<compile_context>
chip_gen: v5e
topology: v5e:2x2
jax: 0.10.0
libtpu: 0.0.40
codegen_flags: <defaults>
</compile_context>

<pallas_src>
import math

import jax
import jax.numpy as jnp
from jax.experimental import pallas as pl
from jax.experimental.pallas import tpu as pltpu


# ----------------------------------------------------------------------------
# Pallas kernel: (M,Kp) @ (Kp,N) bf16 -> f32 acc, fused bias / residual / ReLU
# ----------------------------------------------------------------------------
def _make_kernel(apply_relu: bool, has_residual: bool):
    def kernel(*refs):
        if has_residual:
            a_ref, b_ref, bias_ref, res_ref, o_ref = refs
        else:
            a_ref, b_ref, bias_ref, o_ref = refs
        acc = jnp.dot(a_ref[...], b_ref[...], preferred_element_type=jnp.float32)
        out = acc + bias_ref[...]                 # BN scale already folded into B
        if has_residual:
            out = out + res_ref[...].astype(jnp.float32)
        if apply_relu:
            out = jnp.maximum(out, 0.0)
        o_ref[...] = out.astype(o_ref.dtype)

    return kernel


def _pick_tm(M):
    """Largest multiple-of-8 divisor of M up to 512; prefer >=2 grid steps."""
    cap = min(M, 512)
    best = None
    for t in range(cap - cap % 8, 7, -8):
        if M % t == 0:
            best = t
            break
    if best is None:
        return M  # fall back to a single full block (M not a multiple of 8)
    # Prefer >=2 grid steps so v7x's second TensorCore is not idle.
    if M // best == 1 and M >= 16 and (M // 2) % 8 == 0:
        best = M // 2
    return best


def matmul_bias_act(a, b, bias, *, relu=False, residual=None,
                    out_dtype=jnp.bfloat16):
    """a: (M, Kp) bf16, b: (Kp, N) bf16, bias: (1, N) f32,
    residual: (M, N) bf16 or None.  Returns (M, N) out_dtype."""
    M, K = a.shape
    _, N = b.shape

    # Pad M up to a multiple of 8 so we always get clean sublane-aligned tiles.
    Mp = ((M + 7) // 8) * 8
    if Mp != M:
        a = jnp.pad(a, ((0, Mp - M), (0, 0)))
        if residual is not None:
            residual = jnp.pad(residual, ((0, Mp - M), (0, 0)))

    tm = _pick_tm(Mp)
    grid = (Mp // tm,)

    in_specs = [
        pl.BlockSpec((tm, K), lambda i: (i, 0)),   # A tile (bf16)
        pl.BlockSpec((K, N), lambda i: (0, 0)),    # full B, resident (bf16)
        pl.BlockSpec((1, N), lambda i: (0, 0)),    # bias (f32)
    ]
    args = [a, b, bias]
    if residual is not None:
        in_specs.append(pl.BlockSpec((tm, N), lambda i: (i, 0)))
        args.append(residual)

    # VMEM budget: double-buffered A / out / residual + resident B + slack,
    # capped at 64 MiB so the same config compiles on v7x.
    out_bytes = jnp.dtype(out_dtype).itemsize
    vmem = (2 * tm * K * 2 + 2 * K * N * 2 + 2 * tm * N * out_bytes
            + 2 * N * 4 + (2 * tm * N * 2 if residual is not None else 0)
            + (4 << 20))
    vmem = min(max(vmem, 8 << 20), 64 << 20)

    kernel = _make_kernel(relu, residual is not None)

    out = pl.pallas_call(
        kernel,
        out_shape=jax.ShapeDtypeStruct((Mp, N), out_dtype),
        grid=grid,
        in_specs=in_specs,
        out_specs=pl.BlockSpec((tm, N), lambda i: (i, 0)),
        compiler_params=pltpu.CompilerParams(
            dimension_semantics=("parallel",),
            vmem_limit_bytes=int(vmem),
        ),
    )(*args)
    if Mp != M:
        out = out[:M]
    return out


# ----------------------------------------------------------------------------
# Convolution = im2col (plain JAX glue, bf16) + Pallas matmul kernel
# ----------------------------------------------------------------------------
def _im2col(x, kh, kw, stride, pad):
    """x: (N, H, W, C) -> patches (N*OH*OW, kh*kw*C), plus OH, OW."""
    n, h, w, c = x.shape
    xp = jnp.pad(x, ((0, 0), (pad, pad), (pad, pad), (0, 0)))
    oh = (h + 2 * pad - kh) // stride + 1
    ow = (w + 2 * pad - kw) // stride + 1
    cols = []
    for i in range(kh):
        for j in range(kw):
            cols.append(xp[:, i:i + stride * oh:stride, j:j + stride * ow:stride, :])
    patches = jnp.concatenate(cols, axis=-1)          # (N, OH, OW, kh*kw*C)
    return patches.reshape(n * oh * ow, kh * kw * c), oh, ow


def conv_bn(x_nhwc, w_oihw, stride, pad, scale, bias, *, relu=False,
            residual=None, out_dtype=jnp.bfloat16):
    """Conv2d (bias=False) + BatchNorm (folded) + optional residual + ReLU."""
    cout, cin, kh, kw = w_oihw.shape
    patches, oh, ow = _im2col(x_nhwc.astype(jnp.bfloat16), kh, kw, stride, pad)

    K = kh * kw * cin
    Kp = ((K + 127) // 128) * 128                      # lane-align contraction dim

    # Weight matrix in im2col column order (kh, kw, cin), BN scale folded in.
    wm = jnp.transpose(w_oihw, (2, 3, 1, 0)).reshape(K, cout)
    wm = wm * scale.reshape(1, cout)
    if Kp != K:
        patches = jnp.pad(patches, ((0, 0), (0, Kp - K)))
        wm = jnp.pad(wm, ((0, Kp - K), (0, 0)))
    wm = wm.astype(jnp.bfloat16)

    res_flat = None
    if residual is not None:
        res_flat = residual.reshape(patches.shape[0], cout).astype(jnp.bfloat16)

    out = matmul_bias_act(patches, wm,
                          bias.reshape(1, cout).astype(jnp.float32),
                          relu=relu, residual=res_flat, out_dtype=out_dtype)
    return out.reshape(x_nhwc.shape[0], oh, ow, cout)


# ----------------------------------------------------------------------------
# Parameter construction (deterministic, matches _init_params semantics)
# ----------------------------------------------------------------------------
_BN_EPS = 1e-5


def _kaiming_conv(key, cin, cout, k):
    # kaiming_normal_, mode='fan_out', nonlinearity='relu'
    std = math.sqrt(2.0 / (cout * k * k))
    return jax.random.normal(key, (cout, cin, k, k), jnp.float32) * std


def _bn_scale_bias(cout):
    gamma = jnp.ones((cout,), jnp.float32)
    beta = jnp.zeros((cout,), jnp.float32)
    mean = jnp.zeros((cout,), jnp.float32)
    var = jnp.ones((cout,), jnp.float32)
    scale = gamma / jnp.sqrt(var + _BN_EPS)
    bias = beta - mean * scale
    return scale.reshape(1, cout), bias.reshape(1, cout)


def _make_block_params(key, cin, cout, subsample):
    k1, k2, kd = jax.random.split(key, 3)
    # NOTE: no traced boolean is stored; "wd" key presence encodes `subsample`
    # statically in the pytree structure (jit-safe Python `if`).
    p = {
        "w1": _kaiming_conv(k1, cin, cout, 3),
        "w2": _kaiming_conv(k2, cout, cout, 3),
    }
    p["s1"], p["b1"] = _bn_scale_bias(cout)
    p["s2"], p["b2"] = _bn_scale_bias(cout)
    if subsample:
        p["wd"] = _kaiming_conv(kd, cin, cout, 1)
        p["sd"], p["bd"] = _bn_scale_bias(cout)
    return p


def make_encoder_params(key, in_channels):
    keys = jax.random.split(key, 7)
    params = {
        "w0": _kaiming_conv(keys[0], in_channels, 64, 7),
        "blocks": [
            _make_block_params(keys[1], 64, 64, False),
            _make_block_params(keys[2], 64, 64, False),
            _make_block_params(keys[3], 64, 128, True),
            _make_block_params(keys[4], 128, 128, False),
            _make_block_params(keys[5], 128, 256, True),
            _make_block_params(keys[6], 256, 256, False),
        ],
    }
    params["s0"], params["b0"] = _bn_scale_bias(64)
    return params


# ----------------------------------------------------------------------------
# Forward pass
# ----------------------------------------------------------------------------
def _resnet_block_enc(x, p):
    subsample = "wd" in p            # static (pytree-key) decision, jit-safe
    stride = 2 if subsample else 1
    z = conv_bn(x, p["w1"], stride, 1, p["s1"], p["b1"], relu=True)
    if subsample:
        skip = conv_bn(x, p["wd"], 2, 0, p["sd"], p["bd"], relu=False)
    else:
        skip = x
    # fused epilogue: relu( BN(conv2(z)) + skip )
    return conv_bn(z, p["w2"], 1, 1, p["s2"], p["b2"], relu=True, residual=skip)


def resnet_encoder_forward(params, x_nchw):
    x = jnp.transpose(x_nchw, (0, 2, 3, 1)).astype(jnp.bfloat16)  # NCHW -> NHWC bf16
    # layer_0: conv7x7 s2 p3 + BN + ReLU
    x = conv_bn(x, params["w0"], 2, 3, params["s0"], params["b0"], relu=True)
    # layer_1 .. layer_3
    for p in params["blocks"]:
        x = _resnet_block_enc(x, p)
    return jnp.transpose(x, (0, 3, 1, 2)).astype(jnp.float32)     # NHWC -> NCHW f32


# ----------------------------------------------------------------------------
if __name__ == "__main__":
    key = jax.random.PRNGKey(0)
    k_param, k_x = jax.random.split(key)

    in_channels = 4
    x = jax.random.normal(k_x, (2, in_channels, 16, 16), jnp.float32)

    params = make_encoder_params(k_param, in_channels)

    fwd = jax.jit(resnet_encoder_forward)
    out = fwd(params, x)
    out = jax.block_until_ready(out)

    assert out.shape == (2, 256, 2, 2), out.shape
    assert out.dtype == jnp.float32
    assert bool(jnp.all(jnp.isfinite(out)))
    print("KERNEL_OK")
</pallas_src>

<mosaic_0001>
module attributes {stable_mosaic.version = 11 : i64} {
  func.func @kernel(%arg0: i32, %arg1: memref<64x256xbf16, #tpu.memory_space<vmem>>, %arg2: memref<256x64xbf16, #tpu.memory_space<vmem>>, %arg3: memref<1x64xf32, #tpu.memory_space<vmem>>, %arg4: memref<64x64xbf16, #tpu.memory_space<vmem>>) attributes {dimension_semantics = [#tpu.dimension_semantics<parallel>], iteration_bounds = array<i64: 2>, scalar_prefetch = 0 : i64, scratch_operands = 0 : i64, tpu.core_type = #tpu.core_type<tc>, window_params = [{transform_indices = @transform_0, window_bounds = array<i64: 64, 256>}, {pipeline_mode = #tpu.pipeline_mode<synchronous>, transform_indices = @transform_1, window_bounds = array<i64: 256, 64>}, {pipeline_mode = #tpu.pipeline_mode<synchronous>, transform_indices = @transform_2, window_bounds = array<i64: 1, 64>}, {transform_indices = @transform_3, window_bounds = array<i64: 64, 64>}]} {
    %c0 = arith.constant 0 : index
    %c0_0 = arith.constant 0 : index
    %0 = vector.load %arg1[%c0, %c0_0] : memref<64x256xbf16, #tpu.memory_space<vmem>>, vector<64x256xbf16>
    %c0_1 = arith.constant 0 : index
    %c0_2 = arith.constant 0 : index
    %1 = vector.load %arg2[%c0_1, %c0_2] : memref<256x64xbf16, #tpu.memory_space<vmem>>, vector<256x64xbf16>
    %cst = arith.constant dense<0.000000e+00> : vector<64x64xf32>
    %2 = tpu.matmul %0, %1, %cst {dimension_numbers = #tpu.dot_dimension_numbers<[1], [0], [0], [1], [0, 0, 1, 1], [], []>} : vector<64x256xbf16>, vector<256x64xbf16>, vector<64x64xf32> -> vector<64x64xf32>
    %c0_3 = arith.constant 0 : index
    %c0_4 = arith.constant 0 : index
    %3 = vector.load %arg3[%c0_3, %c0_4] : memref<1x64xf32, #tpu.memory_space<vmem>>, vector<1x64xf32>
    %4 = vector.broadcast %3 : vector<1x64xf32> to vector<64x64xf32>
    %5 = arith.addf %2, %4 : vector<64x64xf32>
    %cst_5 = arith.constant 0.000000e+00 : f32
    %6 = vector.broadcast %cst_5 : f32 to vector<64x64xf32>
    %7 = arith.maximumf %5, %6 : vector<64x64xf32>
    %8 = arith.truncf %7 : vector<64x64xf32> to vector<64x64xbf16>
    %c0_6 = arith.constant 0 : index
    %c0_7 = arith.constant 0 : index
    %9 = vector.load %arg4[%c0_6, %c0_7] : memref<64x64xbf16, #tpu.memory_space<vmem>>, vector<64x64xbf16>
    tpu.vector_store %arg4[%c0_6, %c0_7], %8 {strides = array<i32>} : memref<64x64xbf16, #tpu.memory_space<vmem>>, vector<64x64xbf16>,
    return
  }
  func.func @transform_0(%arg0: i32) -> (i32, i32) {
    %c0_i32 = arith.constant 0 : i32
    %c0_i32_0 = arith.constant 0 : i32
    return %arg0, %c0_i32 : i32, i32
  }
  func.func @transform_1(%arg0: i32) -> (i32, i32) {
    %c0_i32 = arith.constant 0 : i32
    %c0_i32_0 = arith.constant 0 : i32
    %c0_i32_1 = arith.constant 0 : i32
    return %c0_i32, %c0_i32_0 : i32, i32
  }
  func.func @transform_2(%arg0: i32) -> (i32, i32) {
    %c0_i32 = arith.constant 0 : i32
    %c0_i32_0 = arith.constant 0 : i32
    %c0_i32_1 = arith.constant 0 : i32
    return %c0_i32, %c0_i32_0 : i32, i32
  }
  func.func @transform_3(%arg0: i32) -> (i32, i32) {
    %c0_i32 = arith.constant 0 : i32
    %c0_i32_0 = arith.constant 0 : i32
    return %arg0, %c0_i32 : i32, i32
  }
}

module attributes {stable_mosaic.version = 11 : i64} {
  func.func @kernel(%arg0: i32, %arg1: memref<64x640xbf16, #tpu.memory_space<vmem>>, %arg2: memref<640x64xbf16, #tpu.memory_space<vmem>>, %arg3: memref<1x64xf32, #tpu.memory_space<vmem>>, %arg4: memref<64x64xbf16, #tpu.memory_space<vmem>>, %arg5: memref<64x64xbf16, #tpu.memory_space<vmem>>) attributes {dimension_semantics = [#tpu.dimension_semantics<parallel>], iteration_bounds = array<i64: 2>, scalar_prefetch = 0 : i64, scratch_operands = 0 : i64, tpu.core_type = #tpu.core_type<tc>, window_params = [{transform_indices = @transform_0, window_bounds = array<i64: 64, 640>}, {pipeline_mode = #tpu.pipeline_mode<synchronous>, transform_indices = @transform_1, window_bounds = array<i64: 640, 64>}, {pipeline_mode = #tpu.pipeline_mode<synchronous>, transform_indices = @transform_2, window_bounds = array<i64: 1, 64>}, {transform_indices = @transform_3, window_bounds = array<i64: 64, 64>}, {transform_indices = @transform_4, window_bounds = array<i64: 64, 64>}]} {
    %c0 = arith.constant 0 : index
    %c0_0 = arith.constant 0 : index
    %0 = vector.load %arg1[%c0, %c0_0] : memref<64x640xbf16, #tpu.memory_space<vmem>>, vector<64x640xbf16>
    %c0_1 = arith.constant 0 : index
    %c0_2 = arith.constant 0 : index
    %1 = vector.load %arg2[%c0_1, %c0_2] : memref<640x64xbf16, #tpu.memory_space<vmem>>, vector<640x64xbf16>
    %cst = arith.constant dense<0.000000e+00> : vector<64x64xf32>
    %2 = tpu.matmul %0, %1, %cst {dimension_numbers = #tpu.dot_dimension_numbers<[1], [0], [0], [1], [0, 0, 1, 1], [], []>} : vector<64x640xbf16>, vector<640x64xbf16>, vector<64x64xf32> -> vector<64x64xf32>
    %c0_3 = arith.constant 0 : index
    %c0_4 = arith.constant 0 : index
    %3 = vector.load %arg3[%c0_3, %c0_4] : memref<1x64xf32, #tpu.memory_space<vmem>>, vector<1x64xf32>
    %4 = vector.broadcast %3 : vector<1x64xf32> to vector<64x64xf32>
    %5 = arith.addf %2, %4 : vector<64x64xf32>
    %c0_5 = arith.constant 0 : index
    %c0_6 = arith.constant 0 : index
    %6 = vector.load %arg4[%c0_5, %c0_6] : memref<64x64xbf16, #tpu.memory_space<vmem>>, vector<64x64xbf16>
    %7 = arith.extf %6 : vector<64x64xbf16> to vector<64x64xf32>
    %8 = arith.addf %5, %7 : vector<64x64xf32>
    %cst_7 = arith.constant 0.000000e+00 : f32
    %9 = vector.broadcast %cst_7 : f32 to vector<64x64xf32>
    %10 = arith.maximumf %8, %9 : vector<64x64xf32>
    %11 = arith.truncf %10 : vector<64x64xf32> to vector<64x64xbf16>
    %c0_8 = arith.constant 0 : index
    %c0_9 = arith.constant 0 : index
    %12 = vector.load %arg5[%c0_8, %c0_9] : memref<64x64xbf16, #tpu.memory_space<vmem>>, vector<64x64xbf16>
    tpu.vector_store %arg5[%c0_8, %c0_9], %11 {strides = array<i32>} : memref<64x64xbf16, #tpu.memory_space<vmem>>, vector<64x64xbf16>,
    return
  }
  func.func @transform_0(%arg0: i32) -> (i32, i32) {
    %c0_i32 = arith.constant 0 : i32
    %c0_i32_0 = arith.constant 0 : i32
    return %arg0, %c0_i32 : i32, i32
  }
  func.func @transform_1(%arg0: i32) -> (i32, i32) {
    %c0_i32 = arith.constant 0 : i32
    %c0_i32_0 = arith.constant 0 : i32
    %c0_i32_1 = arith.constant 0 : i32
    return %c0_i32, %c0_i32_0 : i32, i32
  }
  func.func @transform_2(%arg0: i32) -> (i32, i32) {
    %c0_i32 = arith.constant 0 : i32
    %c0_i32_0 = arith.constant 0 : i32
    %c0_i32_1 = arith.constant 0 : i32
    return %c0_i32, %c0_i32_0 : i32, i32
  }
  func.func @transform_3(%arg0: i32) -> (i32, i32) {
    %c0_i32 = arith.constant 0 : i32
    %c0_i32_0 = arith.constant 0 : i32
    return %arg0, %c0_i32 : i32, i32
  }
  func.func @transform_4(%arg0: i32) -> (i32, i32) {
    %c0_i32 = arith.constant 0 : i32
    %c0_i32_0 = arith.constant 0 : i32
    return %arg0, %c0_i32 : i32, i32
  }
}

module attributes {stable_mosaic.version = 11 : i64} {
  func.func @kernel(%arg0: i32, %arg1: memref<64x640xbf16, #tpu.memory_space<vmem>>, %arg2: memref<640x64xbf16, #tpu.memory_space<vmem>>, %arg3: memref<1x64xf32, #tpu.memory_space<vmem>>, %arg4: memref<64x64xbf16, #tpu.memory_space<vmem>>) attributes {dimension_semantics = [#tpu.dimension_semantics<parallel>], iteration_bounds = array<i64: 2>, scalar_prefetch = 0 : i64, scratch_operands = 0 : i64, tpu.core_type = #tpu.core_type<tc>, window_params = [{transform_indices = @transform_0, window_bounds = array<i64: 64, 640>}, {pipeline_mode = #tpu.pipeline_mode<synchronous>, transform_indices = @transform_1, window_bounds = array<i64: 640, 64>}, {pipeline_mode = #tpu.pipeline_mode<synchronous>, transform_indices = @transform_2, window_bounds = array<i64: 1, 64>}, {transform_indices = @transform_3, window_bounds = array<i64: 64, 64>}]} {
    %c0 = arith.constant 0 : index
    %c0_0 = arith.constant 0 : index
    %0 = vector.load %arg1[%c0, %c0_0] : memref<64x640xbf16, #tpu.memory_space<vmem>>, vector<64x640xbf16>
    %c0_1 = arith.constant 0 : index
    %c0_2 = arith.constant 0 : index
    %1 = vector.load %arg2[%c0_1, %c0_2] : memref<640x64xbf16, #tpu.memory_space<vmem>>, vector<640x64xbf16>
    %cst = arith.constant dense<0.000000e+00> : vector<64x64xf32>
    %2 = tpu.matmul %0, %1, %cst {dimension_numbers = #tpu.dot_dimension_numbers<[1], [0], [0], [1], [0, 0, 1, 1], [], []>} : vector<64x640xbf16>, vector<640x64xbf16>, vector<64x64xf32> -> vector<64x64xf32>
    %c0_3 = arith.constant 0 : index
    %c0_4 = arith.constant 0 : index
    %3 = vector.load %arg3[%c0_3, %c0_4] : memref<1x64xf32, #tpu.memory_space<vmem>>, vector<1x64xf32>
    %4 = vector.broadcast %3 : vector<1x64xf32> to vector<64x64xf32>
    %5 = arith.addf %2, %4 : vector<64x64xf32>
    %cst_5 = arith.constant 0.000000e+00 : f32
    %6 = vector.broadcast %cst_5 : f32 to vector<64x64xf32>
    %7 = arith.maximumf %5, %6 : vector<64x64xf32>
    %8 = arith.truncf %7 : vector<64x64xf32> to vector<64x64xbf16>
    %c0_6 = arith.constant 0 : index
    %c0_7 = arith.constant 0 : index
    %9 = vector.load %arg4[%c0_6, %c0_7] : memref<64x64xbf16, #tpu.memory_space<vmem>>, vector<64x64xbf16>
    tpu.vector_store %arg4[%c0_6, %c0_7], %8 {strides = array<i32>} : memref<64x64xbf16, #tpu.memory_space<vmem>>, vector<64x64xbf16>,
    return
  }
  func.func @transform_0(%arg0: i32) -> (i32, i32) {
    %c0_i32 = arith.constant 0 : i32
    %c0_i32_0 = arith.constant 0 : i32
    return %arg0, %c0_i32 : i32, i32
  }
  func.func @transform_1(%arg0: i32) -> (i32, i32) {
    %c0_i32 = arith.constant 0 : i32
    %c0_i32_0 = arith.constant 0 : i32
    %c0_i32_1 = arith.constant 0 : i32
    return %c0_i32, %c0_i32_0 : i32, i32
  }
  func.func @transform_2(%arg0: i32) -> (i32, i32) {
    %c0_i32 = arith.constant 0 : i32
    %c0_i32_0 = arith.constant 0 : i32
    %c0_i32_1 = arith.constant 0 : i32
    return %c0_i32, %c0_i32_0 : i32, i32
  }
  func.func @transform_3(%arg0: i32) -> (i32, i32) {
    %c0_i32 = arith.constant 0 : i32
    %c0_i32_0 = arith.constant 0 : i32
    return %arg0, %c0_i32 : i32, i32
  }
}

module attributes {stable_mosaic.version = 11 : i64} {
  func.func @kernel(%arg0: i32, %arg1: memref<16x128xbf16, #tpu.memory_space<vmem>>, %arg2: memref<128x128xbf16, #tpu.memory_space<vmem>>, %arg3: memref<1x128xf32, #tpu.memory_space<vmem>>, %arg4: memref<16x128xbf16, #tpu.memory_space<vmem>>) attributes {dimension_semantics = [#tpu.dimension_semantics<parallel>], iteration_bounds = array<i64: 2>, scalar_prefetch = 0 : i64, scratch_operands = 0 : i64, tpu.core_type = #tpu.core_type<tc>, window_params = [{transform_indices = @transform_0, window_bounds = array<i64: 16, 128>}, {pipeline_mode = #tpu.pipeline_mode<synchronous>, transform_indices = @transform_1, window_bounds = array<i64: 128, 128>}, {pipeline_mode = #tpu.pipeline_mode<synchronous>, transform_indices = @transform_2, window_bounds = array<i64: 1, 128>}, {transform_indices = @transform_3, window_bounds = array<i64: 16, 128>}]} {
    %c0 = arith.constant 0 : index
    %c0_0 = arith.constant 0 : index
    %0 = vector.load %arg1[%c0, %c0_0] : memref<16x128xbf16, #tpu.memory_space<vmem>>, vector<16x128xbf16>
    %c0_1 = arith.constant 0 : index
    %c0_2 = arith.constant 0 : index
    %1 = vector.load %arg2[%c0_1, %c0_2] : memref<128x128xbf16, #tpu.memory_space<vmem>>, vector<128x128xbf16>
    %cst = arith.constant dense<0.000000e+00> : vector<16x128xf32>
    %2 = tpu.matmul %0, %1, %cst {dimension_numbers = #tpu.dot_dimension_numbers<[1], [0], [0], [1], [0, 0, 1, 1], [], []>} : vector<16x128xbf16>, vector<128x128xbf16>, vector<16x128xf32> -> vector<16x128xf32>
    %c0_3 = arith.constant 0 : index
    %c0_4 = arith.constant 0 : index
    %3 = vector.load %arg3[%c0_3, %c0_4] : memref<1x128xf32, #tpu.memory_space<vmem>>, vector<1x128xf32>
    %4 = vector.broadcast %3 : vector<1x128xf32> to vector<16x128xf32>
    %5 = arith.addf %2, %4 : vector<16x128xf32>
    %6 = arith.truncf %5 : vector<16x128xf32> to vector<16x128xbf16>
    %c0_5 = arith.constant 0 : index
    %c0_6 = arith.constant 0 : index
    %7 = vector.load %arg4[%c0_5, %c0_6] : memref<16x128xbf16, #tpu.memory_space<vmem>>, vector<16x128xbf16>
    tpu.vector_store %arg4[%c0_5, %c0_6], %6 {strides = array<i32>} : memref<16x128xbf16, #tpu.memory_space<vmem>>, vector<16x128xbf16>,
    return
  }
  func.func @transform_0(%arg0: i32) -> (i32, i32) {
    %c0_i32 = arith.constant 0 : i32
    %c0_i32_0 = arith.constant 0 : i32
    return %arg0, %c0_i32 : i32, i32
  }
  func.func @transform_1(%arg0: i32) -> (i32, i32) {
    %c0_i32 = arith.constant 0 : i32
    %c0_i32_0 = arith.constant 0 : i32
    %c0_i32_1 = arith.constant 0 : i32
    return %c0_i32, %c0_i32_0 : i32, i32
  }
  func.func @transform_2(%arg0: i32) -> (i32, i32) {
    %c0_i32 = arith.constant 0 : i32
    %c0_i32_0 = arith.constant 0 : i32
    %c0_i32_1 = arith.constant 0 : i32
    return %c0_i32, %c0_i32_0 : i32, i32
  }
  func.func @transform_3(%arg0: i32) -> (i32, i32) {
    %c0_i32 = arith.constant 0 : i32
    %c0_i32_0 = arith.constant 0 : i32
    return %arg0, %c0_i32 : i32, i32
  }
}

module attributes {stable_mosaic.version = 11 : i64} {
  func.func @kernel(%arg0: i32, %arg1: memref<16x640xbf16, #tpu.memory_space<vmem>>, %arg2: memref<640x128xbf16, #tpu.memory_space<vmem>>, %arg3: memref<1x128xf32, #tpu.memory_space<vmem>>, %arg4: memref<16x128xbf16, #tpu.memory_space<vmem>>) attributes {dimension_semantics = [#tpu.dimension_semantics<parallel>], iteration_bounds = array<i64: 2>, scalar_prefetch = 0 : i64, scratch_operands = 0 : i64, tpu.core_type = #tpu.core_type<tc>, window_params = [{transform_indices = @transform_0, window_bounds = array<i64: 16, 640>}, {pipeline_mode = #tpu.pipeline_mode<synchronous>, transform_indices = @transform_1, window_bounds = array<i64: 640, 128>}, {pipeline_mode = #tpu.pipeline_mode<synchronous>, transform_indices = @transform_2, window_bounds = array<i64: 1, 128>}, {transform_indices = @transform_3, window_bounds = array<i64: 16, 128>}]} {
    %c0 = arith.constant 0 : index
    %c0_0 = arith.constant 0 : index
    %0 = vector.load %arg1[%c0, %c0_0] : memref<16x640xbf16, #tpu.memory_space<vmem>>, vector<16x640xbf16>
    %c0_1 = arith.constant 0 : index
    %c0_2 = arith.constant 0 : index
    %1 = vector.load %arg2[%c0_1, %c0_2] : memref<640x128xbf16, #tpu.memory_space<vmem>>, vector<640x128xbf16>
    %cst = arith.constant dense<0.000000e+00> : vector<16x128xf32>
    %2 = tpu.matmul %0, %1, %cst {dimension_numbers = #tpu.dot_dimension_numbers<[1], [0], [0], [1], [0, 0, 1, 1], [], []>} : vector<16x640xbf16>, vector<640x128xbf16>, vector<16x128xf32> -> vector<16x128xf32>
    %c0_3 = arith.constant 0 : index
    %c0_4 = arith.constant 0 : index
    %3 = vector.load %arg3[%c0_3, %c0_4] : memref<1x128xf32, #tpu.memory_space<vmem>>, vector<1x128xf32>
    %4 = vector.broadcast %3 : vector<1x128xf32> to vector<16x128xf32>
    %5 = arith.addf %2, %4 : vector<16x128xf32>
    %cst_5 = arith.constant 0.000000e+00 : f32
    %6 = vector.broadcast %cst_5 : f32 to vector<16x128xf32>
    %7 = arith.maximumf %5, %6 : vector<16x128xf32>
    %8 = arith.truncf %7 : vector<16x128xf32> to vector<16x128xbf16>
    %c0_6 = arith.constant 0 : index
    %c0_7 = arith.constant 0 : index
    %9 = vector.load %arg4[%c0_6, %c0_7] : memref<16x128xbf16, #tpu.memory_space<vmem>>, vector<16x128xbf16>
    tpu.vector_store %arg4[%c0_6, %c0_7], %8 {strides = array<i32>} : memref<16x128xbf16, #tpu.memory_space<vmem>>, vector<16x128xbf16>,
    return
  }
  func.func @transform_0(%arg0: i32) -> (i32, i32) {
    %c0_i32 = arith.constant 0 : i32
    %c0_i32_0 = arith.constant 0 : i32
    return %arg0, %c0_i32 : i32, i32
  }
  func.func @transform_1(%arg0: i32) -> (i32, i32) {
    %c0_i32 = arith.constant 0 : i32
    %c0_i32_0 = arith.constant 0 : i32
    %c0_i32_1 = arith.constant 0 : i32
    return %c0_i32, %c0_i32_0 : i32, i32
  }
  func.func @transform_2(%arg0: i32) -> (i32, i32) {
    %c0_i32 = arith.constant 0 : i32
    %c0_i32_0 = arith.constant 0 : i32
    %c0_i32_1 = arith.constant 0 : i32
    return %c0_i32, %c0_i32_0 : i32, i32
  }
  func.func @transform_3(%arg0: i32) -> (i32, i32) {
    %c0_i32 = arith.constant 0 : i32
    %c0_i32_0 = arith.constant 0 : i32
    return %arg0, %c0_i32 : i32, i32
  }
}

module attributes {stable_mosaic.version = 11 : i64} {
  func.func @kernel(%arg0: i32, %arg1: memref<16x1152xbf16, #tpu.memory_space<vmem>>, %arg2: memref<1152x128xbf16, #tpu.memory_space<vmem>>, %arg3: memref<1x128xf32, #tpu.memory_space<vmem>>, %arg4: memref<16x128xbf16, #tpu.memory_space<vmem>>, %arg5: memref<16x128xbf16, #tpu.memory_space<vmem>>) attributes {dimension_semantics = [#tpu.dimension_semantics<parallel>], iteration_bounds = array<i64: 2>, scalar_prefetch = 0 : i64, scratch_operands = 0 : i64, tpu.core_type = #tpu.core_type<tc>, window_params = [{transform_indices = @transform_0, window_bounds = array<i64: 16, 1152>}, {pipeline_mode = #tpu.pipeline_mode<synchronous>, transform_indices = @transform_1, window_bounds = array<i64: 1152, 128>}, {pipeline_mode = #tpu.pipeline_mode<synchronous>, transform_indices = @transform_2, window_bounds = array<i64: 1, 128>}, {transform_indices = @transform_3, window_bounds = array<i64: 16, 128>}, {transform_indices = @transform_4, window_bounds = array<i64: 16, 128>}]} {
    %c0 = arith.constant 0 : index
    %c0_0 = arith.constant 0 : index
    %0 = vector.load %arg1[%c0, %c0_0] : memref<16x1152xbf16, #tpu.memory_space<vmem>>, vector<16x1152xbf16>
    %c0_1 = arith.constant 0 : index
    %c0_2 = arith.constant 0 : index
    %1 = vector.load %arg2[%c0_1, %c0_2] : memref<1152x128xbf16, #tpu.memory_space<vmem>>, vector<1152x128xbf16>
    %cst = arith.constant dense<0.000000e+00> : vector<16x128xf32>
    %2 = tpu.matmul %0, %1, %cst {dimension_numbers = #tpu.dot_dimension_numbers<[1], [0], [0], [1], [0, 0, 1, 1], [], []>} : vector<16x1152xbf16>, vector<1152x128xbf16>, vector<16x128xf32> -> vector<16x128xf32>
    %c0_3 = arith.constant 0 : index
    %c0_4 = arith.constant 0 : index
    %3 = vector.load %arg3[%c0_3, %c0_4] : memref<1x128xf32, #tpu.memory_space<vmem>>, vector<1x128xf32>
    %4 = vector.broadcast %3 : vector<1x128xf32> to vector<16x128xf32>
    %5 = arith.addf %2, %4 : vector<16x128xf32>
    %c0_5 = arith.constant 0 : index
    %c0_6 = arith.constant 0 : index
    %6 = vector.load %arg4[%c0_5, %c0_6] : memref<16x128xbf16, #tpu.memory_space<vmem>>, vector<16x128xbf16>
    %7 = arith.extf %6 : vector<16x128xbf16> to vector<16x128xf32>
    %8 = arith.addf %5, %7 : vector<16x128xf32>
    %cst_7 = arith.constant 0.000000e+00 : f32
    %9 = vector.broadcast %cst_7 : f32 to vector<16x128xf32>
    %10 = arith.maximumf %8, %9 : vector<16x128xf32>
    %11 = arith.truncf %10 : vector<16x128xf32> to vector<16x128xbf16>
    %c0_8 = arith.constant 0 : index
    %c0_9 = arith.constant 0 : index
    %12 = vector.load %arg5[%c0_8, %c0_9] : memref<16x128xbf16, #tpu.memory_space<vmem>>, vector<16x128xbf16>
    tpu.vector_store %arg5[%c0_8, %c0_9], %11 {strides = array<i32>} : memref<16x128xbf16, #tpu.memory_space<vmem>>, vector<16x128xbf16>,
    return
  }
  func.func @transform_0(%arg0: i32) -> (i32, i32) {
    %c0_i32 = arith.constant 0 : i32
    %c0_i32_0 = arith.constant 0 : i32
    return %arg0, %c0_i32 : i32, i32
  }
  func.func @transform_1(%arg0: i32) -> (i32, i32) {
    %c0_i32 = arith.constant 0 : i32
    %c0_i32_0 = arith.constant 0 : i32
    %c0_i32_1 = arith.constant 0 : i32
    return %c0_i32, %c0_i32_0 : i32, i32
  }
  func.func @transform_2(%arg0: i32) -> (i32, i32) {
    %c0_i32 = arith.constant 0 : i32
    %c0_i32_0 = arith.constant 0 : i32
    %c0_i32_1 = arith.constant 0 : i32
    return %c0_i32, %c0_i32_0 : i32, i32
  }
  func.func @transform_3(%arg0: i32) -> (i32, i32) {
    %c0_i32 = arith.constant 0 : i32
    %c0_i32_0 = arith.constant 0 : i32
    return %arg0, %c0_i32 : i32, i32
  }
  func.func @transform_4(%arg0: i32) -> (i32, i32) {
    %c0_i32 = arith.constant 0 : i32
    %c0_i32_0 = arith.constant 0 : i32
    return %arg0, %c0_i32 : i32, i32
  }
}

module attributes {stable_mosaic.version = 11 : i64} {
  func.func @kernel(%arg0: i32, %arg1: memref<16x1152xbf16, #tpu.memory_space<vmem>>, %arg2: memref<1152x128xbf16, #tpu.memory_space<vmem>>, %arg3: memref<1x128xf32, #tpu.memory_space<vmem>>, %arg4: memref<16x128xbf16, #tpu.memory_space<vmem>>) attributes {dimension_semantics = [#tpu.dimension_semantics<parallel>], iteration_bounds = array<i64: 2>, scalar_prefetch = 0 : i64, scratch_operands = 0 : i64, tpu.core_type = #tpu.core_type<tc>, window_params = [{transform_indices = @transform_0, window_bounds = array<i64: 16, 1152>}, {pipeline_mode = #tpu.pipeline_mode<synchronous>, transform_indices = @transform_1, window_bounds = array<i64: 1152, 128>}, {pipeline_mode = #tpu.pipeline_mode<synchronous>, transform_indices = @transform_2, window_bounds = array<i64: 1, 128>}, {transform_indices = @transform_3, window_bounds = array<i64: 16, 128>}]} {
    %c0 = arith.constant 0 : index
    %c0_0 = arith.constant 0 : index
    %0 = vector.load %arg1[%c0, %c0_0] : memref<16x1152xbf16, #tpu.memory_space<vmem>>, vector<16x1152xbf16>
    %c0_1 = arith.constant 0 : index
    %c0_2 = arith.constant 0 : index
    %1 = vector.load %arg2[%c0_1, %c0_2] : memref<1152x128xbf16, #tpu.memory_space<vmem>>, vector<1152x128xbf16>
    %cst = arith.constant dense<0.000000e+00> : vector<16x128xf32>
    %2 = tpu.matmul %0, %1, %cst {dimension_numbers = #tpu.dot_dimension_numbers<[1], [0], [0], [1], [0, 0, 1, 1], [], []>} : vector<16x1152xbf16>, vector<1152x128xbf16>, vector<16x128xf32> -> vector<16x128xf32>
    %c0_3 = arith.constant 0 : index
    %c0_4 = arith.constant 0 : index
    %3 = vector.load %arg3[%c0_3, %c0_4] : memref<1x128xf32, #tpu.memory_space<vmem>>, vector<1x128xf32>
    %4 = vector.broadcast %3 : vector<1x128xf32> to vector<16x128xf32>
    %5 = arith.addf %2, %4 : vector<16x128xf32>
    %cst_5 = arith.constant 0.000000e+00 : f32
    %6 = vector.broadcast %cst_5 : f32 to vector<16x128xf32>
    %7 = arith.maximumf %5, %6 : vector<16x128xf32>
    %8 = arith.truncf %7 : vector<16x128xf32> to vector<16x128xbf16>
    %c0_6 = arith.constant 0 : index
    %c0_7 = arith.constant 0 : index
    %9 = vector.load %arg4[%c0_6, %c0_7] : memref<16x128xbf16, #tpu.memory_space<vmem>>, vector<16x128xbf16>
    tpu.vector_store %arg4[%c0_6, %c0_7], %8 {strides = array<i32>} : memref<16x128xbf16, #tpu.memory_space<vmem>>, vector<16x128xbf16>,
    return
  }
  func.func @transform_0(%arg0: i32) -> (i32, i32) {
    %c0_i32 = arith.constant 0 : i32
    %c0_i32_0 = arith.constant 0 : i32
    return %arg0, %c0_i32 : i32, i32
  }
  func.func @transform_1(%arg0: i32) -> (i32, i32) {
    %c0_i32 = arith.constant 0 : i32
    %c0_i32_0 = arith.constant 0 : i32
    %c0_i32_1 = arith.constant 0 : i32
    return %c0_i32, %c0_i32_0 : i32, i32
  }
  func.func @transform_2(%arg0: i32) -> (i32, i32) {
    %c0_i32 = arith.constant 0 : i32
    %c0_i32_0 = arith.constant 0 : i32
    %c0_i32_1 = arith.constant 0 : i32
    return %c0_i32, %c0_i32_0 : i32, i32
  }
  func.func @transform_3(%arg0: i32) -> (i32, i32) {
    %c0_i32 = arith.constant 0 : i32
    %c0_i32_0 = arith.constant 0 : i32
    return %arg0, %c0_i32 : i32, i32
  }
}

module attributes {stable_mosaic.version = 11 : i64} {
  func.func @kernel(%arg0: i32, %arg1: memref<8x128xbf16, #tpu.memory_space<vmem>>, %arg2: memref<128x256xbf16, #tpu.memory_space<vmem>>, %arg3: memref<1x256xf32, #tpu.memory_space<vmem>>, %arg4: memref<8x256xbf16, #tpu.memory_space<vmem>>) attributes {dimension_semantics = [#tpu.dimension_semantics<parallel>], iteration_bounds = array<i64: 1>, scalar_prefetch = 0 : i64, scratch_operands = 0 : i64, tpu.core_type = #tpu.core_type<tc>, window_params = [{transform_indices = @transform_0, window_bounds = array<i64: 8, 128>}, {pipeline_mode = #tpu.pipeline_mode<synchronous>, transform_indices = @transform_1, window_bounds = array<i64: 128, 256>}, {pipeline_mode = #tpu.pipeline_mode<synchronous>, transform_indices = @transform_2, window_bounds = array<i64: 1, 256>}, {transform_indices = @transform_3, window_bounds = array<i64: 8, 256>}]} {
    %c0 = arith.constant 0 : index
    %c0_0 = arith.constant 0 : index
    %0 = vector.load %arg1[%c0, %c0_0] : memref<8x128xbf16, #tpu.memory_space<vmem>>, vector<8x128xbf16>
    %c0_1 = arith.constant 0 : index
    %c0_2 = arith.constant 0 : index
    %1 = vector.load %arg2[%c0_1, %c0_2] : memref<128x256xbf16, #tpu.memory_space<vmem>>, vector<128x256xbf16>
    %cst = arith.constant dense<0.000000e+00> : vector<8x256xf32>
    %2 = tpu.matmul %0, %1, %cst {dimension_numbers = #tpu.dot_dimension_numbers<[1], [0], [0], [1], [0, 0, 1, 1], [], []>} : vector<8x128xbf16>, vector<128x256xbf16>, vector<8x256xf32> -> vector<8x256xf32>
    %c0_3 = arith.constant 0 : index
    %c0_4 = arith.constant 0 : index
    %3 = vector.load %arg3[%c0_3, %c0_4] : memref<1x256xf32, #tpu.memory_space<vmem>>, vector<1x256xf32>
    %4 = vector.broadcast %3 : vector<1x256xf32> to vector<8x256xf32>
    %5 = arith.addf %2, %4 : vector<8x256xf32>
    %6 = arith.truncf %5 : vector<8x256xf32> to vector<8x256xbf16>
    %c0_5 = arith.constant 0 : index
    %c0_6 = arith.constant 0 : index
    %7 = vector.load %arg4[%c0_5, %c0_6] : memref<8x256xbf16, #tpu.memory_space<vmem>>, vector<8x256xbf16>
    tpu.vector_store %arg4[%c0_5, %c0_6], %6 {strides = array<i32>} : memref<8x256xbf16, #tpu.memory_space<vmem>>, vector<8x256xbf16>,
    return
  }
  func.func @transform_0(%arg0: i32) -> (i32, i32) {
    %c0_i32 = arith.constant 0 : i32
    %c0_i32_0 = arith.constant 0 : i32
    return %arg0, %c0_i32 : i32, i32
  }
  func.func @transform_1(%arg0: i32) -> (i32, i32) {
    %c0_i32 = arith.constant 0 : i32
    %c0_i32_0 = arith.constant 0 : i32
    %c0_i32_1 = arith.constant 0 : i32
    return %c0_i32, %c0_i32_0 : i32, i32
  }
  func.func @transform_2(%arg0: i32) -> (i32, i32) {
    %c0_i32 = arith.constant 0 : i32
    %c0_i32_0 = arith.constant 0 : i32
    %c0_i32_1 = arith.constant 0 : i32
    return %c0_i32, %c0_i32_0 : i32, i32
  }
  func.func @transform_3(%arg0: i32) -> (i32, i32) {
    %c0_i32 = arith.constant 0 : i32
    %c0_i32_0 = arith.constant 0 : i32
    return %arg0, %c0_i32 : i32, i32
  }
}

module attributes {stable_mosaic.version = 11 : i64} {
  func.func @kernel(%arg0: i32, %arg1: memref<8x1152xbf16, #tpu.memory_space<vmem>>, %arg2: memref<1152x256xbf16, #tpu.memory_space<vmem>>, %arg3: memref<1x256xf32, #tpu.memory_space<vmem>>, %arg4: memref<8x256xbf16, #tpu.memory_space<vmem>>) attributes {dimension_semantics = [#tpu.dimension_semantics<parallel>], iteration_bounds = array<i64: 1>, scalar_prefetch = 0 : i64, scratch_operands = 0 : i64, tpu.core_type = #tpu.core_type<tc>, window_params = [{transform_indices = @transform_0, window_bounds = array<i64: 8, 1152>}, {pipeline_mode = #tpu.pipeline_mode<synchronous>, transform_indices = @transform_1, window_bounds = array<i64: 1152, 256>}, {pipeline_mode = #tpu.pipeline_mode<synchronous>, transform_indices = @transform_2, window_bounds = array<i64: 1, 256>}, {transform_indices = @transform_3, window_bounds = array<i64: 8, 256>}]} {
    %c0 = arith.constant 0 : index
    %c0_0 = arith.constant 0 : index
    %0 = vector.load %arg1[%c0, %c0_0] : memref<8x1152xbf16, #tpu.memory_space<vmem>>, vector<8x1152xbf16>
    %c0_1 = arith.constant 0 : index
    %c0_2 = arith.constant 0 : index
    %1 = vector.load %arg2[%c0_1, %c0_2] : memref<1152x256xbf16, #tpu.memory_space<vmem>>, vector<1152x256xbf16>
    %cst = arith.constant dense<0.000000e+00> : vector<8x256xf32>
    %2 = tpu.matmul %0, %1, %cst {dimension_numbers = #tpu.dot_dimension_numbers<[1], [0], [0], [1], [0, 0, 1, 1], [], []>} : vector<8x1152xbf16>, vector<1152x256xbf16>, vector<8x256xf32> -> vector<8x256xf32>
    %c0_3 = arith.constant 0 : index
    %c0_4 = arith.constant 0 : index
    %3 = vector.load %arg3[%c0_3, %c0_4] : memref<1x256xf32, #tpu.memory_space<vmem>>, vector<1x256xf32>
    %4 = vector.broadcast %3 : vector<1x256xf32> to vector<8x256xf32>
    %5 = arith.addf %2, %4 : vector<8x256xf32>
    %cst_5 = arith.constant 0.000000e+00 : f32
    %6 = vector.broadcast %cst_5 : f32 to vector<8x256xf32>
    %7 = arith.maximumf %5, %6 : vector<8x256xf32>
    %8 = arith.truncf %7 : vector<8x256xf32> to vector<8x256xbf16>
    %c0_6 = arith.constant 0 : index
    %c0_7 = arith.constant 0 : index
    %9 = vector.load %arg4[%c0_6, %c0_7] : memref<8x256xbf16, #tpu.memory_space<vmem>>, vector<8x256xbf16>
    tpu.vector_store %arg4[%c0_6, %c0_7], %8 {strides = array<i32>} : memref<8x256xbf16, #tpu.memory_space<vmem>>, vector<8x256xbf16>,
    return
  }
  func.func @transform_0(%arg0: i32) -> (i32, i32) {
    %c0_i32 = arith.constant 0 : i32
    %c0_i32_0 = arith.constant 0 : i32
    return %arg0, %c0_i32 : i32, i32
  }
  func.func @transform_1(%arg0: i32) -> (i32, i32) {
    %c0_i32 = arith.constant 0 : i32
    %c0_i32_0 = arith.constant 0 : i32
    %c0_i32_1 = arith.constant 0 : i32
    return %c0_i32, %c0_i32_0 : i32, i32
  }
  func.func @transform_2(%arg0: i32) -> (i32, i32) {
    %c0_i32 = arith.constant 0 : i32
    %c0_i32_0 = arith.constant 0 : i32
    %c0_i32_1 = arith.constant 0 : i32
    return %c0_i32, %c0_i32_0 : i32, i32
  }
  func.func @transform_3(%arg0: i32) -> (i32, i32) {
    %c0_i32 = arith.constant 0 : i32
    %c0_i32_0 = arith.constant 0 : i32
    return %arg0, %c0_i32 : i32, i32
  }
}

module attributes {stable_mosaic.version = 11 : i64} {
  func.func @kernel(%arg0: i32, %arg1: memref<8x2304xbf16, #tpu.memory_space<vmem>>, %arg2: memref<2304x256xbf16, #tpu.memory_space<vmem>>, %arg3: memref<1x256xf32, #tpu.memory_space<vmem>>, %arg4: memref<8x256xbf16, #tpu.memory_space<vmem>>, %arg5: memref<8x256xbf16, #tpu.memory_space<vmem>>) attributes {dimension_semantics = [#tpu.dimension_semantics<parallel>], iteration_bounds = array<i64: 1>, scalar_prefetch = 0 : i64, scratch_operands = 0 : i64, tpu.core_type = #tpu.core_type<tc>, window_params = [{transform_indices = @transform_0, window_bounds = array<i64: 8, 2304>}, {pipeline_mode = #tpu.pipeline_mode<synchronous>, transform_indices = @transform_1, window_bounds = array<i64: 2304, 256>}, {pipeline_mode = #tpu.pipeline_mode<synchronous>, transform_indices = @transform_2, window_bounds = array<i64: 1, 256>}, {transform_indices = @transform_3, window_bounds = array<i64: 8, 256>}, {transform_indices = @transform_4, window_bounds = array<i64: 8, 256>}]} {
    %c0 = arith.constant 0 : index
    %c0_0 = arith.constant 0 : index
    %0 = vector.load %arg1[%c0, %c0_0] : memref<8x2304xbf16, #tpu.memory_space<vmem>>, vector<8x2304xbf16>
    %c0_1 = arith.constant 0 : index
    %c0_2 = arith.constant 0 : index
    %1 = vector.load %arg2[%c0_1, %c0_2] : memref<2304x256xbf16, #tpu.memory_space<vmem>>, vector<2304x256xbf16>
    %cst = arith.constant dense<0.000000e+00> : vector<8x256xf32>
    %2 = tpu.matmul %0, %1, %cst {dimension_numbers = #tpu.dot_dimension_numbers<[1], [0], [0], [1], [0, 0, 1, 1], [], []>} : vector<8x2304xbf16>, vector<2304x256xbf16>, vector<8x256xf32> -> vector<8x256xf32>
    %c0_3 = arith.constant 0 : index
    %c0_4 = arith.constant 0 : index
    %3 = vector.load %arg3[%c0_3, %c0_4] : memref<1x256xf32, #tpu.memory_space<vmem>>, vector<1x256xf32>
    %4 = vector.broadcast %3 : vector<1x256xf32> to vector<8x256xf32>
    %5 = arith.addf %2, %4 : vector<8x256xf32>
    %c0_5 = arith.constant 0 : index
    %c0_6 = arith.constant 0 : index
    %6 = vector.load %arg4[%c0_5, %c0_6] : memref<8x256xbf16, #tpu.memory_space<vmem>>, vector<8x256xbf16>
    %7 = arith.extf %6 : vector<8x256xbf16> to vector<8x256xf32>
    %8 = arith.addf %5, %7 : vector<8x256xf32>
    %cst_7 = arith.constant 0.000000e+00 : f32
    %9 = vector.broadcast %cst_7 : f32 to vector<8x256xf32>
    %10 = arith.maximumf %8, %9 : vector<8x256xf32>
    %11 = arith.truncf %10 : vector<8x256xf32> to vector<8x256xbf16>
    %c0_8 = arith.constant 0 : index
    %c0_9 = arith.constant 0 : index
    %12 = vector.load %arg5[%c0_8, %c0_9] : memref<8x256xbf16, #tpu.memory_space<vmem>>, vector<8x256xbf16>
    tpu.vector_store %arg5[%c0_8, %c0_9], %11 {strides = array<i32>} : memref<8x256xbf16, #tpu.memory_space<vmem>>, vector<8x256xbf16>,
    return
  }
  func.func @transform_0(%arg0: i32) -> (i32, i32) {
    %c0_i32 = arith.constant 0 : i32
    %c0_i32_0 = arith.constant 0 : i32
    return %arg0, %c0_i32 : i32, i32
  }
  func.func @transform_1(%arg0: i32) -> (i32, i32) {
    %c0_i32 = arith.constant 0 : i32
    %c0_i32_0 = arith.constant 0 : i32
    %c0_i32_1 = arith.constant 0 : i32
    return %c0_i32, %c0_i32_0 : i32, i32
  }
  func.func @transform_2(%arg0: i32) -> (i32, i32) {
    %c0_i32 = arith.constant 0 : i32
    %c0_i32_0 = arith.constant 0 : i32
    %c0_i32_1 = arith.constant 0 : i32
    return %c0_i32, %c0_i32_0 : i32, i32
  }
  func.func @transform_3(%arg0: i32) -> (i32, i32) {
    %c0_i32 = arith.constant 0 : i32
    %c0_i32_0 = arith.constant 0 : i32
    return %arg0, %c0_i32 : i32, i32
  }
  func.func @transform_4(%arg0: i32) -> (i32, i32) {
    %c0_i32 = arith.constant 0 : i32
    %c0_i32_0 = arith.constant 0 : i32
    return %arg0, %c0_i32 : i32, i32
  }
}

module attributes {stable_mosaic.version = 11 : i64} {
  func.func @kernel(%arg0: i32, %arg1: memref<8x2304xbf16, #tpu.memory_space<vmem>>, %arg2: memref<2304x256xbf16, #tpu.memory_space<vmem>>, %arg3: memref<1x256xf32, #tpu.memory_space<vmem>>, %arg4: memref<8x256xbf16, #tpu.memory_space<vmem>>) attributes {dimension_semantics = [#tpu.dimension_semantics<parallel>], iteration_bounds = array<i64: 1>, scalar_prefetch = 0 : i64, scratch_operands = 0 : i64, tpu.core_type = #tpu.core_type<tc>, window_params = [{transform_indices = @transform_0, window_bounds = array<i64: 8, 2304>}, {pipeline_mode = #tpu.pipeline_mode<synchronous>, transform_indices = @transform_1, window_bounds = array<i64: 2304, 256>}, {pipeline_mode = #tpu.pipeline_mode<synchronous>, transform_indices = @transform_2, window_bounds = array<i64: 1, 256>}, {transform_indices = @transform_3, window_bounds = array<i64: 8, 256>}]} {
    %c0 = arith.constant 0 : index
    %c0_0 = arith.constant 0 : index
    %0 = vector.load %arg1[%c0, %c0_0] : memref<8x2304xbf16, #tpu.memory_space<vmem>>, vector<8x2304xbf16>
    %c0_1 = arith.constant 0 : index
    %c0_2 = arith.constant 0 : index
    %1 = vector.load %arg2[%c0_1, %c0_2] : memref<2304x256xbf16, #tpu.memory_space<vmem>>, vector<2304x256xbf16>
    %cst = arith.constant dense<0.000000e+00> : vector<8x256xf32>
    %2 = tpu.matmul %0, %1, %cst {dimension_numbers = #tpu.dot_dimension_numbers<[1], [0], [0], [1], [0, 0, 1, 1], [], []>} : vector<8x2304xbf16>, vector<2304x256xbf16>, vector<8x256xf32> -> vector<8x256xf32>
    %c0_3 = arith.constant 0 : index
    %c0_4 = arith.constant 0 : index
    %3 = vector.load %arg3[%c0_3, %c0_4] : memref<1x256xf32, #tpu.memory_space<vmem>>, vector<1x256xf32>
    %4 = vector.broadcast %3 : vector<1x256xf32> to vector<8x256xf32>
    %5 = arith.addf %2, %4 : vector<8x256xf32>
    %cst_5 = arith.constant 0.000000e+00 : f32
    %6 = vector.broadcast %cst_5 : f32 to vector<8x256xf32>
    %7 = arith.maximumf %5, %6 : vector<8x256xf32>
    %8 = arith.truncf %7 : vector<8x256xf32> to vector<8x256xbf16>
    %c0_6 = arith.constant 0 : index
    %c0_7 = arith.constant 0 : index
    %9 = vector.load %arg4[%c0_6, %c0_7] : memref<8x256xbf16, #tpu.memory_space<vmem>>, vector<8x256xbf16>
    tpu.vector_store %arg4[%c0_6, %c0_7], %8 {strides = array<i32>} : memref<8x256xbf16, #tpu.memory_space<vmem>>, vector<8x256xbf16>,
    return
  }
  func.func @transform_0(%arg0: i32) -> (i32, i32) {
    %c0_i32 = arith.constant 0 : i32
    %c0_i32_0 = arith.constant 0 : i32
    return %arg0, %c0_i32 : i32, i32
  }
  func.func @transform_1(%arg0: i32) -> (i32, i32) {
    %c0_i32 = arith.constant 0 : i32
    %c0_i32_0 = arith.constant 0 : i32
    %c0_i32_1 = arith.constant 0 : i32
    return %c0_i32, %c0_i32_0 : i32, i32
  }
  func.func @transform_2(%arg0: i32) -> (i32, i32) {
    %c0_i32 = arith.constant 0 : i32
    %c0_i32_0 = arith.constant 0 : i32
    %c0_i32_1 = arith.constant 0 : i32
    return %c0_i32, %c0_i32_0 : i32, i32
  }
  func.func @transform_3(%arg0: i32) -> (i32, i32) {
    %c0_i32 = arith.constant 0 : i32
    %c0_i32_0 = arith.constant 0 : i32
    return %arg0, %c0_i32 : i32, i32
  }
}

</mosaic_0001>

<llo_original>
// kernel: resnet_encoder_forward.15
$region0: #{resnet_encoder_forward.15}
  #allocation0 [shape = 'u32[]', space=smem, size = 0x4, offset = 0x4, fixed_abs, tag = 'smem constant byte address 0x4 - core index']
  #allocation1 [shape = 'u32[72,128]{1,0:T(1,128)}', space=vmem, size = 0x9000, scoped, tag = 'internal scratch']
  %s0 = inlined_call_operand.vmem [shape: bf16[128,256], index: 0, kind: input, shape index: {}]
  %s1 = inlined_call_operand.vmem [shape: bf16[256,64], index: 1, kind: input, shape index: {}]
  %s2 = inlined_call_operand.vmem [shape: f32[1,64], index: 2, kind: input, shape index: {}]
  %s3 = inlined_call_operand.vmem [shape: bf16[128,64], index: 3, kind: output, shape index: {}]
  %s4 = sld [smem:[#allocation0]]
  $region45: #{resnet_encoder_forward.15} parent=0
    _
  %s6 = ssub.s32 1, %s4
  %s7 = scalar_select 0, %s6, %s4
  loop: start=0, step=1, limit=4
  $region2: #{resnet_encoder_forward.15} parent=0 // loop_pre_header
    _
  $region3: #{resnet_encoder_forward.15} parent=0 // loop_header
    %s9 = sphi 0, %s13
    %p10 = scmp.ge.s32.totalorder %s9, 4
    %s19 = sphi 0, %s21
    %s22 = sphi 0, %s19
    %s23 = sphi 0, %s22
    %s39 = sphi 0, %s23
    %s43 = sphi 0, %s43
    %s45 = sphi 0, %s43
    %s46 = sphi 0, %s45
    %s60 = sphi 0, %s46
    %s64 = sphi 0, %s64
    %s66 = sphi 0, %s64
    %s67 = sphi 0, %s66
    %s81 = sphi 0, %s67
    %s87 = sphi 0, %s89
    %s90 = sphi 0, %s87
    %s91 = sphi 0, %s90
    %s107 = sphi 0, %s91
  $region4: #{resnet_encoder_forward.15} parent=0 // loop_header_branch
    %12 = sbr.rel (%p10) target = $region8
  $region5: #{resnet_encoder_forward.15} parent=0 // loop_body
    %s14 = ssub.s32 %s9, 1
    %s15 = ssub.s32 %s9, 2
    %s16 = sadd.s32 %s9, 1
    %s17 = ssub.s32 %s9, %s16
    %p18 = scmp.eq.s32.totalorder %s17, 0
    %s20 = sadd.s32 %s19, 1
    %s21 = scalar_select %p18, %s19, %s20
    %p24 = pneg %p18
    %p25 = scmp.eq.s32.totalorder %s9, 1
    %p26 = por %p24, %p25
    %p27 = scmp.ne.s32.totalorder %s19, %s22
    %p28 = scmp.eq.s32.totalorder %s9, 0
    %p29 = por %p27, %p28
    %p30 = scmp.ne.s32.totalorder %s19, %s22
    %p31 = scmp.eq.s32.totalorder %s14, 1
    %p32 = por %p30, %p31
    %p33 = scmp.ne.s32.totalorder %s22, %s23
    %p34 = scmp.eq.s32.totalorder %s14, 0
    %p35 = por %p33, %p34
    %p36 = scmp.ne.s32.totalorder %s22, %s23
    %p37 = scmp.eq.s32.totalorder %s15, 1
    %p38 = por %p36, %p37
    %p40 = scmp.ne.s32.totalorder %s23, %s39
    %p41 = scmp.eq.s32.totalorder %s15, 0
    %p42 = por %p40, %p41
    %s44 = sadd.s32 %s43, 1
    %p47 = scmp.eq.s32.totalorder %s9, 1
    %p48 = scmp.ne.s32.totalorder %s43, %s45
    %p49 = scmp.eq.s32.totalorder %s9, 0
    %p50 = por %p48, %p49
    %p51 = scmp.ne.s32.totalorder %s43, %s45
    %p52 = scmp.eq.s32.totalorder %s14, 1
    %p53 = por %p51, %p52
    %p54 = scmp.ne.s32.totalorder %s45, %s46
    %p55 = scmp.eq.s32.totalorder %s14, 0
    %p56 = por %p54, %p55
    %p57 = scmp.ne.s32.totalorder %s45, %s46
    %p58 = scmp.eq.s32.totalorder %s15, 1
    %p59 = por %p57, %p58
    %p61 = scmp.ne.s32.totalorder %s46, %s60
    %p62 = scmp.eq.s32.totalorder %s15, 0
    %p63 = por %p61, %p62
    %s65 = sadd.s32 %s64, 1
    %p68 = scmp.eq.s32.totalorder %s9, 1
    %p69 = scmp.ne.s32.totalorder %s64, %s66
    %p70 = scmp.eq.s32.totalorder %s9, 0
    %p71 = por %p69, %p70
    %p72 = scmp.ne.s32.totalorder %s64, %s66
    %p73 = scmp.eq.s32.totalorder %s14, 1
    %p74 = por %p72, %p73
    %p75 = scmp.ne.s32.totalorder %s66, %s67
    %p76 = scmp.eq.s32.totalorder %s14, 0
    %p77 = por %p75, %p76
    %p78 = scmp.ne.s32.totalorder %s66, %s67
    %p79 = scmp.eq.s32.totalorder %s15, 1
    %p80 = por %p78, %p79
    %p82 = scmp.ne.s32.totalorder %s67, %s81
    %p83 = scmp.eq.s32.totalorder %s15, 0
    %p84 = por %p82, %p83
    %s85 = ssub.s32 %s9, %s16
    %p86 = scmp.eq.s32.totalorder %s85, 0
    %s88 = sadd.s32 %s87, 1
    %s89 = scalar_select %p86, %s87, %s88
    %p92 = pneg %p86
    %p93 = scmp.eq.s32.totalorder %s9, 1
    %p94 = por %p92, %p93
    %p95 = scmp.ne.s32.totalorder %s87, %s90
    %p96 = scmp.eq.s32.totalorder %s9, 0
    %p97 = por %p95, %p96
    %p98 = scmp.ne.s32.totalorder %s87, %s90
    %p99 = scmp.eq.s32.totalorder %s14, 1
    %p100 = por %p98, %p99
    %p101 = scmp.ne.s32.totalorder %s90, %s91
    %p102 = scmp.eq.s32.totalorder %s14, 0
    %p103 = por %p101, %p102
    %p104 = scmp.ne.s32.totalorder %s90, %s91
    %p105 = scmp.eq.s32.totalorder %s15, 1
    %p106 = por %p104, %p105
    %p108 = scmp.ne.s32.totalorder %s91, %s107
    %p109 = scmp.eq.s32.totalorder %s15, 0
    %p110 = por %p108, %p109
    %p111 = scmp.le.s32.totalorder 1, %s9
    %p112 = scmp.lt.s32.totalorder %s9, 3
    %p113 = pnand %p111, %p112
    %p114 = pneg %p113
    // Predicated region
    $region9: #{resnet_encoder_forward.15} parent=5 // pred_check
      _
    $region10: #{resnet_encoder_forward.15} parent=5 // pred_check_branch
      %116 = sbr.rel (%p113) target = $region12
    $region11: #{resnet_encoder_forward.15} parent=5 // pred_region
      %s117 = ssub.s32 %s9, 1
      // Predicated region
      $region13: #{resnet_encoder_forward.15} parent=11 // pred_check
        %p118 = pneg %p56
      $region14: #{resnet_encoder_forward.15} parent=11 // pred_check_branch
        %120 = sbr.rel (%p118) target = $region16
      $region15: #{resnet_encoder_forward.15} parent=11 // pred_region
        _
      $region16: #{resnet_encoder_forward.15} parent=11 // pred_fallthru
        _
      // Predicated region
      $region17: #{resnet_encoder_forward.15} parent=11 // pred_check
        %p121 = pneg %p77
      $region18: #{resnet_encoder_forward.15} parent=11 // pred_check_branch
        %123 = sbr.rel (%p121) target = $region20
      $region19: #{resnet_encoder_forward.15} parent=11 // pred_region
        _
      $region20: #{resnet_encoder_forward.15} parent=11 // pred_fallthru
        _
    $region12: #{resnet_encoder_forward.15} parent=5 // pred_fallthru
      _
    %p124 = scmp.lt.s32.totalorder %s9, 2
    // Predicated region
    $region21: #{resnet_encoder_forward.15} parent=5 // pred_check
      %p125 = pneg %p124
    $region22: #{resnet_encoder_forward.15} parent=5 // pred_check_branch
      %127 = sbr.rel (%p125) target = $region24
    $region23: #{resnet_encoder_forward.15} parent=5 // pred_region
      // Predicated region
      $region25: #{resnet_encoder_forward.15} parent=23 // pred_check
        %p128 = pneg %p29
      $region26: #{resnet_encoder_forward.15} parent=23 // pred_check_branch
        %130 = sbr.rel (%p128) target = $region28
      $region27: #{resnet_encoder_forward.15} parent=23 // pred_region
        %s131 = smul.u32 8, %s9
        %p132 = scmp.lt.s32.totalorder %s131, 15
        %s133 = scalar_select %p132, %s131, 15
        %s134 = smul.addr %s133, 2
        %s135 = smul.addr %s134, 4
        %s136 = scalar_lea.vmem %s0, %s135
        %s137 = smul.u32 8, %s9
      $region28: #{resnet_encoder_forward.15} parent=23 // pred_fallthru
        _
    $region24: #{resnet_encoder_forward.15} parent=5 // pred_fallthru
      _
    %p138 = scmp.le.s32.totalorder 1, %s9
    %p139 = scmp.lt.s32.totalorder %s9, 3
    %p140 = pnand %p138, %p139
    %p141 = pneg %p140
    // Predicated region
    $region29: #{resnet_encoder_forward.15} parent=5 // pred_check
      _
    $region30: #{resnet_encoder_forward.15} parent=5 // pred_check_branch
      %143 = sbr.rel (%p140) target = $region32
    $region31: #{resnet_encoder_forward.15} parent=5 // pred_region
      %s144 = ssub.s32 %s9, 1
      %s145 = smul.u32 8, %s14
      %p146 = scmp.lt.s32.totalorder %s145, 15
      %s147 = scalar_select %p146, %s145, 15
      %s148 = smul.addr %s147, 2
      %s149 = smul.addr %s148, 4
      %s150 = scalar_lea.vmem %s0, %s149
      %p151 = pneg %p35
      %p152 = pneg %p32
      %p153 = pneg %p56
      %p154 = pneg %p53
      %p155 = pneg %p77
      %p156 = pneg %p74
      %p157 = pneg %p103
      %p158 = pneg %p100
      %s159 = smul.u32 8, %s14
      %p160 = scmp.lt.s32.totalorder %s159, 15
      %s161 = scalar_select %p160, %s159, 15
      %s162 = smul.addr %s161, 4
      %s163 = scalar_lea.vmem %s3, %s162
      %s164 = smul.u32 8, %s14
      %p165 = scmp.lt.s32.totalorder %s164, 15
      %s166 = scalar_select %p165, %s164, 15
      %s167 = smul.addr %s166, 2
      %s168 = smul.addr %s167, 4
      %s169 = scalar_lea.vmem %s0, %s168
      %s170 = smul.u32 8, %s14
      %s171 = smul.u32 8, %s14
      %p172 = scmp.lt.s32.totalorder %s171, 15
      %s173 = scalar_select %p172, %s171, 15
      %s174 = smul.addr %s173, 4
      %s175 = scalar_lea.vmem %s3, %s174
      %s176 = smul.u32 8, %s14
      %v177 = vld [vmem:[%s169] sm:$0xff]
      %v178 = vld [vmem:[%s169 + $0x8] sm:$0xff]
      %v179 = vld [vmem:[%s169 + $0x10] sm:$0xff]
      %v180 = vld [vmem:[%s169 + $0x18] sm:$0xff]
      %v181 = vld [vmem:[%s169 + $0x20] sm:$0xff]
      %v182 = vld [vmem:[%s169 + $0x28] sm:$0xff]
      %v183 = vld [vmem:[%s169 + $0x30] sm:$0xff]
      %v184 = vld [vmem:[%s169 + $0x38] sm:$0xff]
      %v185 = vld [vmem:[%s1] sm:$0xf]
      %v186 = vld [vmem:[%s1 + $0x4] sm:$0xf]
      %v187 = vld [vmem:[%s1 + $0x8] sm:$0xf]
      %v188 = vld [vmem:[%s1 + $0xc] sm:$0xf]
      %v189 = vld [vmem:[%s1 + $0x10] sm:$0xf]
      %v190 = vld [vmem:[%s1 + $0x14] sm:$0xf]
      %v191 = vld [vmem:[%s1 + $0x18] sm:$0xf]
      %v192 = vld [vmem:[%s1 + $0x1c] sm:$0xf]
      %v193 = vld [vmem:[%s1 + $0x20] sm:$0xf]
      %v194 = vld [vmem:[%s1 + $0x24] sm:$0xf]
      %v195 = vld [vmem:[%s1 + $0x28] sm:$0xf]
      %v196 = vld [vmem:[%s1 + $0x2c] sm:$0xf]
      %v197 = vld [vmem:[%s1 + $0x30] sm:$0xf]
      %v198 = vld [vmem:[%s1 + $0x34] sm:$0xf]
      %v199 = vld [vmem:[%s1 + $0x38] sm:$0xf]
      %v200 = vld [vmem:[%s1 + $0x3c] sm:$0xf]
      %v201 = vld [vmem:[%s1 + $0x40] sm:$0xf]
      %v202 = vld [vmem:[%s1 + $0x44] sm:$0xf]
      %v203 = vld [vmem:[%s1 + $0x48] sm:$0xf]
      %v204 = vld [vmem:[%s1 + $0x4c] sm:$0xf]
      %v205 = vld [vmem:[%s1 + $0x50] sm:$0xf]
      %v206 = vld [vmem:[%s1 + $0x54] sm:$0xf]
      %v207 = vld [vmem:[%s1 + $0x58] sm:$0xf]
      %v208 = vld [vmem:[%s1 + $0x5c] sm:$0xf]
      %v209 = vld [vmem:[%s1 + $0x60] sm:$0xf]
      %v210 = vld [vmem:[%s1 + $0x64] sm:$0xf]
      %v211 = vld [vmem:[%s1 + $0x68] sm:$0xf]
      %v212 = vld [vmem:[%s1 + $0x6c] sm:$0xf]
      %v213 = vld [vmem:[%s1 + $0x70] sm:$0xf]
      %v214 = vld [vmem:[%s1 + $0x74] sm:$0xf]
      %v215 = vld [vmem:[%s1 + $0x78] sm:$0xf]
      %v216 = vld [vmem:[%s1 + $0x7c] sm:$0xf]
      %v217 = vld [vmem:[%s2] sm:$0x1]
      %v219 = vperm.slane %v217, 0
      %v229 = vunpack.c.l.b16 %v177
      %v230 = vunpack.c.h.b16 %v177
      %v231 = vunpack.c.l.b16 %v178
      %v232 = vunpack.c.h.b16 %v178
      %v233 = vunpack.c.l.b16 %v179
      %v234 = vunpack.c.h.b16 %v179
      %v235 = vunpack.c.l.b16 %v180
      %v236 = vunpack.c.h.b16 %v180
      %v237 = vunpack.c.l.b16 %v181
      %v238 = vunpack.c.h.b16 %v181
      %v239 = vunpack.c.l.b16 %v182
      %v240 = vunpack.c.h.b16 %v182
      %v241 = vunpack.c.l.b16 %v183
      %v242 = vunpack.c.h.b16 %v183
      %v243 = vunpack.c.l.b16 %v184
      %v244 = vunpack.c.h.b16 %v184
      %v245 = vpack.c.b16 %v231, %v229
      %v246 = vpack.c.b16 %v232, %v230
      %v247 = vpack.c.b16 %v235, %v233
      %v248 = vpack.c.b16 %v236, %v234
      %v249 = vpack.c.b16 %v239, %v237
      %v250 = vpack.c.b16 %v240, %v238
      %v251 = vpack.c.b16 %v243, %v241
      %v252 = vpack.c.b16 %v244, %v242
      %v293 = vunpack.c.l.b16 %v185
      %v294 = vunpack.c.l.b16 %v186
      %v295 = vunpack.c.l.b16 %v187
      %v296 = vunpack.c.l.b16 %v188
      %v297 = vunpack.c.l.b16 %v189
      %v298 = vunpack.c.l.b16 %v190
      %v299 = vunpack.c.l.b16 %v191
      %v300 = vunpack.c.l.b16 %v192
      %v301 = vunpack.c.l.b16 %v193
      %v302 = vunpack.c.l.b16 %v194
      %v303 = vunpack.c.l.b16 %v195
      %v304 = vunpack.c.l.b16 %v196
      %v305 = vunpack.c.l.b16 %v197
      %v306 = vunpack.c.l.b16 %v198
      %v307 = vunpack.c.l.b16 %v199
      %v308 = vunpack.c.l.b16 %v200
      %v309 = vunpack.c.l.b16 %v201
      %v310 = vunpack.c.l.b16 %v202
      %v311 = vunpack.c.l.b16 %v203
      %v312 = vunpack.c.l.b16 %v204
      %v313 = vunpack.c.l.b16 %v205
      %v314 = vunpack.c.l.b16 %v206
      %v315 = vunpack.c.l.b16 %v207
      %v316 = vunpack.c.l.b16 %v208
      %v317 = vunpack.c.l.b16 %v209
      %v318 = vunpack.c.l.b16 %v210
      %v319 = vunpack.c.l.b16 %v211
      %v320 = vunpack.c.l.b16 %v212
      %v321 = vunpack.c.l.b16 %v213
      %v322 = vunpack.c.l.b16 %v214
      %v323 = vunpack.c.l.b16 %v215
      %v324 = vunpack.c.l.b16 %v216
      %v325 = vpack.c.b16 %v294, %v293
      %v326 = vpack.c.b16 %v296, %v295
      %v327 = vpack.c.b16 %v298, %v297
      %v328 = vpack.c.b16 %v300, %v299
      %v329 = vpack.c.b16 %v302, %v301
      %v330 = vpack.c.b16 %v304, %v303
      %v331 = vpack.c.b16 %v306, %v305
      %v332 = vpack.c.b16 %v308, %v307
      %v333 = vpack.c.b16 %v310, %v309
      %v334 = vpack.c.b16 %v312, %v311
      %v335 = vpack.c.b16 %v314, %v313
      %v336 = vpack.c.b16 %v316, %v315
      %v337 = vpack.c.b16 %v318, %v317
      %v338 = vpack.c.b16 %v320, %v319
      %v339 = vpack.c.b16 %v322, %v321
      %v340 = vpack.c.b16 %v324, %v323
      %357 = vmatpush.bf16.msra.mxu0 %v332
      %358 = vmatpush.bf16.msra.mxu0 %v331
      %359 = vmatpush.bf16.msra.mxu0 %v330
      %360 = vmatpush.bf16.msra.mxu0 %v329
      %361 = vmatpush.bf16.msra.mxu0 %v328
      %362 = vmatpush.bf16.msra.mxu0 %v327
      %363 = vmatpush.bf16.msra.mxu0 %v326
      %364 = vmatpush.bf16.msra.mxu0 %v325
      %365 = vmatmul.bf16.gmra.mxu0 %v245
      %v366 = vpop.f32.mrf.mxu0
      %v367 = vadd.f32 %v219, %v366
      %v368 = vpop.f32.mrf.mxu0
      %v369 = vadd.f32 %v219, %v368
      %370 = vmatmul.bf16.gmra.mxu0 %v247
      %v371 = vpop.f32.mrf.mxu0
      %v372 = vadd.f32 %v219, %v371
      %v373 = vpop.f32.mrf.mxu0
      %v374 = vadd.f32 %v219, %v373
      %375 = vmatmul.bf16.gmra.mxu0 %v249
      %v376 = vpop.f32.mrf.mxu0
      %v377 = vadd.f32 %v219, %v376
      %v378 = vpop.f32.mrf.mxu0
      %v379 = vadd.f32 %v219, %v378
      %380 = vmatmul.bf16.gmra.mxu0 %v251
      %v381 = vpop.f32.mrf.mxu0
      %v382 = vadd.f32 %v219, %v381
      %v383 = vpop.f32.mrf.mxu0
      %v384 = vadd.f32 %v219, %v383
      %385 = vdwg.mxu0
      %386 = vmatpush.bf16.msra.mxu0 %v340
      %387 = vmatpush.bf16.msra.mxu0 %v339
      %388 = vmatpush.bf16.msra.mxu0 %v338
      %389 = vmatpush.bf16.msra.mxu0 %v337
      %390 = vmatpush.bf16.msra.mxu0 %v336
      %391 = vmatpush.bf16.msra.mxu0 %v335
      %392 = vmatpush.bf16.msra.mxu0 %v334
      %393 = vmatpush.bf16.msra.mxu0 %v333
      %394 = vmatmul.bf16.gmra.mxu0 %v246
      %v395 = vpop.f32.mrf.mxu0
      %v396 = vadd.f32 %v367, %v395
      %v397 = vpop.f32.mrf.mxu0
      %v398 = vadd.f32 %v369, %v397
      %399 = vmatmul.bf16.gmra.mxu0 %v248
      %v400 = vpop.f32.mrf.mxu0
      %v401 = vadd.f32 %v372, %v400
      %v402 = vpop.f32.mrf.mxu0
      %v403 = vadd.f32 %v374, %v402
      %404 = vmatmul.bf16.gmra.mxu0 %v250
      %v405 = vpop.f32.mrf.mxu0
      %v406 = vadd.f32 %v377, %v405
      %v407 = vpop.f32.mrf.mxu0
      %v408 = vadd.f32 %v379, %v407
      %409 = vmatmul.bf16.gmra.mxu0 %v252
      %v410 = vpop.f32.mrf.mxu0
      %v411 = vadd.f32 %v382, %v410
      %v412 = vpop.f32.mrf.mxu0
      %v413 = vadd.f32 %v384, %v412
      %414 = vdwg.mxu0
      %v415 = vmax.f32 %v396, 0.0
      %v416 = vmax.f32 %v398, 0.0
      %v417 = vmax.f32 %v401, 0.0
      %v418 = vmax.f32 %v403, 0.0
      %v419 = vmax.f32 %v406, 0.0
      %v420 = vmax.f32 %v408, 0.0
      %v421 = vmax.f32 %v411, 0.0
      %v422 = vmax.f32 %v413, 0.0
      %v423 = vpack.c.bf16 %v415, %v415
      %v424 = vpack.c.bf16 %v416, %v416
      %v425 = vpack.c.bf16 %v417, %v417
      %v426 = vpack.c.bf16 %v418, %v418
      %v427 = vpack.c.bf16 %v419, %v419
      %v428 = vpack.c.bf16 %v420, %v420
      %v429 = vpack.c.bf16 %v421, %v421
      %v430 = vpack.c.bf16 %v422, %v422
      %vm431 = vcmask 519168
      %432 = vst.msk [vmem:[%s175] sm:$0xf] %vm431, %v423
      %433 = vst.msk [vmem:[%s175 + $0x4] sm:$0xf] %vm431, %v424
      %434 = vst.msk [vmem:[%s175 + $0x8] sm:$0xf] %vm431, %v425
      %435 = vst.msk [vmem:[%s175 + $0xc] sm:$0xf] %vm431, %v426
      %436 = vst.msk [vmem:[%s175 + $0x10] sm:$0xf] %vm431, %v427
      %437 = vst.msk [vmem:[%s175 + $0x14] sm:$0xf] %vm431, %v428
      %438 = vst.msk [vmem:[%s175 + $0x18] sm:$0xf] %vm431, %v429
      %439 = vst.msk [vmem:[%s175 + $0x1c] sm:$0xf] %vm431, %v430
      %s440 = smul.u32 8, %s14
      %p441 = scmp.lt.s32.totalorder %s440, 15
      %s442 = scalar_select %p441, %s440, 15
      %s443 = smul.addr %s442, 4
      %s444 = scalar_lea.vmem %s3, %s443
      // Predicated region
      $region33: #{resnet_encoder_forward.15} parent=31 // pred_check
        %p445 = pneg %p100
      $region34: #{resnet_encoder_forward.15} parent=31 // pred_check_branch
        %447 = sbr.rel (%p445) target = $region36
      $region35: #{resnet_encoder_forward.15} parent=31 // pred_region
        %s448 = smul.u32 8, %s14
      $region36: #{resnet_encoder_forward.15} parent=31 // pred_fallthru
        _
    $region32: #{resnet_encoder_forward.15} parent=5 // pred_fallthru
      _
    %p449 = scmp.le.s32.totalorder 2, %s9
    // Predicated region
    $region37: #{resnet_encoder_forward.15} parent=5 // pred_check
      %p450 = pneg %p449
    $region38: #{resnet_encoder_forward.15} parent=5 // pred_check_branch
      %452 = sbr.rel (%p450) target = $region40
    $region39: #{resnet_encoder_forward.15} parent=5 // pred_region
      %s453 = ssub.s32 %s9, 2
      // Predicated region
      $region41: #{resnet_encoder_forward.15} parent=39 // pred_check
        %p454 = pneg %p106
      $region42: #{resnet_encoder_forward.15} parent=39 // pred_check_branch
        %456 = sbr.rel (%p454) target = $region44
      $region43: #{resnet_encoder_forward.15} parent=39 // pred_region
        %s457 = smul.u32 8, %s15
        %p458 = scmp.lt.s32.totalorder %s457, 15
        %s459 = scalar_select %p458, %s457, 15
        %s460 = smul.addr %s459, 4
        %s461 = scalar_lea.vmem %s3, %s460
      $region44: #{resnet_encoder_forward.15} parent=39 // pred_fallthru
        _
    $region40: #{resnet_encoder_forward.15} parent=5 // pred_fallthru
      _
  $region6: #{resnet_encoder_forward.15} parent=0 // loop_footer
    %s13 = sadd.s32 1, %s9
  $region7: #{resnet_encoder_forward.15} parent=0 // loop_footer_branch
    %8 = sbr.rel target = $region3
  $region8: #{resnet_encoder_forward.15} parent=0 // loop_exit
    _

// kernel: resnet_encoder_forward.21
$region0: #{resnet_encoder_forward.21}
  #allocation0 [shape = 'u32[]', space=smem, size = 0x4, offset = 0x4, fixed_abs, tag = 'smem constant byte address 0x4 - core index']
  #allocation1 [shape = 'u32[72,128]{1,0:T(1,128)}', space=vmem, size = 0x9000, scoped, tag = 'internal scratch']
  %s0 = inlined_call_operand.vmem [shape: bf16[32,128], index: 0, kind: input, shape index: {}]
  %s1 = inlined_call_operand.vmem [shape: bf16[128,128], index: 1, kind: input, shape index: {}]
  %s2 = inlined_call_operand.vmem [shape: f32[1,128], index: 2, kind: input, shape index: {}]
  %s3 = inlined_call_operand.vmem [shape: bf16[32,128], index: 3, kind: output, shape index: {}]
  %s4 = sld [smem:[#allocation0]]
  $region45: #{resnet_encoder_forward.21} parent=0
    _
  %s6 = ssub.s32 1, %s4
  %s7 = scalar_select 0, %s6, %s4
  loop: start=0, step=1, limit=4
  $region2: #{resnet_encoder_forward.21} parent=0 // loop_pre_header
    _
  $region3: #{resnet_encoder_forward.21} parent=0 // loop_header
    %s9 = sphi 0, %s13
    %p10 = scmp.ge.s32.totalorder %s9, 4
    %s19 = sphi 0, %s21
    %s22 = sphi 0, %s19
    %s23 = sphi 0, %s22
    %s39 = sphi 0, %s23
    %s43 = sphi 0, %s43
    %s45 = sphi 0, %s43
    %s46 = sphi 0, %s45
    %s60 = sphi 0, %s46
    %s64 = sphi 0, %s64
    %s66 = sphi 0, %s64
    %s67 = sphi 0, %s66
    %s81 = sphi 0, %s67
    %s87 = sphi 0, %s89
    %s90 = sphi 0, %s87
    %s91 = sphi 0, %s90
    %s107 = sphi 0, %s91
  $region4: #{resnet_encoder_forward.21} parent=0 // loop_header_branch
    %12 = sbr.rel (%p10) target = $region8
  $region5: #{resnet_encoder_forward.21} parent=0 // loop_body
    %s14 = ssub.s32 %s9, 1
    %s15 = ssub.s32 %s9, 2
    %s16 = sadd.s32 %s9, 1
    %s17 = ssub.s32 %s9, %s16
    %p18 = scmp.eq.s32.totalorder %s17, 0
    %s20 = sadd.s32 %s19, 1
    %s21 = scalar_select %p18, %s19, %s20
    %p24 = pneg %p18
    %p25 = scmp.eq.s32.totalorder %s9, 1
    %p26 = por %p24, %p25
    %p27 = scmp.ne.s32.totalorder %s19, %s22
    %p28 = scmp.eq.s32.totalorder %s9, 0
    %p29 = por %p27, %p28
    %p30 = scmp.ne.s32.totalorder %s19, %s22
    %p31 = scmp.eq.s32.totalorder %s14, 1
    %p32 = por %p30, %p31
    %p33 = scmp.ne.s32.totalorder %s22, %s23
    %p34 = scmp.eq.s32.totalorder %s14, 0
    %p35 = por %p33, %p34
    %p36 = scmp.ne.s32.totalorder %s22, %s23
    %p37 = scmp.eq.s32.totalorder %s15, 1
    %p38 = por %p36, %p37
    %p40 = scmp.ne.s32.totalorder %s23, %s39
    %p41 = scmp.eq.s32.totalorder %s15, 0
    %p42 = por %p40, %p41
    %s44 = sadd.s32 %s43, 1
    %p47 = scmp.eq.s32.totalorder %s9, 1
    %p48 = scmp.ne.s32.totalorder %s43, %s45
    %p49 = scmp.eq.s32.totalorder %s9, 0
    %p50 = por %p48, %p49
    %p51 = scmp.ne.s32.totalorder %s43, %s45
    %p52 = scmp.eq.s32.totalorder %s14, 1
    %p53 = por %p51, %p52
    %p54 = scmp.ne.s32.totalorder %s45, %s46
    %p55 = scmp.eq.s32.totalorder %s14, 0
    %p56 = por %p54, %p55
    %p57 = scmp.ne.s32.totalorder %s45, %s46
    %p58 = scmp.eq.s32.totalorder %s15, 1
    %p59 = por %p57, %p58
    %p61 = scmp.ne.s32.totalorder %s46, %s60
    %p62 = scmp.eq.s32.totalorder %s15, 0
    %p63 = por %p61, %p62
    %s65 = sadd.s32 %s64, 1
    %p68 = scmp.eq.s32.totalorder %s9, 1
    %p69 = scmp.ne.s32.totalorder %s64, %s66
    %p70 = scmp.eq.s32.totalorder %s9, 0
    %p71 = por %p69, %p70
    %p72 = scmp.ne.s32.totalorder %s64, %s66
    %p73 = scmp.eq.s32.totalorder %s14, 1
    %p74 = por %p72, %p73
    %p75 = scmp.ne.s32.totalorder %s66, %s67
    %p76 = scmp.eq.s32.totalorder %s14, 0
    %p77 = por %p75, %p76
    %p78 = scmp.ne.s32.totalorder %s66, %s67
    %p79 = scmp.eq.s32.totalorder %s15, 1
    %p80 = por %p78, %p79
    %p82 = scmp.ne.s32.totalorder %s67, %s81
    %p83 = scmp.eq.s32.totalorder %s15, 0
    %p84 = por %p82, %p83
    %s85 = ssub.s32 %s9, %s16
    %p86 = scmp.eq.s32.totalorder %s85, 0
    %s88 = sadd.s32 %s87, 1
    %s89 = scalar_select %p86, %s87, %s88
    %p92 = pneg %p86
    %p93 = scmp.eq.s32.totalorder %s9, 1
    %p94 = por %p92, %p93
    %p95 = scmp.ne.s32.totalorder %s87, %s90
    %p96 = scmp.eq.s32.totalorder %s9, 0
    %p97 = por %p95, %p96
    %p98 = scmp.ne.s32.totalorder %s87, %s90
    %p99 = scmp.eq.s32.totalorder %s14, 1
    %p100 = por %p98, %p99
    %p101 = scmp.ne.s32.totalorder %s90, %s91
    %p102 = scmp.eq.s32.totalorder %s14, 0
    %p103 = por %p101, %p102
    %p104 = scmp.ne.s32.totalorder %s90, %s91
    %p105 = scmp.eq.s32.totalorder %s15, 1
    %p106 = por %p104, %p105
    %p108 = scmp.ne.s32.totalorder %s91, %s107
    %p109 = scmp.eq.s32.totalorder %s15, 0
    %p110 = por %p108, %p109
    %p111 = scmp.le.s32.totalorder 1, %s9
    %p112 = scmp.lt.s32.totalorder %s9, 3
    %p113 = pnand %p111, %p112
    %p114 = pneg %p113
    // Predicated region
    $region9: #{resnet_encoder_forward.21} parent=5 // pred_check
      _
    $region10: #{resnet_encoder_forward.21} parent=5 // pred_check_branch
      %116 = sbr.rel (%p113) target = $region12
    $region11: #{resnet_encoder_forward.21} parent=5 // pred_region
      %s117 = ssub.s32 %s9, 1
      // Predicated region
      $region13: #{resnet_encoder_forward.21} parent=11 // pred_check
        %p118 = pneg %p56
      $region14: #{resnet_encoder_forward.21} parent=11 // pred_check_branch
        %120 = sbr.rel (%p118) target = $region16
      $region15: #{resnet_encoder_forward.21} parent=11 // pred_region
        _
      $region16: #{resnet_encoder_forward.21} parent=11 // pred_fallthru
        _
      // Predicated region
      $region17: #{resnet_encoder_forward.21} parent=11 // pred_check
        %p121 = pneg %p77
      $region18: #{resnet_encoder_forward.21} parent=11 // pred_check_branch
        %123 = sbr.rel (%p121) target = $region20
      $region19: #{resnet_encoder_forward.21} parent=11 // pred_region
        _
      $region20: #{resnet_encoder_forward.21} parent=11 // pred_fallthru
        _
    $region12: #{resnet_encoder_forward.21} parent=5 // pred_fallthru
      _
    %p124 = scmp.lt.s32.totalorder %s9, 2
    // Predicated region
    $region21: #{resnet_encoder_forward.21} parent=5 // pred_check
      %p125 = pneg %p124
    $region22: #{resnet_encoder_forward.21} parent=5 // pred_check_branch
      %127 = sbr.rel (%p125) target = $region24
    $region23: #{resnet_encoder_forward.21} parent=5 // pred_region
      // Predicated region
      $region25: #{resnet_encoder_forward.21} parent=23 // pred_check
        %p128 = pneg %p29
      $region26: #{resnet_encoder_forward.21} parent=23 // pred_check_branch
        %130 = sbr.rel (%p128) target = $region28
      $region27: #{resnet_encoder_forward.21} parent=23 // pred_region
        %s131 = smul.u32 2, %s9
        %p132 = scmp.lt.s32.totalorder %s131, 3
        %s133 = scalar_select %p132, %s131, 3
        %s134 = smul.addr %s133, 4
        %s135 = scalar_lea.vmem %s0, %s134
        %s136 = smul.u32 2, %s9
      $region28: #{resnet_encoder_forward.21} parent=23 // pred_fallthru
        _
    $region24: #{resnet_encoder_forward.21} parent=5 // pred_fallthru
      _
    %p137 = scmp.le.s32.totalorder 1, %s9
    %p138 = scmp.lt.s32.totalorder %s9, 3
    %p139 = pnand %p137, %p138
    %p140 = pneg %p139
    // Predicated region
    $region29: #{resnet_encoder_forward.21} parent=5 // pred_check
      _
    $region30: #{resnet_encoder_forward.21} parent=5 // pred_check_branch
      %142 = sbr.rel (%p139) target = $region32
    $region31: #{resnet_encoder_forward.21} parent=5 // pred_region
      %s143 = ssub.s32 %s9, 1
      %s144 = smul.u32 2, %s14
      %p145 = scmp.lt.s32.totalorder %s144, 3
      %s146 = scalar_select %p145, %s144, 3
      %s147 = smul.addr %s146, 4
      %s148 = scalar_lea.vmem %s0, %s147
      %p149 = pneg %p35
      %p150 = pneg %p32
      %p151 = pneg %p56
      %p152 = pneg %p53
      %p153 = pneg %p77
      %p154 = pneg %p74
      %p155 = pneg %p103
      %p156 = pneg %p100
      %s157 = smul.u32 2, %s14
      %p158 = scmp.lt.s32.totalorder %s157, 3
      %s159 = scalar_select %p158, %s157, 3
      %s160 = smul.addr %s159, 4
      %s161 = scalar_lea.vmem %s3, %s160
      %s162 = smul.u32 2, %s14
      %p163 = scmp.lt.s32.totalorder %s162, 3
      %s164 = scalar_select %p163, %s162, 3
      %s165 = smul.addr %s164, 4
      %s166 = scalar_lea.vmem %s0, %s165
      %s167 = smul.u32 2, %s14
      %s168 = smul.u32 2, %s14
      %p169 = scmp.lt.s32.totalorder %s168, 3
      %s170 = scalar_select %p169, %s168, 3
      %s171 = smul.addr %s170, 4
      %s172 = scalar_lea.vmem %s3, %s171
      %s173 = smul.u32 2, %s14
      %v174 = vld [vmem:[%s166] sm:$0xf]
      %v175 = vld [vmem:[%s166 + $0x4] sm:$0xf]
      %v176 = vld [vmem:[%s1] sm:$0xf]
      %v177 = vld [vmem:[%s1 + $0x4] sm:$0xf]
      %v178 = vld [vmem:[%s1 + $0x8] sm:$0xf]
      %v179 = vld [vmem:[%s1 + $0xc] sm:$0xf]
      %v180 = vld [vmem:[%s1 + $0x10] sm:$0xf]
      %v181 = vld [vmem:[%s1 + $0x14] sm:$0xf]
      %v182 = vld [vmem:[%s1 + $0x18] sm:$0xf]
      %v183 = vld [vmem:[%s1 + $0x1c] sm:$0xf]
      %v184 = vld [vmem:[%s1 + $0x20] sm:$0xf]
      %v185 = vld [vmem:[%s1 + $0x24] sm:$0xf]
      %v186 = vld [vmem:[%s1 + $0x28] sm:$0xf]
      %v187 = vld [vmem:[%s1 + $0x2c] sm:$0xf]
      %v188 = vld [vmem:[%s1 + $0x30] sm:$0xf]
      %v189 = vld [vmem:[%s1 + $0x34] sm:$0xf]
      %v190 = vld [vmem:[%s1 + $0x38] sm:$0xf]
      %v191 = vld [vmem:[%s1 + $0x3c] sm:$0xf]
      %v192 = vld [vmem:[%s2] sm:$0x1]
      %v194 = vperm.slane %v192, 0
      %v198 = vunpack.c.l.b16 %v174
      %v199 = vunpack.c.l.b16 %v175
      %v200 = vpack.c.b16 %v199, %v198
      %v218 = vunpack.c.l.b16 %v176
      %v219 = vunpack.c.l.b16 %v177
      %v220 = vunpack.c.l.b16 %v178
      %v221 = vunpack.c.l.b16 %v179
      %v222 = vunpack.c.l.b16 %v180
      %v223 = vunpack.c.l.b16 %v181
      %v224 = vunpack.c.l.b16 %v182
      %v225 = vunpack.c.l.b16 %v183
      %v226 = vunpack.c.l.b16 %v184
      %v227 = vunpack.c.l.b16 %v185
      %v228 = vunpack.c.l.b16 %v186
      %v229 = vunpack.c.l.b16 %v187
      %v230 = vunpack.c.l.b16 %v188
      %v231 = vunpack.c.l.b16 %v189
      %v232 = vunpack.c.l.b16 %v190
      %v233 = vunpack.c.l.b16 %v191
      %v234 = vpack.c.b16 %v219, %v218
      %v235 = vpack.c.b16 %v221, %v220
      %v236 = vpack.c.b16 %v223, %v222
      %v237 = vpack.c.b16 %v225, %v224
      %v238 = vpack.c.b16 %v227, %v226
      %v239 = vpack.c.b16 %v229, %v228
      %v240 = vpack.c.b16 %v231, %v230
      %v241 = vpack.c.b16 %v233, %v232
      %250 = vmatpush.bf16.msra.mxu0 %v241
      %251 = vmatpush.bf16.msra.mxu0 %v240
      %252 = vmatpush.bf16.msra.mxu0 %v239
      %253 = vmatpush.bf16.msra.mxu0 %v238
      %254 = vmatpush.bf16.msra.mxu0 %v237
      %255 = vmatpush.bf16.msra.mxu0 %v236
      %256 = vmatpush.bf16.msra.mxu0 %v235
      %257 = vmatpush.bf16.msra.mxu0 %v234
      %258 = vmatmul.bf16.gmra.mxu0 %v200
      %v259 = vpop.f32.mrf.mxu0
      %v260 = vadd.f32 %v194, %v259
      %v261 = vpop.f32.mrf.mxu0
      %v262 = vadd.f32 %v194, %v261
      %263 = vdwg.mxu0
      %v264 = vpack.c.bf16 %v260, %v260
      %v265 = vpack.c.bf16 %v262, %v262
      %266 = vst [vmem:[%s172] sm:$0xf] %v264
      %267 = vst [vmem:[%s172 + $0x4] sm:$0xf] %v265
      %s268 = smul.u32 2, %s14
      %p269 = scmp.lt.s32.totalorder %s268, 3
      %s270 = scalar_select %p269, %s268, 3
      %s271 = smul.addr %s270, 4
      %s272 = scalar_lea.vmem %s3, %s271
      // Predicated region
      $region33: #{resnet_encoder_forward.21} parent=31 // pred_check
        %p273 = pneg %p100
      $region34: #{resnet_encoder_forward.21} parent=31 // pred_check_branch
        %275 = sbr.rel (%p273) target = $region36
      $region35: #{resnet_encoder_forward.21} parent=31 // pred_region
        %s276 = smul.u32 2, %s14
      $region36: #{resnet_encoder_forward.21} parent=31 // pred_fallthru
        _
    $region32: #{resnet_encoder_forward.21} parent=5 // pred_fallthru
      _
    %p277 = scmp.le.s32.totalorder 2, %s9
    // Predicated region
    $region37: #{resnet_encoder_forward.21} parent=5 // pred_check
      %p278 = pneg %p277
    $region38: #{resnet_encoder_forward.21} parent=5 // pred_check_branch
      %280 = sbr.rel (%p278) target = $region40
    $region39: #{resnet_encoder_forward.21} parent=5 // pred_region
      %s281 = ssub.s32 %s9, 2
      // Predicated region
      $region41: #{resnet_encoder_forward.21} parent=39 // pred_check
        %p282 = pneg %p106
      $region42: #{resnet_encoder_forward.21} parent=39 // pred_check_branch
        %284 = sbr.rel (%p282) target = $region44
      $region43: #{resnet_encoder_forward.21} parent=39 // pred_region
        %s285 = smul.u32 2, %s15
        %p286 = scmp.lt.s32.totalorder %s285, 3
        %s287 = scalar_select %p286, %s285, 3
        %s288 = smul.addr %s287, 4
        %s289 = scalar_lea.vmem %s3, %s288
      $region44: #{resnet_encoder_forward.21} parent=39 // pred_fallthru
        _
    $region40: #{resnet_encoder_forward.21} parent=5 // pred_fallthru
      _
  $region6: #{resnet_encoder_forward.21} parent=0 // loop_footer
    %s13 = sadd.s32 1, %s9
  $region7: #{resnet_encoder_forward.21} parent=0 // loop_footer_branch
    %8 = sbr.rel target = $region3
  $region8: #{resnet_encoder_forward.21} parent=0 // loop_exit
    _

// kernel: resnet_encoder_forward.17
$region0: #{resnet_encoder_forward.17}
  #allocation0 [shape = 'u32[]', space=smem, size = 0x4, offset = 0x4, fixed_abs, tag = 'smem constant byte address 0x4 - core index']
  #allocation1 [shape = 'u32[72,128]{1,0:T(1,128)}', space=vmem, size = 0x9000, scoped, tag = 'internal scratch']
  %s0 = inlined_call_operand.vmem [shape: bf16[128,640], index: 0, kind: input, shape index: {}]
  %s1 = inlined_call_operand.vmem [shape: bf16[640,64], index: 1, kind: input, shape index: {}]
  %s2 = inlined_call_operand.vmem [shape: f32[1,64], index: 2, kind: input, shape index: {}]
  %s3 = inlined_call_operand.vmem [shape: bf16[128,64], index: 3, kind: input, shape index: {}]
  %s4 = inlined_call_operand.vmem [shape: bf16[128,64], index: 4, kind: output, shape index: {}]
  %s5 = sld [smem:[#allocation0]]
  $region49: #{resnet_encoder_forward.17} parent=0
    _
  %s7 = ssub.s32 1, %s5
  %s8 = scalar_select 0, %s7, %s5
  loop: start=0, step=1, limit=4
  $region2: #{resnet_encoder_forward.17} parent=0 // loop_pre_header
    _
  $region3: #{resnet_encoder_forward.17} parent=0 // loop_header
    %s10 = sphi 0, %s14
    %p11 = scmp.ge.s32.totalorder %s10, 4
    %s20 = sphi 0, %s22
    %s23 = sphi 0, %s20
    %s24 = sphi 0, %s23
    %s40 = sphi 0, %s24
    %s44 = sphi 0, %s44
    %s46 = sphi 0, %s44
    %s47 = sphi 0, %s46
    %s61 = sphi 0, %s47
    %s65 = sphi 0, %s65
    %s67 = sphi 0, %s65
    %s68 = sphi 0, %s67
    %s82 = sphi 0, %s68
    %s88 = sphi 0, %s90
    %s91 = sphi 0, %s88
    %s92 = sphi 0, %s91
    %s108 = sphi 0, %s92
    %s114 = sphi 0, %s116
    %s117 = sphi 0, %s114
    %s118 = sphi 0, %s117
    %s134 = sphi 0, %s118
  $region4: #{resnet_encoder_forward.17} parent=0 // loop_header_branch
    %13 = sbr.rel (%p11) target = $region8
  $region5: #{resnet_encoder_forward.17} parent=0 // loop_body
    %s15 = ssub.s32 %s10, 1
    %s16 = ssub.s32 %s10, 2
    %s17 = sadd.s32 %s10, 1
    %s18 = ssub.s32 %s10, %s17
    %p19 = scmp.eq.s32.totalorder %s18, 0
    %s21 = sadd.s32 %s20, 1
    %s22 = scalar_select %p19, %s20, %s21
    %p25 = pneg %p19
    %p26 = scmp.eq.s32.totalorder %s10, 1
    %p27 = por %p25, %p26
    %p28 = scmp.ne.s32.totalorder %s20, %s23
    %p29 = scmp.eq.s32.totalorder %s10, 0
    %p30 = por %p28, %p29
    %p31 = scmp.ne.s32.totalorder %s20, %s23
    %p32 = scmp.eq.s32.totalorder %s15, 1
    %p33 = por %p31, %p32
    %p34 = scmp.ne.s32.totalorder %s23, %s24
    %p35 = scmp.eq.s32.totalorder %s15, 0
    %p36 = por %p34, %p35
    %p37 = scmp.ne.s32.totalorder %s23, %s24
    %p38 = scmp.eq.s32.totalorder %s16, 1
    %p39 = por %p37, %p38
    %p41 = scmp.ne.s32.totalorder %s24, %s40
    %p42 = scmp.eq.s32.totalorder %s16, 0
    %p43 = por %p41, %p42
    %s45 = sadd.s32 %s44, 1
    %p48 = scmp.eq.s32.totalorder %s10, 1
    %p49 = scmp.ne.s32.totalorder %s44, %s46
    %p50 = scmp.eq.s32.totalorder %s10, 0
    %p51 = por %p49, %p50
    %p52 = scmp.ne.s32.totalorder %s44, %s46
    %p53 = scmp.eq.s32.totalorder %s15, 1
    %p54 = por %p52, %p53
    %p55 = scmp.ne.s32.totalorder %s46, %s47
    %p56 = scmp.eq.s32.totalorder %s15, 0
    %p57 = por %p55, %p56
    %p58 = scmp.ne.s32.totalorder %s46, %s47
    %p59 = scmp.eq.s32.totalorder %s16, 1
    %p60 = por %p58, %p59
    %p62 = scmp.ne.s32.totalorder %s47, %s61
    %p63 = scmp.eq.s32.totalorder %s16, 0
    %p64 = por %p62, %p63
    %s66 = sadd.s32 %s65, 1
    %p69 = scmp.eq.s32.totalorder %s10, 1
    %p70 = scmp.ne.s32.totalorder %s65, %s67
    %p71 = scmp.eq.s32.totalorder %s10, 0
    %p72 = por %p70, %p71
    %p73 = scmp.ne.s32.totalorder %s65, %s67
    %p74 = scmp.eq.s32.totalorder %s15, 1
    %p75 = por %p73, %p74
    %p76 = scmp.ne.s32.totalorder %s67, %s68
    %p77 = scmp.eq.s32.totalorder %s15, 0
    %p78 = por %p76, %p77
    %p79 = scmp.ne.s32.totalorder %s67, %s68
    %p80 = scmp.eq.s32.totalorder %s16, 1
    %p81 = por %p79, %p80
    %p83 = scmp.ne.s32.totalorder %s68, %s82
    %p84 = scmp.eq.s32.totalorder %s16, 0
    %p85 = por %p83, %p84
    %s86 = ssub.s32 %s10, %s17
    %p87 = scmp.eq.s32.totalorder %s86, 0
    %s89 = sadd.s32 %s88, 1
    %s90 = scalar_select %p87, %s88, %s89
    %p93 = pneg %p87
    %p94 = scmp.eq.s32.totalorder %s10, 1
    %p95 = por %p93, %p94
    %p96 = scmp.ne.s32.totalorder %s88, %s91
    %p97 = scmp.eq.s32.totalorder %s10, 0
    %p98 = por %p96, %p97
    %p99 = scmp.ne.s32.totalorder %s88, %s91
    %p100 = scmp.eq.s32.totalorder %s15, 1
    %p101 = por %p99, %p100
    %p102 = scmp.ne.s32.totalorder %s91, %s92
    %p103 = scmp.eq.s32.totalorder %s15, 0
    %p104 = por %p102, %p103
    %p105 = scmp.ne.s32.totalorder %s91, %s92
    %p106 = scmp.eq.s32.totalorder %s16, 1
    %p107 = por %p105, %p106
    %p109 = scmp.ne.s32.totalorder %s92, %s108
    %p110 = scmp.eq.s32.totalorder %s16, 0
    %p111 = por %p109, %p110
    %s112 = ssub.s32 %s10, %s17
    %p113 = scmp.eq.s32.totalorder %s112, 0
    %s115 = sadd.s32 %s114, 1
    %s116 = scalar_select %p113, %s114, %s115
    %p119 = pneg %p113
    %p120 = scmp.eq.s32.totalorder %s10, 1
    %p121 = por %p119, %p120
    %p122 = scmp.ne.s32.totalorder %s114, %s117
    %p123 = scmp.eq.s32.totalorder %s10, 0
    %p124 = por %p122, %p123
    %p125 = scmp.ne.s32.totalorder %s114, %s117
    %p126 = scmp.eq.s32.totalorder %s15, 1
    %p127 = por %p125, %p126
    %p128 = scmp.ne.s32.totalorder %s117, %s118
    %p129 = scmp.eq.s32.totalorder %s15, 0
    %p130 = por %p128, %p129
    %p131 = scmp.ne.s32.totalorder %s117, %s118
    %p132 = scmp.eq.s32.totalorder %s16, 1
    %p133 = por %p131, %p132
    %p135 = scmp.ne.s32.totalorder %s118, %s134
    %p136 = scmp.eq.s32.totalorder %s16, 0
    %p137 = por %p135, %p136
    %p138 = scmp.le.s32.totalorder 1, %s10
    %p139 = scmp.lt.s32.totalorder %s10, 3
    %p140 = pnand %p138, %p139
    %p141 = pneg %p140
    // Predicated region
    $region9: #{resnet_encoder_forward.17} parent=5 // pred_check
      _
    $region10: #{resnet_encoder_forward.17} parent=5 // pred_check_branch
      %143 = sbr.rel (%p140) target = $region12
    $region11: #{resnet_encoder_forward.17} parent=5 // pred_region
      %s144 = ssub.s32 %s10, 1
      // Predicated region
      $region13: #{resnet_encoder_forward.17} parent=11 // pred_check
        %p145 = pneg %p57
      $region14: #{resnet_encoder_forward.17} parent=11 // pred_check_branch
        %147 = sbr.rel (%p145) target = $region16
      $region15: #{resnet_encoder_forward.17} parent=11 // pred_region
        _
      $region16: #{resnet_encoder_forward.17} parent=11 // pred_fallthru
        _
      // Predicated region
      $region17: #{resnet_encoder_forward.17} parent=11 // pred_check
        %p148 = pneg %p78
      $region18: #{resnet_encoder_forward.17} parent=11 // pred_check_branch
        %150 = sbr.rel (%p148) target = $region20
      $region19: #{resnet_encoder_forward.17} parent=11 // pred_region
        _
      $region20: #{resnet_encoder_forward.17} parent=11 // pred_fallthru
        _
    $region12: #{resnet_encoder_forward.17} parent=5 // pred_fallthru
      _
    %p151 = scmp.lt.s32.totalorder %s10, 2
    // Predicated region
    $region21: #{resnet_encoder_forward.17} parent=5 // pred_check
      %p152 = pneg %p151
    $region22: #{resnet_encoder_forward.17} parent=5 // pred_check_branch
      %154 = sbr.rel (%p152) target = $region24
    $region23: #{resnet_encoder_forward.17} parent=5 // pred_region
      // Predicated region
      $region25: #{resnet_encoder_forward.17} parent=23 // pred_check
        %p155 = pneg %p30
      $region26: #{resnet_encoder_forward.17} parent=23 // pred_check_branch
        %157 = sbr.rel (%p155) target = $region28
      $region27: #{resnet_encoder_forward.17} parent=23 // pred_region
        %s158 = smul.u32 8, %s10
        %p159 = scmp.lt.s32.totalorder %s158, 15
        %s160 = scalar_select %p159, %s158, 15
        %s161 = smul.addr %s160, 5
        %s162 = smul.addr %s161, 4
        %s163 = scalar_lea.vmem %s0, %s162
        %s164 = smul.u32 8, %s10
      $region28: #{resnet_encoder_forward.17} parent=23 // pred_fallthru
        _
      // Predicated region
      $region29: #{resnet_encoder_forward.17} parent=23 // pred_check
        %p165 = pneg %p98
      $region30: #{resnet_encoder_forward.17} parent=23 // pred_check_branch
        %167 = sbr.rel (%p165) target = $region32
      $region31: #{resnet_encoder_forward.17} parent=23 // pred_region
        %s168 = smul.u32 8, %s10
        %p169 = scmp.lt.s32.totalorder %s168, 15
        %s170 = scalar_select %p169, %s168, 15
        %s171 = smul.addr %s170, 4
        %s172 = scalar_lea.vmem %s3, %s171
        %s173 = smul.u32 8, %s10
      $region32: #{resnet_encoder_forward.17} parent=23 // pred_fallthru
        _
    $region24: #{resnet_encoder_forward.17} parent=5 // pred_fallthru
      _
    %p174 = scmp.le.s32.totalorder 1, %s10
    %p175 = scmp.lt.s32.totalorder %s10, 3
    %p176 = pnand %p174, %p175
    %p177 = pneg %p176
    // Predicated region
    $region33: #{resnet_encoder_forward.17} parent=5 // pred_check
      _
    $region34: #{resnet_encoder_forward.17} parent=5 // pred_check_branch
      %179 = sbr.rel (%p176) target = $region36
    $region35: #{resnet_encoder_forward.17} parent=5 // pred_region
      %s180 = ssub.s32 %s10, 1
      %s181 = smul.u32 8, %s15
      %p182 = scmp.lt.s32.totalorder %s181, 15
      %s183 = scalar_select %p182, %s181, 15
      %s184 = smul.addr %s183, 5
      %s185 = smul.addr %s184, 4
      %s186 = scalar_lea.vmem %s0, %s185
      %p187 = pneg %p36
      %p188 = pneg %p33
      %p189 = pneg %p57
      %p190 = pneg %p54
      %p191 = pneg %p78
      %p192 = pneg %p75
      %s193 = smul.u32 8, %s15
      %p194 = scmp.lt.s32.totalorder %s193, 15
      %s195 = scalar_select %p194, %s193, 15
      %s196 = smul.addr %s195, 4
      %s197 = scalar_lea.vmem %s3, %s196
      %p198 = pneg %p104
      %p199 = pneg %p101
      %p200 = pneg %p130
      %p201 = pneg %p127
      %s202 = smul.u32 8, %s15
      %p203 = scmp.lt.s32.totalorder %s202, 15
      %s204 = scalar_select %p203, %s202, 15
      %s205 = smul.addr %s204, 4
      %s206 = scalar_lea.vmem %s4, %s205
      %s207 = smul.u32 8, %s15
      %p208 = scmp.lt.s32.totalorder %s207, 15
      %s209 = scalar_select %p208, %s207, 15
      %s210 = smul.addr %s209, 5
      %s211 = smul.addr %s210, 4
      %s212 = scalar_lea.vmem %s0, %s211
      %s213 = smul.u32 8, %s15
      %s214 = smul.u32 8, %s15
      %p215 = scmp.lt.s32.totalorder %s214, 15
      %s216 = scalar_select %p215, %s214, 15
      %s217 = smul.addr %s216, 4
      %s218 = scalar_lea.vmem %s3, %s217
      %s219 = smul.u32 8, %s15
      %s220 = smul.u32 8, %s15
      %p221 = scmp.lt.s32.totalorder %s220, 15
      %s222 = scalar_select %p221, %s220, 15
      %s223 = smul.addr %s222, 4
      %s224 = scalar_lea.vmem %s4, %s223
      %s225 = smul.u32 8, %s15
      %v226 = vld [vmem:[%s212] sm:$0xff]
      %v227 = vld [vmem:[%s212 + $0x8] sm:$0xff]
      %v228 = vld [vmem:[%s212 + $0x10] sm:$0xf]
      %v229 = vld [vmem:[%s212 + $0x14] sm:$0xff]
      %v230 = vld [vmem:[%s212 + $0x1c] sm:$0xff]
      %v231 = vld [vmem:[%s212 + $0x24] sm:$0xf]
      %v232 = vld [vmem:[%s212 + $0x28] sm:$0xff]
      %v233 = vld [vmem:[%s212 + $0x30] sm:$0xff]
      %v234 = vld [vmem:[%s212 + $0x38] sm:$0xf]
      %v235 = vld [vmem:[%s212 + $0x3c] sm:$0xff]
      %v236 = vld [vmem:[%s212 + $0x44] sm:$0xff]
      %v237 = vld [vmem:[%s212 + $0x4c] sm:$0xf]
      %v238 = vld [vmem:[%s212 + $0x50] sm:$0xff]
      %v239 = vld [vmem:[%s212 + $0x58] sm:$0xff]
      %v240 = vld [vmem:[%s212 + $0x60] sm:$0xf]
      %v241 = vld [vmem:[%s212 + $0x64] sm:$0xff]
      %v242 = vld [vmem:[%s212 + $0x6c] sm:$0xff]
      %v243 = vld [vmem:[%s212 + $0x74] sm:$0xf]
      %v244 = vld [vmem:[%s212 + $0x78] sm:$0xff]
      %v245 = vld [vmem:[%s212 + $0x80] sm:$0xff]
      %v246 = vld [vmem:[%s212 + $0x88] sm:$0xf]
      %v247 = vld [vmem:[%s212 + $0x8c] sm:$0xff]
      %v248 = vld [vmem:[%s212 + $0x94] sm:$0xff]
      %v249 = vld [vmem:[%s212 + $0x9c] sm:$0xf]
      %v250 = vld [vmem:[%s1] sm:$0xf]
      %v251 = vld [vmem:[%s1 + $0x4] sm:$0xf]
      %v252 = vld [vmem:[%s1 + $0x8] sm:$0xf]
      %v253 = vld [vmem:[%s1 + $0xc] sm:$0xf]
      %v254 = vld [vmem:[%s1 + $0x10] sm:$0xf]
      %v255 = vld [vmem:[%s1 + $0x14] sm:$0xf]
      %v256 = vld [vmem:[%s1 + $0x18] sm:$0xf]
      %v257 = vld [vmem:[%s1 + $0x1c] sm:$0xf]
      %v258 = vld [vmem:[%s1 + $0x20] sm:$0xf]
      %v259 = vld [vmem:[%s1 + $0x24] sm:$0xf]
      %v260 = vld [vmem:[%s1 + $0x28] sm:$0xf]
      %v261 = vld [vmem:[%s1 + $0x2c] sm:$0xf]
      %v262 = vld [vmem:[%s1 + $0x30] sm:$0xf]
      %v263 = vld [vmem:[%s1 + $0x34] sm:$0xf]
      %v264 = vld [vmem:[%s1 + $0x38] sm:$0xf]
      %v265 = vld [vmem:[%s1 + $0x3c] sm:$0xf]
      %v266 = vld [vmem:[%s1 + $0x40] sm:$0xf]
      %v267 = vld [vmem:[%s1 + $0x44] sm:$0xf]
      %v268 = vld [vmem:[%s1 + $0x48] sm:$0xf]
      %v269 = vld [vmem:[%s1 + $0x4c] sm:$0xf]
      %v270 = vld [vmem:[%s1 + $0x50] sm:$0xf]
      %v271 = vld [vmem:[%s1 + $0x54] sm:$0xf]
      %v272 = vld [vmem:[%s1 + $0x58] sm:$0xf]
      %v273 = vld [vmem:[%s1 + $0x5c] sm:$0xf]
      %v274 = vld [vmem:[%s1 + $0x60] sm:$0xf]
      %v275 = vld [vmem:[%s1 + $0x64] sm:$0xf]
      %v276 = vld [vmem:[%s1 + $0x68] sm:$0xf]
      %v277 = vld [vmem:[%s1 + $0x6c] sm:$0xf]
      %v278 = vld [vmem:[%s1 + $0x70] sm:$0xf]
      %v279 = vld [vmem:[%s1 + $0x74] sm:$0xf]
      %v280 = vld [vmem:[%s1 + $0x78] sm:$0xf]
      %v281 = vld [vmem:[%s1 + $0x7c] sm:$0xf]
      %v282 = vld [vmem:[%s1 + $0x80] sm:$0xf]
      %v283 = vld [vmem:[%s1 + $0x84] sm:$0xf]
      %v284 = vld [vmem:[%s1 + $0x88] sm:$0xf]
      %v285 = vld [vmem:[%s1 + $0x8c] sm:$0xf]
      %v286 = vld [vmem:[%s1 + $0x90] sm:$0xf]
      %v287 = vld [vmem:[%s1 + $0x94] sm:$0xf]
      %v288 = vld [vmem:[%s1 + $0x98] sm:$0xf]
      %v289 = vld [vmem:[%s1 + $0x9c] sm:$0xf]
      %v290 = vld [vmem:[%s1 + $0xa0] sm:$0xf]
      %v291 = vld [vmem:[%s1 + $0xa4] sm:$0xf]
      %v292 = vld [vmem:[%s1 + $0xa8] sm:$0xf]
      %v293 = vld [vmem:[%s1 + $0xac] sm:$0xf]
      %v294 = vld [vmem:[%s1 + $0xb0] sm:$0xf]
      %v295 = vld [vmem:[%s1 + $0xb4] sm:$0xf]
      %v296 = vld [vmem:[%s1 + $0xb8] sm:$0xf]
      %v297 = vld [vmem:[%s1 + $0xbc] sm:$0xf]
      %v298 = vld [vmem:[%s1 + $0xc0] sm:$0xf]
      %v299 = vld [vmem:[%s1 + $0xc4] sm:$0xf]
      %v300 = vld [vmem:[%s1 + $0xc8] sm:$0xf]
      %v301 = vld [vmem:[%s1 + $0xcc] sm:$0xf]
      %v302 = vld [vmem:[%s1 + $0xd0] sm:$0xf]
      %v303 = vld [vmem:[%s1 + $0xd4] sm:$0xf]
      %v304 = vld [vmem:[%s1 + $0xd8] sm:$0xf]
      %v305 = vld [vmem:[%s1 + $0xdc] sm:$0xf]
      %v306 = vld [vmem:[%s1 + $0xe0] sm:$0xf]
      %v307 = vld [vmem:[%s1 + $0xe4] sm:$0xf]
      %v308 = vld [vmem:[%s1 + $0xe8] sm:$0xf]
      %v309 = vld [vmem:[%s1 + $0xec] sm:$0xf]
      %v310 = vld [vmem:[%s1 + $0xf0] sm:$0xf]
      %v311 = vld [vmem:[%s1 + $0xf4] sm:$0xf]
      %v312 = vld [vmem:[%s1 + $0xf8] sm:$0xf]
      %v313 = vld [vmem:[%s1 + $0xfc] sm:$0xf]
      %v314 = vld [vmem:[%s1 + $0x100] sm:$0xf]
      %v315 = vld [vmem:[%s1 + $0x104] sm:$0xf]
      %v316 = vld [vmem:[%s1 + $0x108] sm:$0xf]
      %v317 = vld [vmem:[%s1 + $0x10c] sm:$0xf]
      %v318 = vld [vmem:[%s1 + $0x110] sm:$0xf]
      %v319 = vld [vmem:[%s1 + $0x114] sm:$0xf]
      %v320 = vld [vmem:[%s1 + $0x118] sm:$0xf]
      %v321 = vld [vmem:[%s1 + $0x11c] sm:$0xf]
      %v322 = vld [vmem:[%s1 + $0x120] sm:$0xf]
      %v323 = vld [vmem:[%s1 + $0x124] sm:$0xf]
      %v324 = vld [vmem:[%s1 + $0x128] sm:$0xf]
      %v325 = vld [vmem:[%s1 + $0x12c] sm:$0xf]
      %v326 = vld [vmem:[%s1 + $0x130] sm:$0xf]
      %v327 = vld [vmem:[%s1 + $0x134] sm:$0xf]
      %v328 = vld [vmem:[%s1 + $0x138] sm:$0xf]
      %v329 = vld [vmem:[%s1 + $0x13c] sm:$0xf]
      %v330 = vld [vmem:[%s2] sm:$0x1]
      %v332 = vperm.slane %v330, 0
      %v358 = vunpack.c.l.b16 %v226
      %v359 = vunpack.c.h.b16 %v226
      %v360 = vunpack.c.l.b16 %v227
      %v361 = vunpack.c.h.b16 %v227
      %v362 = vunpack.c.l.b16 %v228
      %v363 = vunpack.c.l.b16 %v229
      %v364 = vunpack.c.h.b16 %v229
      %v365 = vunpack.c.l.b16 %v230
      %v366 = vunpack.c.h.b16 %v230
      %v367 = vunpack.c.l.b16 %v231
      %v368 = vunpack.c.l.b16 %v232
      %v369 = vunpack.c.h.b16 %v232
      %v370 = vunpack.c.l.b16 %v233
      %v371 = vunpack.c.h.b16 %v233
      %v372 = vunpack.c.l.b16 %v234
      %v373 = vunpack.c.l.b16 %v235
      %v374 = vunpack.c.h.b16 %v235
      %v375 = vunpack.c.l.b16 %v236
      %v376 = vunpack.c.h.b16 %v236
      %v377 = vunpack.c.l.b16 %v237
      %v378 = vunpack.c.l.b16 %v238
      %v379 = vunpack.c.h.b16 %v238
      %v380 = vunpack.c.l.b16 %v239
      %v381 = vunpack.c.h.b16 %v239
      %v382 = vunpack.c.l.b16 %v240
      %v383 = vunpack.c.l.b16 %v241
      %v384 = vunpack.c.h.b16 %v241
      %v385 = vunpack.c.l.b16 %v242
      %v386 = vunpack.c.h.b16 %v242
      %v387 = vunpack.c.l.b16 %v243
      %v388 = vunpack.c.l.b16 %v244
      %v389 = vunpack.c.h.b16 %v244
      %v390 = vunpack.c.l.b16 %v245
      %v391 = vunpack.c.h.b16 %v245
      %v392 = vunpack.c.l.b16 %v246
      %v393 = vunpack.c.l.b16 %v247
      %v394 = vunpack.c.h.b16 %v247
      %v395 = vunpack.c.l.b16 %v248
      %v396 = vunpack.c.h.b16 %v248
      %v397 = vunpack.c.l.b16 %v249
      %v398 = vpack.c.b16 %v363, %v358
      %v399 = vpack.c.b16 %v364, %v359
      %v400 = vpack.c.b16 %v365, %v360
      %v401 = vpack.c.b16 %v366, %v361
      %v402 = vpack.c.b16 %v367, %v362
      %v403 = vpack.c.b16 %v373, %v368
      %v404 = vpack.c.b16 %v374, %v369
      %v405 = vpack.c.b16 %v375, %v370
      %v406 = vpack.c.b16 %v376, %v371
      %v407 = vpack.c.b16 %v377, %v372
      %v408 = vpack.c.b16 %v383, %v378
      %v409 = vpack.c.b16 %v384, %v379
      %v410 = vpack.c.b16 %v385, %v380
      %v411 = vpack.c.b16 %v386, %v381
      %v412 = vpack.c.b16 %v387, %v382
      %v413 = vpack.c.b16 %v393, %v388
      %v414 = vpack.c.b16 %v394, %v389
      %v415 = vpack.c.b16 %v395, %v390
      %v416 = vpack.c.b16 %v396, %v391
      %v417 = vpack.c.b16 %v397, %v392
      %v518 = vunpack.c.l.b16 %v250
      %v519 = vunpack.c.l.b16 %v251
      %v520 = vunpack.c.l.b16 %v252
      %v521 = vunpack.c.l.b16 %v253
      %v522 = vunpack.c.l.b16 %v254
      %v523 = vunpack.c.l.b16 %v255
      %v524 = vunpack.c.l.b16 %v256
      %v525 = vunpack.c.l.b16 %v257
      %v526 = vunpack.c.l.b16 %v258
      %v527 = vunpack.c.l.b16 %v259
      %v528 = vunpack.c.l.b16 %v260
      %v529 = vunpack.c.l.b16 %v261
      %v530 = vunpack.c.l.b16 %v262
      %v531 = vunpack.c.l.b16 %v263
      %v532 = vunpack.c.l.b16 %v264
      %v533 = vunpack.c.l.b16 %v265
      %v534 = vunpack.c.l.b16 %v266
      %v535 = vunpack.c.l.b16 %v267
      %v536 = vunpack.c.l.b16 %v268
      %v537 = vunpack.c.l.b16 %v269
      %v538 = vunpack.c.l.b16 %v270
      %v539 = vunpack.c.l.b16 %v271
      %v540 = vunpack.c.l.b16 %v272
      %v541 = vunpack.c.l.b16 %v273
      %v542 = vunpack.c.l.b16 %v274
      %v543 = vunpack.c.l.b16 %v275
      %v544 = vunpack.c.l.b16 %v276
      %v545 = vunpack.c.l.b16 %v277
      %v546 = vunpack.c.l.b16 %v278
      %v547 = vunpack.c.l.b16 %v279
      %v548 = vunpack.c.l.b16 %v280
      %v549 = vunpack.c.l.b16 %v281
      %v550 = vunpack.c.l.b16 %v282
      %v551 = vunpack.c.l.b16 %v283
      %v552 = vunpack.c.l.b16 %v284
      %v553 = vunpack.c.l.b16 %v285
      %v554 = vunpack.c.l.b16 %v286
      %v555 = vunpack.c.l.b16 %v287
      %v556 = vunpack.c.l.b16 %v288
      %v557 = vunpack.c.l.b16 %v289
      %v558 = vunpack.c.l.b16 %v290
      %v559 = vunpack.c.l.b16 %v291
      %v560 = vunpack.c.l.b16 %v292
      %v561 = vunpack.c.l.b16 %v293
      %v562 = vunpack.c.l.b16 %v294
      %v563 = vunpack.c.l.b16 %v295
      %v564 = vunpack.c.l.b16 %v296
      %v565 = vunpack.c.l.b16 %v297
      %v566 = vunpack.c.l.b16 %v298
      %v567 = vunpack.c.l.b16 %v299
      %v568 = vunpack.c.l.b16 %v300
      %v569 = vunpack.c.l.b16 %v301
      %v570 = vunpack.c.l.b16 %v302
      %v571 = vunpack.c.l.b16 %v303
      %v572 = vunpack.c.l.b16 %v304
      %v573 = vunpack.c.l.b16 %v305
      %v574 = vunpack.c.l.b16 %v306
      %v575 = vunpack.c.l.b16 %v307
      %v576 = vunpack.c.l.b16 %v308
      %v577 = vunpack.c.l.b16 %v309
      %v578 = vunpack.c.l.b16 %v310
      %v579 = vunpack.c.l.b16 %v311
      %v580 = vunpack.c.l.b16 %v312
      %v581 = vunpack.c.l.b16 %v313
      %v582 = vunpack.c.l.b16 %v314
      %v583 = vunpack.c.l.b16 %v315
      %v584 = vunpack.c.l.b16 %v316
      %v585 = vunpack.c.l.b16 %v317
      %v586 = vunpack.c.l.b16 %v318
      %v587 = vunpack.c.l.b16 %v319
      %v588 = vunpack.c.l.b16 %v320
      %v589 = vunpack.c.l.b16 %v321
      %v590 = vunpack.c.l.b16 %v322
      %v591 = vunpack.c.l.b16 %v323
      %v592 = vunpack.c.l.b16 %v324
      %v593 = vunpack.c.l.b16 %v325
      %v594 = vunpack.c.l.b16 %v326
      %v595 = vunpack.c.l.b16 %v327
      %v596 = vunpack.c.l.b16 %v328
      %v597 = vunpack.c.l.b16 %v329
      %v598 = vpack.c.b16 %v519, %v518
      %v599 = vpack.c.b16 %v521, %v520
      %v600 = vpack.c.b16 %v523, %v522
      %v601 = vpack.c.b16 %v525, %v524
      %v602 = vpack.c.b16 %v527, %v526
      %v603 = vpack.c.b16 %v529, %v528
      %v604 = vpack.c.b16 %v531, %v530
      %v605 = vpack.c.b16 %v533, %v532
      %v606 = vpack.c.b16 %v535, %v534
      %v607 = vpack.c.b16 %v537, %v536
      %v608 = vpack.c.b16 %v539, %v538
      %v609 = vpack.c.b16 %v541, %v540
      %v610 = vpack.c.b16 %v543, %v542
      %v611 = vpack.c.b16 %v545, %v544
      %v612 = vpack.c.b16 %v547, %v546
      %v613 = vpack.c.b16 %v549, %v548
      %v614 = vpack.c.b16 %v551, %v550
      %v615 = vpack.c.b16 %v553, %v552
      %v616 = vpack.c.b16 %v555, %v554
      %v617 = vpack.c.b16 %v557, %v556
      %v618 = vpack.c.b16 %v559, %v558
      %v619 = vpack.c.b16 %v561, %v560
      %v620 = vpack.c.b16 %v563, %v562
      %v621 = vpack.c.b16 %v565, %v564
      %v622 = vpack.c.b16 %v567, %v566
      %v623 = vpack.c.b16 %v569, %v568
      %v624 = vpack.c.b16 %v571, %v570
      %v625 = vpack.c.b16 %v573, %v572
      %v626 = vpack.c.b16 %v575, %v574
      %v627 = vpack.c.b16 %v577, %v576
      %v628 = vpack.c.b16 %v579, %v578
      %v629 = vpack.c.b16 %v581, %v580
      %v630 = vpack.c.b16 %v583, %v582
      %v631 = vpack.c.b16 %v585, %v584
      %v632 = vpack.c.b16 %v587, %v586
      %v633 = vpack.c.b16 %v589, %v588
      %v634 = vpack.c.b16 %v591, %v590
      %v635 = vpack.c.b16 %v593, %v592
      %v636 = vpack.c.b16 %v595, %v594
      %v637 = vpack.c.b16 %v597, %v596
      %678 = vmatpush.bf16.msra.mxu0 %v605
      %679 = vmatpush.bf16.msra.mxu0 %v604
      %680 = vmatpush.bf16.msra.mxu0 %v603
      %681 = vmatpush.bf16.msra.mxu0 %v602
      %682 = vmatpush.bf16.msra.mxu0 %v601
      %683 = vmatpush.bf16.msra.mxu0 %v600
      %684 = vmatpush.bf16.msra.mxu0 %v599
      %685 = vmatpush.bf16.msra.mxu0 %v598
      %686 = vmatmul.bf16.gmra.mxu0 %v398
      %v687 = vpop.f32.mrf.mxu0
      %v688 = vadd.f32 %v332, %v687
      %v689 = vpop.f32.mrf.mxu0
      %v690 = vadd.f32 %v332, %v689
      %691 = vmatmul.bf16.gmra.mxu0 %v403
      %v692 = vpop.f32.mrf.mxu0
      %v693 = vadd.f32 %v332, %v692
      %v694 = vpop.f32.mrf.mxu0
      %v695 = vadd.f32 %v332, %v694
      %696 = vmatmul.bf16.gmra.mxu0 %v408
      %v697 = vpop.f32.mrf.mxu0
      %v698 = vadd.f32 %v332, %v697
      %v699 = vpop.f32.mrf.mxu0
      %v700 = vadd.f32 %v332, %v699
      %701 = vmatmul.bf16.gmra.mxu0 %v413
      %v702 = vpop.f32.mrf.mxu0
      %v703 = vadd.f32 %v332, %v702
      %v704 = vpop.f32.mrf.mxu0
      %v705 = vadd.f32 %v332, %v704
      %706 = vdwg.mxu0
      %707 = vmatpush.bf16.msra.mxu0 %v613
      %708 = vmatpush.bf16.msra.mxu0 %v612
      %709 = vmatpush.bf16.msra.mxu0 %v611
      %710 = vmatpush.bf16.msra.mxu0 %v610
      %711 = vmatpush.bf16.msra.mxu0 %v609
      %712 = vmatpush.bf16.msra.mxu0 %v608
      %713 = vmatpush.bf16.msra.mxu0 %v607
      %714 = vmatpush.bf16.msra.mxu0 %v606
      %715 = vmatmul.bf16.gmra.mxu0 %v399
      %v716 = vpop.f32.mrf.mxu0
      %v717 = vadd.f32 %v688, %v716
      %v718 = vpop.f32.mrf.mxu0
      %v719 = vadd.f32 %v690, %v718
      %720 = vmatmul.bf16.gmra.mxu0 %v404
      %v721 = vpop.f32.mrf.mxu0
      %v722 = vadd.f32 %v693, %v721
      %v723 = vpop.f32.mrf.mxu0
      %v724 = vadd.f32 %v695, %v723
      %725 = vmatmul.bf16.gmra.mxu0 %v409
      %v726 = vpop.f32.mrf.mxu0
      %v727 = vadd.f32 %v698, %v726
      %v728 = vpop.f32.mrf.mxu0
      %v729 = vadd.f32 %v700, %v728
      %730 = vmatmul.bf16.gmra.mxu0 %v414
      %v731 = vpop.f32.mrf.mxu0
      %v732 = vadd.f32 %v703, %v731
      %v733 = vpop.f32.mrf.mxu0
      %v734 = vadd.f32 %v705, %v733
      %735 = vdwg.mxu0
      %736 = vmatpush.bf16.msra.mxu0 %v621
      %737 = vmatpush.bf16.msra.mxu0 %v620
      %738 = vmatpush.bf16.msra.mxu0 %v619
      %739 = vmatpush.bf16.msra.mxu0 %v618
      %740 = vmatpush.bf16.msra.mxu0 %v617
      %741 = vmatpush.bf16.msra.mxu0 %v616
      %742 = vmatpush.bf16.msra.mxu0 %v615
      %743 = vmatpush.bf16.msra.mxu0 %v614
      %744 = vmatmul.bf16.gmra.mxu0 %v400
      %v745 = vpop.f32.mrf.mxu0
      %v746 = vadd.f32 %v717, %v745
      %v747 = vpop.f32.mrf.mxu0
      %v748 = vadd.f32 %v719, %v747
      %749 = vmatmul.bf16.gmra.mxu0 %v405
      %v750 = vpop.f32.mrf.mxu0
      %v751 = vadd.f32 %v722, %v750
      %v752 = vpop.f32.mrf.mxu0
      %v753 = vadd.f32 %v724, %v752
      %754 = vmatmul.bf16.gmra.mxu0 %v410
      %v755 = vpop.f32.mrf.mxu0
      %v756 = vadd.f32 %v727, %v755
      %v757 = vpop.f32.mrf.mxu0
      %v758 = vadd.f32 %v729, %v757
      %759 = vmatmul.bf16.gmra.mxu0 %v415
      %v760 = vpop.f32.mrf.mxu0
      %v761 = vadd.f32 %v732, %v760
      %v762 = vpop.f32.mrf.mxu0
      %v763 = vadd.f32 %v734, %v762
      %764 = vdwg.mxu0
      %765 = vmatpush.bf16.msra.mxu0 %v629
      %766 = vmatpush.bf16.msra.mxu0 %v628
      %767 = vmatpush.bf16.msra.mxu0 %v627
      %768 = vmatpush.bf16.msra.mxu0 %v626
      %769 = vmatpush.bf16.msra.mxu0 %v625
      %770 = vmatpush.bf16.msra.mxu0 %v624
      %771 = vmatpush.bf16.msra.mxu0 %v623
      %772 = vmatpush.bf16.msra.mxu0 %v622
      %773 = vmatmul.bf16.gmra.mxu0 %v401
      %v774 = vpop.f32.mrf.mxu0
      %v775 = vadd.f32 %v746, %v774
      %v776 = vpop.f32.mrf.mxu0
      %v777 = vadd.f32 %v748, %v776
      %778 = vmatmul.bf16.gmra.mxu0 %v406
      %v779 = vpop.f32.mrf.mxu0
      %v780 = vadd.f32 %v751, %v779
      %v781 = vpop.f32.mrf.mxu0
      %v782 = vadd.f32 %v753, %v781
      %783 = vmatmul.bf16.gmra.mxu0 %v411
      %v784 = vpop.f32.mrf.mxu0
      %v785 = vadd.f32 %v756, %v784
      %v786 = vpop.f32.mrf.mxu0
      %v787 = vadd.f32 %v758, %v786
      %788 = vmatmul.bf16.gmra.mxu0 %v416
      %v789 = vpop.f32.mrf.mxu0
      %v790 = vadd.f32 %v761, %v789
      %v791 = vpop.f32.mrf.mxu0
      %v792 = vadd.f32 %v763, %v791
      %793 = vdwg.mxu0
      %794 = vmatpush.bf16.msra.mxu0 %v637
      %795 = vmatpush.bf16.msra.mxu0 %v636
      %796 = vmatpush.bf16.msra.mxu0 %v635
      %797 = vmatpush.bf16.msra.mxu0 %v634
      %798 = vmatpush.bf16.msra.mxu0 %v633
      %799 = vmatpush.bf16.msra.mxu0 %v632
      %800 = vmatpush.bf16.msra.mxu0 %v631
      %801 = vmatpush.bf16.msra.mxu0 %v630
      %802 = vmatmul.bf16.gmra.mxu0 %v402
      %v803 = vpop.f32.mrf.mxu0
      %v804 = vadd.f32 %v775, %v803
      %v805 = vpop.f32.mrf.mxu0
      %v806 = vadd.f32 %v777, %v805
      %807 = vmatmul.bf16.gmra.mxu0 %v407
      %v808 = vpop.f32.mrf.mxu0
      %v809 = vadd.f32 %v780, %v808
      %v810 = vpop.f32.mrf.mxu0
      %v811 = vadd.f32 %v782, %v810
      %812 = vmatmul.bf16.gmra.mxu0 %v412
      %v813 = vpop.f32.mrf.mxu0
      %v814 = vadd.f32 %v785, %v813
      %v815 = vpop.f32.mrf.mxu0
      %v816 = vadd.f32 %v787, %v815
      %817 = vmatmul.bf16.gmra.mxu0 %v417
      %v818 = vpop.f32.mrf.mxu0
      %v819 = vadd.f32 %v790, %v818
      %v820 = vpop.f32.mrf.mxu0
      %v821 = vadd.f32 %v792, %v820
      %822 = vdwg.mxu0
      %v823 = vld [vmem:[%s218] sm:$0xf]
      %v824 = vld [vmem:[%s218 + $0x4] sm:$0xf]
      %v825 = vld [vmem:[%s218 + $0x8] sm:$0xf]
      %v826 = vld [vmem:[%s218 + $0xc] sm:$0xf]
      %v827 = vld [vmem:[%s218 + $0x10] sm:$0xf]
      %v828 = vld [vmem:[%s218 + $0x14] sm:$0xf]
      %v829 = vld [vmem:[%s218 + $0x18] sm:$0xf]
      %v830 = vld [vmem:[%s218 + $0x1c] sm:$0xf]
      %v831 = vunpack.c.l.bf16 %v823
      %v832 = vunpack.c.l.bf16 %v824
      %v833 = vunpack.c.l.bf16 %v825
      %v834 = vunpack.c.l.bf16 %v826
      %v835 = vunpack.c.l.bf16 %v827
      %v836 = vunpack.c.l.bf16 %v828
      %v837 = vunpack.c.l.bf16 %v829
      %v838 = vunpack.c.l.bf16 %v830
      %v839 = vadd.f32 %v804, %v831
      %v840 = vadd.f32 %v806, %v832
      %v841 = vadd.f32 %v809, %v833
      %v842 = vadd.f32 %v811, %v834
      %v843 = vadd.f32 %v814, %v835
      %v844 = vadd.f32 %v816, %v836
      %v845 = vadd.f32 %v819, %v837
      %v846 = vadd.f32 %v821, %v838
      %v847 = vmax.f32 %v839, 0.0
      %v848 = vmax.f32 %v840, 0.0
      %v849 = vmax.f32 %v841, 0.0
      %v850 = vmax.f32 %v842, 0.0
      %v851 = vmax.f32 %v843, 0.0
      %v852 = vmax.f32 %v844, 0.0
      %v853 = vmax.f32 %v845, 0.0
      %v854 = vmax.f32 %v846, 0.0
      %v855 = vpack.c.bf16 %v847, %v847
      %v856 = vpack.c.bf16 %v848, %v848
      %v857 = vpack.c.bf16 %v849, %v849
      %v858 = vpack.c.bf16 %v850, %v850
      %v859 = vpack.c.bf16 %v851, %v851
      %v860 = vpack.c.bf16 %v852, %v852
      %v861 = vpack.c.bf16 %v853, %v853
      %v862 = vpack.c.bf16 %v854, %v854
      %vm863 = vcmask 519168
      %864 = vst.msk [vmem:[%s224] sm:$0xf] %vm863, %v855
      %865 = vst.msk [vmem:[%s224 + $0x4] sm:$0xf] %vm863, %v856
      %866 = vst.msk [vmem:[%s224 + $0x8] sm:$0xf] %vm863, %v857
      %867 = vst.msk [vmem:[%s224 + $0xc] sm:$0xf] %vm863, %v858
      %868 = vst.msk [vmem:[%s224 + $0x10] sm:$0xf] %vm863, %v859
      %869 = vst.msk [vmem:[%s224 + $0x14] sm:$0xf] %vm863, %v860
      %870 = vst.msk [vmem:[%s224 + $0x18] sm:$0xf] %vm863, %v861
      %871 = vst.msk [vmem:[%s224 + $0x1c] sm:$0xf] %vm863, %v862
      %s872 = smul.u32 8, %s15
      %p873 = scmp.lt.s32.totalorder %s872, 15
      %s874 = scalar_select %p873, %s872, 15
      %s875 = smul.addr %s874, 4
      %s876 = scalar_lea.vmem %s4, %s875
      // Predicated region
      $region37: #{resnet_encoder_forward.17} parent=35 // pred_check
        %p877 = pneg %p127
      $region38: #{resnet_encoder_forward.17} parent=35 // pred_check_branch
        %879 = sbr.rel (%p877) target = $region40
      $region39: #{resnet_encoder_forward.17} parent=35 // pred_region
        %s880 = smul.u32 8, %s15
      $region40: #{resnet_encoder_forward.17} parent=35 // pred_fallthru
        _
    $region36: #{resnet_encoder_forward.17} parent=5 // pred_fallthru
      _
    %p881 = scmp.le.s32.totalorder 2, %s10
    // Predicated region
    $region41: #{resnet_encoder_forward.17} parent=5 // pred_check
      %p882 = pneg %p881
    $region42: #{resnet_encoder_forward.17} parent=5 // pred_check_branch
      %884 = sbr.rel (%p882) target = $region44
    $region43: #{resnet_encoder_forward.17} parent=5 // pred_region
      %s885 = ssub.s32 %s10, 2
      // Predicated region
      $region45: #{resnet_encoder_forward.17} parent=43 // pred_check
        %p886 = pneg %p133
      $region46: #{resnet_encoder_forward.17} parent=43 // pred_check_branch
        %888 = sbr.rel (%p886) target = $region48
      $region47: #{resnet_encoder_forward.17} parent=43 // pred_region
        %s889 = smul.u32 8, %s16
        %p890 = scmp.lt.s32.totalorder %s889, 15
        %s891 = scalar_select %p890, %s889, 15
        %s892 = smul.addr %s891, 4
        %s893 = scalar_lea.vmem %s4, %s892
      $region48: #{resnet_encoder_forward.17} parent=43 // pred_fallthru
        _
    $region44: #{resnet_encoder_forward.17} parent=5 // pred_fallthru
      _
  $region6: #{resnet_encoder_forward.17} parent=0 // loop_footer
    %s14 = sadd.s32 1, %s10
  $region7: #{resnet_encoder_forward.17} parent=0 // loop_footer_branch
    %9 = sbr.rel target = $region3
  $region8: #{resnet_encoder_forward.17} parent=0 // loop_exit
    _

// kernel: resnet_encoder_forward.16
$region0: #{resnet_encoder_forward.16}
  #allocation0 [shape = 'u32[]', space=smem, size = 0x4, offset = 0x4, fixed_abs, tag = 'smem constant byte address 0x4 - core index']
  #allocation1 [shape = 'u32[72,128]{1,0:T(1,128)}', space=vmem, size = 0x9000, scoped, tag = 'internal scratch']
  %s0 = inlined_call_operand.vmem [shape: bf16[128,640], index: 0, kind: input, shape index: {}]
  %s1 = inlined_call_operand.vmem [shape: bf16[640,64], index: 1, kind: input, shape index: {}]
  %s2 = inlined_call_operand.vmem [shape: f32[1,64], index: 2, kind: input, shape index: {}]
  %s3 = inlined_call_operand.vmem [shape: bf16[128,64], index: 3, kind: output, shape index: {}]
  %s4 = sld [smem:[#allocation0]]
  $region45: #{resnet_encoder_forward.16} parent=0
    _
  %s6 = ssub.s32 1, %s4
  %s7 = scalar_select 0, %s6, %s4
  loop: start=0, step=1, limit=4
  $region2: #{resnet_encoder_forward.16} parent=0 // loop_pre_header
    _
  $region3: #{resnet_encoder_forward.16} parent=0 // loop_header
    %s9 = sphi 0, %s13
    %p10 = scmp.ge.s32.totalorder %s9, 4
    %s19 = sphi 0, %s21
    %s22 = sphi 0, %s19
    %s23 = sphi 0, %s22
    %s39 = sphi 0, %s23
    %s43 = sphi 0, %s43
    %s45 = sphi 0, %s43
    %s46 = sphi 0, %s45
    %s60 = sphi 0, %s46
    %s64 = sphi 0, %s64
    %s66 = sphi 0, %s64
    %s67 = sphi 0, %s66
    %s81 = sphi 0, %s67
    %s87 = sphi 0, %s89
    %s90 = sphi 0, %s87
    %s91 = sphi 0, %s90
    %s107 = sphi 0, %s91
  $region4: #{resnet_encoder_forward.16} parent=0 // loop_header_branch
    %12 = sbr.rel (%p10) target = $region8
  $region5: #{resnet_encoder_forward.16} parent=0 // loop_body
    %s14 = ssub.s32 %s9, 1
    %s15 = ssub.s32 %s9, 2
    %s16 = sadd.s32 %s9, 1
    %s17 = ssub.s32 %s9, %s16
    %p18 = scmp.eq.s32.totalorder %s17, 0
    %s20 = sadd.s32 %s19, 1
    %s21 = scalar_select %p18, %s19, %s20
    %p24 = pneg %p18
    %p25 = scmp.eq.s32.totalorder %s9, 1
    %p26 = por %p24, %p25
    %p27 = scmp.ne.s32.totalorder %s19, %s22
    %p28 = scmp.eq.s32.totalorder %s9, 0
    %p29 = por %p27, %p28
    %p30 = scmp.ne.s32.totalorder %s19, %s22
    %p31 = scmp.eq.s32.totalorder %s14, 1
    %p32 = por %p30, %p31
    %p33 = scmp.ne.s32.totalorder %s22, %s23
    %p34 = scmp.eq.s32.totalorder %s14, 0
    %p35 = por %p33, %p34
    %p36 = scmp.ne.s32.totalorder %s22, %s23
    %p37 = scmp.eq.s32.totalorder %s15, 1
    %p38 = por %p36, %p37
    %p40 = scmp.ne.s32.totalorder %s23, %s39
    %p41 = scmp.eq.s32.totalorder %s15, 0
    %p42 = por %p40, %p41
    %s44 = sadd.s32 %s43, 1
    %p47 = scmp.eq.s32.totalorder %s9, 1
    %p48 = scmp.ne.s32.totalorder %s43, %s45
    %p49 = scmp.eq.s32.totalorder %s9, 0
    %p50 = por %p48, %p49
    %p51 = scmp.ne.s32.totalorder %s43, %s45
    %p52 = scmp.eq.s32.totalorder %s14, 1
    %p53 = por %p51, %p52
    %p54 = scmp.ne.s32.totalorder %s45, %s46
    %p55 = scmp.eq.s32.totalorder %s14, 0
    %p56 = por %p54, %p55
    %p57 = scmp.ne.s32.totalorder %s45, %s46
    %p58 = scmp.eq.s32.totalorder %s15, 1
    %p59 = por %p57, %p58
    %p61 = scmp.ne.s32.totalorder %s46, %s60
    %p62 = scmp.eq.s32.totalorder %s15, 0
    %p63 = por %p61, %p62
    %s65 = sadd.s32 %s64, 1
    %p68 = scmp.eq.s32.totalorder %s9, 1
    %p69 = scmp.ne.s32.totalorder %s64, %s66
    %p70 = scmp.eq.s32.totalorder %s9, 0
    %p71 = por %p69, %p70
    %p72 = scmp.ne.s32.totalorder %s64, %s66
    %p73 = scmp.eq.s32.totalorder %s14, 1
    %p74 = por %p72, %p73
    %p75 = scmp.ne.s32.totalorder %s66, %s67
    %p76 = scmp.eq.s32.totalorder %s14, 0
    %p77 = por %p75, %p76
    %p78 = scmp.ne.s32.totalorder %s66, %s67
    %p79 = scmp.eq.s32.totalorder %s15, 1
    %p80 = por %p78, %p79
    %p82 = scmp.ne.s32.totalorder %s67, %s81
    %p83 = scmp.eq.s32.totalorder %s15, 0
    %p84 = por %p82, %p83
    %s85 = ssub.s32 %s9, %s16
    %p86 = scmp.eq.s32.totalorder %s85, 0
    %s88 = sadd.s32 %s87, 1
    %s89 = scalar_select %p86, %s87, %s88
    %p92 = pneg %p86
    %p93 = scmp.eq.s32.totalorder %s9, 1
    %p94 = por %p92, %p93
    %p95 = scmp.ne.s32.totalorder %s87, %s90
    %p96 = scmp.eq.s32.totalorder %s9, 0
    %p97 = por %p95, %p96
    %p98 = scmp.ne.s32.totalorder %s87, %s90
    %p99 = scmp.eq.s32.totalorder %s14, 1
    %p100 = por %p98, %p99
    %p101 = scmp.ne.s32.totalorder %s90, %s91
    %p102 = scmp.eq.s32.totalorder %s14, 0
    %p103 = por %p101, %p102
    %p104 = scmp.ne.s32.totalorder %s90, %s91
    %p105 = scmp.eq.s32.totalorder %s15, 1
    %p106 = por %p104, %p105
    %p108 = scmp.ne.s32.totalorder %s91, %s107
    %p109 = scmp.eq.s32.totalorder %s15, 0
    %p110 = por %p108, %p109
    %p111 = scmp.le.s32.totalorder 1, %s9
    %p112 = scmp.lt.s32.totalorder %s9, 3
    %p113 = pnand %p111, %p112
    %p114 = pneg %p113
    // Predicated region
    $region9: #{resnet_encoder_forward.16} parent=5 // pred_check
      _
    $region10: #{resnet_encoder_forward.16} parent=5 // pred_check_branch
      %116 = sbr.rel (%p113) target = $region12
    $region11: #{resnet_encoder_forward.16} parent=5 // pred_region
      %s117 = ssub.s32 %s9, 1
      // Predicated region
      $region13: #{resnet_encoder_forward.16} parent=11 // pred_check
        %p118 = pneg %p56
      $region14: #{resnet_encoder_forward.16} parent=11 // pred_check_branch
        %120 = sbr.rel (%p118) target = $region16
      $region15: #{resnet_encoder_forward.16} parent=11 // pred_region
        _
      $region16: #{resnet_encoder_forward.16} parent=11 // pred_fallthru
        _
      // Predicated region
      $region17: #{resnet_encoder_forward.16} parent=11 // pred_check
        %p121 = pneg %p77
      $region18: #{resnet_encoder_forward.16} parent=11 // pred_check_branch
        %123 = sbr.rel (%p121) target = $region20
      $region19: #{resnet_encoder_forward.16} parent=11 // pred_region
        _
      $region20: #{resnet_encoder_forward.16} parent=11 // pred_fallthru
        _
    $region12: #{resnet_encoder_forward.16} parent=5 // pred_fallthru
      _
    %p124 = scmp.lt.s32.totalorder %s9, 2
    // Predicated region
    $region21: #{resnet_encoder_forward.16} parent=5 // pred_check
      %p125 = pneg %p124
    $region22: #{resnet_encoder_forward.16} parent=5 // pred_check_branch
      %127 = sbr.rel (%p125) target = $region24
    $region23: #{resnet_encoder_forward.16} parent=5 // pred_region
      // Predicated region
      $region25: #{resnet_encoder_forward.16} parent=23 // pred_check
        %p128 = pneg %p29
      $region26: #{resnet_encoder_forward.16} parent=23 // pred_check_branch
        %130 = sbr.rel (%p128) target = $region28
      $region27: #{resnet_encoder_forward.16} parent=23 // pred_region
        %s131 = smul.u32 8, %s9
        %p132 = scmp.lt.s32.totalorder %s131, 15
        %s133 = scalar_select %p132, %s131, 15
        %s134 = smul.addr %s133, 5
        %s135 = smul.addr %s134, 4
        %s136 = scalar_lea.vmem %s0, %s135
        %s137 = smul.u32 8, %s9
      $region28: #{resnet_encoder_forward.16} parent=23 // pred_fallthru
        _
    $region24: #{resnet_encoder_forward.16} parent=5 // pred_fallthru
      _
    %p138 = scmp.le.s32.totalorder 1, %s9
    %p139 = scmp.lt.s32.totalorder %s9, 3
    %p140 = pnand %p138, %p139
    %p141 = pneg %p140
    // Predicated region
    $region29: #{resnet_encoder_forward.16} parent=5 // pred_check
      _
    $region30: #{resnet_encoder_forward.16} parent=5 // pred_check_branch
      %143 = sbr.rel (%p140) target = $region32
    $region31: #{resnet_encoder_forward.16} parent=5 // pred_region
      %s144 = ssub.s32 %s9, 1
      %s145 = smul.u32 8, %s14
      %p146 = scmp.lt.s32.totalorder %s145, 15
      %s147 = scalar_select %p146, %s145, 15
      %s148 = smul.addr %s147, 5
      %s149 = smul.addr %s148, 4
      %s150 = scalar_lea.vmem %s0, %s149
      %p151 = pneg %p35
      %p152 = pneg %p32
      %p153 = pneg %p56
      %p154 = pneg %p53
      %p155 = pneg %p77
      %p156 = pneg %p74
      %p157 = pneg %p103
      %p158 = pneg %p100
      %s159 = smul.u32 8, %s14
      %p160 = scmp.lt.s32.totalorder %s159, 15
      %s161 = scalar_select %p160, %s159, 15
      %s162 = smul.addr %s161, 4
      %s163 = scalar_lea.vmem %s3, %s162
      %s164 = smul.u32 8, %s14
      %p165 = scmp.lt.s32.totalorder %s164, 15
      %s166 = scalar_select %p165, %s164, 15
      %s167 = smul.addr %s166, 5
      %s168 = smul.addr %s167, 4
      %s169 = scalar_lea.vmem %s0, %s168
      %s170 = smul.u32 8, %s14
      %s171 = smul.u32 8, %s14
      %p172 = scmp.lt.s32.totalorder %s171, 15
      %s173 = scalar_select %p172, %s171, 15
      %s174 = smul.addr %s173, 4
      %s175 = scalar_lea.vmem %s3, %s174
      %s176 = smul.u32 8, %s14
      %v177 = vld [vmem:[%s169] sm:$0xff]
      %v178 = vld [vmem:[%s169 + $0x8] sm:$0xff]
      %v179 = vld [vmem:[%s169 + $0x10] sm:$0xf]
      %v180 = vld [vmem:[%s169 + $0x14] sm:$0xff]
      %v181 = vld [vmem:[%s169 + $0x1c] sm:$0xff]
      %v182 = vld [vmem:[%s169 + $0x24] sm:$0xf]
      %v183 = vld [vmem:[%s169 + $0x28] sm:$0xff]
      %v184 = vld [vmem:[%s169 + $0x30] sm:$0xff]
      %v185 = vld [vmem:[%s169 + $0x38] sm:$0xf]
      %v186 = vld [vmem:[%s169 + $0x3c] sm:$0xff]
      %v187 = vld [vmem:[%s169 + $0x44] sm:$0xff]
      %v188 = vld [vmem:[%s169 + $0x4c] sm:$0xf]
      %v189 = vld [vmem:[%s169 + $0x50] sm:$0xff]
      %v190 = vld [vmem:[%s169 + $0x58] sm:$0xff]
      %v191 = vld [vmem:[%s169 + $0x60] sm:$0xf]
      %v192 = vld [vmem:[%s169 + $0x64] sm:$0xff]
      %v193 = vld [vmem:[%s169 + $0x6c] sm:$0xff]
      %v194 = vld [vmem:[%s169 + $0x74] sm:$0xf]
      %v195 = vld [vmem:[%s169 + $0x78] sm:$0xff]
      %v196 = vld [vmem:[%s169 + $0x80] sm:$0xff]
      %v197 = vld [vmem:[%s169 + $0x88] sm:$0xf]
      %v198 = vld [vmem:[%s169 + $0x8c] sm:$0xff]
      %v199 = vld [vmem:[%s169 + $0x94] sm:$0xff]
      %v200 = vld [vmem:[%s169 + $0x9c] sm:$0xf]
      %v201 = vld [vmem:[%s1] sm:$0xf]
      %v202 = vld [vmem:[%s1 + $0x4] sm:$0xf]
      %v203 = vld [vmem:[%s1 + $0x8] sm:$0xf]
      %v204 = vld [vmem:[%s1 + $0xc] sm:$0xf]
      %v205 = vld [vmem:[%s1 + $0x10] sm:$0xf]
      %v206 = vld [vmem:[%s1 + $0x14] sm:$0xf]
      %v207 = vld [vmem:[%s1 + $0x18] sm:$0xf]
      %v208 = vld [vmem:[%s1 + $0x1c] sm:$0xf]
      %v209 = vld [vmem:[%s1 + $0x20] sm:$0xf]
      %v210 = vld [vmem:[%s1 + $0x24] sm:$0xf]
      %v211 = vld [vmem:[%s1 + $0x28] sm:$0xf]
      %v212 = vld [vmem:[%s1 + $0x2c] sm:$0xf]
      %v213 = vld [vmem:[%s1 + $0x30] sm:$0xf]
      %v214 = vld [vmem:[%s1 + $0x34] sm:$0xf]
      %v215 = vld [vmem:[%s1 + $0x38] sm:$0xf]
      %v216 = vld [vmem:[%s1 + $0x3c] sm:$0xf]
      %v217 = vld [vmem:[%s1 + $0x40] sm:$0xf]
      %v218 = vld [vmem:[%s1 + $0x44] sm:$0xf]
      %v219 = vld [vmem:[%s1 + $0x48] sm:$0xf]
      %v220 = vld [vmem:[%s1 + $0x4c] sm:$0xf]
      %v221 = vld [vmem:[%s1 + $0x50] sm:$0xf]
      %v222 = vld [vmem:[%s1 + $0x54] sm:$0xf]
      %v223 = vld [vmem:[%s1 + $0x58] sm:$0xf]
      %v224 = vld [vmem:[%s1 + $0x5c] sm:$0xf]
      %v225 = vld [vmem:[%s1 + $0x60] sm:$0xf]
      %v226 = vld [vmem:[%s1 + $0x64] sm:$0xf]
      %v227 = vld [vmem:[%s1 + $0x68] sm:$0xf]
      %v228 = vld [vmem:[%s1 + $0x6c] sm:$0xf]
      %v229 = vld [vmem:[%s1 + $0x70] sm:$0xf]
      %v230 = vld [vmem:[%s1 + $0x74] sm:$0xf]
      %v231 = vld [vmem:[%s1 + $0x78] sm:$0xf]
      %v232 = vld [vmem:[%s1 + $0x7c] sm:$0xf]
      %v233 = vld [vmem:[%s1 + $0x80] sm:$0xf]
      %v234 = vld [vmem:[%s1 + $0x84] sm:$0xf]
      %v235 = vld [vmem:[%s1 + $0x88] sm:$0xf]
      %v236 = vld [vmem:[%s1 + $0x8c] sm:$0xf]
      %v237 = vld [vmem:[%s1 + $0x90] sm:$0xf]
      %v238 = vld [vmem:[%s1 + $0x94] sm:$0xf]
      %v239 = vld [vmem:[%s1 + $0x98] sm:$0xf]
      %v240 = vld [vmem:[%s1 + $0x9c] sm:$0xf]
      %v241 = vld [vmem:[%s1 + $0xa0] sm:$0xf]
      %v242 = vld [vmem:[%s1 + $0xa4] sm:$0xf]
      %v243 = vld [vmem:[%s1 + $0xa8] sm:$0xf]
      %v244 = vld [vmem:[%s1 + $0xac] sm:$0xf]
      %v245 = vld [vmem:[%s1 + $0xb0] sm:$0xf]
      %v246 = vld [vmem:[%s1 + $0xb4] sm:$0xf]
      %v247 = vld [vmem:[%s1 + $0xb8] sm:$0xf]
      %v248 = vld [vmem:[%s1 + $0xbc] sm:$0xf]
      %v249 = vld [vmem:[%s1 + $0xc0] sm:$0xf]
      %v250 = vld [vmem:[%s1 + $0xc4] sm:$0xf]
      %v251 = vld [vmem:[%s1 + $0xc8] sm:$0xf]
      %v252 = vld [vmem:[%s1 + $0xcc] sm:$0xf]
      %v253 = vld [vmem:[%s1 + $0xd0] sm:$0xf]
      %v254 = vld [vmem:[%s1 + $0xd4] sm:$0xf]
      %v255 = vld [vmem:[%s1 + $0xd8] sm:$0xf]
      %v256 = vld [vmem:[%s1 + $0xdc] sm:$0xf]
      %v257 = vld [vmem:[%s1 + $0xe0] sm:$0xf]
      %v258 = vld [vmem:[%s1 + $0xe4] sm:$0xf]
      %v259 = vld [vmem:[%s1 + $0xe8] sm:$0xf]
      %v260 = vld [vmem:[%s1 + $0xec] sm:$0xf]
      %v261 = vld [vmem:[%s1 + $0xf0] sm:$0xf]
      %v262 = vld [vmem:[%s1 + $0xf4] sm:$0xf]
      %v263 = vld [vmem:[%s1 + $0xf8] sm:$0xf]
      %v264 = vld [vmem:[%s1 + $0xfc] sm:$0xf]
      %v265 = vld [vmem:[%s1 + $0x100] sm:$0xf]
      %v266 = vld [vmem:[%s1 + $0x104] sm:$0xf]
      %v267 = vld [vmem:[%s1 + $0x108] sm:$0xf]
      %v268 = vld [vmem:[%s1 + $0x10c] sm:$0xf]
      %v269 = vld [vmem:[%s1 + $0x110] sm:$0xf]
      %v270 = vld [vmem:[%s1 + $0x114] sm:$0xf]
      %v271 = vld [vmem:[%s1 + $0x118] sm:$0xf]
      %v272 = vld [vmem:[%s1 + $0x11c] sm:$0xf]
      %v273 = vld [vmem:[%s1 + $0x120] sm:$0xf]
      %v274 = vld [vmem:[%s1 + $0x124] sm:$0xf]
      %v275 = vld [vmem:[%s1 + $0x128] sm:$0xf]
      %v276 = vld [vmem:[%s1 + $0x12c] sm:$0xf]
      %v277 = vld [vmem:[%s1 + $0x130] sm:$0xf]
      %v278 = vld [vmem:[%s1 + $0x134] sm:$0xf]
      %v279 = vld [vmem:[%s1 + $0x138] sm:$0xf]
      %v280 = vld [vmem:[%s1 + $0x13c] sm:$0xf]
      %v281 = vld [vmem:[%s2] sm:$0x1]
      %v283 = vperm.slane %v281, 0
      %v309 = vunpack.c.l.b16 %v177
      %v310 = vunpack.c.h.b16 %v177
      %v311 = vunpack.c.l.b16 %v178
      %v312 = vunpack.c.h.b16 %v178
      %v313 = vunpack.c.l.b16 %v179
      %v314 = vunpack.c.l.b16 %v180
      %v315 = vunpack.c.h.b16 %v180
      %v316 = vunpack.c.l.b16 %v181
      %v317 = vunpack.c.h.b16 %v181
      %v318 = vunpack.c.l.b16 %v182
      %v319 = vunpack.c.l.b16 %v183
      %v320 = vunpack.c.h.b16 %v183
      %v321 = vunpack.c.l.b16 %v184
      %v322 = vunpack.c.h.b16 %v184
      %v323 = vunpack.c.l.b16 %v185
      %v324 = vunpack.c.l.b16 %v186
      %v325 = vunpack.c.h.b16 %v186
      %v326 = vunpack.c.l.b16 %v187
      %v327 = vunpack.c.h.b16 %v187
      %v328 = vunpack.c.l.b16 %v188
      %v329 = vunpack.c.l.b16 %v189
      %v330 = vunpack.c.h.b16 %v189
      %v331 = vunpack.c.l.b16 %v190
      %v332 = vunpack.c.h.b16 %v190
      %v333 = vunpack.c.l.b16 %v191
      %v334 = vunpack.c.l.b16 %v192
      %v335 = vunpack.c.h.b16 %v192
      %v336 = vunpack.c.l.b16 %v193
      %v337 = vunpack.c.h.b16 %v193
      %v338 = vunpack.c.l.b16 %v194
      %v339 = vunpack.c.l.b16 %v195
      %v340 = vunpack.c.h.b16 %v195
      %v341 = vunpack.c.l.b16 %v196
      %v342 = vunpack.c.h.b16 %v196
      %v343 = vunpack.c.l.b16 %v197
      %v344 = vunpack.c.l.b16 %v198
      %v345 = vunpack.c.h.b16 %v198
      %v346 = vunpack.c.l.b16 %v199
      %v347 = vunpack.c.h.b16 %v199
      %v348 = vunpack.c.l.b16 %v200
      %v349 = vpack.c.b16 %v314, %v309
      %v350 = vpack.c.b16 %v315, %v310
      %v351 = vpack.c.b16 %v316, %v311
      %v352 = vpack.c.b16 %v317, %v312
      %v353 = vpack.c.b16 %v318, %v313
      %v354 = vpack.c.b16 %v324, %v319
      %v355 = vpack.c.b16 %v325, %v320
      %v356 = vpack.c.b16 %v326, %v321
      %v357 = vpack.c.b16 %v327, %v322
      %v358 = vpack.c.b16 %v328, %v323
      %v359 = vpack.c.b16 %v334, %v329
      %v360 = vpack.c.b16 %v335, %v330
      %v361 = vpack.c.b16 %v336, %v331
      %v362 = vpack.c.b16 %v337, %v332
      %v363 = vpack.c.b16 %v338, %v333
      %v364 = vpack.c.b16 %v344, %v339
      %v365 = vpack.c.b16 %v345, %v340
      %v366 = vpack.c.b16 %v346, %v341
      %v367 = vpack.c.b16 %v347, %v342
      %v368 = vpack.c.b16 %v348, %v343
      %v469 = vunpack.c.l.b16 %v201
      %v470 = vunpack.c.l.b16 %v202
      %v471 = vunpack.c.l.b16 %v203
      %v472 = vunpack.c.l.b16 %v204
      %v473 = vunpack.c.l.b16 %v205
      %v474 = vunpack.c.l.b16 %v206
      %v475 = vunpack.c.l.b16 %v207
      %v476 = vunpack.c.l.b16 %v208
      %v477 = vunpack.c.l.b16 %v209
      %v478 = vunpack.c.l.b16 %v210
      %v479 = vunpack.c.l.b16 %v211
      %v480 = vunpack.c.l.b16 %v212
      %v481 = vunpack.c.l.b16 %v213
      %v482 = vunpack.c.l.b16 %v214
      %v483 = vunpack.c.l.b16 %v215
      %v484 = vunpack.c.l.b16 %v216
      %v485 = vunpack.c.l.b16 %v217
      %v486 = vunpack.c.l.b16 %v218
      %v487 = vunpack.c.l.b16 %v219
      %v488 = vunpack.c.l.b16 %v220
      %v489 = vunpack.c.l.b16 %v221
      %v490 = vunpack.c.l.b16 %v222
      %v491 = vunpack.c.l.b16 %v223
      %v492 = vunpack.c.l.b16 %v224
      %v493 = vunpack.c.l.b16 %v225
      %v494 = vunpack.c.l.b16 %v226
      %v495 = vunpack.c.l.b16 %v227
      %v496 = vunpack.c.l.b16 %v228
      %v497 = vunpack.c.l.b16 %v229
      %v498 = vunpack.c.l.b16 %v230
      %v499 = vunpack.c.l.b16 %v231
      %v500 = vunpack.c.l.b16 %v232
      %v501 = vunpack.c.l.b16 %v233
      %v502 = vunpack.c.l.b16 %v234
      %v503 = vunpack.c.l.b16 %v235
      %v504 = vunpack.c.l.b16 %v236
      %v505 = vunpack.c.l.b16 %v237
      %v506 = vunpack.c.l.b16 %v238
      %v507 = vunpack.c.l.b16 %v239
      %v508 = vunpack.c.l.b16 %v240
      %v509 = vunpack.c.l.b16 %v241
      %v510 = vunpack.c.l.b16 %v242
      %v511 = vunpack.c.l.b16 %v243
      %v512 = vunpack.c.l.b16 %v244
      %v513 = vunpack.c.l.b16 %v245
      %v514 = vunpack.c.l.b16 %v246
      %v515 = vunpack.c.l.b16 %v247
      %v516 = vunpack.c.l.b16 %v248
      %v517 = vunpack.c.l.b16 %v249
      %v518 = vunpack.c.l.b16 %v250
      %v519 = vunpack.c.l.b16 %v251
      %v520 = vunpack.c.l.b16 %v252
      %v521 = vunpack.c.l.b16 %v253
      %v522 = vunpack.c.l.b16 %v254
      %v523 = vunpack.c.l.b16 %v255
      %v524 = vunpack.c.l.b16 %v256
      %v525 = vunpack.c.l.b16 %v257
      %v526 = vunpack.c.l.b16 %v258
      %v527 = vunpack.c.l.b16 %v259
      %v528 = vunpack.c.l.b16 %v260
      %v529 = vunpack.c.l.b16 %v261
      %v530 = vunpack.c.l.b16 %v262
      %v531 = vunpack.c.l.b16 %v263
      %v532 = vunpack.c.l.b16 %v264
      %v533 = vunpack.c.l.b16 %v265
      %v534 = vunpack.c.l.b16 %v266
      %v535 = vunpack.c.l.b16 %v267
      %v536 = vunpack.c.l.b16 %v268
      %v537 = vunpack.c.l.b16 %v269
      %v538 = vunpack.c.l.b16 %v270
      %v539 = vunpack.c.l.b16 %v271
      %v540 = vunpack.c.l.b16 %v272
      %v541 = vunpack.c.l.b16 %v273
      %v542 = vunpack.c.l.b16 %v274
      %v543 = vunpack.c.l.b16 %v275
      %v544 = vunpack.c.l.b16 %v276
      %v545 = vunpack.c.l.b16 %v277
      %v546 = vunpack.c.l.b16 %v278
      %v547 = vunpack.c.l.b16 %v279
      %v548 = vunpack.c.l.b16 %v280
      %v549 = vpack.c.b16 %v470, %v469
      %v550 = vpack.c.b16 %v472, %v471
      %v551 = vpack.c.b16 %v474, %v473
      %v552 = vpack.c.b16 %v476, %v475
      %v553 = vpack.c.b16 %v478, %v477
      %v554 = vpack.c.b16 %v480, %v479
      %v555 = vpack.c.b16 %v482, %v481
      %v556 = vpack.c.b16 %v484, %v483
      %v557 = vpack.c.b16 %v486, %v485
      %v558 = vpack.c.b16 %v488, %v487
      %v559 = vpack.c.b16 %v490, %v489
      %v560 = vpack.c.b16 %v492, %v491
      %v561 = vpack.c.b16 %v494, %v493
      %v562 = vpack.c.b16 %v496, %v495
      %v563 = vpack.c.b16 %v498, %v497
      %v564 = vpack.c.b16 %v500, %v499
      %v565 = vpack.c.b16 %v502, %v501
      %v566 = vpack.c.b16 %v504, %v503
      %v567 = vpack.c.b16 %v506, %v505
      %v568 = vpack.c.b16 %v508, %v507
      %v569 = vpack.c.b16 %v510, %v509
      %v570 = vpack.c.b16 %v512, %v511
      %v571 = vpack.c.b16 %v514, %v513
      %v572 = vpack.c.b16 %v516, %v515
      %v573 = vpack.c.b16 %v518, %v517
      %v574 = vpack.c.b16 %v520, %v519
      %v575 = vpack.c.b16 %v522, %v521
      %v576 = vpack.c.b16 %v524, %v523
      %v577 = vpack.c.b16 %v526, %v525
      %v578 = vpack.c.b16 %v528, %v527
      %v579 = vpack.c.b16 %v530, %v529
      %v580 = vpack.c.b16 %v532, %v531
      %v581 = vpack.c.b16 %v534, %v533
      %v582 = vpack.c.b16 %v536, %v535
      %v583 = vpack.c.b16 %v538, %v537
      %v584 = vpack.c.b16 %v540, %v539
      %v585 = vpack.c.b16 %v542, %v541
      %v586 = vpack.c.b16 %v544, %v543
      %v587 = vpack.c.b16 %v546, %v545
      %v588 = vpack.c.b16 %v548, %v547
      %629 = vmatpush.bf16.msra.mxu0 %v556
      %630 = vmatpush.bf16.msra.mxu0 %v555
      %631 = vmatpush.bf16.msra.mxu0 %v554
      %632 = vmatpush.bf16.msra.mxu0 %v553
      %633 = vmatpush.bf16.msra.mxu0 %v552
      %634 = vmatpush.bf16.msra.mxu0 %v551
      %635 = vmatpush.bf16.msra.mxu0 %v550
      %636 = vmatpush.bf16.msra.mxu0 %v549
      %637 = vmatmul.bf16.gmra.mxu0 %v349
      %v638 = vpop.f32.mrf.mxu0
      %v639 = vadd.f32 %v283, %v638
      %v640 = vpop.f32.mrf.mxu0
      %v641 = vadd.f32 %v283, %v640
      %642 = vmatmul.bf16.gmra.mxu0 %v354
      %v643 = vpop.f32.mrf.mxu0
      %v644 = vadd.f32 %v283, %v643
      %v645 = vpop.f32.mrf.mxu0
      %v646 = vadd.f32 %v283, %v645
      %647 = vmatmul.bf16.gmra.mxu0 %v359
      %v648 = vpop.f32.mrf.mxu0
      %v649 = vadd.f32 %v283, %v648
      %v650 = vpop.f32.mrf.mxu0
      %v651 = vadd.f32 %v283, %v650
      %652 = vmatmul.bf16.gmra.mxu0 %v364
      %v653 = vpop.f32.mrf.mxu0
      %v654 = vadd.f32 %v283, %v653
      %v655 = vpop.f32.mrf.mxu0
      %v656 = vadd.f32 %v283, %v655
      %657 = vdwg.mxu0
      %658 = vmatpush.bf16.msra.mxu0 %v564
      %659 = vmatpush.bf16.msra.mxu0 %v563
      %660 = vmatpush.bf16.msra.mxu0 %v562
      %661 = vmatpush.bf16.msra.mxu0 %v561
      %662 = vmatpush.bf16.msra.mxu0 %v560
      %663 = vmatpush.bf16.msra.mxu0 %v559
      %664 = vmatpush.bf16.msra.mxu0 %v558
      %665 = vmatpush.bf16.msra.mxu0 %v557
      %666 = vmatmul.bf16.gmra.mxu0 %v350
      %v667 = vpop.f32.mrf.mxu0
      %v668 = vadd.f32 %v639, %v667
      %v669 = vpop.f32.mrf.mxu0
      %v670 = vadd.f32 %v641, %v669
      %671 = vmatmul.bf16.gmra.mxu0 %v355
      %v672 = vpop.f32.mrf.mxu0
      %v673 = vadd.f32 %v644, %v672
      %v674 = vpop.f32.mrf.mxu0
      %v675 = vadd.f32 %v646, %v674
      %676 = vmatmul.bf16.gmra.mxu0 %v360
      %v677 = vpop.f32.mrf.mxu0
      %v678 = vadd.f32 %v649, %v677
      %v679 = vpop.f32.mrf.mxu0
      %v680 = vadd.f32 %v651, %v679
      %681 = vmatmul.bf16.gmra.mxu0 %v365
      %v682 = vpop.f32.mrf.mxu0
      %v683 = vadd.f32 %v654, %v682
      %v684 = vpop.f32.mrf.mxu0
      %v685 = vadd.f32 %v656, %v684
      %686 = vdwg.mxu0
      %687 = vmatpush.bf16.msra.mxu0 %v572
      %688 = vmatpush.bf16.msra.mxu0 %v571
      %689 = vmatpush.bf16.msra.mxu0 %v570
      %690 = vmatpush.bf16.msra.mxu0 %v569
      %691 = vmatpush.bf16.msra.mxu0 %v568
      %692 = vmatpush.bf16.msra.mxu0 %v567
      %693 = vmatpush.bf16.msra.mxu0 %v566
      %694 = vmatpush.bf16.msra.mxu0 %v565
      %695 = vmatmul.bf16.gmra.mxu0 %v351
      %v696 = vpop.f32.mrf.mxu0
      %v697 = vadd.f32 %v668, %v696
      %v698 = vpop.f32.mrf.mxu0
      %v699 = vadd.f32 %v670, %v698
      %700 = vmatmul.bf16.gmra.mxu0 %v356
      %v701 = vpop.f32.mrf.mxu0
      %v702 = vadd.f32 %v673, %v701
      %v703 = vpop.f32.mrf.mxu0
      %v704 = vadd.f32 %v675, %v703
      %705 = vmatmul.bf16.gmra.mxu0 %v361
      %v706 = vpop.f32.mrf.mxu0
      %v707 = vadd.f32 %v678, %v706
      %v708 = vpop.f32.mrf.mxu0
      %v709 = vadd.f32 %v680, %v708
      %710 = vmatmul.bf16.gmra.mxu0 %v366
      %v711 = vpop.f32.mrf.mxu0
      %v712 = vadd.f32 %v683, %v711
      %v713 = vpop.f32.mrf.mxu0
      %v714 = vadd.f32 %v685, %v713
      %715 = vdwg.mxu0
      %716 = vmatpush.bf16.msra.mxu0 %v580
      %717 = vmatpush.bf16.msra.mxu0 %v579
      %718 = vmatpush.bf16.msra.mxu0 %v578
      %719 = vmatpush.bf16.msra.mxu0 %v577
      %720 = vmatpush.bf16.msra.mxu0 %v576
      %721 = vmatpush.bf16.msra.mxu0 %v575
      %722 = vmatpush.bf16.msra.mxu0 %v574
      %723 = vmatpush.bf16.msra.mxu0 %v573
      %724 = vmatmul.bf16.gmra.mxu0 %v352
      %v725 = vpop.f32.mrf.mxu0
      %v726 = vadd.f32 %v697, %v725
      %v727 = vpop.f32.mrf.mxu0
      %v728 = vadd.f32 %v699, %v727
      %729 = vmatmul.bf16.gmra.mxu0 %v357
      %v730 = vpop.f32.mrf.mxu0
      %v731 = vadd.f32 %v702, %v730
      %v732 = vpop.f32.mrf.mxu0
      %v733 = vadd.f32 %v704, %v732
      %734 = vmatmul.bf16.gmra.mxu0 %v362
      %v735 = vpop.f32.mrf.mxu0
      %v736 = vadd.f32 %v707, %v735
      %v737 = vpop.f32.mrf.mxu0
      %v738 = vadd.f32 %v709, %v737
      %739 = vmatmul.bf16.gmra.mxu0 %v367
      %v740 = vpop.f32.mrf.mxu0
      %v741 = vadd.f32 %v712, %v740
      %v742 = vpop.f32.mrf.mxu0
      %v743 = vadd.f32 %v714, %v742
      %744 = vdwg.mxu0
      %745 = vmatpush.bf16.msra.mxu0 %v588
      %746 = vmatpush.bf16.msra.mxu0 %v587
      %747 = vmatpush.bf16.msra.mxu0 %v586
      %748 = vmatpush.bf16.msra.mxu0 %v585
      %749 = vmatpush.bf16.msra.mxu0 %v584
      %750 = vmatpush.bf16.msra.mxu0 %v583
      %751 = vmatpush.bf16.msra.mxu0 %v582
      %752 = vmatpush.bf16.msra.mxu0 %v581
      %753 = vmatmul.bf16.gmra.mxu0 %v353
      %v754 = vpop.f32.mrf.mxu0
      %v755 = vadd.f32 %v726, %v754
      %v756 = vpop.f32.mrf.mxu0
      %v757 = vadd.f32 %v728, %v756
      %758 = vmatmul.bf16.gmra.mxu0 %v358
      %v759 = vpop.f32.mrf.mxu0
      %v760 = vadd.f32 %v731, %v759
      %v761 = vpop.f32.mrf.mxu0
      %v762 = vadd.f32 %v733, %v761
      %763 = vmatmul.bf16.gmra.mxu0 %v363
      %v764 = vpop.f32.mrf.mxu0
      %v765 = vadd.f32 %v736, %v764
      %v766 = vpop.f32.mrf.mxu0
      %v767 = vadd.f32 %v738, %v766
      %768 = vmatmul.bf16.gmra.mxu0 %v368
      %v769 = vpop.f32.mrf.mxu0
      %v770 = vadd.f32 %v741, %v769
      %v771 = vpop.f32.mrf.mxu0
      %v772 = vadd.f32 %v743, %v771
      %773 = vdwg.mxu0
      %v774 = vmax.f32 %v755, 0.0
      %v775 = vmax.f32 %v757, 0.0
      %v776 = vmax.f32 %v760, 0.0
      %v777 = vmax.f32 %v762, 0.0
      %v778 = vmax.f32 %v765, 0.0
      %v779 = vmax.f32 %v767, 0.0
      %v780 = vmax.f32 %v770, 0.0
      %v781 = vmax.f32 %v772, 0.0
      %v782 = vpack.c.bf16 %v774, %v774
      %v783 = vpack.c.bf16 %v775, %v775
      %v784 = vpack.c.bf16 %v776, %v776
      %v785 = vpack.c.bf16 %v777, %v777
      %v786 = vpack.c.bf16 %v778, %v778
      %v787 = vpack.c.bf16 %v779, %v779
      %v788 = vpack.c.bf16 %v780, %v780
      %v789 = vpack.c.bf16 %v781, %v781
      %vm790 = vcmask 519168
      %791 = vst.msk [vmem:[%s175] sm:$0xf] %vm790, %v782
      %792 = vst.msk [vmem:[%s175 + $0x4] sm:$0xf] %vm790, %v783
      %793 = vst.msk [vmem:[%s175 + $0x8] sm:$0xf] %vm790, %v784
      %794 = vst.msk [vmem:[%s175 + $0xc] sm:$0xf] %vm790, %v785
      %795 = vst.msk [vmem:[%s175 + $0x10] sm:$0xf] %vm790, %v786
      %796 = vst.msk [vmem:[%s175 + $0x14] sm:$0xf] %vm790, %v787
      %797 = vst.msk [vmem:[%s175 + $0x18] sm:$0xf] %vm790, %v788
      %798 = vst.msk [vmem:[%s175 + $0x1c] sm:$0xf] %vm790, %v789
      %s799 = smul.u32 8, %s14
      %p800 = scmp.lt.s32.totalorder %s799, 15
      %s801 = scalar_select %p800, %s799, 15
      %s802 = smul.addr %s801, 4
      %s803 = scalar_lea.vmem %s3, %s802
      // Predicated region
      $region33: #{resnet_encoder_forward.16} parent=31 // pred_check
        %p804 = pneg %p100
      $region34: #{resnet_encoder_forward.16} parent=31 // pred_check_branch
        %806 = sbr.rel (%p804) target = $region36
      $region35: #{resnet_encoder_forward.16} parent=31 // pred_region
        %s807 = smul.u32 8, %s14
      $region36: #{resnet_encoder_forward.16} parent=31 // pred_fallthru
        _
    $region32: #{resnet_encoder_forward.16} parent=5 // pred_fallthru
      _
    %p808 = scmp.le.s32.totalorder 2, %s9
    // Predicated region
    $region37: #{resnet_encoder_forward.16} parent=5 // pred_check
      %p809 = pneg %p808
    $region38: #{resnet_encoder_forward.16} parent=5 // pred_check_branch
      %811 = sbr.rel (%p809) target = $region40
    $region39: #{resnet_encoder_forward.16} parent=5 // pred_region
      %s812 = ssub.s32 %s9, 2
      // Predicated region
      $region41: #{resnet_encoder_forward.16} parent=39 // pred_check
        %p813 = pneg %p106
      $region42: #{resnet_encoder_forward.16} parent=39 // pred_check_branch
        %815 = sbr.rel (%p813) target = $region44
      $region43: #{resnet_encoder_forward.16} parent=39 // pred_region
        %s816 = smul.u32 8, %s15
        %p817 = scmp.lt.s32.totalorder %s816, 15
        %s818 = scalar_select %p817, %s816, 15
        %s819 = smul.addr %s818, 4
        %s820 = scalar_lea.vmem %s3, %s819
      $region44: #{resnet_encoder_forward.16} parent=39 // pred_fallthru
        _
    $region40: #{resnet_encoder_forward.16} parent=5 // pred_fallthru
      _
  $region6: #{resnet_encoder_forward.16} parent=0 // loop_footer
    %s13 = sadd.s32 1, %s9
  $region7: #{resnet_encoder_forward.16} parent=0 // loop_footer_branch
    %8 = sbr.rel target = $region3
  $region8: #{resnet_encoder_forward.16} parent=0 // loop_exit
    _

// kernel: resnet_encoder_forward.20
$region0: #{resnet_encoder_forward.20}
  #allocation0 [shape = 'u32[]', space=smem, size = 0x4, offset = 0x4, fixed_abs, tag = 'smem constant byte address 0x4 - core index']
  #allocation1 [shape = 'u32[72,128]{1,0:T(1,128)}', space=vmem, size = 0x9000, scoped, tag = 'internal scratch']
  %s0 = inlined_call_operand.vmem [shape: bf16[32,640], index: 0, kind: input, shape index: {}]
  %s1 = inlined_call_operand.vmem [shape: bf16[640,128], index: 1, kind: input, shape index: {}]
  %s2 = inlined_call_operand.vmem [shape: f32[1,128], index: 2, kind: input, shape index: {}]
  %s3 = inlined_call_operand.vmem [shape: bf16[32,128], index: 3, kind: output, shape index: {}]
  %s4 = sld [smem:[#allocation0]]
  $region45: #{resnet_encoder_forward.20} parent=0
    _
  %s6 = ssub.s32 1, %s4
  %s7 = scalar_select 0, %s6, %s4
  loop: start=0, step=1, limit=4
  $region2: #{resnet_encoder_forward.20} parent=0 // loop_pre_header
    _
  $region3: #{resnet_encoder_forward.20} parent=0 // loop_header
    %s9 = sphi 0, %s13
    %p10 = scmp.ge.s32.totalorder %s9, 4
    %s19 = sphi 0, %s21
    %s22 = sphi 0, %s19
    %s23 = sphi 0, %s22
    %s39 = sphi 0, %s23
    %s43 = sphi 0, %s43
    %s45 = sphi 0, %s43
    %s46 = sphi 0, %s45
    %s60 = sphi 0, %s46
    %s64 = sphi 0, %s64
    %s66 = sphi 0, %s64
    %s67 = sphi 0, %s66
    %s81 = sphi 0, %s67
    %s87 = sphi 0, %s89
    %s90 = sphi 0, %s87
    %s91 = sphi 0, %s90
    %s107 = sphi 0, %s91
  $region4: #{resnet_encoder_forward.20} parent=0 // loop_header_branch
    %12 = sbr.rel (%p10) target = $region8
  $region5: #{resnet_encoder_forward.20} parent=0 // loop_body
    %s14 = ssub.s32 %s9, 1
    %s15 = ssub.s32 %s9, 2
    %s16 = sadd.s32 %s9, 1
    %s17 = ssub.s32 %s9, %s16
    %p18 = scmp.eq.s32.totalorder %s17, 0
    %s20 = sadd.s32 %s19, 1
    %s21 = scalar_select %p18, %s19, %s20
    %p24 = pneg %p18
    %p25 = scmp.eq.s32.totalorder %s9, 1
    %p26 = por %p24, %p25
    %p27 = scmp.ne.s32.totalorder %s19, %s22
    %p28 = scmp.eq.s32.totalorder %s9, 0
    %p29 = por %p27, %p28
    %p30 = scmp.ne.s32.totalorder %s19, %s22
    %p31 = scmp.eq.s32.totalorder %s14, 1
    %p32 = por %p30, %p31
    %p33 = scmp.ne.s32.totalorder %s22, %s23
    %p34 = scmp.eq.s32.totalorder %s14, 0
    %p35 = por %p33, %p34
    %p36 = scmp.ne.s32.totalorder %s22, %s23
    %p37 = scmp.eq.s32.totalorder %s15, 1
    %p38 = por %p36, %p37
    %p40 = scmp.ne.s32.totalorder %s23, %s39
    %p41 = scmp.eq.s32.totalorder %s15, 0
    %p42 = por %p40, %p41
    %s44 = sadd.s32 %s43, 1
    %p47 = scmp.eq.s32.totalorder %s9, 1
    %p48 = scmp.ne.s32.totalorder %s43, %s45
    %p49 = scmp.eq.s32.totalorder %s9, 0
    %p50 = por %p48, %p49
    %p51 = scmp.ne.s32.totalorder %s43, %s45
    %p52 = scmp.eq.s32.totalorder %s14, 1
    %p53 = por %p51, %p52
    %p54 = scmp.ne.s32.totalorder %s45, %s46
    %p55 = scmp.eq.s32.totalorder %s14, 0
    %p56 = por %p54, %p55
    %p57 = scmp.ne.s32.totalorder %s45, %s46
    %p58 = scmp.eq.s32.totalorder %s15, 1
    %p59 = por %p57, %p58
    %p61 = scmp.ne.s32.totalorder %s46, %s60
    %p62 = scmp.eq.s32.totalorder %s15, 0
    %p63 = por %p61, %p62
    %s65 = sadd.s32 %s64, 1
    %p68 = scmp.eq.s32.totalorder %s9, 1
    %p69 = scmp.ne.s32.totalorder %s64, %s66
    %p70 = scmp.eq.s32.totalorder %s9, 0
    %p71 = por %p69, %p70
    %p72 = scmp.ne.s32.totalorder %s64, %s66
    %p73 = scmp.eq.s32.totalorder %s14, 1
    %p74 = por %p72, %p73
    %p75 = scmp.ne.s32.totalorder %s66, %s67
    %p76 = scmp.eq.s32.totalorder %s14, 0
    %p77 = por %p75, %p76
    %p78 = scmp.ne.s32.totalorder %s66, %s67
    %p79 = scmp.eq.s32.totalorder %s15, 1
    %p80 = por %p78, %p79
    %p82 = scmp.ne.s32.totalorder %s67, %s81
    %p83 = scmp.eq.s32.totalorder %s15, 0
    %p84 = por %p82, %p83
    %s85 = ssub.s32 %s9, %s16
    %p86 = scmp.eq.s32.totalorder %s85, 0
    %s88 = sadd.s32 %s87, 1
    %s89 = scalar_select %p86, %s87, %s88
    %p92 = pneg %p86
    %p93 = scmp.eq.s32.totalorder %s9, 1
    %p94 = por %p92, %p93
    %p95 = scmp.ne.s32.totalorder %s87, %s90
    %p96 = scmp.eq.s32.totalorder %s9, 0
    %p97 = por %p95, %p96
    %p98 = scmp.ne.s32.totalorder %s87, %s90
    %p99 = scmp.eq.s32.totalorder %s14, 1
    %p100 = por %p98, %p99
    %p101 = scmp.ne.s32.totalorder %s90, %s91
    %p102 = scmp.eq.s32.totalorder %s14, 0
    %p103 = por %p101, %p102
    %p104 = scmp.ne.s32.totalorder %s90, %s91
    %p105 = scmp.eq.s32.totalorder %s15, 1
    %p106 = por %p104, %p105
    %p108 = scmp.ne.s32.totalorder %s91, %s107
    %p109 = scmp.eq.s32.totalorder %s15, 0
    %p110 = por %p108, %p109
    %p111 = scmp.le.s32.totalorder 1, %s9
    %p112 = scmp.lt.s32.totalorder %s9, 3
    %p113 = pnand %p111, %p112
    %p114 = pneg %p113
    // Predicated region
    $region9: #{resnet_encoder_forward.20} parent=5 // pred_check
      _
    $region10: #{resnet_encoder_forward.20} parent=5 // pred_check_branch
      %116 = sbr.rel (%p113) target = $region12
    $region11: #{resnet_encoder_forward.20} parent=5 // pred_region
      %s117 = ssub.s32 %s9, 1
      // Predicated region
      $region13: #{resnet_encoder_forward.20} parent=11 // pred_check
        %p118 = pneg %p56
      $region14: #{resnet_encoder_forward.20} parent=11 // pred_check_branch
        %120 = sbr.rel (%p118) target = $region16
      $region15: #{resnet_encoder_forward.20} parent=11 // pred_region
        _
      $region16: #{resnet_encoder_forward.20} parent=11 // pred_fallthru
        _
      // Predicated region
      $region17: #{resnet_encoder_forward.20} parent=11 // pred_check
        %p121 = pneg %p77
      $region18: #{resnet_encoder_forward.20} parent=11 // pred_check_branch
        %123 = sbr.rel (%p121) target = $region20
      $region19: #{resnet_encoder_forward.20} parent=11 // pred_region
        _
      $region20: #{resnet_encoder_forward.20} parent=11 // pred_fallthru
        _
    $region12: #{resnet_encoder_forward.20} parent=5 // pred_fallthru
      _
    %p124 = scmp.lt.s32.totalorder %s9, 2
    // Predicated region
    $region21: #{resnet_encoder_forward.20} parent=5 // pred_check
      %p125 = pneg %p124
    $region22: #{resnet_encoder_forward.20} parent=5 // pred_check_branch
      %127 = sbr.rel (%p125) target = $region24
    $region23: #{resnet_encoder_forward.20} parent=5 // pred_region
      // Predicated region
      $region25: #{resnet_encoder_forward.20} parent=23 // pred_check
        %p128 = pneg %p29
      $region26: #{resnet_encoder_forward.20} parent=23 // pred_check_branch
        %130 = sbr.rel (%p128) target = $region28
      $region27: #{resnet_encoder_forward.20} parent=23 // pred_region
        %s131 = smul.u32 2, %s9
        %p132 = scmp.lt.s32.totalorder %s131, 3
        %s133 = scalar_select %p132, %s131, 3
        %s134 = smul.addr %s133, 5
        %s135 = smul.addr %s134, 4
        %s136 = scalar_lea.vmem %s0, %s135
        %s137 = smul.u32 2, %s9
      $region28: #{resnet_encoder_forward.20} parent=23 // pred_fallthru
        _
    $region24: #{resnet_encoder_forward.20} parent=5 // pred_fallthru
      _
    %p138 = scmp.le.s32.totalorder 1, %s9
    %p139 = scmp.lt.s32.totalorder %s9, 3
    %p140 = pnand %p138, %p139
    %p141 = pneg %p140
    // Predicated region
    $region29: #{resnet_encoder_forward.20} parent=5 // pred_check
      _
    $region30: #{resnet_encoder_forward.20} parent=5 // pred_check_branch
      %143 = sbr.rel (%p140) target = $region32
    $region31: #{resnet_encoder_forward.20} parent=5 // pred_region
      %s144 = ssub.s32 %s9, 1
      %s145 = smul.u32 2, %s14
      %p146 = scmp.lt.s32.totalorder %s145, 3
      %s147 = scalar_select %p146, %s145, 3
      %s148 = smul.addr %s147, 5
      %s149 = smul.addr %s148, 4
      %s150 = scalar_lea.vmem %s0, %s149
      %p151 = pneg %p35
      %p152 = pneg %p32
      %p153 = pneg %p56
      %p154 = pneg %p53
      %p155 = pneg %p77
      %p156 = pneg %p74
      %p157 = pneg %p103
      %p158 = pneg %p100
      %s159 = smul.u32 2, %s14
      %p160 = scmp.lt.s32.totalorder %s159, 3
      %s161 = scalar_select %p160, %s159, 3
      %s162 = smul.addr %s161, 4
      %s163 = scalar_lea.vmem %s3, %s162
      %s164 = smul.u32 2, %s14
      %p165 = scmp.lt.s32.totalorder %s164, 3
      %s166 = scalar_select %p165, %s164, 3
      %s167 = smul.addr %s166, 5
      %s168 = smul.addr %s167, 4
      %s169 = scalar_lea.vmem %s0, %s168
      %s170 = smul.u32 2, %s14
      %s171 = smul.u32 2, %s14
      %p172 = scmp.lt.s32.totalorder %s171, 3
      %s173 = scalar_select %p172, %s171, 3
      %s174 = smul.addr %s173, 4
      %s175 = scalar_lea.vmem %s3, %s174
      %s176 = smul.u32 2, %s14
      %v177 = vld [vmem:[%s169] sm:$0xff]
      %v178 = vld [vmem:[%s169 + $0x8] sm:$0xff]
      %v179 = vld [vmem:[%s169 + $0x10] sm:$0xf]
      %v180 = vld [vmem:[%s169 + $0x14] sm:$0xff]
      %v181 = vld [vmem:[%s169 + $0x1c] sm:$0xff]
      %v182 = vld [vmem:[%s169 + $0x24] sm:$0xf]
      %v183 = vld [vmem:[%s1] sm:$0xf]
      %v184 = vld [vmem:[%s1 + $0x4] sm:$0xf]
      %v185 = vld [vmem:[%s1 + $0x8] sm:$0xf]
      %v186 = vld [vmem:[%s1 + $0xc] sm:$0xf]
      %v187 = vld [vmem:[%s1 + $0x10] sm:$0xf]
      %v188 = vld [vmem:[%s1 + $0x14] sm:$0xf]
      %v189 = vld [vmem:[%s1 + $0x18] sm:$0xf]
      %v190 = vld [vmem:[%s1 + $0x1c] sm:$0xf]
      %v191 = vld [vmem:[%s1 + $0x20] sm:$0xf]
      %v192 = vld [vmem:[%s1 + $0x24] sm:$0xf]
      %v193 = vld [vmem:[%s1 + $0x28] sm:$0xf]
      %v194 = vld [vmem:[%s1 + $0x2c] sm:$0xf]
      %v195 = vld [vmem:[%s1 + $0x30] sm:$0xf]
      %v196 = vld [vmem:[%s1 + $0x34] sm:$0xf]
      %v197 = vld [vmem:[%s1 + $0x38] sm:$0xf]
      %v198 = vld [vmem:[%s1 + $0x3c] sm:$0xf]
      %v199 = vld [vmem:[%s1 + $0x40] sm:$0xf]
      %v200 = vld [vmem:[%s1 + $0x44] sm:$0xf]
      %v201 = vld [vmem:[%s1 + $0x48] sm:$0xf]
      %v202 = vld [vmem:[%s1 + $0x4c] sm:$0xf]
      %v203 = vld [vmem:[%s1 + $0x50] sm:$0xf]
      %v204 = vld [vmem:[%s1 + $0x54] sm:$0xf]
      %v205 = vld [vmem:[%s1 + $0x58] sm:$0xf]
      %v206 = vld [vmem:[%s1 + $0x5c] sm:$0xf]
      %v207 = vld [vmem:[%s1 + $0x60] sm:$0xf]
      %v208 = vld [vmem:[%s1 + $0x64] sm:$0xf]
      %v209 = vld [vmem:[%s1 + $0x68] sm:$0xf]
      %v210 = vld [vmem:[%s1 + $0x6c] sm:$0xf]
      %v211 = vld [vmem:[%s1 + $0x70] sm:$0xf]
      %v212 = vld [vmem:[%s1 + $0x74] sm:$0xf]
      %v213 = vld [vmem:[%s1 + $0x78] sm:$0xf]
      %v214 = vld [vmem:[%s1 + $0x7c] sm:$0xf]
      %v215 = vld [vmem:[%s1 + $0x80] sm:$0xf]
      %v216 = vld [vmem:[%s1 + $0x84] sm:$0xf]
      %v217 = vld [vmem:[%s1 + $0x88] sm:$0xf]
      %v218 = vld [vmem:[%s1 + $0x8c] sm:$0xf]
      %v219 = vld [vmem:[%s1 + $0x90] sm:$0xf]
      %v220 = vld [vmem:[%s1 + $0x94] sm:$0xf]
      %v221 = vld [vmem:[%s1 + $0x98] sm:$0xf]
      %v222 = vld [vmem:[%s1 + $0x9c] sm:$0xf]
      %v223 = vld [vmem:[%s1 + $0xa0] sm:$0xf]
      %v224 = vld [vmem:[%s1 + $0xa4] sm:$0xf]
      %v225 = vld [vmem:[%s1 + $0xa8] sm:$0xf]
      %v226 = vld [vmem:[%s1 + $0xac] sm:$0xf]
      %v227 = vld [vmem:[%s1 + $0xb0] sm:$0xf]
      %v228 = vld [vmem:[%s1 + $0xb4] sm:$0xf]
      %v229 = vld [vmem:[%s1 + $0xb8] sm:$0xf]
      %v230 = vld [vmem:[%s1 + $0xbc] sm:$0xf]
      %v231 = vld [vmem:[%s1 + $0xc0] sm:$0xf]
      %v232 = vld [vmem:[%s1 + $0xc4] sm:$0xf]
      %v233 = vld [vmem:[%s1 + $0xc8] sm:$0xf]
      %v234 = vld [vmem:[%s1 + $0xcc] sm:$0xf]
      %v235 = vld [vmem:[%s1 + $0xd0] sm:$0xf]
      %v236 = vld [vmem:[%s1 + $0xd4] sm:$0xf]
      %v237 = vld [vmem:[%s1 + $0xd8] sm:$0xf]
      %v238 = vld [vmem:[%s1 + $0xdc] sm:$0xf]
      %v239 = vld [vmem:[%s1 + $0xe0] sm:$0xf]
      %v240 = vld [vmem:[%s1 + $0xe4] sm:$0xf]
      %v241 = vld [vmem:[%s1 + $0xe8] sm:$0xf]
      %v242 = vld [vmem:[%s1 + $0xec] sm:$0xf]
      %v243 = vld [vmem:[%s1 + $0xf0] sm:$0xf]
      %v244 = vld [vmem:[%s1 + $0xf4] sm:$0xf]
      %v245 = vld [vmem:[%s1 + $0xf8] sm:$0xf]
      %v246 = vld [vmem:[%s1 + $0xfc] sm:$0xf]
      %v247 = vld [vmem:[%s1 + $0x100] sm:$0xf]
      %v248 = vld [vmem:[%s1 + $0x104] sm:$0xf]
      %v249 = vld [vmem:[%s1 + $0x108] sm:$0xf]
      %v250 = vld [vmem:[%s1 + $0x10c] sm:$0xf]
      %v251 = vld [vmem:[%s1 + $0x110] sm:$0xf]
      %v252 = vld [vmem:[%s1 + $0x114] sm:$0xf]
      %v253 = vld [vmem:[%s1 + $0x118] sm:$0xf]
      %v254 = vld [vmem:[%s1 + $0x11c] sm:$0xf]
      %v255 = vld [vmem:[%s1 + $0x120] sm:$0xf]
      %v256 = vld [vmem:[%s1 + $0x124] sm:$0xf]
      %v257 = vld [vmem:[%s1 + $0x128] sm:$0xf]
      %v258 = vld [vmem:[%s1 + $0x12c] sm:$0xf]
      %v259 = vld [vmem:[%s1 + $0x130] sm:$0xf]
      %v260 = vld [vmem:[%s1 + $0x134] sm:$0xf]
      %v261 = vld [vmem:[%s1 + $0x138] sm:$0xf]
      %v262 = vld [vmem:[%s1 + $0x13c] sm:$0xf]
      %v263 = vld [vmem:[%s2] sm:$0x1]
      %v265 = vperm.slane %v263, 0
      %v273 = vunpack.c.l.b16 %v177
      %v274 = vunpack.c.h.b16 %v177
      %v275 = vunpack.c.l.b16 %v178
      %v276 = vunpack.c.h.b16 %v178
      %v277 = vunpack.c.l.b16 %v179
      %v278 = vunpack.c.l.b16 %v180
      %v279 = vunpack.c.h.b16 %v180
      %v280 = vunpack.c.l.b16 %v181
      %v281 = vunpack.c.h.b16 %v181
      %v282 = vunpack.c.l.b16 %v182
      %v283 = vpack.c.b16 %v278, %v273
      %v284 = vpack.c.b16 %v279, %v274
      %v285 = vpack.c.b16 %v280, %v275
      %v286 = vpack.c.b16 %v281, %v276
      %v287 = vpack.c.b16 %v282, %v277
      %v373 = vunpack.c.l.b16 %v183
      %v374 = vunpack.c.l.b16 %v184
      %v375 = vunpack.c.l.b16 %v185
      %v376 = vunpack.c.l.b16 %v186
      %v377 = vunpack.c.l.b16 %v187
      %v378 = vunpack.c.l.b16 %v188
      %v379 = vunpack.c.l.b16 %v189
      %v380 = vunpack.c.l.b16 %v190
      %v381 = vunpack.c.l.b16 %v191
      %v382 = vunpack.c.l.b16 %v192
      %v383 = vunpack.c.l.b16 %v193
      %v384 = vunpack.c.l.b16 %v194
      %v385 = vunpack.c.l.b16 %v195
      %v386 = vunpack.c.l.b16 %v196
      %v387 = vunpack.c.l.b16 %v197
      %v388 = vunpack.c.l.b16 %v198
      %v389 = vunpack.c.l.b16 %v199
      %v390 = vunpack.c.l.b16 %v200
      %v391 = vunpack.c.l.b16 %v201
      %v392 = vunpack.c.l.b16 %v202
      %v393 = vunpack.c.l.b16 %v203
      %v394 = vunpack.c.l.b16 %v204
      %v395 = vunpack.c.l.b16 %v205
      %v396 = vunpack.c.l.b16 %v206
      %v397 = vunpack.c.l.b16 %v207
      %v398 = vunpack.c.l.b16 %v208
      %v399 = vunpack.c.l.b16 %v209
      %v400 = vunpack.c.l.b16 %v210
      %v401 = vunpack.c.l.b16 %v211
      %v402 = vunpack.c.l.b16 %v212
      %v403 = vunpack.c.l.b16 %v213
      %v404 = vunpack.c.l.b16 %v214
      %v405 = vunpack.c.l.b16 %v215
      %v406 = vunpack.c.l.b16 %v216
      %v407 = vunpack.c.l.b16 %v217
      %v408 = vunpack.c.l.b16 %v218
      %v409 = vunpack.c.l.b16 %v219
      %v410 = vunpack.c.l.b16 %v220
      %v411 = vunpack.c.l.b16 %v221
      %v412 = vunpack.c.l.b16 %v222
      %v413 = vunpack.c.l.b16 %v223
      %v414 = vunpack.c.l.b16 %v224
      %v415 = vunpack.c.l.b16 %v225
      %v416 = vunpack.c.l.b16 %v226
      %v417 = vunpack.c.l.b16 %v227
      %v418 = vunpack.c.l.b16 %v228
      %v419 = vunpack.c.l.b16 %v229
      %v420 = vunpack.c.l.b16 %v230
      %v421 = vunpack.c.l.b16 %v231
      %v422 = vunpack.c.l.b16 %v232
      %v423 = vunpack.c.l.b16 %v233
      %v424 = vunpack.c.l.b16 %v234
      %v425 = vunpack.c.l.b16 %v235
      %v426 = vunpack.c.l.b16 %v236
      %v427 = vunpack.c.l.b16 %v237
      %v428 = vunpack.c.l.b16 %v238
      %v429 = vunpack.c.l.b16 %v239
      %v430 = vunpack.c.l.b16 %v240
      %v431 = vunpack.c.l.b16 %v241
      %v432 = vunpack.c.l.b16 %v242
      %v433 = vunpack.c.l.b16 %v243
      %v434 = vunpack.c.l.b16 %v244
      %v435 = vunpack.c.l.b16 %v245
      %v436 = vunpack.c.l.b16 %v246
      %v437 = vunpack.c.l.b16 %v247
      %v438 = vunpack.c.l.b16 %v248
      %v439 = vunpack.c.l.b16 %v249
      %v440 = vunpack.c.l.b16 %v250
      %v441 = vunpack.c.l.b16 %v251
      %v442 = vunpack.c.l.b16 %v252
      %v443 = vunpack.c.l.b16 %v253
      %v444 = vunpack.c.l.b16 %v254
      %v445 = vunpack.c.l.b16 %v255
      %v446 = vunpack.c.l.b16 %v256
      %v447 = vunpack.c.l.b16 %v257
      %v448 = vunpack.c.l.b16 %v258
      %v449 = vunpack.c.l.b16 %v259
      %v450 = vunpack.c.l.b16 %v260
      %v451 = vunpack.c.l.b16 %v261
      %v452 = vunpack.c.l.b16 %v262
      %v453 = vpack.c.b16 %v374, %v373
      %v454 = vpack.c.b16 %v376, %v375
      %v455 = vpack.c.b16 %v378, %v377
      %v456 = vpack.c.b16 %v380, %v379
      %v457 = vpack.c.b16 %v382, %v381
      %v458 = vpack.c.b16 %v384, %v383
      %v459 = vpack.c.b16 %v386, %v385
      %v460 = vpack.c.b16 %v388, %v387
      %v461 = vpack.c.b16 %v390, %v389
      %v462 = vpack.c.b16 %v392, %v391
      %v463 = vpack.c.b16 %v394, %v393
      %v464 = vpack.c.b16 %v396, %v395
      %v465 = vpack.c.b16 %v398, %v397
      %v466 = vpack.c.b16 %v400, %v399
      %v467 = vpack.c.b16 %v402, %v401
      %v468 = vpack.c.b16 %v404, %v403
      %v469 = vpack.c.b16 %v406, %v405
      %v470 = vpack.c.b16 %v408, %v407
      %v471 = vpack.c.b16 %v410, %v409
      %v472 = vpack.c.b16 %v412, %v411
      %v473 = vpack.c.b16 %v414, %v413
      %v474 = vpack.c.b16 %v416, %v415
      %v475 = vpack.c.b16 %v418, %v417
      %v476 = vpack.c.b16 %v420, %v419
      %v477 = vpack.c.b16 %v422, %v421
      %v478 = vpack.c.b16 %v424, %v423
      %v479 = vpack.c.b16 %v426, %v425
      %v480 = vpack.c.b16 %v428, %v427
      %v481 = vpack.c.b16 %v430, %v429
      %v482 = vpack.c.b16 %v432, %v431
      %v483 = vpack.c.b16 %v434, %v433
      %v484 = vpack.c.b16 %v436, %v435
      %v485 = vpack.c.b16 %v438, %v437
      %v486 = vpack.c.b16 %v440, %v439
      %v487 = vpack.c.b16 %v442, %v441
      %v488 = vpack.c.b16 %v444, %v443
      %v489 = vpack.c.b16 %v446, %v445
      %v490 = vpack.c.b16 %v448, %v447
      %v491 = vpack.c.b16 %v450, %v449
      %v492 = vpack.c.b16 %v452, %v451
      %533 = vmatpush.bf16.msra.mxu0 %v460
      %534 = vmatpush.bf16.msra.mxu0 %v459
      %535 = vmatpush.bf16.msra.mxu0 %v458
      %536 = vmatpush.bf16.msra.mxu0 %v457
      %537 = vmatpush.bf16.msra.mxu0 %v456
      %538 = vmatpush.bf16.msra.mxu0 %v455
      %539 = vmatpush.bf16.msra.mxu0 %v454
      %540 = vmatpush.bf16.msra.mxu0 %v453
      %541 = vmatmul.bf16.gmra.mxu0 %v283
      %v542 = vpop.f32.mrf.mxu0
      %v543 = vadd.f32 %v265, %v542
      %v544 = vpop.f32.mrf.mxu0
      %v545 = vadd.f32 %v265, %v544
      %546 = vdwg.mxu0
      %547 = vmatpush.bf16.msra.mxu0 %v468
      %548 = vmatpush.bf16.msra.mxu0 %v467
      %549 = vmatpush.bf16.msra.mxu0 %v466
      %550 = vmatpush.bf16.msra.mxu0 %v465
      %551 = vmatpush.bf16.msra.mxu0 %v464
      %552 = vmatpush.bf16.msra.mxu0 %v463
      %553 = vmatpush.bf16.msra.mxu0 %v462
      %554 = vmatpush.bf16.msra.mxu0 %v461
      %555 = vmatmul.bf16.gmra.mxu0 %v284
      %v556 = vpop.f32.mrf.mxu0
      %v557 = vadd.f32 %v543, %v556
      %v558 = vpop.f32.mrf.mxu0
      %v559 = vadd.f32 %v545, %v558
      %560 = vdwg.mxu0
      %561 = vmatpush.bf16.msra.mxu0 %v476
      %562 = vmatpush.bf16.msra.mxu0 %v475
      %563 = vmatpush.bf16.msra.mxu0 %v474
      %564 = vmatpush.bf16.msra.mxu0 %v473
      %565 = vmatpush.bf16.msra.mxu0 %v472
      %566 = vmatpush.bf16.msra.mxu0 %v471
      %567 = vmatpush.bf16.msra.mxu0 %v470
      %568 = vmatpush.bf16.msra.mxu0 %v469
      %569 = vmatmul.bf16.gmra.mxu0 %v285
      %v570 = vpop.f32.mrf.mxu0
      %v571 = vadd.f32 %v557, %v570
      %v572 = vpop.f32.mrf.mxu0
      %v573 = vadd.f32 %v559, %v572
      %574 = vdwg.mxu0
      %575 = vmatpush.bf16.msra.mxu0 %v484
      %576 = vmatpush.bf16.msra.mxu0 %v483
      %577 = vmatpush.bf16.msra.mxu0 %v482
      %578 = vmatpush.bf16.msra.mxu0 %v481
      %579 = vmatpush.bf16.msra.mxu0 %v480
      %580 = vmatpush.bf16.msra.mxu0 %v479
      %581 = vmatpush.bf16.msra.mxu0 %v478
      %582 = vmatpush.bf16.msra.mxu0 %v477
      %583 = vmatmul.bf16.gmra.mxu0 %v286
      %v584 = vpop.f32.mrf.mxu0
      %v585 = vadd.f32 %v571, %v584
      %v586 = vpop.f32.mrf.mxu0
      %v587 = vadd.f32 %v573, %v586
      %588 = vdwg.mxu0
      %589 = vmatpush.bf16.msra.mxu0 %v492
      %590 = vmatpush.bf16.msra.mxu0 %v491
      %591 = vmatpush.bf16.msra.mxu0 %v490
      %592 = vmatpush.bf16.msra.mxu0 %v489
      %593 = vmatpush.bf16.msra.mxu0 %v488
      %594 = vmatpush.bf16.msra.mxu0 %v487
      %595 = vmatpush.bf16.msra.mxu0 %v486
      %596 = vmatpush.bf16.msra.mxu0 %v485
      %597 = vmatmul.bf16.gmra.mxu0 %v287
      %v598 = vpop.f32.mrf.mxu0
      %v599 = vadd.f32 %v585, %v598
      %v600 = vpop.f32.mrf.mxu0
      %v601 = vadd.f32 %v587, %v600
      %602 = vdwg.mxu0
      %v603 = vmax.f32 %v599, 0.0
      %v604 = vmax.f32 %v601, 0.0
      %v605 = vpack.c.bf16 %v603, %v603
      %v606 = vpack.c.bf16 %v604, %v604
      %607 = vst [vmem:[%s175] sm:$0xf] %v605
      %608 = vst [vmem:[%s175 + $0x4] sm:$0xf] %v606
      %s609 = smul.u32 2, %s14
      %p610 = scmp.lt.s32.totalorder %s609, 3
      %s611 = scalar_select %p610, %s609, 3
      %s612 = smul.addr %s611, 4
      %s613 = scalar_lea.vmem %s3, %s612
      // Predicated region
      $region33: #{resnet_encoder_forward.20} parent=31 // pred_check
        %p614 = pneg %p100
      $region34: #{resnet_encoder_forward.20} parent=31 // pred_check_branch
        %616 = sbr.rel (%p614) target = $region36
      $region35: #{resnet_encoder_forward.20} parent=31 // pred_region
        %s617 = smul.u32 2, %s14
      $region36: #{resnet_encoder_forward.20} parent=31 // pred_fallthru
        _
    $region32: #{resnet_encoder_forward.20} parent=5 // pred_fallthru
      _
    %p618 = scmp.le.s32.totalorder 2, %s9
    // Predicated region
    $region37: #{resnet_encoder_forward.20} parent=5 // pred_check
      %p619 = pneg %p618
    $region38: #{resnet_encoder_forward.20} parent=5 // pred_check_branch
      %621 = sbr.rel (%p619) target = $region40
    $region39: #{resnet_encoder_forward.20} parent=5 // pred_region
      %s622 = ssub.s32 %s9, 2
      // Predicated region
      $region41: #{resnet_encoder_forward.20} parent=39 // pred_check
        %p623 = pneg %p106
      $region42: #{resnet_encoder_forward.20} parent=39 // pred_check_branch
        %625 = sbr.rel (%p623) target = $region44
      $region43: #{resnet_encoder_forward.20} parent=39 // pred_region
        %s626 = smul.u32 2, %s15
        %p627 = scmp.lt.s32.totalorder %s626, 3
        %s628 = scalar_select %p627, %s626, 3
        %s629 = smul.addr %s628, 4
        %s630 = scalar_lea.vmem %s3, %s629
      $region44: #{resnet_encoder_forward.20} parent=39 // pred_fallthru
        _
    $region40: #{resnet_encoder_forward.20} parent=5 // pred_fallthru
      _
  $region6: #{resnet_encoder_forward.20} parent=0 // loop_footer
    %s13 = sadd.s32 1, %s9
  $region7: #{resnet_encoder_forward.20} parent=0 // loop_footer_branch
    %8 = sbr.rel target = $region3
  $region8: #{resnet_encoder_forward.20} parent=0 // loop_exit
    _

// kernel: resnet_encoder_forward.22
$region0: #{resnet_encoder_forward.22}
  #allocation0 [shape = 'u32[]', space=smem, size = 0x4, offset = 0x4, fixed_abs, tag = 'smem constant byte address 0x4 - core index']
  #allocation1 [shape = 'u32[72,128]{1,0:T(1,128)}', space=vmem, size = 0x9000, scoped, tag = 'internal scratch']
  %s0 = inlined_call_operand.vmem [shape: bf16[32,1152], index: 0, kind: input, shape index: {}]
  %s1 = inlined_call_operand.vmem [shape: bf16[1152,128], index: 1, kind: input, shape index: {}]
  %s2 = inlined_call_operand.vmem [shape: f32[1,128], index: 2, kind: input, shape index: {}]
  %s3 = inlined_call_operand.vmem [shape: bf16[32,128], index: 3, kind: input, shape index: {}]
  %s4 = inlined_call_operand.vmem [shape: bf16[32,128], index: 4, kind: output, shape index: {}]
  %s5 = sld [smem:[#allocation0]]
  $region49: #{resnet_encoder_forward.22} parent=0
    _
  %s7 = ssub.s32 1, %s5
  %s8 = scalar_select 0, %s7, %s5
  loop: start=0, step=1, limit=4
  $region2: #{resnet_encoder_forward.22} parent=0 // loop_pre_header
    _
  $region3: #{resnet_encoder_forward.22} parent=0 // loop_header
    %s10 = sphi 0, %s14
    %p11 = scmp.ge.s32.totalorder %s10, 4
    %s20 = sphi 0, %s22
    %s23 = sphi 0, %s20
    %s24 = sphi 0, %s23
    %s40 = sphi 0, %s24
    %s44 = sphi 0, %s44
    %s46 = sphi 0, %s44
    %s47 = sphi 0, %s46
    %s61 = sphi 0, %s47
    %s65 = sphi 0, %s65
    %s67 = sphi 0, %s65
    %s68 = sphi 0, %s67
    %s82 = sphi 0, %s68
    %s88 = sphi 0, %s90
    %s91 = sphi 0, %s88
    %s92 = sphi 0, %s91
    %s108 = sphi 0, %s92
    %s114 = sphi 0, %s116
    %s117 = sphi 0, %s114
    %s118 = sphi 0, %s117
    %s134 = sphi 0, %s118
  $region4: #{resnet_encoder_forward.22} parent=0 // loop_header_branch
    %13 = sbr.rel (%p11) target = $region8
  $region5: #{resnet_encoder_forward.22} parent=0 // loop_body
    %s15 = ssub.s32 %s10, 1
    %s16 = ssub.s32 %s10, 2
    %s17 = sadd.s32 %s10, 1
    %s18 = ssub.s32 %s10, %s17
    %p19 = scmp.eq.s32.totalorder %s18, 0
    %s21 = sadd.s32 %s20, 1
    %s22 = scalar_select %p19, %s20, %s21
    %p25 = pneg %p19
    %p26 = scmp.eq.s32.totalorder %s10, 1
    %p27 = por %p25, %p26
    %p28 = scmp.ne.s32.totalorder %s20, %s23
    %p29 = scmp.eq.s32.totalorder %s10, 0
    %p30 = por %p28, %p29
    %p31 = scmp.ne.s32.totalorder %s20, %s23
    %p32 = scmp.eq.s32.totalorder %s15, 1
    %p33 = por %p31, %p32
    %p34 = scmp.ne.s32.totalorder %s23, %s24
    %p35 = scmp.eq.s32.totalorder %s15, 0
    %p36 = por %p34, %p35
    %p37 = scmp.ne.s32.totalorder %s23, %s24
    %p38 = scmp.eq.s32.totalorder %s16, 1
    %p39 = por %p37, %p38
    %p41 = scmp.ne.s32.totalorder %s24, %s40
    %p42 = scmp.eq.s32.totalorder %s16, 0
    %p43 = por %p41, %p42
    %s45 = sadd.s32 %s44, 1
    %p48 = scmp.eq.s32.totalorder %s10, 1
    %p49 = scmp.ne.s32.totalorder %s44, %s46
    %p50 = scmp.eq.s32.totalorder %s10, 0
    %p51 = por %p49, %p50
    %p52 = scmp.ne.s32.totalorder %s44, %s46
    %p53 = scmp.eq.s32.totalorder %s15, 1
    %p54 = por %p52, %p53
    %p55 = scmp.ne.s32.totalorder %s46, %s47
    %p56 = scmp.eq.s32.totalorder %s15, 0
    %p57 = por %p55, %p56
    %p58 = scmp.ne.s32.totalorder %s46, %s47
    %p59 = scmp.eq.s32.totalorder %s16, 1
    %p60 = por %p58, %p59
    %p62 = scmp.ne.s32.totalorder %s47, %s61
    %p63 = scmp.eq.s32.totalorder %s16, 0
    %p64 = por %p62, %p63
    %s66 = sadd.s32 %s65, 1
    %p69 = scmp.eq.s32.totalorder %s10, 1
    %p70 = scmp.ne.s32.totalorder %s65, %s67
    %p71 = scmp.eq.s32.totalorder %s10, 0
    %p72 = por %p70, %p71
    %p73 = scmp.ne.s32.totalorder %s65, %s67
    %p74 = scmp.eq.s32.totalorder %s15, 1
    %p75 = por %p73, %p74
    %p76 = scmp.ne.s32.totalorder %s67, %s68
    %p77 = scmp.eq.s32.totalorder %s15, 0
    %p78 = por %p76, %p77
    %p79 = scmp.ne.s32.totalorder %s67, %s68
    %p80 = scmp.eq.s32.totalorder %s16, 1
    %p81 = por %p79, %p80
    %p83 = scmp.ne.s32.totalorder %s68, %s82
    %p84 = scmp.eq.s32.totalorder %s16, 0
    %p85 = por %p83, %p84
    %s86 = ssub.s32 %s10, %s17
    %p87 = scmp.eq.s32.totalorder %s86, 0
    %s89 = sadd.s32 %s88, 1
    %s90 = scalar_select %p87, %s88, %s89
    %p93 = pneg %p87
    %p94 = scmp.eq.s32.totalorder %s10, 1
    %p95 = por %p93, %p94
    %p96 = scmp.ne.s32.totalorder %s88, %s91
    %p97 = scmp.eq.s32.totalorder %s10, 0
    %p98 = por %p96, %p97
    %p99 = scmp.ne.s32.totalorder %s88, %s91
    %p100 = scmp.eq.s32.totalorder %s15, 1
    %p101 = por %p99, %p100
    %p102 = scmp.ne.s32.totalorder %s91, %s92
    %p103 = scmp.eq.s32.totalorder %s15, 0
    %p104 = por %p102, %p103
    %p105 = scmp.ne.s32.totalorder %s91, %s92
    %p106 = scmp.eq.s32.totalorder %s16, 1
    %p107 = por %p105, %p106
    %p109 = scmp.ne.s32.totalorder %s92, %s108
    %p110 = scmp.eq.s32.totalorder %s16, 0
    %p111 = por %p109, %p110
    %s112 = ssub.s32 %s10, %s17
    %p113 = scmp.eq.s32.totalorder %s112, 0
    %s115 = sadd.s32 %s114, 1
    %s116 = scalar_select %p113, %s114, %s115
    %p119 = pneg %p113
    %p120 = scmp.eq.s32.totalorder %s10, 1
    %p121 = por %p119, %p120
    %p122 = scmp.ne.s32.totalorder %s114, %s117
    %p123 = scmp.eq.s32.totalorder %s10, 0
    %p124 = por %p122, %p123
    %p125 = scmp.ne.s32.totalorder %s114, %s117
    %p126 = scmp.eq.s32.totalorder %s15, 1
    %p127 = por %p125, %p126
    %p128 = scmp.ne.s32.totalorder %s117, %s118
    %p129 = scmp.eq.s32.totalorder %s15, 0
    %p130 = por %p128, %p129
    %p131 = scmp.ne.s32.totalorder %s117, %s118
    %p132 = scmp.eq.s32.totalorder %s16, 1
    %p133 = por %p131, %p132
    %p135 = scmp.ne.s32.totalorder %s118, %s134
    %p136 = scmp.eq.s32.totalorder %s16, 0
    %p137 = por %p135, %p136
    %p138 = scmp.le.s32.totalorder 1, %s10
    %p139 = scmp.lt.s32.totalorder %s10, 3
    %p140 = pnand %p138, %p139
    %p141 = pneg %p140
    // Predicated region
    $region9: #{resnet_encoder_forward.22} parent=5 // pred_check
      _
    $region10: #{resnet_encoder_forward.22} parent=5 // pred_check_branch
      %143 = sbr.rel (%p140) target = $region12
    $region11: #{resnet_encoder_forward.22} parent=5 // pred_region
      %s144 = ssub.s32 %s10, 1
      // Predicated region
      $region13: #{resnet_encoder_forward.22} parent=11 // pred_check
        %p145 = pneg %p57
      $region14: #{resnet_encoder_forward.22} parent=11 // pred_check_branch
        %147 = sbr.rel (%p145) target = $region16
      $region15: #{resnet_encoder_forward.22} parent=11 // pred_region
        _
      $region16: #{resnet_encoder_forward.22} parent=11 // pred_fallthru
        _
      // Predicated region
      $region17: #{resnet_encoder_forward.22} parent=11 // pred_check
        %p148 = pneg %p78
      $region18: #{resnet_encoder_forward.22} parent=11 // pred_check_branch
        %150 = sbr.rel (%p148) target = $region20
      $region19: #{resnet_encoder_forward.22} parent=11 // pred_region
        _
      $region20: #{resnet_encoder_forward.22} parent=11 // pred_fallthru
        _
    $region12: #{resnet_encoder_forward.22} parent=5 // pred_fallthru
      _
    %p151 = scmp.lt.s32.totalorder %s10, 2
    // Predicated region
    $region21: #{resnet_encoder_forward.22} parent=5 // pred_check
      %p152 = pneg %p151
    $region22: #{resnet_encoder_forward.22} parent=5 // pred_check_branch
      %154 = sbr.rel (%p152) target = $region24
    $region23: #{resnet_encoder_forward.22} parent=5 // pred_region
      // Predicated region
      $region25: #{resnet_encoder_forward.22} parent=23 // pred_check
        %p155 = pneg %p30
      $region26: #{resnet_encoder_forward.22} parent=23 // pred_check_branch
        %157 = sbr.rel (%p155) target = $region28
      $region27: #{resnet_encoder_forward.22} parent=23 // pred_region
        %s158 = smul.u32 2, %s10
        %p159 = scmp.lt.s32.totalorder %s158, 3
        %s160 = scalar_select %p159, %s158, 3
        %s161 = smul.addr %s160, 9
        %s162 = smul.addr %s161, 4
        %s163 = scalar_lea.vmem %s0, %s162
        %s164 = smul.u32 2, %s10
      $region28: #{resnet_encoder_forward.22} parent=23 // pred_fallthru
        _
      // Predicated region
      $region29: #{resnet_encoder_forward.22} parent=23 // pred_check
        %p165 = pneg %p98
      $region30: #{resnet_encoder_forward.22} parent=23 // pred_check_branch
        %167 = sbr.rel (%p165) target = $region32
      $region31: #{resnet_encoder_forward.22} parent=23 // pred_region
        %s168 = smul.u32 2, %s10
        %p169 = scmp.lt.s32.totalorder %s168, 3
        %s170 = scalar_select %p169, %s168, 3
        %s171 = smul.addr %s170, 4
        %s172 = scalar_lea.vmem %s3, %s171
        %s173 = smul.u32 2, %s10
      $region32: #{resnet_encoder_forward.22} parent=23 // pred_fallthru
        _
    $region24: #{resnet_encoder_forward.22} parent=5 // pred_fallthru
      _
    %p174 = scmp.le.s32.totalorder 1, %s10
    %p175 = scmp.lt.s32.totalorder %s10, 3
    %p176 = pnand %p174, %p175
    %p177 = pneg %p176
    // Predicated region
    $region33: #{resnet_encoder_forward.22} parent=5 // pred_check
      _
    $region34: #{resnet_encoder_forward.22} parent=5 // pred_check_branch
      %179 = sbr.rel (%p176) target = $region36
    $region35: #{resnet_encoder_forward.22} parent=5 // pred_region
      %s180 = ssub.s32 %s10, 1
      %s181 = smul.u32 2, %s15
      %p182 = scmp.lt.s32.totalorder %s181, 3
      %s183 = scalar_select %p182, %s181, 3
      %s184 = smul.addr %s183, 9
      %s185 = smul.addr %s184, 4
      %s186 = scalar_lea.vmem %s0, %s185
      %p187 = pneg %p36
      %p188 = pneg %p33
      %p189 = pneg %p57
      %p190 = pneg %p54
      %p191 = pneg %p78
      %p192 = pneg %p75
      %s193 = smul.u32 2, %s15
      %p194 = scmp.lt.s32.totalorder %s193, 3
      %s195 = scalar_select %p194, %s193, 3
      %s196 = smul.addr %s195, 4
      %s197 = scalar_lea.vmem %s3, %s196
      %p198 = pneg %p104
      %p199 = pneg %p101
      %p200 = pneg %p130
      %p201 = pneg %p127
      %s202 = smul.u32 2, %s15
      %p203 = scmp.lt.s32.totalorder %s202, 3
      %s204 = scalar_select %p203, %s202, 3
      %s205 = smul.addr %s204, 4
      %s206 = scalar_lea.vmem %s4, %s205
      %s207 = smul.u32 2, %s15
      %p208 = scmp.lt.s32.totalorder %s207, 3
      %s209 = scalar_select %p208, %s207, 3
      %s210 = smul.addr %s209, 9
      %s211 = smul.addr %s210, 4
      %s212 = scalar_lea.vmem %s0, %s211
      %s213 = smul.u32 2, %s15
      %s214 = smul.u32 2, %s15
      %p215 = scmp.lt.s32.totalorder %s214, 3
      %s216 = scalar_select %p215, %s214, 3
      %s217 = smul.addr %s216, 4
      %s218 = scalar_lea.vmem %s3, %s217
      %s219 = smul.u32 2, %s15
      %s220 = smul.u32 2, %s15
      %p221 = scmp.lt.s32.totalorder %s220, 3
      %s222 = scalar_select %p221, %s220, 3
      %s223 = smul.addr %s222, 4
      %s224 = scalar_lea.vmem %s4, %s223
      %s225 = smul.u32 2, %s15
      %v226 = vld [vmem:[%s212] sm:$0xff]
      %v227 = vld [vmem:[%s212 + $0x8] sm:$0xff]
      %v228 = vld [vmem:[%s212 + $0x10] sm:$0xff]
      %v229 = vld [vmem:[%s212 + $0x18] sm:$0xff]
      %v230 = vld [vmem:[%s212 + $0x20] sm:$0xf]
      %v231 = vld [vmem:[%s212 + $0x24] sm:$0xff]
      %v232 = vld [vmem:[%s212 + $0x2c] sm:$0xff]
      %v233 = vld [vmem:[%s212 + $0x34] sm:$0xff]
      %v234 = vld [vmem:[%s212 + $0x3c] sm:$0xff]
      %v235 = vld [vmem:[%s212 + $0x44] sm:$0xf]
      %v236 = vld [vmem:[%s1] sm:$0xf]
      %v237 = vld [vmem:[%s1 + $0x4] sm:$0xf]
      %v238 = vld [vmem:[%s1 + $0x8] sm:$0xf]
      %v239 = vld [vmem:[%s1 + $0xc] sm:$0xf]
      %v240 = vld [vmem:[%s1 + $0x10] sm:$0xf]
      %v241 = vld [vmem:[%s1 + $0x14] sm:$0xf]
      %v242 = vld [vmem:[%s1 + $0x18] sm:$0xf]
      %v243 = vld [vmem:[%s1 + $0x1c] sm:$0xf]
      %v244 = vld [vmem:[%s1 + $0x20] sm:$0xf]
      %v245 = vld [vmem:[%s1 + $0x24] sm:$0xf]
      %v246 = vld [vmem:[%s1 + $0x28] sm:$0xf]
      %v247 = vld [vmem:[%s1 + $0x2c] sm:$0xf]
      %v248 = vld [vmem:[%s1 + $0x30] sm:$0xf]
      %v249 = vld [vmem:[%s1 + $0x34] sm:$0xf]
      %v250 = vld [vmem:[%s1 + $0x38] sm:$0xf]
      %v251 = vld [vmem:[%s1 + $0x3c] sm:$0xf]
      %v252 = vld [vmem:[%s1 + $0x40] sm:$0xf]
      %v253 = vld [vmem:[%s1 + $0x44] sm:$0xf]
      %v254 = vld [vmem:[%s1 + $0x48] sm:$0xf]
      %v255 = vld [vmem:[%s1 + $0x4c] sm:$0xf]
      %v256 = vld [vmem:[%s1 + $0x50] sm:$0xf]
      %v257 = vld [vmem:[%s1 + $0x54] sm:$0xf]
      %v258 = vld [vmem:[%s1 + $0x58] sm:$0xf]
      %v259 = vld [vmem:[%s1 + $0x5c] sm:$0xf]
      %v260 = vld [vmem:[%s1 + $0x60] sm:$0xf]
      %v261 = vld [vmem:[%s1 + $0x64] sm:$0xf]
      %v262 = vld [vmem:[%s1 + $0x68] sm:$0xf]
      %v263 = vld [vmem:[%s1 + $0x6c] sm:$0xf]
      %v264 = vld [vmem:[%s1 + $0x70] sm:$0xf]
      %v265 = vld [vmem:[%s1 + $0x74] sm:$0xf]
      %v266 = vld [vmem:[%s1 + $0x78] sm:$0xf]
      %v267 = vld [vmem:[%s1 + $0x7c] sm:$0xf]
      %v268 = vld [vmem:[%s1 + $0x80] sm:$0xf]
      %v269 = vld [vmem:[%s1 + $0x84] sm:$0xf]
      %v270 = vld [vmem:[%s1 + $0x88] sm:$0xf]
      %v271 = vld [vmem:[%s1 + $0x8c] sm:$0xf]
      %v272 = vld [vmem:[%s1 + $0x90] sm:$0xf]
      %v273 = vld [vmem:[%s1 + $0x94] sm:$0xf]
      %v274 = vld [vmem:[%s1 + $0x98] sm:$0xf]
      %v275 = vld [vmem:[%s1 + $0x9c] sm:$0xf]
      %v276 = vld [vmem:[%s1 + $0xa0] sm:$0xf]
      %v277 = vld [vmem:[%s1 + $0xa4] sm:$0xf]
      %v278 = vld [vmem:[%s1 + $0xa8] sm:$0xf]
      %v279 = vld [vmem:[%s1 + $0xac] sm:$0xf]
      %v280 = vld [vmem:[%s1 + $0xb0] sm:$0xf]
      %v281 = vld [vmem:[%s1 + $0xb4] sm:$0xf]
      %v282 = vld [vmem:[%s1 + $0xb8] sm:$0xf]
      %v283 = vld [vmem:[%s1 + $0xbc] sm:$0xf]
      %v284 = vld [vmem:[%s1 + $0xc0] sm:$0xf]
      %v285 = vld [vmem:[%s1 + $0xc4] sm:$0xf]
      %v286 = vld [vmem:[%s1 + $0xc8] sm:$0xf]
      %v287 = vld [vmem:[%s1 + $0xcc] sm:$0xf]
      %v288 = vld [vmem:[%s1 + $0xd0] sm:$0xf]
      %v289 = vld [vmem:[%s1 + $0xd4] sm:$0xf]
      %v290 = vld [vmem:[%s1 + $0xd8] sm:$0xf]
      %v291 = vld [vmem:[%s1 + $0xdc] sm:$0xf]
      %v292 = vld [vmem:[%s1 + $0xe0] sm:$0xf]
      %v293 = vld [vmem:[%s1 + $0xe4] sm:$0xf]
      %v294 = vld [vmem:[%s1 + $0xe8] sm:$0xf]
      %v295 = vld [vmem:[%s1 + $0xec] sm:$0xf]
      %v296 = vld [vmem:[%s1 + $0xf0] sm:$0xf]
      %v297 = vld [vmem:[%s1 + $0xf4] sm:$0xf]
      %v298 = vld [vmem:[%s1 + $0xf8] sm:$0xf]
      %v299 = vld [vmem:[%s1 + $0xfc] sm:$0xf]
      %v300 = vld [vmem:[%s1 + $0x100] sm:$0xf]
      %v301 = vld [vmem:[%s1 + $0x104] sm:$0xf]
      %v302 = vld [vmem:[%s1 + $0x108] sm:$0xf]
      %v303 = vld [vmem:[%s1 + $0x10c] sm:$0xf]
      %v304 = vld [vmem:[%s1 + $0x110] sm:$0xf]
      %v305 = vld [vmem:[%s1 + $0x114] sm:$0xf]
      %v306 = vld [vmem:[%s1 + $0x118] sm:$0xf]
      %v307 = vld [vmem:[%s1 + $0x11c] sm:$0xf]
      %v308 = vld [vmem:[%s1 + $0x120] sm:$0xf]
      %v309 = vld [vmem:[%s1 + $0x124] sm:$0xf]
      %v310 = vld [vmem:[%s1 + $0x128] sm:$0xf]
      %v311 = vld [vmem:[%s1 + $0x12c] sm:$0xf]
      %v312 = vld [vmem:[%s1 + $0x130] sm:$0xf]
      %v313 = vld [vmem:[%s1 + $0x134] sm:$0xf]
      %v314 = vld [vmem:[%s1 + $0x138] sm:$0xf]
      %v315 = vld [vmem:[%s1 + $0x13c] sm:$0xf]
      %v316 = vld [vmem:[%s1 + $0x140] sm:$0xf]
      %v317 = vld [vmem:[%s1 + $0x144] sm:$0xf]
      %v318 = vld [vmem:[%s1 + $0x148] sm:$0xf]
      %v319 = vld [vmem:[%s1 + $0x14c] sm:$0xf]
      %v320 = vld [vmem:[%s1 + $0x150] sm:$0xf]
      %v321 = vld [vmem:[%s1 + $0x154] sm:$0xf]
      %v322 = vld [vmem:[%s1 + $0x158] sm:$0xf]
      %v323 = vld [vmem:[%s1 + $0x15c] sm:$0xf]
      %v324 = vld [vmem:[%s1 + $0x160] sm:$0xf]
      %v325 = vld [vmem:[%s1 + $0x164] sm:$0xf]
      %v326 = vld [vmem:[%s1 + $0x168] sm:$0xf]
      %v327 = vld [vmem:[%s1 + $0x16c] sm:$0xf]
      %v328 = vld [vmem:[%s1 + $0x170] sm:$0xf]
      %v329 = vld [vmem:[%s1 + $0x174] sm:$0xf]
      %v330 = vld [vmem:[%s1 + $0x178] sm:$0xf]
      %v331 = vld [vmem:[%s1 + $0x17c] sm:$0xf]
      %v332 = vld [vmem:[%s1 + $0x180] sm:$0xf]
      %v333 = vld [vmem:[%s1 + $0x184] sm:$0xf]
      %v334 = vld [vmem:[%s1 + $0x188] sm:$0xf]
      %v335 = vld [vmem:[%s1 + $0x18c] sm:$0xf]
      %v336 = vld [vmem:[%s1 + $0x190] sm:$0xf]
      %v337 = vld [vmem:[%s1 + $0x194] sm:$0xf]
      %v338 = vld [vmem:[%s1 + $0x198] sm:$0xf]
      %v339 = vld [vmem:[%s1 + $0x19c] sm:$0xf]
      %v340 = vld [vmem:[%s1 + $0x1a0] sm:$0xf]
      %v341 = vld [vmem:[%s1 + $0x1a4] sm:$0xf]
      %v342 = vld [vmem:[%s1 + $0x1a8] sm:$0xf]
      %v343 = vld [vmem:[%s1 + $0x1ac] sm:$0xf]
      %v344 = vld [vmem:[%s1 + $0x1b0] sm:$0xf]
      %v345 = vld [vmem:[%s1 + $0x1b4] sm:$0xf]
      %v346 = vld [vmem:[%s1 + $0x1b8] sm:$0xf]
      %v347 = vld [vmem:[%s1 + $0x1bc] sm:$0xf]
      %v348 = vld [vmem:[%s1 + $0x1c0] sm:$0xf]
      %v349 = vld [vmem:[%s1 + $0x1c4] sm:$0xf]
      %v350 = vld [vmem:[%s1 + $0x1c8] sm:$0xf]
      %v351 = vld [vmem:[%s1 + $0x1cc] sm:$0xf]
      %v352 = vld [vmem:[%s1 + $0x1d0] sm:$0xf]
      %v353 = vld [vmem:[%s1 + $0x1d4] sm:$0xf]
      %v354 = vld [vmem:[%s1 + $0x1d8] sm:$0xf]
      %v355 = vld [vmem:[%s1 + $0x1dc] sm:$0xf]
      %v356 = vld [vmem:[%s1 + $0x1e0] sm:$0xf]
      %v357 = vld [vmem:[%s1 + $0x1e4] sm:$0xf]
      %v358 = vld [vmem:[%s1 + $0x1e8] sm:$0xf]
      %v359 = vld [vmem:[%s1 + $0x1ec] sm:$0xf]
      %v360 = vld [vmem:[%s1 + $0x1f0] sm:$0xf]
      %v361 = vld [vmem:[%s1 + $0x1f4] sm:$0xf]
      %v362 = vld [vmem:[%s1 + $0x1f8] sm:$0xf]
      %v363 = vld [vmem:[%s1 + $0x1fc] sm:$0xf]
      %v364 = vld [vmem:[%s1 + $0x200] sm:$0xf]
      %v365 = vld [vmem:[%s1 + $0x204] sm:$0xf]
      %v366 = vld [vmem:[%s1 + $0x208] sm:$0xf]
      %v367 = vld [vmem:[%s1 + $0x20c] sm:$0xf]
      %v368 = vld [vmem:[%s1 + $0x210] sm:$0xf]
      %v369 = vld [vmem:[%s1 + $0x214] sm:$0xf]
      %v370 = vld [vmem:[%s1 + $0x218] sm:$0xf]
      %v371 = vld [vmem:[%s1 + $0x21c] sm:$0xf]
      %v372 = vld [vmem:[%s1 + $0x220] sm:$0xf]
      %v373 = vld [vmem:[%s1 + $0x224] sm:$0xf]
      %v374 = vld [vmem:[%s1 + $0x228] sm:$0xf]
      %v375 = vld [vmem:[%s1 + $0x22c] sm:$0xf]
      %v376 = vld [vmem:[%s1 + $0x230] sm:$0xf]
      %v377 = vld [vmem:[%s1 + $0x234] sm:$0xf]
      %v378 = vld [vmem:[%s1 + $0x238] sm:$0xf]
      %v379 = vld [vmem:[%s1 + $0x23c] sm:$0xf]
      %v380 = vld [vmem:[%s2] sm:$0x1]
      %v382 = vperm.slane %v380, 0
      %v394 = vunpack.c.l.b16 %v226
      %v395 = vunpack.c.h.b16 %v226
      %v396 = vunpack.c.l.b16 %v227
      %v397 = vunpack.c.h.b16 %v227
      %v398 = vunpack.c.l.b16 %v228
      %v399 = vunpack.c.h.b16 %v228
      %v400 = vunpack.c.l.b16 %v229
      %v401 = vunpack.c.h.b16 %v229
      %v402 = vunpack.c.l.b16 %v230
      %v403 = vunpack.c.l.b16 %v231
      %v404 = vunpack.c.h.b16 %v231
      %v405 = vunpack.c.l.b16 %v232
      %v406 = vunpack.c.h.b16 %v232
      %v407 = vunpack.c.l.b16 %v233
      %v408 = vunpack.c.h.b16 %v233
      %v409 = vunpack.c.l.b16 %v234
      %v410 = vunpack.c.h.b16 %v234
      %v411 = vunpack.c.l.b16 %v235
      %v412 = vpack.c.b16 %v403, %v394
      %v413 = vpack.c.b16 %v404, %v395
      %v414 = vpack.c.b16 %v405, %v396
      %v415 = vpack.c.b16 %v406, %v397
      %v416 = vpack.c.b16 %v407, %v398
      %v417 = vpack.c.b16 %v408, %v399
      %v418 = vpack.c.b16 %v409, %v400
      %v419 = vpack.c.b16 %v410, %v401
      %v420 = vpack.c.b16 %v411, %v402
      %v574 = vunpack.c.l.b16 %v236
      %v575 = vunpack.c.l.b16 %v237
      %v576 = vunpack.c.l.b16 %v238
      %v577 = vunpack.c.l.b16 %v239
      %v578 = vunpack.c.l.b16 %v240
      %v579 = vunpack.c.l.b16 %v241
      %v580 = vunpack.c.l.b16 %v242
      %v581 = vunpack.c.l.b16 %v243
      %v582 = vunpack.c.l.b16 %v244
      %v583 = vunpack.c.l.b16 %v245
      %v584 = vunpack.c.l.b16 %v246
      %v585 = vunpack.c.l.b16 %v247
      %v586 = vunpack.c.l.b16 %v248
      %v587 = vunpack.c.l.b16 %v249
      %v588 = vunpack.c.l.b16 %v250
      %v589 = vunpack.c.l.b16 %v251
      %v590 = vunpack.c.l.b16 %v252
      %v591 = vunpack.c.l.b16 %v253
      %v592 = vunpack.c.l.b16 %v254
      %v593 = vunpack.c.l.b16 %v255
      %v594 = vunpack.c.l.b16 %v256
      %v595 = vunpack.c.l.b16 %v257
      %v596 = vunpack.c.l.b16 %v258
      %v597 = vunpack.c.l.b16 %v259
      %v598 = vunpack.c.l.b16 %v260
      %v599 = vunpack.c.l.b16 %v261
      %v600 = vunpack.c.l.b16 %v262
      %v601 = vunpack.c.l.b16 %v263
      %v602 = vunpack.c.l.b16 %v264
      %v603 = vunpack.c.l.b16 %v265
      %v604 = vunpack.c.l.b16 %v266
      %v605 = vunpack.c.l.b16 %v267
      %v606 = vunpack.c.l.b16 %v268
      %v607 = vunpack.c.l.b16 %v269
      %v608 = vunpack.c.l.b16 %v270
      %v609 = vunpack.c.l.b16 %v271
      %v610 = vunpack.c.l.b16 %v272
      %v611 = vunpack.c.l.b16 %v273
      %v612 = vunpack.c.l.b16 %v274
      %v613 = vunpack.c.l.b16 %v275
      %v614 = vunpack.c.l.b16 %v276
      %v615 = vunpack.c.l.b16 %v277
      %v616 = vunpack.c.l.b16 %v278
      %v617 = vunpack.c.l.b16 %v279
      %v618 = vunpack.c.l.b16 %v280
      %v619 = vunpack.c.l.b16 %v281
      %v620 = vunpack.c.l.b16 %v282
      %v621 = vunpack.c.l.b16 %v283
      %v622 = vunpack.c.l.b16 %v284
      %v623 = vunpack.c.l.b16 %v285
      %v624 = vunpack.c.l.b16 %v286
      %v625 = vunpack.c.l.b16 %v287
      %v626 = vunpack.c.l.b16 %v288
      %v627 = vunpack.c.l.b16 %v289
      %v628 = vunpack.c.l.b16 %v290
      %v629 = vunpack.c.l.b16 %v291
      %v630 = vunpack.c.l.b16 %v292
      %v631 = vunpack.c.l.b16 %v293
      %v632 = vunpack.c.l.b16 %v294
      %v633 = vunpack.c.l.b16 %v295
      %v634 = vunpack.c.l.b16 %v296
      %v635 = vunpack.c.l.b16 %v297
      %v636 = vunpack.c.l.b16 %v298
      %v637 = vunpack.c.l.b16 %v299
      %v638 = vunpack.c.l.b16 %v300
      %v639 = vunpack.c.l.b16 %v301
      %v640 = vunpack.c.l.b16 %v302
      %v641 = vunpack.c.l.b16 %v303
      %v642 = vunpack.c.l.b16 %v304
      %v643 = vunpack.c.l.b16 %v305
      %v644 = vunpack.c.l.b16 %v306
      %v645 = vunpack.c.l.b16 %v307
      %v646 = vunpack.c.l.b16 %v308
      %v647 = vunpack.c.l.b16 %v309
      %v648 = vunpack.c.l.b16 %v310
      %v649 = vunpack.c.l.b16 %v311
      %v650 = vunpack.c.l.b16 %v312
      %v651 = vunpack.c.l.b16 %v313
      %v652 = vunpack.c.l.b16 %v314
      %v653 = vunpack.c.l.b16 %v315
      %v654 = vunpack.c.l.b16 %v316
      %v655 = vunpack.c.l.b16 %v317
      %v656 = vunpack.c.l.b16 %v318
      %v657 = vunpack.c.l.b16 %v319
      %v658 = vunpack.c.l.b16 %v320
      %v659 = vunpack.c.l.b16 %v321
      %v660 = vunpack.c.l.b16 %v322
      %v661 = vunpack.c.l.b16 %v323
      %v662 = vunpack.c.l.b16 %v324
      %v663 = vunpack.c.l.b16 %v325
      %v664 = vunpack.c.l.b16 %v326
      %v665 = vunpack.c.l.b16 %v327
      %v666 = vunpack.c.l.b16 %v328
      %v667 = vunpack.c.l.b16 %v329
      %v668 = vunpack.c.l.b16 %v330
      %v669 = vunpack.c.l.b16 %v331
      %v670 = vunpack.c.l.b16 %v332
      %v671 = vunpack.c.l.b16 %v333
      %v672 = vunpack.c.l.b16 %v334
      %v673 = vunpack.c.l.b16 %v335
      %v674 = vunpack.c.l.b16 %v336
      %v675 = vunpack.c.l.b16 %v337
      %v676 = vunpack.c.l.b16 %v338
      %v677 = vunpack.c.l.b16 %v339
      %v678 = vunpack.c.l.b16 %v340
      %v679 = vunpack.c.l.b16 %v341
      %v680 = vunpack.c.l.b16 %v342
      %v681 = vunpack.c.l.b16 %v343
      %v682 = vunpack.c.l.b16 %v344
      %v683 = vunpack.c.l.b16 %v345
      %v684 = vunpack.c.l.b16 %v346
      %v685 = vunpack.c.l.b16 %v347
      %v686 = vunpack.c.l.b16 %v348
      %v687 = vunpack.c.l.b16 %v349
      %v688 = vunpack.c.l.b16 %v350
      %v689 = vunpack.c.l.b16 %v351
      %v690 = vunpack.c.l.b16 %v352
      %v691 = vunpack.c.l.b16 %v353
      %v692 = vunpack.c.l.b16 %v354
      %v693 = vunpack.c.l.b16 %v355
      %v694 = vunpack.c.l.b16 %v356
      %v695 = vunpack.c.l.b16 %v357
      %v696 = vunpack.c.l.b16 %v358
      %v697 = vunpack.c.l.b16 %v359
      %v698 = vunpack.c.l.b16 %v360
      %v699 = vunpack.c.l.b16 %v361
      %v700 = vunpack.c.l.b16 %v362
      %v701 = vunpack.c.l.b16 %v363
      %v702 = vunpack.c.l.b16 %v364
      %v703 = vunpack.c.l.b16 %v365
      %v704 = vunpack.c.l.b16 %v366
      %v705 = vunpack.c.l.b16 %v367
      %v706 = vunpack.c.l.b16 %v368
      %v707 = vunpack.c.l.b16 %v369
      %v708 = vunpack.c.l.b16 %v370
      %v709 = vunpack.c.l.b16 %v371
      %v710 = vunpack.c.l.b16 %v372
      %v711 = vunpack.c.l.b16 %v373
      %v712 = vunpack.c.l.b16 %v374
      %v713 = vunpack.c.l.b16 %v375
      %v714 = vunpack.c.l.b16 %v376
      %v715 = vunpack.c.l.b16 %v377
      %v716 = vunpack.c.l.b16 %v378
      %v717 = vunpack.c.l.b16 %v379
      %v718 = vpack.c.b16 %v575, %v574
      %v719 = vpack.c.b16 %v577, %v576
      %v720 = vpack.c.b16 %v579, %v578
      %v721 = vpack.c.b16 %v581, %v580
      %v722 = vpack.c.b16 %v583, %v582
      %v723 = vpack.c.b16 %v585, %v584
      %v724 = vpack.c.b16 %v587, %v586
      %v725 = vpack.c.b16 %v589, %v588
      %v726 = vpack.c.b16 %v591, %v590
      %v727 = vpack.c.b16 %v593, %v592
      %v728 = vpack.c.b16 %v595, %v594
      %v729 = vpack.c.b16 %v597, %v596
      %v730 = vpack.c.b16 %v599, %v598
      %v731 = vpack.c.b16 %v601, %v600
      %v732 = vpack.c.b16 %v603, %v602
      %v733 = vpack.c.b16 %v605, %v604
      %v734 = vpack.c.b16 %v607, %v606
      %v735 = vpack.c.b16 %v609, %v608
      %v736 = vpack.c.b16 %v611, %v610
      %v737 = vpack.c.b16 %v613, %v612
      %v738 = vpack.c.b16 %v615, %v614
      %v739 = vpack.c.b16 %v617, %v616
      %v740 = vpack.c.b16 %v619, %v618
      %v741 = vpack.c.b16 %v621, %v620
      %v742 = vpack.c.b16 %v623, %v622
      %v743 = vpack.c.b16 %v625, %v624
      %v744 = vpack.c.b16 %v627, %v626
      %v745 = vpack.c.b16 %v629, %v628
      %v746 = vpack.c.b16 %v631, %v630
      %v747 = vpack.c.b16 %v633, %v632
      %v748 = vpack.c.b16 %v635, %v634
      %v749 = vpack.c.b16 %v637, %v636
      %v750 = vpack.c.b16 %v639, %v638
      %v751 = vpack.c.b16 %v641, %v640
      %v752 = vpack.c.b16 %v643, %v642
      %v753 = vpack.c.b16 %v645, %v644
      %v754 = vpack.c.b16 %v647, %v646
      %v755 = vpack.c.b16 %v649, %v648
      %v756 = vpack.c.b16 %v651, %v650
      %v757 = vpack.c.b16 %v653, %v652
      %v758 = vpack.c.b16 %v655, %v654
      %v759 = vpack.c.b16 %v657, %v656
      %v760 = vpack.c.b16 %v659, %v658
      %v761 = vpack.c.b16 %v661, %v660
      %v762 = vpack.c.b16 %v663, %v662
      %v763 = vpack.c.b16 %v665, %v664
      %v764 = vpack.c.b16 %v667, %v666
      %v765 = vpack.c.b16 %v669, %v668
      %v766 = vpack.c.b16 %v671, %v670
      %v767 = vpack.c.b16 %v673, %v672
      %v768 = vpack.c.b16 %v675, %v674
      %v769 = vpack.c.b16 %v677, %v676
      %v770 = vpack.c.b16 %v679, %v678
      %v771 = vpack.c.b16 %v681, %v680
      %v772 = vpack.c.b16 %v683, %v682
      %v773 = vpack.c.b16 %v685, %v684
      %v774 = vpack.c.b16 %v687, %v686
      %v775 = vpack.c.b16 %v689, %v688
      %v776 = vpack.c.b16 %v691, %v690
      %v777 = vpack.c.b16 %v693, %v692
      %v778 = vpack.c.b16 %v695, %v694
      %v779 = vpack.c.b16 %v697, %v696
      %v780 = vpack.c.b16 %v699, %v698
      %v781 = vpack.c.b16 %v701, %v700
      %v782 = vpack.c.b16 %v703, %v702
      %v783 = vpack.c.b16 %v705, %v704
      %v784 = vpack.c.b16 %v707, %v706
      %v785 = vpack.c.b16 %v709, %v708
      %v786 = vpack.c.b16 %v711, %v710
      %v787 = vpack.c.b16 %v713, %v712
      %v788 = vpack.c.b16 %v715, %v714
      %v789 = vpack.c.b16 %v717, %v716
      %862 = vmatpush.bf16.msra.mxu0 %v725
      %863 = vmatpush.bf16.msra.mxu0 %v724
      %864 = vmatpush.bf16.msra.mxu0 %v723
      %865 = vmatpush.bf16.msra.mxu0 %v722
      %866 = vmatpush.bf16.msra.mxu0 %v721
      %867 = vmatpush.bf16.msra.mxu0 %v720
      %868 = vmatpush.bf16.msra.mxu0 %v719
      %869 = vmatpush.bf16.msra.mxu0 %v718
      %870 = vmatmul.bf16.gmra.mxu0 %v412
      %v871 = vpop.f32.mrf.mxu0
      %v872 = vadd.f32 %v382, %v871
      %v873 = vpop.f32.mrf.mxu0
      %v874 = vadd.f32 %v382, %v873
      %875 = vdwg.mxu0
      %876 = vmatpush.bf16.msra.mxu0 %v733
      %877 = vmatpush.bf16.msra.mxu0 %v732
      %878 = vmatpush.bf16.msra.mxu0 %v731
      %879 = vmatpush.bf16.msra.mxu0 %v730
      %880 = vmatpush.bf16.msra.mxu0 %v729
      %881 = vmatpush.bf16.msra.mxu0 %v728
      %882 = vmatpush.bf16.msra.mxu0 %v727
      %883 = vmatpush.bf16.msra.mxu0 %v726
      %884 = vmatmul.bf16.gmra.mxu0 %v413
      %v885 = vpop.f32.mrf.mxu0
      %v886 = vadd.f32 %v872, %v885
      %v887 = vpop.f32.mrf.mxu0
      %v888 = vadd.f32 %v874, %v887
      %889 = vdwg.mxu0
      %890 = vmatpush.bf16.msra.mxu0 %v741
      %891 = vmatpush.bf16.msra.mxu0 %v740
      %892 = vmatpush.bf16.msra.mxu0 %v739
      %893 = vmatpush.bf16.msra.mxu0 %v738
      %894 = vmatpush.bf16.msra.mxu0 %v737
      %895 = vmatpush.bf16.msra.mxu0 %v736
      %896 = vmatpush.bf16.msra.mxu0 %v735
      %897 = vmatpush.bf16.msra.mxu0 %v734
      %898 = vmatmul.bf16.gmra.mxu0 %v414
      %v899 = vpop.f32.mrf.mxu0
      %v900 = vadd.f32 %v886, %v899
      %v901 = vpop.f32.mrf.mxu0
      %v902 = vadd.f32 %v888, %v901
      %903 = vdwg.mxu0
      %904 = vmatpush.bf16.msra.mxu0 %v749
      %905 = vmatpush.bf16.msra.mxu0 %v748
      %906 = vmatpush.bf16.msra.mxu0 %v747
      %907 = vmatpush.bf16.msra.mxu0 %v746
      %908 = vmatpush.bf16.msra.mxu0 %v745
      %909 = vmatpush.bf16.msra.mxu0 %v744
      %910 = vmatpush.bf16.msra.mxu0 %v743
      %911 = vmatpush.bf16.msra.mxu0 %v742
      %912 = vmatmul.bf16.gmra.mxu0 %v415
      %v913 = vpop.f32.mrf.mxu0
      %v914 = vadd.f32 %v900, %v913
      %v915 = vpop.f32.mrf.mxu0
      %v916 = vadd.f32 %v902, %v915
      %917 = vdwg.mxu0
      %918 = vmatpush.bf16.msra.mxu0 %v757
      %919 = vmatpush.bf16.msra.mxu0 %v756
      %920 = vmatpush.bf16.msra.mxu0 %v755
      %921 = vmatpush.bf16.msra.mxu0 %v754
      %922 = vmatpush.bf16.msra.mxu0 %v753
      %923 = vmatpush.bf16.msra.mxu0 %v752
      %924 = vmatpush.bf16.msra.mxu0 %v751
      %925 = vmatpush.bf16.msra.mxu0 %v750
      %926 = vmatmul.bf16.gmra.mxu0 %v416
      %v927 = vpop.f32.mrf.mxu0
      %v928 = vadd.f32 %v914, %v927
      %v929 = vpop.f32.mrf.mxu0
      %v930 = vadd.f32 %v916, %v929
      %931 = vdwg.mxu0
      %932 = vmatpush.bf16.msra.mxu0 %v765
      %933 = vmatpush.bf16.msra.mxu0 %v764
      %934 = vmatpush.bf16.msra.mxu0 %v763
      %935 = vmatpush.bf16.msra.mxu0 %v762
      %936 = vmatpush.bf16.msra.mxu0 %v761
      %937 = vmatpush.bf16.msra.mxu0 %v760
      %938 = vmatpush.bf16.msra.mxu0 %v759
      %939 = vmatpush.bf16.msra.mxu0 %v758
      %940 = vmatmul.bf16.gmra.mxu0 %v417
      %v941 = vpop.f32.mrf.mxu0
      %v942 = vadd.f32 %v928, %v941
      %v943 = vpop.f32.mrf.mxu0
      %v944 = vadd.f32 %v930, %v943
      %945 = vdwg.mxu0
      %946 = vmatpush.bf16.msra.mxu0 %v773
      %947 = vmatpush.bf16.msra.mxu0 %v772
      %948 = vmatpush.bf16.msra.mxu0 %v771
      %949 = vmatpush.bf16.msra.mxu0 %v770
      %950 = vmatpush.bf16.msra.mxu0 %v769
      %951 = vmatpush.bf16.msra.mxu0 %v768
      %952 = vmatpush.bf16.msra.mxu0 %v767
      %953 = vmatpush.bf16.msra.mxu0 %v766
      %954 = vmatmul.bf16.gmra.mxu0 %v418
      %v955 = vpop.f32.mrf.mxu0
      %v956 = vadd.f32 %v942, %v955
      %v957 = vpop.f32.mrf.mxu0
      %v958 = vadd.f32 %v944, %v957
      %959 = vdwg.mxu0
      %960 = vmatpush.bf16.msra.mxu0 %v781
      %961 = vmatpush.bf16.msra.mxu0 %v780
      %962 = vmatpush.bf16.msra.mxu0 %v779
      %963 = vmatpush.bf16.msra.mxu0 %v778
      %964 = vmatpush.bf16.msra.mxu0 %v777
      %965 = vmatpush.bf16.msra.mxu0 %v776
      %966 = vmatpush.bf16.msra.mxu0 %v775
      %967 = vmatpush.bf16.msra.mxu0 %v774
      %968 = vmatmul.bf16.gmra.mxu0 %v419
      %v969 = vpop.f32.mrf.mxu0
      %v970 = vadd.f32 %v956, %v969
      %v971 = vpop.f32.mrf.mxu0
      %v972 = vadd.f32 %v958, %v971
      %973 = vdwg.mxu0
      %974 = vmatpush.bf16.msra.mxu0 %v789
      %975 = vmatpush.bf16.msra.mxu0 %v788
      %976 = vmatpush.bf16.msra.mxu0 %v787
      %977 = vmatpush.bf16.msra.mxu0 %v786
      %978 = vmatpush.bf16.msra.mxu0 %v785
      %979 = vmatpush.bf16.msra.mxu0 %v784
      %980 = vmatpush.bf16.msra.mxu0 %v783
      %981 = vmatpush.bf16.msra.mxu0 %v782
      %982 = vmatmul.bf16.gmra.mxu0 %v420
      %v983 = vpop.f32.mrf.mxu0
      %v984 = vadd.f32 %v970, %v983
      %v985 = vpop.f32.mrf.mxu0
      %v986 = vadd.f32 %v972, %v985
      %987 = vdwg.mxu0
      %v988 = vld [vmem:[%s218] sm:$0xf]
      %v989 = vld [vmem:[%s218 + $0x4] sm:$0xf]
      %v990 = vunpack.c.l.bf16 %v988
      %v991 = vunpack.c.l.bf16 %v989
      %v992 = vadd.f32 %v984, %v990
      %v993 = vadd.f32 %v986, %v991
      %v994 = vmax.f32 %v992, 0.0
      %v995 = vmax.f32 %v993, 0.0
      %v996 = vpack.c.bf16 %v994, %v994
      %v997 = vpack.c.bf16 %v995, %v995
      %998 = vst [vmem:[%s224] sm:$0xf] %v996
      %999 = vst [vmem:[%s224 + $0x4] sm:$0xf] %v997
      %s1000 = smul.u32 2, %s15
      %p1001 = scmp.lt.s32.totalorder %s1000, 3
      %s1002 = scalar_select %p1001, %s1000, 3
      %s1003 = smul.addr %s1002, 4
      %s1004 = scalar_lea.vmem %s4, %s1003
      // Predicated region
      $region37: #{resnet_encoder_forward.22} parent=35 // pred_check
        %p1005 = pneg %p127
      $region38: #{resnet_encoder_forward.22} parent=35 // pred_check_branch
        %1007 = sbr.rel (%p1005) target = $region40
      $region39: #{resnet_encoder_forward.22} parent=35 // pred_region
        %s1008 = smul.u32 2, %s15
      $region40: #{resnet_encoder_forward.22} parent=35 // pred_fallthru
        _
    $region36: #{resnet_encoder_forward.22} parent=5 // pred_fallthru
      _
    %p1009 = scmp.le.s32.totalorder 2, %s10
    // Predicated region
    $region41: #{resnet_encoder_forward.22} parent=5 // pred_check
      %p1010 = pneg %p1009
    $region42: #{resnet_encoder_forward.22} parent=5 // pred_check_branch
      %1012 = sbr.rel (%p1010) target = $region44
    $region43: #{resnet_encoder_forward.22} parent=5 // pred_region
      %s1013 = ssub.s32 %s10, 2
      // Predicated region
      $region45: #{resnet_encoder_forward.22} parent=43 // pred_check
        %p1014 = pneg %p133
      $region46: #{resnet_encoder_forward.22} parent=43 // pred_check_branch
        %1016 = sbr.rel (%p1014) target = $region48
      $region47: #{resnet_encoder_forward.22} parent=43 // pred_region
        %s1017 = smul.u32 2, %s16
        %p1018 = scmp.lt.s32.totalorder %s1017, 3
        %s1019 = scalar_select %p1018, %s1017, 3
        %s1020 = smul.addr %s1019, 4
        %s1021 = scalar_lea.vmem %s4, %s1020
      $region48: #{resnet_encoder_forward.22} parent=43 // pred_fallthru
        _
    $region44: #{resnet_encoder_forward.22} parent=5 // pred_fallthru
      _
  $region6: #{resnet_encoder_forward.22} parent=0 // loop_footer
    %s14 = sadd.s32 1, %s10
  $region7: #{resnet_encoder_forward.22} parent=0 // loop_footer_branch
    %9 = sbr.rel target = $region3
  $region8: #{resnet_encoder_forward.22} parent=0 // loop_exit
    _

// kernel: resnet_encoder_forward.26
$region0: #{resnet_encoder_forward.26}
  #allocation0 [shape = 'u32[]', space=smem, size = 0x4, offset = 0x4, fixed_abs, tag = 'smem constant byte address 0x4 - core index']
  #allocation1 [shape = 'u32[72,128]{1,0:T(1,128)}', space=vmem, size = 0x9000, scoped, tag = 'internal scratch']
  %s0 = inlined_call_operand.vmem [shape: bf16[8,128], index: 0, kind: input, shape index: {}]
  %s1 = inlined_call_operand.vmem [shape: bf16[128,256], index: 1, kind: input, shape index: {}]
  %s2 = inlined_call_operand.vmem [shape: f32[1,256], index: 2, kind: input, shape index: {}]
  %s3 = inlined_call_operand.vmem [shape: bf16[8,256], index: 3, kind: output, shape index: {}]
  %s4 = sld [smem:[#allocation0]]
  $region22: #{resnet_encoder_forward.26} parent=0
    _
  %s6 = ssub.s32 1, %s4
  %s7 = scalar_select 0, %s6, %s4
  // Predicated region
  $region2: #{resnet_encoder_forward.26} parent=0 // pred_check
    _
  $region3: #{resnet_encoder_forward.26} parent=0 // pred_check_branch
    %9 = sbr.rel (0) target = $region5
  $region4: #{resnet_encoder_forward.26} parent=0 // pred_region
    _
  $region5: #{resnet_encoder_forward.26} parent=0 // pred_fallthru
    _
  // Predicated region
  $region6: #{resnet_encoder_forward.26} parent=0 // pred_check
    _
  $region7: #{resnet_encoder_forward.26} parent=0 // pred_check_branch
    %11 = sbr.rel (0) target = $region9
  $region8: #{resnet_encoder_forward.26} parent=0 // pred_region
    _
  $region9: #{resnet_encoder_forward.26} parent=0 // pred_fallthru
    _
  // Predicated region
  $region10: #{resnet_encoder_forward.26} parent=0 // pred_check
    _
  $region11: #{resnet_encoder_forward.26} parent=0 // pred_check_branch
    %13 = sbr.rel (0) target = $region13
  $region12: #{resnet_encoder_forward.26} parent=0 // pred_region
    _
  $region13: #{resnet_encoder_forward.26} parent=0 // pred_fallthru
    _
  %v14 = vld [vmem:[%s0] sm:$0xf]
  %v15 = vld [vmem:[%s1] sm:$0xff]
  %v16 = vld [vmem:[%s1 + $0x8] sm:$0xff]
  %v17 = vld [vmem:[%s1 + $0x10] sm:$0xff]
  %v18 = vld [vmem:[%s1 + $0x18] sm:$0xff]
  %v19 = vld [vmem:[%s1 + $0x20] sm:$0xff]
  %v20 = vld [vmem:[%s1 + $0x28] sm:$0xff]
  %v21 = vld [vmem:[%s1 + $0x30] sm:$0xff]
  %v22 = vld [vmem:[%s1 + $0x38] sm:$0xff]
  %v23 = vld [vmem:[%s1 + $0x40] sm:$0xff]
  %v24 = vld [vmem:[%s1 + $0x48] sm:$0xff]
  %v25 = vld [vmem:[%s1 + $0x50] sm:$0xff]
  %v26 = vld [vmem:[%s1 + $0x58] sm:$0xff]
  %v27 = vld [vmem:[%s1 + $0x60] sm:$0xff]
  %v28 = vld [vmem:[%s1 + $0x68] sm:$0xff]
  %v29 = vld [vmem:[%s1 + $0x70] sm:$0xff]
  %v30 = vld [vmem:[%s1 + $0x78] sm:$0xff]
  %v31 = vld [vmem:[%s2] sm:$0x3]
  %v33 = vperm.slane %v31, 0
  %v34 = vperm.slane %v31, 1
  %v53 = vunpack.c.l.b16 %v15
  %v54 = vunpack.c.h.b16 %v15
  %v55 = vunpack.c.l.b16 %v16
  %v56 = vunpack.c.h.b16 %v16
  %v57 = vunpack.c.l.b16 %v17
  %v58 = vunpack.c.h.b16 %v17
  %v59 = vunpack.c.l.b16 %v18
  %v60 = vunpack.c.h.b16 %v18
  %v61 = vunpack.c.l.b16 %v19
  %v62 = vunpack.c.h.b16 %v19
  %v63 = vunpack.c.l.b16 %v20
  %v64 = vunpack.c.h.b16 %v20
  %v65 = vunpack.c.l.b16 %v21
  %v66 = vunpack.c.h.b16 %v21
  %v67 = vunpack.c.l.b16 %v22
  %v68 = vunpack.c.h.b16 %v22
  %v69 = vunpack.c.l.b16 %v23
  %v70 = vunpack.c.h.b16 %v23
  %v71 = vunpack.c.l.b16 %v24
  %v72 = vunpack.c.h.b16 %v24
  %v73 = vunpack.c.l.b16 %v25
  %v74 = vunpack.c.h.b16 %v25
  %v75 = vunpack.c.l.b16 %v26
  %v76 = vunpack.c.h.b16 %v26
  %v77 = vunpack.c.l.b16 %v27
  %v78 = vunpack.c.h.b16 %v27
  %v79 = vunpack.c.l.b16 %v28
  %v80 = vunpack.c.h.b16 %v28
  %v81 = vunpack.c.l.b16 %v29
  %v82 = vunpack.c.h.b16 %v29
  %v83 = vunpack.c.l.b16 %v30
  %v84 = vunpack.c.h.b16 %v30
  %v85 = vpack.c.b16 %v55, %v53
  %v86 = vpack.c.b16 %v56, %v54
  %v87 = vpack.c.b16 %v59, %v57
  %v88 = vpack.c.b16 %v60, %v58
  %v89 = vpack.c.b16 %v63, %v61
  %v90 = vpack.c.b16 %v64, %v62
  %v91 = vpack.c.b16 %v67, %v65
  %v92 = vpack.c.b16 %v68, %v66
  %v93 = vpack.c.b16 %v71, %v69
  %v94 = vpack.c.b16 %v72, %v70
  %v95 = vpack.c.b16 %v75, %v73
  %v96 = vpack.c.b16 %v76, %v74
  %v97 = vpack.c.b16 %v79, %v77
  %v98 = vpack.c.b16 %v80, %v78
  %v99 = vpack.c.b16 %v83, %v81
  %v100 = vpack.c.b16 %v84, %v82
  %117 = vmatpush.bf16.msra.mxu0 %v99
  %118 = vmatpush.bf16.msra.mxu0 %v97
  %119 = vmatpush.bf16.msra.mxu0 %v95
  %120 = vmatpush.bf16.msra.mxu0 %v93
  %121 = vmatpush.bf16.msra.mxu0 %v91
  %122 = vmatpush.bf16.msra.mxu0 %v89
  %123 = vmatpush.bf16.msra.mxu0 %v87
  %124 = vmatpush.bf16.msra.mxu0 %v85
  %125 = vmatmul.bf16.gmra.mxu0 %v14
  %v126 = vpop.f32.mrf.mxu0
  %v127 = vadd.f32 %v33, %v126
  %v128 = vpop.f32.mrf.mxu0
  %129 = vdwg.mxu0
  %130 = vmatpush.bf16.msra.mxu0 %v100
  %131 = vmatpush.bf16.msra.mxu0 %v98
  %132 = vmatpush.bf16.msra.mxu0 %v96
  %133 = vmatpush.bf16.msra.mxu0 %v94
  %134 = vmatpush.bf16.msra.mxu0 %v92
  %135 = vmatpush.bf16.msra.mxu0 %v90
  %136 = vmatpush.bf16.msra.mxu0 %v88
  %137 = vmatpush.bf16.msra.mxu0 %v86
  %138 = vmatmul.bf16.gmra.mxu0 %v14
  %v139 = vpop.f32.mrf.mxu0
  %v140 = vadd.f32 %v34, %v139
  %v141 = vpop.f32.mrf.mxu0
  %142 = vdwg.mxu0
  %v143 = vpack.c.bf16 %v140, %v127
  %144 = vst [vmem:[%s3] sm:$0xff] %v143
  // Predicated region
  $region14: #{resnet_encoder_forward.26} parent=0 // pred_check
    _
  $region15: #{resnet_encoder_forward.26} parent=0 // pred_check_branch
    %146 = sbr.rel (0) target = $region17
  $region16: #{resnet_encoder_forward.26} parent=0 // pred_region
    _
  $region17: #{resnet_encoder_forward.26} parent=0 // pred_fallthru
    _
  // Predicated region
  $region18: #{resnet_encoder_forward.26} parent=0 // pred_check
    _
  $region19: #{resnet_encoder_forward.26} parent=0 // pred_check_branch
    %148 = sbr.rel (0) target = $region21
  $region20: #{resnet_encoder_forward.26} parent=0 // pred_region
    _
  $region21: #{resnet_encoder_forward.26} parent=0 // pred_fallthru
    _

// kernel: resnet_encoder_forward.23
$region0: #{resnet_encoder_forward.23}
  #allocation0 [shape = 'u32[]', space=smem, size = 0x4, offset = 0x4, fixed_abs, tag = 'smem constant byte address 0x4 - core index']
  #allocation1 [shape = 'u32[72,128]{1,0:T(1,128)}', space=vmem, size = 0x9000, scoped, tag = 'internal scratch']
  %s0 = inlined_call_operand.vmem [shape: bf16[32,1152], index: 0, kind: input, shape index: {}]
  %s1 = inlined_call_operand.vmem [shape: bf16[1152,128], index: 1, kind: input, shape index: {}]
  %s2 = inlined_call_operand.vmem [shape: f32[1,128], index: 2, kind: input, shape index: {}]
  %s3 = inlined_call_operand.vmem [shape: bf16[32,128], index: 3, kind: output, shape index: {}]
  %s4 = sld [smem:[#allocation0]]
  $region45: #{resnet_encoder_forward.23} parent=0
    _
  %s6 = ssub.s32 1, %s4
  %s7 = scalar_select 0, %s6, %s4
  loop: start=0, step=1, limit=4
  $region2: #{resnet_encoder_forward.23} parent=0 // loop_pre_header
    _
  $region3: #{resnet_encoder_forward.23} parent=0 // loop_header
    %s9 = sphi 0, %s13
    %p10 = scmp.ge.s32.totalorder %s9, 4
    %s19 = sphi 0, %s21
    %s22 = sphi 0, %s19
    %s23 = sphi 0, %s22
    %s39 = sphi 0, %s23
    %s43 = sphi 0, %s43
    %s45 = sphi 0, %s43
    %s46 = sphi 0, %s45
    %s60 = sphi 0, %s46
    %s64 = sphi 0, %s64
    %s66 = sphi 0, %s64
    %s67 = sphi 0, %s66
    %s81 = sphi 0, %s67
    %s87 = sphi 0, %s89
    %s90 = sphi 0, %s87
    %s91 = sphi 0, %s90
    %s107 = sphi 0, %s91
  $region4: #{resnet_encoder_forward.23} parent=0 // loop_header_branch
    %12 = sbr.rel (%p10) target = $region8
  $region5: #{resnet_encoder_forward.23} parent=0 // loop_body
    %s14 = ssub.s32 %s9, 1
    %s15 = ssub.s32 %s9, 2
    %s16 = sadd.s32 %s9, 1
    %s17 = ssub.s32 %s9, %s16
    %p18 = scmp.eq.s32.totalorder %s17, 0
    %s20 = sadd.s32 %s19, 1
    %s21 = scalar_select %p18, %s19, %s20
    %p24 = pneg %p18
    %p25 = scmp.eq.s32.totalorder %s9, 1
    %p26 = por %p24, %p25
    %p27 = scmp.ne.s32.totalorder %s19, %s22
    %p28 = scmp.eq.s32.totalorder %s9, 0
    %p29 = por %p27, %p28
    %p30 = scmp.ne.s32.totalorder %s19, %s22
    %p31 = scmp.eq.s32.totalorder %s14, 1
    %p32 = por %p30, %p31
    %p33 = scmp.ne.s32.totalorder %s22, %s23
    %p34 = scmp.eq.s32.totalorder %s14, 0
    %p35 = por %p33, %p34
    %p36 = scmp.ne.s32.totalorder %s22, %s23
    %p37 = scmp.eq.s32.totalorder %s15, 1
    %p38 = por %p36, %p37
    %p40 = scmp.ne.s32.totalorder %s23, %s39
    %p41 = scmp.eq.s32.totalorder %s15, 0
    %p42 = por %p40, %p41
    %s44 = sadd.s32 %s43, 1
    %p47 = scmp.eq.s32.totalorder %s9, 1
    %p48 = scmp.ne.s32.totalorder %s43, %s45
    %p49 = scmp.eq.s32.totalorder %s9, 0
    %p50 = por %p48, %p49
    %p51 = scmp.ne.s32.totalorder %s43, %s45
    %p52 = scmp.eq.s32.totalorder %s14, 1
    %p53 = por %p51, %p52
    %p54 = scmp.ne.s32.totalorder %s45, %s46
    %p55 = scmp.eq.s32.totalorder %s14, 0
    %p56 = por %p54, %p55
    %p57 = scmp.ne.s32.totalorder %s45, %s46
    %p58 = scmp.eq.s32.totalorder %s15, 1
    %p59 = por %p57, %p58
    %p61 = scmp.ne.s32.totalorder %s46, %s60
    %p62 = scmp.eq.s32.totalorder %s15, 0
    %p63 = por %p61, %p62
    %s65 = sadd.s32 %s64, 1
    %p68 = scmp.eq.s32.totalorder %s9, 1
    %p69 = scmp.ne.s32.totalorder %s64, %s66
    %p70 = scmp.eq.s32.totalorder %s9, 0
    %p71 = por %p69, %p70
    %p72 = scmp.ne.s32.totalorder %s64, %s66
    %p73 = scmp.eq.s32.totalorder %s14, 1
    %p74 = por %p72, %p73
    %p75 = scmp.ne.s32.totalorder %s66, %s67
    %p76 = scmp.eq.s32.totalorder %s14, 0
    %p77 = por %p75, %p76
    %p78 = scmp.ne.s32.totalorder %s66, %s67
    %p79 = scmp.eq.s32.totalorder %s15, 1
    %p80 = por %p78, %p79
    %p82 = scmp.ne.s32.totalorder %s67, %s81
    %p83 = scmp.eq.s32.totalorder %s15, 0
    %p84 = por %p82, %p83
    %s85 = ssub.s32 %s9, %s16
    %p86 = scmp.eq.s32.totalorder %s85, 0
    %s88 = sadd.s32 %s87, 1
    %s89 = scalar_select %p86, %s87, %s88
    %p92 = pneg %p86
    %p93 = scmp.eq.s32.totalorder %s9, 1
    %p94 = por %p92, %p93
    %p95 = scmp.ne.s32.totalorder %s87, %s90
    %p96 = scmp.eq.s32.totalorder %s9, 0
    %p97 = por %p95, %p96
    %p98 = scmp.ne.s32.totalorder %s87, %s90
    %p99 = scmp.eq.s32.totalorder %s14, 1
    %p100 = por %p98, %p99
    %p101 = scmp.ne.s32.totalorder %s90, %s91
    %p102 = scmp.eq.s32.totalorder %s14, 0
    %p103 = por %p101, %p102
    %p104 = scmp.ne.s32.totalorder %s90, %s91
    %p105 = scmp.eq.s32.totalorder %s15, 1
    %p106 = por %p104, %p105
    %p108 = scmp.ne.s32.totalorder %s91, %s107
    %p109 = scmp.eq.s32.totalorder %s15, 0
    %p110 = por %p108, %p109
    %p111 = scmp.le.s32.totalorder 1, %s9
    %p112 = scmp.lt.s32.totalorder %s9, 3
    %p113 = pnand %p111, %p112
    %p114 = pneg %p113
    // Predicated region
    $region9: #{resnet_encoder_forward.23} parent=5 // pred_check
      _
    $region10: #{resnet_encoder_forward.23} parent=5 // pred_check_branch
      %116 = sbr.rel (%p113) target = $region12
    $region11: #{resnet_encoder_forward.23} parent=5 // pred_region
      %s117 = ssub.s32 %s9, 1
      // Predicated region
      $region13: #{resnet_encoder_forward.23} parent=11 // pred_check
        %p118 = pneg %p56
      $region14: #{resnet_encoder_forward.23} parent=11 // pred_check_branch
        %120 = sbr.rel (%p118) target = $region16
      $region15: #{resnet_encoder_forward.23} parent=11 // pred_region
        _
      $region16: #{resnet_encoder_forward.23} parent=11 // pred_fallthru
        _
      // Predicated region
      $region17: #{resnet_encoder_forward.23} parent=11 // pred_check
        %p121 = pneg %p77
      $region18: #{resnet_encoder_forward.23} parent=11 // pred_check_branch
        %123 = sbr.rel (%p121) target = $region20
      $region19: #{resnet_encoder_forward.23} parent=11 // pred_region
        _
      $region20: #{resnet_encoder_forward.23} parent=11 // pred_fallthru
        _
    $region12: #{resnet_encoder_forward.23} parent=5 // pred_fallthru
      _
    %p124 = scmp.lt.s32.totalorder %s9, 2
    // Predicated region
    $region21: #{resnet_encoder_forward.23} parent=5 // pred_check
      %p125 = pneg %p124
    $region22: #{resnet_encoder_forward.23} parent=5 // pred_check_branch
      %127 = sbr.rel (%p125) target = $region24
    $region23: #{resnet_encoder_forward.23} parent=5 // pred_region
      // Predicated region
      $region25: #{resnet_encoder_forward.23} parent=23 // pred_check
        %p128 = pneg %p29
      $region26: #{resnet_encoder_forward.23} parent=23 // pred_check_branch
        %130 = sbr.rel (%p128) target = $region28
      $region27: #{resnet_encoder_forward.23} parent=23 // pred_region
        %s131 = smul.u32 2, %s9
        %p132 = scmp.lt.s32.totalorder %s131, 3
        %s133 = scalar_select %p132, %s131, 3
        %s134 = smul.addr %s133, 9
        %s135 = smul.addr %s134, 4
        %s136 = scalar_lea.vmem %s0, %s135
        %s137 = smul.u32 2, %s9
      $region28: #{resnet_encoder_forward.23} parent=23 // pred_fallthru
        _
    $region24: #{resnet_encoder_forward.23} parent=5 // pred_fallthru
      _
    %p138 = scmp.le.s32.totalorder 1, %s9
    %p139 = scmp.lt.s32.totalorder %s9, 3
    %p140 = pnand %p138, %p139
    %p141 = pneg %p140
    // Predicated region
    $region29: #{resnet_encoder_forward.23} parent=5 // pred_check
      _
    $region30: #{resnet_encoder_forward.23} parent=5 // pred_check_branch
      %143 = sbr.rel (%p140) target = $region32
    $region31: #{resnet_encoder_forward.23} parent=5 // pred_region
      %s144 = ssub.s32 %s9, 1
      %s145 = smul.u32 2, %s14
      %p146 = scmp.lt.s32.totalorder %s145, 3
      %s147 = scalar_select %p146, %s145, 3
      %s148 = smul.addr %s147, 9
      %s149 = smul.addr %s148, 4
      %s150 = scalar_lea.vmem %s0, %s149
      %p151 = pneg %p35
      %p152 = pneg %p32
      %p153 = pneg %p56
      %p154 = pneg %p53
      %p155 = pneg %p77
      %p156 = pneg %p74
      %p157 = pneg %p103
      %p158 = pneg %p100
      %s159 = smul.u32 2, %s14
      %p160 = scmp.lt.s32.totalorder %s159, 3
      %s161 = scalar_select %p160, %s159, 3
      %s162 = smul.addr %s161, 4
      %s163 = scalar_lea.vmem %s3, %s162
      %s164 = smul.u32 2, %s14
      %p165 = scmp.lt.s32.totalorder %s164, 3
      %s166 = scalar_select %p165, %s164, 3
      %s167 = smul.addr %s166, 9
      %s168 = smul.addr %s167, 4
      %s169 = scalar_lea.vmem %s0, %s168
      %s170 = smul.u32 2, %s14
      %s171 = smul.u32 2, %s14
      %p172 = scmp.lt.s32.totalorder %s171, 3
      %s173 = scalar_select %p172, %s171, 3
      %s174 = smul.addr %s173, 4
      %s175 = scalar_lea.vmem %s3, %s174
      %s176 = smul.u32 2, %s14
      %v177 = vld [vmem:[%s169] sm:$0xff]
      %v178 = vld [vmem:[%s169 + $0x8] sm:$0xff]
      %v179 = vld [vmem:[%s169 + $0x10] sm:$0xff]
      %v180 = vld [vmem:[%s169 + $0x18] sm:$0xff]
      %v181 = vld [vmem:[%s169 + $0x20] sm:$0xf]
      %v182 = vld [vmem:[%s169 + $0x24] sm:$0xff]
      %v183 = vld [vmem:[%s169 + $0x2c] sm:$0xff]
      %v184 = vld [vmem:[%s169 + $0x34] sm:$0xff]
      %v185 = vld [vmem:[%s169 + $0x3c] sm:$0xff]
      %v186 = vld [vmem:[%s169 + $0x44] sm:$0xf]
      %v187 = vld [vmem:[%s1] sm:$0xf]
      %v188 = vld [vmem:[%s1 + $0x4] sm:$0xf]
      %v189 = vld [vmem:[%s1 + $0x8] sm:$0xf]
      %v190 = vld [vmem:[%s1 + $0xc] sm:$0xf]
      %v191 = vld [vmem:[%s1 + $0x10] sm:$0xf]
      %v192 = vld [vmem:[%s1 + $0x14] sm:$0xf]
      %v193 = vld [vmem:[%s1 + $0x18] sm:$0xf]
      %v194 = vld [vmem:[%s1 + $0x1c] sm:$0xf]
      %v195 = vld [vmem:[%s1 + $0x20] sm:$0xf]
      %v196 = vld [vmem:[%s1 + $0x24] sm:$0xf]
      %v197 = vld [vmem:[%s1 + $0x28] sm:$0xf]
      %v198 = vld [vmem:[%s1 + $0x2c] sm:$0xf]
      %v199 = vld [vmem:[%s1 + $0x30] sm:$0xf]
      %v200 = vld [vmem:[%s1 + $0x34] sm:$0xf]
      %v201 = vld [vmem:[%s1 + $0x38] sm:$0xf]
      %v202 = vld [vmem:[%s1 + $0x3c] sm:$0xf]
      %v203 = vld [vmem:[%s1 + $0x40] sm:$0xf]
      %v204 = vld [vmem:[%s1 + $0x44] sm:$0xf]
      %v205 = vld [vmem:[%s1 + $0x48] sm:$0xf]
      %v206 = vld [vmem:[%s1 + $0x4c] sm:$0xf]
      %v207 = vld [vmem:[%s1 + $0x50] sm:$0xf]
      %v208 = vld [vmem:[%s1 + $0x54] sm:$0xf]
      %v209 = vld [vmem:[%s1 + $0x58] sm:$0xf]
      %v210 = vld [vmem:[%s1 + $0x5c] sm:$0xf]
      %v211 = vld [vmem:[%s1 + $0x60] sm:$0xf]
      %v212 = vld [vmem:[%s1 + $0x64] sm:$0xf]
      %v213 = vld [vmem:[%s1 + $0x68] sm:$0xf]
      %v214 = vld [vmem:[%s1 + $0x6c] sm:$0xf]
      %v215 = vld [vmem:[%s1 + $0x70] sm:$0xf]
      %v216 = vld [vmem:[%s1 + $0x74] sm:$0xf]
      %v217 = vld [vmem:[%s1 + $0x78] sm:$0xf]
      %v218 = vld [vmem:[%s1 + $0x7c] sm:$0xf]
      %v219 = vld [vmem:[%s1 + $0x80] sm:$0xf]
      %v220 = vld [vmem:[%s1 + $0x84] sm:$0xf]
      %v221 = vld [vmem:[%s1 + $0x88] sm:$0xf]
      %v222 = vld [vmem:[%s1 + $0x8c] sm:$0xf]
      %v223 = vld [vmem:[%s1 + $0x90] sm:$0xf]
      %v224 = vld [vmem:[%s1 + $0x94] sm:$0xf]
      %v225 = vld [vmem:[%s1 + $0x98] sm:$0xf]
      %v226 = vld [vmem:[%s1 + $0x9c] sm:$0xf]
      %v227 = vld [vmem:[%s1 + $0xa0] sm:$0xf]
      %v228 = vld [vmem:[%s1 + $0xa4] sm:$0xf]
      %v229 = vld [vmem:[%s1 + $0xa8] sm:$0xf]
      %v230 = vld [vmem:[%s1 + $0xac] sm:$0xf]
      %v231 = vld [vmem:[%s1 + $0xb0] sm:$0xf]
      %v232 = vld [vmem:[%s1 + $0xb4] sm:$0xf]
      %v233 = vld [vmem:[%s1 + $0xb8] sm:$0xf]
      %v234 = vld [vmem:[%s1 + $0xbc] sm:$0xf]
      %v235 = vld [vmem:[%s1 + $0xc0] sm:$0xf]
      %v236 = vld [vmem:[%s1 + $0xc4] sm:$0xf]
      %v237 = vld [vmem:[%s1 + $0xc8] sm:$0xf]
      %v238 = vld [vmem:[%s1 + $0xcc] sm:$0xf]
      %v239 = vld [vmem:[%s1 + $0xd0] sm:$0xf]
      %v240 = vld [vmem:[%s1 + $0xd4] sm:$0xf]
      %v241 = vld [vmem:[%s1 + $0xd8] sm:$0xf]
      %v242 = vld [vmem:[%s1 + $0xdc] sm:$0xf]
      %v243 = vld [vmem:[%s1 + $0xe0] sm:$0xf]
      %v244 = vld [vmem:[%s1 + $0xe4] sm:$0xf]
      %v245 = vld [vmem:[%s1 + $0xe8] sm:$0xf]
      %v246 = vld [vmem:[%s1 + $0xec] sm:$0xf]
      %v247 = vld [vmem:[%s1 + $0xf0] sm:$0xf]
      %v248 = vld [vmem:[%s1 + $0xf4] sm:$0xf]
      %v249 = vld [vmem:[%s1 + $0xf8] sm:$0xf]
      %v250 = vld [vmem:[%s1 + $0xfc] sm:$0xf]
      %v251 = vld [vmem:[%s1 + $0x100] sm:$0xf]
      %v252 = vld [vmem:[%s1 + $0x104] sm:$0xf]
      %v253 = vld [vmem:[%s1 + $0x108] sm:$0xf]
      %v254 = vld [vmem:[%s1 + $0x10c] sm:$0xf]
      %v255 = vld [vmem:[%s1 + $0x110] sm:$0xf]
      %v256 = vld [vmem:[%s1 + $0x114] sm:$0xf]
      %v257 = vld [vmem:[%s1 + $0x118] sm:$0xf]
      %v258 = vld [vmem:[%s1 + $0x11c] sm:$0xf]
      %v259 = vld [vmem:[%s1 + $0x120] sm:$0xf]
      %v260 = vld [vmem:[%s1 + $0x124] sm:$0xf]
      %v261 = vld [vmem:[%s1 + $0x128] sm:$0xf]
      %v262 = vld [vmem:[%s1 + $0x12c] sm:$0xf]
      %v263 = vld [vmem:[%s1 + $0x130] sm:$0xf]
      %v264 = vld [vmem:[%s1 + $0x134] sm:$0xf]
      %v265 = vld [vmem:[%s1 + $0x138] sm:$0xf]
      %v266 = vld [vmem:[%s1 + $0x13c] sm:$0xf]
      %v267 = vld [vmem:[%s1 + $0x140] sm:$0xf]
      %v268 = vld [vmem:[%s1 + $0x144] sm:$0xf]
      %v269 = vld [vmem:[%s1 + $0x148] sm:$0xf]
      %v270 = vld [vmem:[%s1 + $0x14c] sm:$0xf]
      %v271 = vld [vmem:[%s1 + $0x150] sm:$0xf]
      %v272 = vld [vmem:[%s1 + $0x154] sm:$0xf]
      %v273 = vld [vmem:[%s1 + $0x158] sm:$0xf]
      %v274 = vld [vmem:[%s1 + $0x15c] sm:$0xf]
      %v275 = vld [vmem:[%s1 + $0x160] sm:$0xf]
      %v276 = vld [vmem:[%s1 + $0x164] sm:$0xf]
      %v277 = vld [vmem:[%s1 + $0x168] sm:$0xf]
      %v278 = vld [vmem:[%s1 + $0x16c] sm:$0xf]
      %v279 = vld [vmem:[%s1 + $0x170] sm:$0xf]
      %v280 = vld [vmem:[%s1 + $0x174] sm:$0xf]
      %v281 = vld [vmem:[%s1 + $0x178] sm:$0xf]
      %v282 = vld [vmem:[%s1 + $0x17c] sm:$0xf]
      %v283 = vld [vmem:[%s1 + $0x180] sm:$0xf]
      %v284 = vld [vmem:[%s1 + $0x184] sm:$0xf]
      %v285 = vld [vmem:[%s1 + $0x188] sm:$0xf]
      %v286 = vld [vmem:[%s1 + $0x18c] sm:$0xf]
      %v287 = vld [vmem:[%s1 + $0x190] sm:$0xf]
      %v288 = vld [vmem:[%s1 + $0x194] sm:$0xf]
      %v289 = vld [vmem:[%s1 + $0x198] sm:$0xf]
      %v290 = vld [vmem:[%s1 + $0x19c] sm:$0xf]
      %v291 = vld [vmem:[%s1 + $0x1a0] sm:$0xf]
      %v292 = vld [vmem:[%s1 + $0x1a4] sm:$0xf]
      %v293 = vld [vmem:[%s1 + $0x1a8] sm:$0xf]
      %v294 = vld [vmem:[%s1 + $0x1ac] sm:$0xf]
      %v295 = vld [vmem:[%s1 + $0x1b0] sm:$0xf]
      %v296 = vld [vmem:[%s1 + $0x1b4] sm:$0xf]
      %v297 = vld [vmem:[%s1 + $0x1b8] sm:$0xf]
      %v298 = vld [vmem:[%s1 + $0x1bc] sm:$0xf]
      %v299 = vld [vmem:[%s1 + $0x1c0] sm:$0xf]
      %v300 = vld [vmem:[%s1 + $0x1c4] sm:$0xf]
      %v301 = vld [vmem:[%s1 + $0x1c8] sm:$0xf]
      %v302 = vld [vmem:[%s1 + $0x1cc] sm:$0xf]
      %v303 = vld [vmem:[%s1 + $0x1d0] sm:$0xf]
      %v304 = vld [vmem:[%s1 + $0x1d4] sm:$0xf]
      %v305 = vld [vmem:[%s1 + $0x1d8] sm:$0xf]
      %v306 = vld [vmem:[%s1 + $0x1dc] sm:$0xf]
      %v307 = vld [vmem:[%s1 + $0x1e0] sm:$0xf]
      %v308 = vld [vmem:[%s1 + $0x1e4] sm:$0xf]
      %v309 = vld [vmem:[%s1 + $0x1e8] sm:$0xf]
      %v310 = vld [vmem:[%s1 + $0x1ec] sm:$0xf]
      %v311 = vld [vmem:[%s1 + $0x1f0] sm:$0xf]
      %v312 = vld [vmem:[%s1 + $0x1f4] sm:$0xf]
      %v313 = vld [vmem:[%s1 + $0x1f8] sm:$0xf]
      %v314 = vld [vmem:[%s1 + $0x1fc] sm:$0xf]
      %v315 = vld [vmem:[%s1 + $0x200] sm:$0xf]
      %v316 = vld [vmem:[%s1 + $0x204] sm:$0xf]
      %v317 = vld [vmem:[%s1 + $0x208] sm:$0xf]
      %v318 = vld [vmem:[%s1 + $0x20c] sm:$0xf]
      %v319 = vld [vmem:[%s1 + $0x210] sm:$0xf]
      %v320 = vld [vmem:[%s1 + $0x214] sm:$0xf]
      %v321 = vld [vmem:[%s1 + $0x218] sm:$0xf]
      %v322 = vld [vmem:[%s1 + $0x21c] sm:$0xf]
      %v323 = vld [vmem:[%s1 + $0x220] sm:$0xf]
      %v324 = vld [vmem:[%s1 + $0x224] sm:$0xf]
      %v325 = vld [vmem:[%s1 + $0x228] sm:$0xf]
      %v326 = vld [vmem:[%s1 + $0x22c] sm:$0xf]
      %v327 = vld [vmem:[%s1 + $0x230] sm:$0xf]
      %v328 = vld [vmem:[%s1 + $0x234] sm:$0xf]
      %v329 = vld [vmem:[%s1 + $0x238] sm:$0xf]
      %v330 = vld [vmem:[%s1 + $0x23c] sm:$0xf]
      %v331 = vld [vmem:[%s2] sm:$0x1]
      %v333 = vperm.slane %v331, 0
      %v345 = vunpack.c.l.b16 %v177
      %v346 = vunpack.c.h.b16 %v177
      %v347 = vunpack.c.l.b16 %v178
      %v348 = vunpack.c.h.b16 %v178
      %v349 = vunpack.c.l.b16 %v179
      %v350 = vunpack.c.h.b16 %v179
      %v351 = vunpack.c.l.b16 %v180
      %v352 = vunpack.c.h.b16 %v180
      %v353 = vunpack.c.l.b16 %v181
      %v354 = vunpack.c.l.b16 %v182
      %v355 = vunpack.c.h.b16 %v182
      %v356 = vunpack.c.l.b16 %v183
      %v357 = vunpack.c.h.b16 %v183
      %v358 = vunpack.c.l.b16 %v184
      %v359 = vunpack.c.h.b16 %v184
      %v360 = vunpack.c.l.b16 %v185
      %v361 = vunpack.c.h.b16 %v185
      %v362 = vunpack.c.l.b16 %v186
      %v363 = vpack.c.b16 %v354, %v345
      %v364 = vpack.c.b16 %v355, %v346
      %v365 = vpack.c.b16 %v356, %v347
      %v366 = vpack.c.b16 %v357, %v348
      %v367 = vpack.c.b16 %v358, %v349
      %v368 = vpack.c.b16 %v359, %v350
      %v369 = vpack.c.b16 %v360, %v351
      %v370 = vpack.c.b16 %v361, %v352
      %v371 = vpack.c.b16 %v362, %v353
      %v525 = vunpack.c.l.b16 %v187
      %v526 = vunpack.c.l.b16 %v188
      %v527 = vunpack.c.l.b16 %v189
      %v528 = vunpack.c.l.b16 %v190
      %v529 = vunpack.c.l.b16 %v191
      %v530 = vunpack.c.l.b16 %v192
      %v531 = vunpack.c.l.b16 %v193
      %v532 = vunpack.c.l.b16 %v194
      %v533 = vunpack.c.l.b16 %v195
      %v534 = vunpack.c.l.b16 %v196
      %v535 = vunpack.c.l.b16 %v197
      %v536 = vunpack.c.l.b16 %v198
      %v537 = vunpack.c.l.b16 %v199
      %v538 = vunpack.c.l.b16 %v200
      %v539 = vunpack.c.l.b16 %v201
      %v540 = vunpack.c.l.b16 %v202
      %v541 = vunpack.c.l.b16 %v203
      %v542 = vunpack.c.l.b16 %v204
      %v543 = vunpack.c.l.b16 %v205
      %v544 = vunpack.c.l.b16 %v206
      %v545 = vunpack.c.l.b16 %v207
      %v546 = vunpack.c.l.b16 %v208
      %v547 = vunpack.c.l.b16 %v209
      %v548 = vunpack.c.l.b16 %v210
      %v549 = vunpack.c.l.b16 %v211
      %v550 = vunpack.c.l.b16 %v212
      %v551 = vunpack.c.l.b16 %v213
      %v552 = vunpack.c.l.b16 %v214
      %v553 = vunpack.c.l.b16 %v215
      %v554 = vunpack.c.l.b16 %v216
      %v555 = vunpack.c.l.b16 %v217
      %v556 = vunpack.c.l.b16 %v218
      %v557 = vunpack.c.l.b16 %v219
      %v558 = vunpack.c.l.b16 %v220
      %v559 = vunpack.c.l.b16 %v221
      %v560 = vunpack.c.l.b16 %v222
      %v561 = vunpack.c.l.b16 %v223
      %v562 = vunpack.c.l.b16 %v224
      %v563 = vunpack.c.l.b16 %v225
      %v564 = vunpack.c.l.b16 %v226
      %v565 = vunpack.c.l.b16 %v227
      %v566 = vunpack.c.l.b16 %v228
      %v567 = vunpack.c.l.b16 %v229
      %v568 = vunpack.c.l.b16 %v230
      %v569 = vunpack.c.l.b16 %v231
      %v570 = vunpack.c.l.b16 %v232
      %v571 = vunpack.c.l.b16 %v233
      %v572 = vunpack.c.l.b16 %v234
      %v573 = vunpack.c.l.b16 %v235
      %v574 = vunpack.c.l.b16 %v236
      %v575 = vunpack.c.l.b16 %v237
      %v576 = vunpack.c.l.b16 %v238
      %v577 = vunpack.c.l.b16 %v239
      %v578 = vunpack.c.l.b16 %v240
      %v579 = vunpack.c.l.b16 %v241
      %v580 = vunpack.c.l.b16 %v242
      %v581 = vunpack.c.l.b16 %v243
      %v582 = vunpack.c.l.b16 %v244
      %v583 = vunpack.c.l.b16 %v245
      %v584 = vunpack.c.l.b16 %v246
      %v585 = vunpack.c.l.b16 %v247
      %v586 = vunpack.c.l.b16 %v248
      %v587 = vunpack.c.l.b16 %v249
      %v588 = vunpack.c.l.b16 %v250
      %v589 = vunpack.c.l.b16 %v251
      %v590 = vunpack.c.l.b16 %v252
      %v591 = vunpack.c.l.b16 %v253
      %v592 = vunpack.c.l.b16 %v254
      %v593 = vunpack.c.l.b16 %v255
      %v594 = vunpack.c.l.b16 %v256
      %v595 = vunpack.c.l.b16 %v257
      %v596 = vunpack.c.l.b16 %v258
      %v597 = vunpack.c.l.b16 %v259
      %v598 = vunpack.c.l.b16 %v260
      %v599 = vunpack.c.l.b16 %v261
      %v600 = vunpack.c.l.b16 %v262
      %v601 = vunpack.c.l.b16 %v263
      %v602 = vunpack.c.l.b16 %v264
      %v603 = vunpack.c.l.b16 %v265
      %v604 = vunpack.c.l.b16 %v266
      %v605 = vunpack.c.l.b16 %v267
      %v606 = vunpack.c.l.b16 %v268
      %v607 = vunpack.c.l.b16 %v269
      %v608 = vunpack.c.l.b16 %v270
      %v609 = vunpack.c.l.b16 %v271
      %v610 = vunpack.c.l.b16 %v272
      %v611 = vunpack.c.l.b16 %v273
      %v612 = vunpack.c.l.b16 %v274
      %v613 = vunpack.c.l.b16 %v275
      %v614 = vunpack.c.l.b16 %v276
      %v615 = vunpack.c.l.b16 %v277
      %v616 = vunpack.c.l.b16 %v278
      %v617 = vunpack.c.l.b16 %v279
      %v618 = vunpack.c.l.b16 %v280
      %v619 = vunpack.c.l.b16 %v281
      %v620 = vunpack.c.l.b16 %v282
      %v621 = vunpack.c.l.b16 %v283
      %v622 = vunpack.c.l.b16 %v284
      %v623 = vunpack.c.l.b16 %v285
      %v624 = vunpack.c.l.b16 %v286
      %v625 = vunpack.c.l.b16 %v287
      %v626 = vunpack.c.l.b16 %v288
      %v627 = vunpack.c.l.b16 %v289
      %v628 = vunpack.c.l.b16 %v290
      %v629 = vunpack.c.l.b16 %v291
      %v630 = vunpack.c.l.b16 %v292
      %v631 = vunpack.c.l.b16 %v293
      %v632 = vunpack.c.l.b16 %v294
      %v633 = vunpack.c.l.b16 %v295
      %v634 = vunpack.c.l.b16 %v296
      %v635 = vunpack.c.l.b16 %v297
      %v636 = vunpack.c.l.b16 %v298
      %v637 = vunpack.c.l.b16 %v299
      %v638 = vunpack.c.l.b16 %v300
      %v639 = vunpack.c.l.b16 %v301
      %v640 = vunpack.c.l.b16 %v302
      %v641 = vunpack.c.l.b16 %v303
      %v642 = vunpack.c.l.b16 %v304
      %v643 = vunpack.c.l.b16 %v305
      %v644 = vunpack.c.l.b16 %v306
      %v645 = vunpack.c.l.b16 %v307
      %v646 = vunpack.c.l.b16 %v308
      %v647 = vunpack.c.l.b16 %v309
      %v648 = vunpack.c.l.b16 %v310
      %v649 = vunpack.c.l.b16 %v311
      %v650 = vunpack.c.l.b16 %v312
      %v651 = vunpack.c.l.b16 %v313
      %v652 = vunpack.c.l.b16 %v314
      %v653 = vunpack.c.l.b16 %v315
      %v654 = vunpack.c.l.b16 %v316
      %v655 = vunpack.c.l.b16 %v317
      %v656 = vunpack.c.l.b16 %v318
      %v657 = vunpack.c.l.b16 %v319
      %v658 = vunpack.c.l.b16 %v320
      %v659 = vunpack.c.l.b16 %v321
      %v660 = vunpack.c.l.b16 %v322
      %v661 = vunpack.c.l.b16 %v323
      %v662 = vunpack.c.l.b16 %v324
      %v663 = vunpack.c.l.b16 %v325
      %v664 = vunpack.c.l.b16 %v326
      %v665 = vunpack.c.l.b16 %v327
      %v666 = vunpack.c.l.b16 %v328
      %v667 = vunpack.c.l.b16 %v329
      %v668 = vunpack.c.l.b16 %v330
      %v669 = vpack.c.b16 %v526, %v525
      %v670 = vpack.c.b16 %v528, %v527
      %v671 = vpack.c.b16 %v530, %v529
      %v672 = vpack.c.b16 %v532, %v531
      %v673 = vpack.c.b16 %v534, %v533
      %v674 = vpack.c.b16 %v536, %v535
      %v675 = vpack.c.b16 %v538, %v537
      %v676 = vpack.c.b16 %v540, %v539
      %v677 = vpack.c.b16 %v542, %v541
      %v678 = vpack.c.b16 %v544, %v543
      %v679 = vpack.c.b16 %v546, %v545
      %v680 = vpack.c.b16 %v548, %v547
      %v681 = vpack.c.b16 %v550, %v549
      %v682 = vpack.c.b16 %v552, %v551
      %v683 = vpack.c.b16 %v554, %v553
      %v684 = vpack.c.b16 %v556, %v555
      %v685 = vpack.c.b16 %v558, %v557
      %v686 = vpack.c.b16 %v560, %v559
      %v687 = vpack.c.b16 %v562, %v561
      %v688 = vpack.c.b16 %v564, %v563
      %v689 = vpack.c.b16 %v566, %v565
      %v690 = vpack.c.b16 %v568, %v567
      %v691 = vpack.c.b16 %v570, %v569
      %v692 = vpack.c.b16 %v572, %v571
      %v693 = vpack.c.b16 %v574, %v573
      %v694 = vpack.c.b16 %v576, %v575
      %v695 = vpack.c.b16 %v578, %v577
      %v696 = vpack.c.b16 %v580, %v579
      %v697 = vpack.c.b16 %v582, %v581
      %v698 = vpack.c.b16 %v584, %v583
      %v699 = vpack.c.b16 %v586, %v585
      %v700 = vpack.c.b16 %v588, %v587
      %v701 = vpack.c.b16 %v590, %v589
      %v702 = vpack.c.b16 %v592, %v591
      %v703 = vpack.c.b16 %v594, %v593
      %v704 = vpack.c.b16 %v596, %v595
      %v705 = vpack.c.b16 %v598, %v597
      %v706 = vpack.c.b16 %v600, %v599
      %v707 = vpack.c.b16 %v602, %v601
      %v708 = vpack.c.b16 %v604, %v603
      %v709 = vpack.c.b16 %v606, %v605
      %v710 = vpack.c.b16 %v608, %v607
      %v711 = vpack.c.b16 %v610, %v609
      %v712 = vpack.c.b16 %v612, %v611
      %v713 = vpack.c.b16 %v614, %v613
      %v714 = vpack.c.b16 %v616, %v615
      %v715 = vpack.c.b16 %v618, %v617
      %v716 = vpack.c.b16 %v620, %v619
      %v717 = vpack.c.b16 %v622, %v621
      %v718 = vpack.c.b16 %v624, %v623
      %v719 = vpack.c.b16 %v626, %v625
      %v720 = vpack.c.b16 %v628, %v627
      %v721 = vpack.c.b16 %v630, %v629
      %v722 = vpack.c.b16 %v632, %v631
      %v723 = vpack.c.b16 %v634, %v633
      %v724 = vpack.c.b16 %v636, %v635
      %v725 = vpack.c.b16 %v638, %v637
      %v726 = vpack.c.b16 %v640, %v639
      %v727 = vpack.c.b16 %v642, %v641
      %v728 = vpack.c.b16 %v644, %v643
      %v729 = vpack.c.b16 %v646, %v645
      %v730 = vpack.c.b16 %v648, %v647
      %v731 = vpack.c.b16 %v650, %v649
      %v732 = vpack.c.b16 %v652, %v651
      %v733 = vpack.c.b16 %v654, %v653
      %v734 = vpack.c.b16 %v656, %v655
      %v735 = vpack.c.b16 %v658, %v657
      %v736 = vpack.c.b16 %v660, %v659
      %v737 = vpack.c.b16 %v662, %v661
      %v738 = vpack.c.b16 %v664, %v663
      %v739 = vpack.c.b16 %v666, %v665
      %v740 = vpack.c.b16 %v668, %v667
      %813 = vmatpush.bf16.msra.mxu0 %v676
      %814 = vmatpush.bf16.msra.mxu0 %v675
      %815 = vmatpush.bf16.msra.mxu0 %v674
      %816 = vmatpush.bf16.msra.mxu0 %v673
      %817 = vmatpush.bf16.msra.mxu0 %v672
      %818 = vmatpush.bf16.msra.mxu0 %v671
      %819 = vmatpush.bf16.msra.mxu0 %v670
      %820 = vmatpush.bf16.msra.mxu0 %v669
      %821 = vmatmul.bf16.gmra.mxu0 %v363
      %v822 = vpop.f32.mrf.mxu0
      %v823 = vadd.f32 %v333, %v822
      %v824 = vpop.f32.mrf.mxu0
      %v825 = vadd.f32 %v333, %v824
      %826 = vdwg.mxu0
      %827 = vmatpush.bf16.msra.mxu0 %v684
      %828 = vmatpush.bf16.msra.mxu0 %v683
      %829 = vmatpush.bf16.msra.mxu0 %v682
      %830 = vmatpush.bf16.msra.mxu0 %v681
      %831 = vmatpush.bf16.msra.mxu0 %v680
      %832 = vmatpush.bf16.msra.mxu0 %v679
      %833 = vmatpush.bf16.msra.mxu0 %v678
      %834 = vmatpush.bf16.msra.mxu0 %v677
      %835 = vmatmul.bf16.gmra.mxu0 %v364
      %v836 = vpop.f32.mrf.mxu0
      %v837 = vadd.f32 %v823, %v836
      %v838 = vpop.f32.mrf.mxu0
      %v839 = vadd.f32 %v825, %v838
      %840 = vdwg.mxu0
      %841 = vmatpush.bf16.msra.mxu0 %v692
      %842 = vmatpush.bf16.msra.mxu0 %v691
      %843 = vmatpush.bf16.msra.mxu0 %v690
      %844 = vmatpush.bf16.msra.mxu0 %v689
      %845 = vmatpush.bf16.msra.mxu0 %v688
      %846 = vmatpush.bf16.msra.mxu0 %v687
      %847 = vmatpush.bf16.msra.mxu0 %v686
      %848 = vmatpush.bf16.msra.mxu0 %v685
      %849 = vmatmul.bf16.gmra.mxu0 %v365
      %v850 = vpop.f32.mrf.mxu0
      %v851 = vadd.f32 %v837, %v850
      %v852 = vpop.f32.mrf.mxu0
      %v853 = vadd.f32 %v839, %v852
      %854 = vdwg.mxu0
      %855 = vmatpush.bf16.msra.mxu0 %v700
      %856 = vmatpush.bf16.msra.mxu0 %v699
      %857 = vmatpush.bf16.msra.mxu0 %v698
      %858 = vmatpush.bf16.msra.mxu0 %v697
      %859 = vmatpush.bf16.msra.mxu0 %v696
      %860 = vmatpush.bf16.msra.mxu0 %v695
      %861 = vmatpush.bf16.msra.mxu0 %v694
      %862 = vmatpush.bf16.msra.mxu0 %v693
      %863 = vmatmul.bf16.gmra.mxu0 %v366
      %v864 = vpop.f32.mrf.mxu0
      %v865 = vadd.f32 %v851, %v864
      %v866 = vpop.f32.mrf.mxu0
      %v867 = vadd.f32 %v853, %v866
      %868 = vdwg.mxu0
      %869 = vmatpush.bf16.msra.mxu0 %v708
      %870 = vmatpush.bf16.msra.mxu0 %v707
      %871 = vmatpush.bf16.msra.mxu0 %v706
      %872 = vmatpush.bf16.msra.mxu0 %v705
      %873 = vmatpush.bf16.msra.mxu0 %v704
      %874 = vmatpush.bf16.msra.mxu0 %v703
      %875 = vmatpush.bf16.msra.mxu0 %v702
      %876 = vmatpush.bf16.msra.mxu0 %v701
      %877 = vmatmul.bf16.gmra.mxu0 %v367
      %v878 = vpop.f32.mrf.mxu0
      %v879 = vadd.f32 %v865, %v878
      %v880 = vpop.f32.mrf.mxu0
      %v881 = vadd.f32 %v867, %v880
      %882 = vdwg.mxu0
      %883 = vmatpush.bf16.msra.mxu0 %v716
      %884 = vmatpush.bf16.msra.mxu0 %v715
      %885 = vmatpush.bf16.msra.mxu0 %v714
      %886 = vmatpush.bf16.msra.mxu0 %v713
      %887 = vmatpush.bf16.msra.mxu0 %v712
      %888 = vmatpush.bf16.msra.mxu0 %v711
      %889 = vmatpush.bf16.msra.mxu0 %v710
      %890 = vmatpush.bf16.msra.mxu0 %v709
      %891 = vmatmul.bf16.gmra.mxu0 %v368
      %v892 = vpop.f32.mrf.mxu0
      %v893 = vadd.f32 %v879, %v892
      %v894 = vpop.f32.mrf.mxu0
      %v895 = vadd.f32 %v881, %v894
      %896 = vdwg.mxu0
      %897 = vmatpush.bf16.msra.mxu0 %v724
      %898 = vmatpush.bf16.msra.mxu0 %v723
      %899 = vmatpush.bf16.msra.mxu0 %v722
      %900 = vmatpush.bf16.msra.mxu0 %v721
      %901 = vmatpush.bf16.msra.mxu0 %v720
      %902 = vmatpush.bf16.msra.mxu0 %v719
      %903 = vmatpush.bf16.msra.mxu0 %v718
      %904 = vmatpush.bf16.msra.mxu0 %v717
      %905 = vmatmul.bf16.gmra.mxu0 %v369
      %v906 = vpop.f32.mrf.mxu0
      %v907 = vadd.f32 %v893, %v906
      %v908 = vpop.f32.mrf.mxu0
      %v909 = vadd.f32 %v895, %v908
      %910 = vdwg.mxu0
      %911 = vmatpush.bf16.msra.mxu0 %v732
      %912 = vmatpush.bf16.msra.mxu0 %v731
      %913 = vmatpush.bf16.msra.mxu0 %v730
      %914 = vmatpush.bf16.msra.mxu0 %v729
      %915 = vmatpush.bf16.msra.mxu0 %v728
      %916 = vmatpush.bf16.msra.mxu0 %v727
      %917 = vmatpush.bf16.msra.mxu0 %v726
      %918 = vmatpush.bf16.msra.mxu0 %v725
      %919 = vmatmul.bf16.gmra.mxu0 %v370
      %v920 = vpop.f32.mrf.mxu0
      %v921 = vadd.f32 %v907, %v920
      %v922 = vpop.f32.mrf.mxu0
      %v923 = vadd.f32 %v909, %v922
      %924 = vdwg.mxu0
      %925 = vmatpush.bf16.msra.mxu0 %v740
      %926 = vmatpush.bf16.msra.mxu0 %v739
      %927 = vmatpush.bf16.msra.mxu0 %v738
      %928 = vmatpush.bf16.msra.mxu0 %v737
      %929 = vmatpush.bf16.msra.mxu0 %v736
      %930 = vmatpush.bf16.msra.mxu0 %v735
      %931 = vmatpush.bf16.msra.mxu0 %v734
      %932 = vmatpush.bf16.msra.mxu0 %v733
      %933 = vmatmul.bf16.gmra.mxu0 %v371
      %v934 = vpop.f32.mrf.mxu0
      %v935 = vadd.f32 %v921, %v934
      %v936 = vpop.f32.mrf.mxu0
      %v937 = vadd.f32 %v923, %v936
      %938 = vdwg.mxu0
      %v939 = vmax.f32 %v935, 0.0
      %v940 = vmax.f32 %v937, 0.0
      %v941 = vpack.c.bf16 %v939, %v939
      %v942 = vpack.c.bf16 %v940, %v940
      %943 = vst [vmem:[%s175] sm:$0xf] %v941
      %944 = vst [vmem:[%s175 + $0x4] sm:$0xf] %v942
      %s945 = smul.u32 2, %s14
      %p946 = scmp.lt.s32.totalorder %s945, 3
      %s947 = scalar_select %p946, %s945, 3
      %s948 = smul.addr %s947, 4
      %s949 = scalar_lea.vmem %s3, %s948
      // Predicated region
      $region33: #{resnet_encoder_forward.23} parent=31 // pred_check
        %p950 = pneg %p100
      $region34: #{resnet_encoder_forward.23} parent=31 // pred_check_branch
        %952 = sbr.rel (%p950) target = $region36
      $region35: #{resnet_encoder_forward.23} parent=31 // pred_region
        %s953 = smul.u32 2, %s14
      $region36: #{resnet_encoder_forward.23} parent=31 // pred_fallthru
        _
    $region32: #{resnet_encoder_forward.23} parent=5 // pred_fallthru
      _
    %p954 = scmp.le.s32.totalorder 2, %s9
    // Predicated region
    $region37: #{resnet_encoder_forward.23} parent=5 // pred_check
      %p955 = pneg %p954
    $region38: #{resnet_encoder_forward.23} parent=5 // pred_check_branch
      %957 = sbr.rel (%p955) target = $region40
    $region39: #{resnet_encoder_forward.23} parent=5 // pred_region
      %s958 = ssub.s32 %s9, 2
      // Predicated region
      $region41: #{resnet_encoder_forward.23} parent=39 // pred_check
        %p959 = pneg %p106
      $region42: #{resnet_encoder_forward.23} parent=39 // pred_check_branch
        %961 = sbr.rel (%p959) target = $region44
      $region43: #{resnet_encoder_forward.23} parent=39 // pred_region
        %s962 = smul.u32 2, %s15
        %p963 = scmp.lt.s32.totalorder %s962, 3
        %s964 = scalar_select %p963, %s962, 3
        %s965 = smul.addr %s964, 4
        %s966 = scalar_lea.vmem %s3, %s965
      $region44: #{resnet_encoder_forward.23} parent=39 // pred_fallthru
        _
    $region40: #{resnet_encoder_forward.23} parent=5 // pred_fallthru
      _
  $region6: #{resnet_encoder_forward.23} parent=0 // loop_footer
    %s13 = sadd.s32 1, %s9
  $region7: #{resnet_encoder_forward.23} parent=0 // loop_footer_branch
    %8 = sbr.rel target = $region3
  $region8: #{resnet_encoder_forward.23} parent=0 // loop_exit
    _

// kernel: resnet_encoder_forward.25
$region0: #{resnet_encoder_forward.25}
  #allocation0 [shape = 'u32[]', space=smem, size = 0x4, offset = 0x4, fixed_abs, tag = 'smem constant byte address 0x4 - core index']
  #allocation1 [shape = 'u32[72,128]{1,0:T(1,128)}', space=vmem, size = 0x9000, scoped, tag = 'internal scratch']
  %s0 = inlined_call_operand.vmem [shape: bf16[8,1152], index: 0, kind: input, shape index: {}]
  %s1 = inlined_call_operand.vmem [shape: bf16[1152,256], index: 1, kind: input, shape index: {}]
  %s2 = inlined_call_operand.vmem [shape: f32[1,256], index: 2, kind: input, shape index: {}]
  %s3 = inlined_call_operand.vmem [shape: bf16[8,256], index: 3, kind: output, shape index: {}]
  %s4 = sld [smem:[#allocation0]]
  $region22: #{resnet_encoder_forward.25} parent=0
    _
  %s6 = ssub.s32 1, %s4
  %s7 = scalar_select 0, %s6, %s4
  // Predicated region
  $region2: #{resnet_encoder_forward.25} parent=0 // pred_check
    _
  $region3: #{resnet_encoder_forward.25} parent=0 // pred_check_branch
    %9 = sbr.rel (0) target = $region5
  $region4: #{resnet_encoder_forward.25} parent=0 // pred_region
    _
  $region5: #{resnet_encoder_forward.25} parent=0 // pred_fallthru
    _
  // Predicated region
  $region6: #{resnet_encoder_forward.25} parent=0 // pred_check
    _
  $region7: #{resnet_encoder_forward.25} parent=0 // pred_check_branch
    %11 = sbr.rel (0) target = $region9
  $region8: #{resnet_encoder_forward.25} parent=0 // pred_region
    _
  $region9: #{resnet_encoder_forward.25} parent=0 // pred_fallthru
    _
  // Predicated region
  $region10: #{resnet_encoder_forward.25} parent=0 // pred_check
    _
  $region11: #{resnet_encoder_forward.25} parent=0 // pred_check_branch
    %13 = sbr.rel (0) target = $region13
  $region12: #{resnet_encoder_forward.25} parent=0 // pred_region
    _
  $region13: #{resnet_encoder_forward.25} parent=0 // pred_fallthru
    _
  %v14 = vld [vmem:[%s0] sm:$0xff]
  %v15 = vld [vmem:[%s0 + $0x8] sm:$0xff]
  %v16 = vld [vmem:[%s0 + $0x10] sm:$0xff]
  %v17 = vld [vmem:[%s0 + $0x18] sm:$0xff]
  %v18 = vld [vmem:[%s0 + $0x20] sm:$0xf]
  %v19 = vld [vmem:[%s1] sm:$0xff]
  %v20 = vld [vmem:[%s1 + $0x8] sm:$0xff]
  %v21 = vld [vmem:[%s1 + $0x10] sm:$0xff]
  %v22 = vld [vmem:[%s1 + $0x18] sm:$0xff]
  %v23 = vld [vmem:[%s1 + $0x20] sm:$0xff]
  %v24 = vld [vmem:[%s1 + $0x28] sm:$0xff]
  %v25 = vld [vmem:[%s1 + $0x30] sm:$0xff]
  %v26 = vld [vmem:[%s1 + $0x38] sm:$0xff]
  %v27 = vld [vmem:[%s1 + $0x40] sm:$0xff]
  %v28 = vld [vmem:[%s1 + $0x48] sm:$0xff]
  %v29 = vld [vmem:[%s1 + $0x50] sm:$0xff]
  %v30 = vld [vmem:[%s1 + $0x58] sm:$0xff]
  %v31 = vld [vmem:[%s1 + $0x60] sm:$0xff]
  %v32 = vld [vmem:[%s1 + $0x68] sm:$0xff]
  %v33 = vld [vmem:[%s1 + $0x70] sm:$0xff]
  %v34 = vld [vmem:[%s1 + $0x78] sm:$0xff]
  %v35 = vld [vmem:[%s1 + $0x80] sm:$0xff]
  %v36 = vld [vmem:[%s1 + $0x88] sm:$0xff]
  %v37 = vld [vmem:[%s1 + $0x90] sm:$0xff]
  %v38 = vld [vmem:[%s1 + $0x98] sm:$0xff]
  %v39 = vld [vmem:[%s1 + $0xa0] sm:$0xff]
  %v40 = vld [vmem:[%s1 + $0xa8] sm:$0xff]
  %v41 = vld [vmem:[%s1 + $0xb0] sm:$0xff]
  %v42 = vld [vmem:[%s1 + $0xb8] sm:$0xff]
  %v43 = vld [vmem:[%s1 + $0xc0] sm:$0xff]
  %v44 = vld [vmem:[%s1 + $0xc8] sm:$0xff]
  %v45 = vld [vmem:[%s1 + $0xd0] sm:$0xff]
  %v46 = vld [vmem:[%s1 + $0xd8] sm:$0xff]
  %v47 = vld [vmem:[%s1 + $0xe0] sm:$0xff]
  %v48 = vld [vmem:[%s1 + $0xe8] sm:$0xff]
  %v49 = vld [vmem:[%s1 + $0xf0] sm:$0xff]
  %v50 = vld [vmem:[%s1 + $0xf8] sm:$0xff]
  %v51 = vld [vmem:[%s1 + $0x100] sm:$0xff]
  %v52 = vld [vmem:[%s1 + $0x108] sm:$0xff]
  %v53 = vld [vmem:[%s1 + $0x110] sm:$0xff]
  %v54 = vld [vmem:[%s1 + $0x118] sm:$0xff]
  %v55 = vld [vmem:[%s1 + $0x120] sm:$0xff]
  %v56 = vld [vmem:[%s1 + $0x128] sm:$0xff]
  %v57 = vld [vmem:[%s1 + $0x130] sm:$0xff]
  %v58 = vld [vmem:[%s1 + $0x138] sm:$0xff]
  %v59 = vld [vmem:[%s1 + $0x140] sm:$0xff]
  %v60 = vld [vmem:[%s1 + $0x148] sm:$0xff]
  %v61 = vld [vmem:[%s1 + $0x150] sm:$0xff]
  %v62 = vld [vmem:[%s1 + $0x158] sm:$0xff]
  %v63 = vld [vmem:[%s1 + $0x160] sm:$0xff]
  %v64 = vld [vmem:[%s1 + $0x168] sm:$0xff]
  %v65 = vld [vmem:[%s1 + $0x170] sm:$0xff]
  %v66 = vld [vmem:[%s1 + $0x178] sm:$0xff]
  %v67 = vld [vmem:[%s1 + $0x180] sm:$0xff]
  %v68 = vld [vmem:[%s1 + $0x188] sm:$0xff]
  %v69 = vld [vmem:[%s1 + $0x190] sm:$0xff]
  %v70 = vld [vmem:[%s1 + $0x198] sm:$0xff]
  %v71 = vld [vmem:[%s1 + $0x1a0] sm:$0xff]
  %v72 = vld [vmem:[%s1 + $0x1a8] sm:$0xff]
  %v73 = vld [vmem:[%s1 + $0x1b0] sm:$0xff]
  %v74 = vld [vmem:[%s1 + $0x1b8] sm:$0xff]
  %v75 = vld [vmem:[%s1 + $0x1c0] sm:$0xff]
  %v76 = vld [vmem:[%s1 + $0x1c8] sm:$0xff]
  %v77 = vld [vmem:[%s1 + $0x1d0] sm:$0xff]
  %v78 = vld [vmem:[%s1 + $0x1d8] sm:$0xff]
  %v79 = vld [vmem:[%s1 + $0x1e0] sm:$0xff]
  %v80 = vld [vmem:[%s1 + $0x1e8] sm:$0xff]
  %v81 = vld [vmem:[%s1 + $0x1f0] sm:$0xff]
  %v82 = vld [vmem:[%s1 + $0x1f8] sm:$0xff]
  %v83 = vld [vmem:[%s1 + $0x200] sm:$0xff]
  %v84 = vld [vmem:[%s1 + $0x208] sm:$0xff]
  %v85 = vld [vmem:[%s1 + $0x210] sm:$0xff]
  %v86 = vld [vmem:[%s1 + $0x218] sm:$0xff]
  %v87 = vld [vmem:[%s1 + $0x220] sm:$0xff]
  %v88 = vld [vmem:[%s1 + $0x228] sm:$0xff]
  %v89 = vld [vmem:[%s1 + $0x230] sm:$0xff]
  %v90 = vld [vmem:[%s1 + $0x238] sm:$0xff]
  %v91 = vld [vmem:[%s1 + $0x240] sm:$0xff]
  %v92 = vld [vmem:[%s1 + $0x248] sm:$0xff]
  %v93 = vld [vmem:[%s1 + $0x250] sm:$0xff]
  %v94 = vld [vmem:[%s1 + $0x258] sm:$0xff]
  %v95 = vld [vmem:[%s1 + $0x260] sm:$0xff]
  %v96 = vld [vmem:[%s1 + $0x268] sm:$0xff]
  %v97 = vld [vmem:[%s1 + $0x270] sm:$0xff]
  %v98 = vld [vmem:[%s1 + $0x278] sm:$0xff]
  %v99 = vld [vmem:[%s1 + $0x280] sm:$0xff]
  %v100 = vld [vmem:[%s1 + $0x288] sm:$0xff]
  %v101 = vld [vmem:[%s1 + $0x290] sm:$0xff]
  %v102 = vld [vmem:[%s1 + $0x298] sm:$0xff]
  %v103 = vld [vmem:[%s1 + $0x2a0] sm:$0xff]
  %v104 = vld [vmem:[%s1 + $0x2a8] sm:$0xff]
  %v105 = vld [vmem:[%s1 + $0x2b0] sm:$0xff]
  %v106 = vld [vmem:[%s1 + $0x2b8] sm:$0xff]
  %v107 = vld [vmem:[%s1 + $0x2c0] sm:$0xff]
  %v108 = vld [vmem:[%s1 + $0x2c8] sm:$0xff]
  %v109 = vld [vmem:[%s1 + $0x2d0] sm:$0xff]
  %v110 = vld [vmem:[%s1 + $0x2d8] sm:$0xff]
  %v111 = vld [vmem:[%s1 + $0x2e0] sm:$0xff]
  %v112 = vld [vmem:[%s1 + $0x2e8] sm:$0xff]
  %v113 = vld [vmem:[%s1 + $0x2f0] sm:$0xff]
  %v114 = vld [vmem:[%s1 + $0x2f8] sm:$0xff]
  %v115 = vld [vmem:[%s1 + $0x300] sm:$0xff]
  %v116 = vld [vmem:[%s1 + $0x308] sm:$0xff]
  %v117 = vld [vmem:[%s1 + $0x310] sm:$0xff]
  %v118 = vld [vmem:[%s1 + $0x318] sm:$0xff]
  %v119 = vld [vmem:[%s1 + $0x320] sm:$0xff]
  %v120 = vld [vmem:[%s1 + $0x328] sm:$0xff]
  %v121 = vld [vmem:[%s1 + $0x330] sm:$0xff]
  %v122 = vld [vmem:[%s1 + $0x338] sm:$0xff]
  %v123 = vld [vmem:[%s1 + $0x340] sm:$0xff]
  %v124 = vld [vmem:[%s1 + $0x348] sm:$0xff]
  %v125 = vld [vmem:[%s1 + $0x350] sm:$0xff]
  %v126 = vld [vmem:[%s1 + $0x358] sm:$0xff]
  %v127 = vld [vmem:[%s1 + $0x360] sm:$0xff]
  %v128 = vld [vmem:[%s1 + $0x368] sm:$0xff]
  %v129 = vld [vmem:[%s1 + $0x370] sm:$0xff]
  %v130 = vld [vmem:[%s1 + $0x378] sm:$0xff]
  %v131 = vld [vmem:[%s1 + $0x380] sm:$0xff]
  %v132 = vld [vmem:[%s1 + $0x388] sm:$0xff]
  %v133 = vld [vmem:[%s1 + $0x390] sm:$0xff]
  %v134 = vld [vmem:[%s1 + $0x398] sm:$0xff]
  %v135 = vld [vmem:[%s1 + $0x3a0] sm:$0xff]
  %v136 = vld [vmem:[%s1 + $0x3a8] sm:$0xff]
  %v137 = vld [vmem:[%s1 + $0x3b0] sm:$0xff]
  %v138 = vld [vmem:[%s1 + $0x3b8] sm:$0xff]
  %v139 = vld [vmem:[%s1 + $0x3c0] sm:$0xff]
  %v140 = vld [vmem:[%s1 + $0x3c8] sm:$0xff]
  %v141 = vld [vmem:[%s1 + $0x3d0] sm:$0xff]
  %v142 = vld [vmem:[%s1 + $0x3d8] sm:$0xff]
  %v143 = vld [vmem:[%s1 + $0x3e0] sm:$0xff]
  %v144 = vld [vmem:[%s1 + $0x3e8] sm:$0xff]
  %v145 = vld [vmem:[%s1 + $0x3f0] sm:$0xff]
  %v146 = vld [vmem:[%s1 + $0x3f8] sm:$0xff]
  %v147 = vld [vmem:[%s1 + $0x400] sm:$0xff]
  %v148 = vld [vmem:[%s1 + $0x408] sm:$0xff]
  %v149 = vld [vmem:[%s1 + $0x410] sm:$0xff]
  %v150 = vld [vmem:[%s1 + $0x418] sm:$0xff]
  %v151 = vld [vmem:[%s1 + $0x420] sm:$0xff]
  %v152 = vld [vmem:[%s1 + $0x428] sm:$0xff]
  %v153 = vld [vmem:[%s1 + $0x430] sm:$0xff]
  %v154 = vld [vmem:[%s1 + $0x438] sm:$0xff]
  %v155 = vld [vmem:[%s1 + $0x440] sm:$0xff]
  %v156 = vld [vmem:[%s1 + $0x448] sm:$0xff]
  %v157 = vld [vmem:[%s1 + $0x450] sm:$0xff]
  %v158 = vld [vmem:[%s1 + $0x458] sm:$0xff]
  %v159 = vld [vmem:[%s1 + $0x460] sm:$0xff]
  %v160 = vld [vmem:[%s1 + $0x468] sm:$0xff]
  %v161 = vld [vmem:[%s1 + $0x470] sm:$0xff]
  %v162 = vld [vmem:[%s1 + $0x478] sm:$0xff]
  %v163 = vld [vmem:[%s2] sm:$0x3]
  %v165 = vperm.slane %v163, 0
  %v166 = vperm.slane %v163, 1
  %v174 = vunpack.c.l.b16 %v14
  %v175 = vunpack.c.h.b16 %v14
  %v176 = vunpack.c.l.b16 %v15
  %v177 = vunpack.c.h.b16 %v15
  %v178 = vunpack.c.l.b16 %v16
  %v179 = vunpack.c.h.b16 %v16
  %v180 = vunpack.c.l.b16 %v17
  %v181 = vunpack.c.h.b16 %v17
  %v182 = vunpack.c.l.b16 %v18
  %v183 = vpack.c.b16 %v174, %v174
  %v184 = vpack.c.b16 %v175, %v175
  %v185 = vpack.c.b16 %v176, %v176
  %v186 = vpack.c.b16 %v177, %v177
  %v187 = vpack.c.b16 %v178, %v178
  %v188 = vpack.c.b16 %v179, %v179
  %v189 = vpack.c.b16 %v180, %v180
  %v190 = vpack.c.b16 %v181, %v181
  %v191 = vpack.c.b16 %v182, %v182
  %v345 = vunpack.c.l.b16 %v19
  %v346 = vunpack.c.h.b16 %v19
  %v347 = vunpack.c.l.b16 %v20
  %v348 = vunpack.c.h.b16 %v20
  %v349 = vunpack.c.l.b16 %v21
  %v350 = vunpack.c.h.b16 %v21
  %v351 = vunpack.c.l.b16 %v22
  %v352 = vunpack.c.h.b16 %v22
  %v353 = vunpack.c.l.b16 %v23
  %v354 = vunpack.c.h.b16 %v23
  %v355 = vunpack.c.l.b16 %v24
  %v356 = vunpack.c.h.b16 %v24
  %v357 = vunpack.c.l.b16 %v25
  %v358 = vunpack.c.h.b16 %v25
  %v359 = vunpack.c.l.b16 %v26
  %v360 = vunpack.c.h.b16 %v26
  %v361 = vunpack.c.l.b16 %v27
  %v362 = vunpack.c.h.b16 %v27
  %v363 = vunpack.c.l.b16 %v28
  %v364 = vunpack.c.h.b16 %v28
  %v365 = vunpack.c.l.b16 %v29
  %v366 = vunpack.c.h.b16 %v29
  %v367 = vunpack.c.l.b16 %v30
  %v368 = vunpack.c.h.b16 %v30
  %v369 = vunpack.c.l.b16 %v31
  %v370 = vunpack.c.h.b16 %v31
  %v371 = vunpack.c.l.b16 %v32
  %v372 = vunpack.c.h.b16 %v32
  %v373 = vunpack.c.l.b16 %v33
  %v374 = vunpack.c.h.b16 %v33
  %v375 = vunpack.c.l.b16 %v34
  %v376 = vunpack.c.h.b16 %v34
  %v377 = vunpack.c.l.b16 %v35
  %v378 = vunpack.c.h.b16 %v35
  %v379 = vunpack.c.l.b16 %v36
  %v380 = vunpack.c.h.b16 %v36
  %v381 = vunpack.c.l.b16 %v37
  %v382 = vunpack.c.h.b16 %v37
  %v383 = vunpack.c.l.b16 %v38
  %v384 = vunpack.c.h.b16 %v38
  %v385 = vunpack.c.l.b16 %v39
  %v386 = vunpack.c.h.b16 %v39
  %v387 = vunpack.c.l.b16 %v40
  %v388 = vunpack.c.h.b16 %v40
  %v389 = vunpack.c.l.b16 %v41
  %v390 = vunpack.c.h.b16 %v41
  %v391 = vunpack.c.l.b16 %v42
  %v392 = vunpack.c.h.b16 %v42
  %v393 = vunpack.c.l.b16 %v43
  %v394 = vunpack.c.h.b16 %v43
  %v395 = vunpack.c.l.b16 %v44
  %v396 = vunpack.c.h.b16 %v44
  %v397 = vunpack.c.l.b16 %v45
  %v398 = vunpack.c.h.b16 %v45
  %v399 = vunpack.c.l.b16 %v46
  %v400 = vunpack.c.h.b16 %v46
  %v401 = vunpack.c.l.b16 %v47
  %v402 = vunpack.c.h.b16 %v47
  %v403 = vunpack.c.l.b16 %v48
  %v404 = vunpack.c.h.b16 %v48
  %v405 = vunpack.c.l.b16 %v49
  %v406 = vunpack.c.h.b16 %v49
  %v407 = vunpack.c.l.b16 %v50
  %v408 = vunpack.c.h.b16 %v50
  %v409 = vunpack.c.l.b16 %v51
  %v410 = vunpack.c.h.b16 %v51
  %v411 = vunpack.c.l.b16 %v52
  %v412 = vunpack.c.h.b16 %v52
  %v413 = vunpack.c.l.b16 %v53
  %v414 = vunpack.c.h.b16 %v53
  %v415 = vunpack.c.l.b16 %v54
  %v416 = vunpack.c.h.b16 %v54
  %v417 = vunpack.c.l.b16 %v55
  %v418 = vunpack.c.h.b16 %v55
  %v419 = vunpack.c.l.b16 %v56
  %v420 = vunpack.c.h.b16 %v56
  %v421 = vunpack.c.l.b16 %v57
  %v422 = vunpack.c.h.b16 %v57
  %v423 = vunpack.c.l.b16 %v58
  %v424 = vunpack.c.h.b16 %v58
  %v425 = vunpack.c.l.b16 %v59
  %v426 = vunpack.c.h.b16 %v59
  %v427 = vunpack.c.l.b16 %v60
  %v428 = vunpack.c.h.b16 %v60
  %v429 = vunpack.c.l.b16 %v61
  %v430 = vunpack.c.h.b16 %v61
  %v431 = vunpack.c.l.b16 %v62
  %v432 = vunpack.c.h.b16 %v62
  %v433 = vunpack.c.l.b16 %v63
  %v434 = vunpack.c.h.b16 %v63
  %v435 = vunpack.c.l.b16 %v64
  %v436 = vunpack.c.h.b16 %v64
  %v437 = vunpack.c.l.b16 %v65
  %v438 = vunpack.c.h.b16 %v65
  %v439 = vunpack.c.l.b16 %v66
  %v440 = vunpack.c.h.b16 %v66
  %v441 = vunpack.c.l.b16 %v67
  %v442 = vunpack.c.h.b16 %v67
  %v443 = vunpack.c.l.b16 %v68
  %v444 = vunpack.c.h.b16 %v68
  %v445 = vunpack.c.l.b16 %v69
  %v446 = vunpack.c.h.b16 %v69
  %v447 = vunpack.c.l.b16 %v70
  %v448 = vunpack.c.h.b16 %v70
  %v449 = vunpack.c.l.b16 %v71
  %v450 = vunpack.c.h.b16 %v71
  %v451 = vunpack.c.l.b16 %v72
  %v452 = vunpack.c.h.b16 %v72
  %v453 = vunpack.c.l.b16 %v73
  %v454 = vunpack.c.h.b16 %v73
  %v455 = vunpack.c.l.b16 %v74
  %v456 = vunpack.c.h.b16 %v74
  %v457 = vunpack.c.l.b16 %v75
  %v458 = vunpack.c.h.b16 %v75
  %v459 = vunpack.c.l.b16 %v76
  %v460 = vunpack.c.h.b16 %v76
  %v461 = vunpack.c.l.b16 %v77
  %v462 = vunpack.c.h.b16 %v77
  %v463 = vunpack.c.l.b16 %v78
  %v464 = vunpack.c.h.b16 %v78
  %v465 = vunpack.c.l.b16 %v79
  %v466 = vunpack.c.h.b16 %v79
  %v467 = vunpack.c.l.b16 %v80
  %v468 = vunpack.c.h.b16 %v80
  %v469 = vunpack.c.l.b16 %v81
  %v470 = vunpack.c.h.b16 %v81
  %v471 = vunpack.c.l.b16 %v82
  %v472 = vunpack.c.h.b16 %v82
  %v473 = vunpack.c.l.b16 %v83
  %v474 = vunpack.c.h.b16 %v83
  %v475 = vunpack.c.l.b16 %v84
  %v476 = vunpack.c.h.b16 %v84
  %v477 = vunpack.c.l.b16 %v85
  %v478 = vunpack.c.h.b16 %v85
  %v479 = vunpack.c.l.b16 %v86
  %v480 = vunpack.c.h.b16 %v86
  %v481 = vunpack.c.l.b16 %v87
  %v482 = vunpack.c.h.b16 %v87
  %v483 = vunpack.c.l.b16 %v88
  %v484 = vunpack.c.h.b16 %v88
  %v485 = vunpack.c.l.b16 %v89
  %v486 = vunpack.c.h.b16 %v89
  %v487 = vunpack.c.l.b16 %v90
  %v488 = vunpack.c.h.b16 %v90
  %v489 = vunpack.c.l.b16 %v91
  %v490 = vunpack.c.h.b16 %v91
  %v491 = vunpack.c.l.b16 %v92
  %v492 = vunpack.c.h.b16 %v92
  %v493 = vunpack.c.l.b16 %v93
  %v494 = vunpack.c.h.b16 %v93
  %v495 = vunpack.c.l.b16 %v94
  %v496 = vunpack.c.h.b16 %v94
  %v497 = vunpack.c.l.b16 %v95
  %v498 = vunpack.c.h.b16 %v95
  %v499 = vunpack.c.l.b16 %v96
  %v500 = vunpack.c.h.b16 %v96
  %v501 = vunpack.c.l.b16 %v97
  %v502 = vunpack.c.h.b16 %v97
  %v503 = vunpack.c.l.b16 %v98
  %v504 = vunpack.c.h.b16 %v98
  %v505 = vunpack.c.l.b16 %v99
  %v506 = vunpack.c.h.b16 %v99
  %v507 = vunpack.c.l.b16 %v100
  %v508 = vunpack.c.h.b16 %v100
  %v509 = vunpack.c.l.b16 %v101
  %v510 = vunpack.c.h.b16 %v101
  %v511 = vunpack.c.l.b16 %v102
  %v512 = vunpack.c.h.b16 %v102
  %v513 = vunpack.c.l.b16 %v103
  %v514 = vunpack.c.h.b16 %v103
  %v515 = vunpack.c.l.b16 %v104
  %v516 = vunpack.c.h.b16 %v104
  %v517 = vunpack.c.l.b16 %v105
  %v518 = vunpack.c.h.b16 %v105
  %v519 = vunpack.c.l.b16 %v106
  %v520 = vunpack.c.h.b16 %v106
  %v521 = vunpack.c.l.b16 %v107
  %v522 = vunpack.c.h.b16 %v107
  %v523 = vunpack.c.l.b16 %v108
  %v524 = vunpack.c.h.b16 %v108
  %v525 = vunpack.c.l.b16 %v109
  %v526 = vunpack.c.h.b16 %v109
  %v527 = vunpack.c.l.b16 %v110
  %v528 = vunpack.c.h.b16 %v110
  %v529 = vunpack.c.l.b16 %v111
  %v530 = vunpack.c.h.b16 %v111
  %v531 = vunpack.c.l.b16 %v112
  %v532 = vunpack.c.h.b16 %v112
  %v533 = vunpack.c.l.b16 %v113
  %v534 = vunpack.c.h.b16 %v113
  %v535 = vunpack.c.l.b16 %v114
  %v536 = vunpack.c.h.b16 %v114
  %v537 = vunpack.c.l.b16 %v115
  %v538 = vunpack.c.h.b16 %v115
  %v539 = vunpack.c.l.b16 %v116
  %v540 = vunpack.c.h.b16 %v116
  %v541 = vunpack.c.l.b16 %v117
  %v542 = vunpack.c.h.b16 %v117
  %v543 = vunpack.c.l.b16 %v118
  %v544 = vunpack.c.h.b16 %v118
  %v545 = vunpack.c.l.b16 %v119
  %v546 = vunpack.c.h.b16 %v119
  %v547 = vunpack.c.l.b16 %v120
  %v548 = vunpack.c.h.b16 %v120
  %v549 = vunpack.c.l.b16 %v121
  %v550 = vunpack.c.h.b16 %v121
  %v551 = vunpack.c.l.b16 %v122
  %v552 = vunpack.c.h.b16 %v122
  %v553 = vunpack.c.l.b16 %v123
  %v554 = vunpack.c.h.b16 %v123
  %v555 = vunpack.c.l.b16 %v124
  %v556 = vunpack.c.h.b16 %v124
  %v557 = vunpack.c.l.b16 %v125
  %v558 = vunpack.c.h.b16 %v125
  %v559 = vunpack.c.l.b16 %v126
  %v560 = vunpack.c.h.b16 %v126
  %v561 = vunpack.c.l.b16 %v127
  %v562 = vunpack.c.h.b16 %v127
  %v563 = vunpack.c.l.b16 %v128
  %v564 = vunpack.c.h.b16 %v128
  %v565 = vunpack.c.l.b16 %v129
  %v566 = vunpack.c.h.b16 %v129
  %v567 = vunpack.c.l.b16 %v130
  %v568 = vunpack.c.h.b16 %v130
  %v569 = vunpack.c.l.b16 %v131
  %v570 = vunpack.c.h.b16 %v131
  %v571 = vunpack.c.l.b16 %v132
  %v572 = vunpack.c.h.b16 %v132
  %v573 = vunpack.c.l.b16 %v133
  %v574 = vunpack.c.h.b16 %v133
  %v575 = vunpack.c.l.b16 %v134
  %v576 = vunpack.c.h.b16 %v134
  %v577 = vunpack.c.l.b16 %v135
  %v578 = vunpack.c.h.b16 %v135
  %v579 = vunpack.c.l.b16 %v136
  %v580 = vunpack.c.h.b16 %v136
  %v581 = vunpack.c.l.b16 %v137
  %v582 = vunpack.c.h.b16 %v137
  %v583 = vunpack.c.l.b16 %v138
  %v584 = vunpack.c.h.b16 %v138
  %v585 = vunpack.c.l.b16 %v139
  %v586 = vunpack.c.h.b16 %v139
  %v587 = vunpack.c.l.b16 %v140
  %v588 = vunpack.c.h.b16 %v140
  %v589 = vunpack.c.l.b16 %v141
  %v590 = vunpack.c.h.b16 %v141
  %v591 = vunpack.c.l.b16 %v142
  %v592 = vunpack.c.h.b16 %v142
  %v593 = vunpack.c.l.b16 %v143
  %v594 = vunpack.c.h.b16 %v143
  %v595 = vunpack.c.l.b16 %v144
  %v596 = vunpack.c.h.b16 %v144
  %v597 = vunpack.c.l.b16 %v145
  %v598 = vunpack.c.h.b16 %v145
  %v599 = vunpack.c.l.b16 %v146
  %v600 = vunpack.c.h.b16 %v146
  %v601 = vunpack.c.l.b16 %v147
  %v602 = vunpack.c.h.b16 %v147
  %v603 = vunpack.c.l.b16 %v148
  %v604 = vunpack.c.h.b16 %v148
  %v605 = vunpack.c.l.b16 %v149
  %v606 = vunpack.c.h.b16 %v149
  %v607 = vunpack.c.l.b16 %v150
  %v608 = vunpack.c.h.b16 %v150
  %v609 = vunpack.c.l.b16 %v151
  %v610 = vunpack.c.h.b16 %v151
  %v611 = vunpack.c.l.b16 %v152
  %v612 = vunpack.c.h.b16 %v152
  %v613 = vunpack.c.l.b16 %v153
  %v614 = vunpack.c.h.b16 %v153
  %v615 = vunpack.c.l.b16 %v154
  %v616 = vunpack.c.h.b16 %v154
  %v617 = vunpack.c.l.b16 %v155
  %v618 = vunpack.c.h.b16 %v155
  %v619 = vunpack.c.l.b16 %v156
  %v620 = vunpack.c.h.b16 %v156
  %v621 = vunpack.c.l.b16 %v157
  %v622 = vunpack.c.h.b16 %v157
  %v623 = vunpack.c.l.b16 %v158
  %v624 = vunpack.c.h.b16 %v158
  %v625 = vunpack.c.l.b16 %v159
  %v626 = vunpack.c.h.b16 %v159
  %v627 = vunpack.c.l.b16 %v160
  %v628 = vunpack.c.h.b16 %v160
  %v629 = vunpack.c.l.b16 %v161
  %v630 = vunpack.c.h.b16 %v161
  %v631 = vunpack.c.l.b16 %v162
  %v632 = vunpack.c.h.b16 %v162
  %v633 = vpack.c.b16 %v347, %v345
  %v634 = vpack.c.b16 %v348, %v346
  %v635 = vpack.c.b16 %v351, %v349
  %v636 = vpack.c.b16 %v352, %v350
  %v637 = vpack.c.b16 %v355, %v353
  %v638 = vpack.c.b16 %v356, %v354
  %v639 = vpack.c.b16 %v359, %v357
  %v640 = vpack.c.b16 %v360, %v358
  %v641 = vpack.c.b16 %v363, %v361
  %v642 = vpack.c.b16 %v364, %v362
  %v643 = vpack.c.b16 %v367, %v365
  %v644 = vpack.c.b16 %v368, %v366
  %v645 = vpack.c.b16 %v371, %v369
  %v646 = vpack.c.b16 %v372, %v370
  %v647 = vpack.c.b16 %v375, %v373
  %v648 = vpack.c.b16 %v376, %v374
  %v649 = vpack.c.b16 %v379, %v377
  %v650 = vpack.c.b16 %v380, %v378
  %v651 = vpack.c.b16 %v383, %v381
  %v652 = vpack.c.b16 %v384, %v382
  %v653 = vpack.c.b16 %v387, %v385
  %v654 = vpack.c.b16 %v388, %v386
  %v655 = vpack.c.b16 %v391, %v389
  %v656 = vpack.c.b16 %v392, %v390
  %v657 = vpack.c.b16 %v395, %v393
  %v658 = vpack.c.b16 %v396, %v394
  %v659 = vpack.c.b16 %v399, %v397
  %v660 = vpack.c.b16 %v400, %v398
  %v661 = vpack.c.b16 %v403, %v401
  %v662 = vpack.c.b16 %v404, %v402
  %v663 = vpack.c.b16 %v407, %v405
  %v664 = vpack.c.b16 %v408, %v406
  %v665 = vpack.c.b16 %v411, %v409
  %v666 = vpack.c.b16 %v412, %v410
  %v667 = vpack.c.b16 %v415, %v413
  %v668 = vpack.c.b16 %v416, %v414
  %v669 = vpack.c.b16 %v419, %v417
  %v670 = vpack.c.b16 %v420, %v418
  %v671 = vpack.c.b16 %v423, %v421
  %v672 = vpack.c.b16 %v424, %v422
  %v673 = vpack.c.b16 %v427, %v425
  %v674 = vpack.c.b16 %v428, %v426
  %v675 = vpack.c.b16 %v431, %v429
  %v676 = vpack.c.b16 %v432, %v430
  %v677 = vpack.c.b16 %v435, %v433
  %v678 = vpack.c.b16 %v436, %v434
  %v679 = vpack.c.b16 %v439, %v437
  %v680 = vpack.c.b16 %v440, %v438
  %v681 = vpack.c.b16 %v443, %v441
  %v682 = vpack.c.b16 %v444, %v442
  %v683 = vpack.c.b16 %v447, %v445
  %v684 = vpack.c.b16 %v448, %v446
  %v685 = vpack.c.b16 %v451, %v449
  %v686 = vpack.c.b16 %v452, %v450
  %v687 = vpack.c.b16 %v455, %v453
  %v688 = vpack.c.b16 %v456, %v454
  %v689 = vpack.c.b16 %v459, %v457
  %v690 = vpack.c.b16 %v460, %v458
  %v691 = vpack.c.b16 %v463, %v461
  %v692 = vpack.c.b16 %v464, %v462
  %v693 = vpack.c.b16 %v467, %v465
  %v694 = vpack.c.b16 %v468, %v466
  %v695 = vpack.c.b16 %v471, %v469
  %v696 = vpack.c.b16 %v472, %v470
  %v697 = vpack.c.b16 %v475, %v473
  %v698 = vpack.c.b16 %v476, %v474
  %v699 = vpack.c.b16 %v479, %v477
  %v700 = vpack.c.b16 %v480, %v478
  %v701 = vpack.c.b16 %v483, %v481
  %v702 = vpack.c.b16 %v484, %v482
  %v703 = vpack.c.b16 %v487, %v485
  %v704 = vpack.c.b16 %v488, %v486
  %v705 = vpack.c.b16 %v491, %v489
  %v706 = vpack.c.b16 %v492, %v490
  %v707 = vpack.c.b16 %v495, %v493
  %v708 = vpack.c.b16 %v496, %v494
  %v709 = vpack.c.b16 %v499, %v497
  %v710 = vpack.c.b16 %v500, %v498
  %v711 = vpack.c.b16 %v503, %v501
  %v712 = vpack.c.b16 %v504, %v502
  %v713 = vpack.c.b16 %v507, %v505
  %v714 = vpack.c.b16 %v508, %v506
  %v715 = vpack.c.b16 %v511, %v509
  %v716 = vpack.c.b16 %v512, %v510
  %v717 = vpack.c.b16 %v515, %v513
  %v718 = vpack.c.b16 %v516, %v514
  %v719 = vpack.c.b16 %v519, %v517
  %v720 = vpack.c.b16 %v520, %v518
  %v721 = vpack.c.b16 %v523, %v521
  %v722 = vpack.c.b16 %v524, %v522
  %v723 = vpack.c.b16 %v527, %v525
  %v724 = vpack.c.b16 %v528, %v526
  %v725 = vpack.c.b16 %v531, %v529
  %v726 = vpack.c.b16 %v532, %v530
  %v727 = vpack.c.b16 %v535, %v533
  %v728 = vpack.c.b16 %v536, %v534
  %v729 = vpack.c.b16 %v539, %v537
  %v730 = vpack.c.b16 %v540, %v538
  %v731 = vpack.c.b16 %v543, %v541
  %v732 = vpack.c.b16 %v544, %v542
  %v733 = vpack.c.b16 %v547, %v545
  %v734 = vpack.c.b16 %v548, %v546
  %v735 = vpack.c.b16 %v551, %v549
  %v736 = vpack.c.b16 %v552, %v550
  %v737 = vpack.c.b16 %v555, %v553
  %v738 = vpack.c.b16 %v556, %v554
  %v739 = vpack.c.b16 %v559, %v557
  %v740 = vpack.c.b16 %v560, %v558
  %v741 = vpack.c.b16 %v563, %v561
  %v742 = vpack.c.b16 %v564, %v562
  %v743 = vpack.c.b16 %v567, %v565
  %v744 = vpack.c.b16 %v568, %v566
  %v745 = vpack.c.b16 %v571, %v569
  %v746 = vpack.c.b16 %v572, %v570
  %v747 = vpack.c.b16 %v575, %v573
  %v748 = vpack.c.b16 %v576, %v574
  %v749 = vpack.c.b16 %v579, %v577
  %v750 = vpack.c.b16 %v580, %v578
  %v751 = vpack.c.b16 %v583, %v581
  %v752 = vpack.c.b16 %v584, %v582
  %v753 = vpack.c.b16 %v587, %v585
  %v754 = vpack.c.b16 %v588, %v586
  %v755 = vpack.c.b16 %v591, %v589
  %v756 = vpack.c.b16 %v592, %v590
  %v757 = vpack.c.b16 %v595, %v593
  %v758 = vpack.c.b16 %v596, %v594
  %v759 = vpack.c.b16 %v599, %v597
  %v760 = vpack.c.b16 %v600, %v598
  %v761 = vpack.c.b16 %v603, %v601
  %v762 = vpack.c.b16 %v604, %v602
  %v763 = vpack.c.b16 %v607, %v605
  %v764 = vpack.c.b16 %v608, %v606
  %v765 = vpack.c.b16 %v611, %v609
  %v766 = vpack.c.b16 %v612, %v610
  %v767 = vpack.c.b16 %v615, %v613
  %v768 = vpack.c.b16 %v616, %v614
  %v769 = vpack.c.b16 %v619, %v617
  %v770 = vpack.c.b16 %v620, %v618
  %v771 = vpack.c.b16 %v623, %v621
  %v772 = vpack.c.b16 %v624, %v622
  %v773 = vpack.c.b16 %v627, %v625
  %v774 = vpack.c.b16 %v628, %v626
  %v775 = vpack.c.b16 %v631, %v629
  %v776 = vpack.c.b16 %v632, %v630
  %921 = vmatpush.bf16.msra.mxu0 %v647
  %922 = vmatpush.bf16.msra.mxu0 %v645
  %923 = vmatpush.bf16.msra.mxu0 %v643
  %924 = vmatpush.bf16.msra.mxu0 %v641
  %925 = vmatpush.bf16.msra.mxu0 %v639
  %926 = vmatpush.bf16.msra.mxu0 %v637
  %927 = vmatpush.bf16.msra.mxu0 %v635
  %928 = vmatpush.bf16.msra.mxu0 %v633
  %929 = vmatmul.bf16.gmra.mxu0 %v183
  %v930 = vpop.f32.mrf.mxu0
  %v931 = vadd.f32 %v165, %v930
  %v932 = vpop.f32.mrf.mxu0
  %933 = vdwg.mxu0
  %934 = vmatpush.bf16.msra.mxu0 %v663
  %935 = vmatpush.bf16.msra.mxu0 %v661
  %936 = vmatpush.bf16.msra.mxu0 %v659
  %937 = vmatpush.bf16.msra.mxu0 %v657
  %938 = vmatpush.bf16.msra.mxu0 %v655
  %939 = vmatpush.bf16.msra.mxu0 %v653
  %940 = vmatpush.bf16.msra.mxu0 %v651
  %941 = vmatpush.bf16.msra.mxu0 %v649
  %942 = vmatmul.bf16.gmra.mxu0 %v184
  %v943 = vpop.f32.mrf.mxu0
  %v944 = vadd.f32 %v931, %v943
  %v945 = vpop.f32.mrf.mxu0
  %946 = vdwg.mxu0
  %947 = vmatpush.bf16.msra.mxu0 %v679
  %948 = vmatpush.bf16.msra.mxu0 %v677
  %949 = vmatpush.bf16.msra.mxu0 %v675
  %950 = vmatpush.bf16.msra.mxu0 %v673
  %951 = vmatpush.bf16.msra.mxu0 %v671
  %952 = vmatpush.bf16.msra.mxu0 %v669
  %953 = vmatpush.bf16.msra.mxu0 %v667
  %954 = vmatpush.bf16.msra.mxu0 %v665
  %955 = vmatmul.bf16.gmra.mxu0 %v185
  %v956 = vpop.f32.mrf.mxu0
  %v957 = vadd.f32 %v944, %v956
  %v958 = vpop.f32.mrf.mxu0
  %959 = vdwg.mxu0
  %960 = vmatpush.bf16.msra.mxu0 %v695
  %961 = vmatpush.bf16.msra.mxu0 %v693
  %962 = vmatpush.bf16.msra.mxu0 %v691
  %963 = vmatpush.bf16.msra.mxu0 %v689
  %964 = vmatpush.bf16.msra.mxu0 %v687
  %965 = vmatpush.bf16.msra.mxu0 %v685
  %966 = vmatpush.bf16.msra.mxu0 %v683
  %967 = vmatpush.bf16.msra.mxu0 %v681
  %968 = vmatmul.bf16.gmra.mxu0 %v186
  %v969 = vpop.f32.mrf.mxu0
  %v970 = vadd.f32 %v957, %v969
  %v971 = vpop.f32.mrf.mxu0
  %972 = vdwg.mxu0
  %973 = vmatpush.bf16.msra.mxu0 %v711
  %974 = vmatpush.bf16.msra.mxu0 %v709
  %975 = vmatpush.bf16.msra.mxu0 %v707
  %976 = vmatpush.bf16.msra.mxu0 %v705
  %977 = vmatpush.bf16.msra.mxu0 %v703
  %978 = vmatpush.bf16.msra.mxu0 %v701
  %979 = vmatpush.bf16.msra.mxu0 %v699
  %980 = vmatpush.bf16.msra.mxu0 %v697
  %981 = vmatmul.bf16.gmra.mxu0 %v187
  %v982 = vpop.f32.mrf.mxu0
  %v983 = vadd.f32 %v970, %v982
  %v984 = vpop.f32.mrf.mxu0
  %985 = vdwg.mxu0
  %986 = vmatpush.bf16.msra.mxu0 %v727
  %987 = vmatpush.bf16.msra.mxu0 %v725
  %988 = vmatpush.bf16.msra.mxu0 %v723
  %989 = vmatpush.bf16.msra.mxu0 %v721
  %990 = vmatpush.bf16.msra.mxu0 %v719
  %991 = vmatpush.bf16.msra.mxu0 %v717
  %992 = vmatpush.bf16.msra.mxu0 %v715
  %993 = vmatpush.bf16.msra.mxu0 %v713
  %994 = vmatmul.bf16.gmra.mxu0 %v188
  %v995 = vpop.f32.mrf.mxu0
  %v996 = vadd.f32 %v983, %v995
  %v997 = vpop.f32.mrf.mxu0
  %998 = vdwg.mxu0
  %999 = vmatpush.bf16.msra.mxu0 %v743
  %1000 = vmatpush.bf16.msra.mxu0 %v741
  %1001 = vmatpush.bf16.msra.mxu0 %v739
  %1002 = vmatpush.bf16.msra.mxu0 %v737
  %1003 = vmatpush.bf16.msra.mxu0 %v735
  %1004 = vmatpush.bf16.msra.mxu0 %v733
  %1005 = vmatpush.bf16.msra.mxu0 %v731
  %1006 = vmatpush.bf16.msra.mxu0 %v729
  %1007 = vmatmul.bf16.gmra.mxu0 %v189
  %v1008 = vpop.f32.mrf.mxu0
  %v1009 = vadd.f32 %v996, %v1008
  %v1010 = vpop.f32.mrf.mxu0
  %1011 = vdwg.mxu0
  %1012 = vmatpush.bf16.msra.mxu0 %v759
  %1013 = vmatpush.bf16.msra.mxu0 %v757
  %1014 = vmatpush.bf16.msra.mxu0 %v755
  %1015 = vmatpush.bf16.msra.mxu0 %v753
  %1016 = vmatpush.bf16.msra.mxu0 %v751
  %1017 = vmatpush.bf16.msra.mxu0 %v749
  %1018 = vmatpush.bf16.msra.mxu0 %v747
  %1019 = vmatpush.bf16.msra.mxu0 %v745
  %1020 = vmatmul.bf16.gmra.mxu0 %v190
  %v1021 = vpop.f32.mrf.mxu0
  %v1022 = vadd.f32 %v1009, %v1021
  %v1023 = vpop.f32.mrf.mxu0
  %1024 = vdwg.mxu0
  %1025 = vmatpush.bf16.msra.mxu0 %v775
  %1026 = vmatpush.bf16.msra.mxu0 %v773
  %1027 = vmatpush.bf16.msra.mxu0 %v771
  %1028 = vmatpush.bf16.msra.mxu0 %v769
  %1029 = vmatpush.bf16.msra.mxu0 %v767
  %1030 = vmatpush.bf16.msra.mxu0 %v765
  %1031 = vmatpush.bf16.msra.mxu0 %v763
  %1032 = vmatpush.bf16.msra.mxu0 %v761
  %1033 = vmatmul.bf16.gmra.mxu0 %v191
  %v1034 = vpop.f32.mrf.mxu0
  %v1035 = vadd.f32 %v1022, %v1034
  %v1036 = vpop.f32.mrf.mxu0
  %1037 = vdwg.mxu0
  %1038 = vmatpush.bf16.msra.mxu0 %v648
  %1039 = vmatpush.bf16.msra.mxu0 %v646
  %1040 = vmatpush.bf16.msra.mxu0 %v644
  %1041 = vmatpush.bf16.msra.mxu0 %v642
  %1042 = vmatpush.bf16.msra.mxu0 %v640
  %1043 = vmatpush.bf16.msra.mxu0 %v638
  %1044 = vmatpush.bf16.msra.mxu0 %v636
  %1045 = vmatpush.bf16.msra.mxu0 %v634
  %1046 = vmatmul.bf16.gmra.mxu0 %v183
  %v1047 = vpop.f32.mrf.mxu0
  %v1048 = vadd.f32 %v166, %v1047
  %v1049 = vpop.f32.mrf.mxu0
  %1050 = vdwg.mxu0
  %1051 = vmatpush.bf16.msra.mxu0 %v664
  %1052 = vmatpush.bf16.msra.mxu0 %v662
  %1053 = vmatpush.bf16.msra.mxu0 %v660
  %1054 = vmatpush.bf16.msra.mxu0 %v658
  %1055 = vmatpush.bf16.msra.mxu0 %v656
  %1056 = vmatpush.bf16.msra.mxu0 %v654
  %1057 = vmatpush.bf16.msra.mxu0 %v652
  %1058 = vmatpush.bf16.msra.mxu0 %v650
  %1059 = vmatmul.bf16.gmra.mxu0 %v184
  %v1060 = vpop.f32.mrf.mxu0
  %v1061 = vadd.f32 %v1048, %v1060
  %v1062 = vpop.f32.mrf.mxu0
  %1063 = vdwg.mxu0
  %1064 = vmatpush.bf16.msra.mxu0 %v680
  %1065 = vmatpush.bf16.msra.mxu0 %v678
  %1066 = vmatpush.bf16.msra.mxu0 %v676
  %1067 = vmatpush.bf16.msra.mxu0 %v674
  %1068 = vmatpush.bf16.msra.mxu0 %v672
  %1069 = vmatpush.bf16.msra.mxu0 %v670
  %1070 = vmatpush.bf16.msra.mxu0 %v668
  %1071 = vmatpush.bf16.msra.mxu0 %v666
  %1072 = vmatmul.bf16.gmra.mxu0 %v185
  %v1073 = vpop.f32.mrf.mxu0
  %v1074 = vadd.f32 %v1061, %v1073
  %v1075 = vpop.f32.mrf.mxu0
  %1076 = vdwg.mxu0
  %1077 = vmatpush.bf16.msra.mxu0 %v696
  %1078 = vmatpush.bf16.msra.mxu0 %v694
  %1079 = vmatpush.bf16.msra.mxu0 %v692
  %1080 = vmatpush.bf16.msra.mxu0 %v690
  %1081 = vmatpush.bf16.msra.mxu0 %v688
  %1082 = vmatpush.bf16.msra.mxu0 %v686
  %1083 = vmatpush.bf16.msra.mxu0 %v684
  %1084 = vmatpush.bf16.msra.mxu0 %v682
  %1085 = vmatmul.bf16.gmra.mxu0 %v186
  %v1086 = vpop.f32.mrf.mxu0
  %v1087 = vadd.f32 %v1074, %v1086
  %v1088 = vpop.f32.mrf.mxu0
  %1089 = vdwg.mxu0
  %1090 = vmatpush.bf16.msra.mxu0 %v712
  %1091 = vmatpush.bf16.msra.mxu0 %v710
  %1092 = vmatpush.bf16.msra.mxu0 %v708
  %1093 = vmatpush.bf16.msra.mxu0 %v706
  %1094 = vmatpush.bf16.msra.mxu0 %v704
  %1095 = vmatpush.bf16.msra.mxu0 %v702
  %1096 = vmatpush.bf16.msra.mxu0 %v700
  %1097 = vmatpush.bf16.msra.mxu0 %v698
  %1098 = vmatmul.bf16.gmra.mxu0 %v187
  %v1099 = vpop.f32.mrf.mxu0
  %v1100 = vadd.f32 %v1087, %v1099
  %v1101 = vpop.f32.mrf.mxu0
  %1102 = vdwg.mxu0
  %1103 = vmatpush.bf16.msra.mxu0 %v728
  %1104 = vmatpush.bf16.msra.mxu0 %v726
  %1105 = vmatpush.bf16.msra.mxu0 %v724
  %1106 = vmatpush.bf16.msra.mxu0 %v722
  %1107 = vmatpush.bf16.msra.mxu0 %v720
  %1108 = vmatpush.bf16.msra.mxu0 %v718
  %1109 = vmatpush.bf16.msra.mxu0 %v716
  %1110 = vmatpush.bf16.msra.mxu0 %v714
  %1111 = vmatmul.bf16.gmra.mxu0 %v188
  %v1112 = vpop.f32.mrf.mxu0
  %v1113 = vadd.f32 %v1100, %v1112
  %v1114 = vpop.f32.mrf.mxu0
  %1115 = vdwg.mxu0
  %1116 = vmatpush.bf16.msra.mxu0 %v744
  %1117 = vmatpush.bf16.msra.mxu0 %v742
  %1118 = vmatpush.bf16.msra.mxu0 %v740
  %1119 = vmatpush.bf16.msra.mxu0 %v738
  %1120 = vmatpush.bf16.msra.mxu0 %v736
  %1121 = vmatpush.bf16.msra.mxu0 %v734
  %1122 = vmatpush.bf16.msra.mxu0 %v732
  %1123 = vmatpush.bf16.msra.mxu0 %v730
  %1124 = vmatmul.bf16.gmra.mxu0 %v189
  %v1125 = vpop.f32.mrf.mxu0
  %v1126 = vadd.f32 %v1113, %v1125
  %v1127 = vpop.f32.mrf.mxu0
  %1128 = vdwg.mxu0
  %1129 = vmatpush.bf16.msra.mxu0 %v760
  %1130 = vmatpush.bf16.msra.mxu0 %v758
  %1131 = vmatpush.bf16.msra.mxu0 %v756
  %1132 = vmatpush.bf16.msra.mxu0 %v754
  %1133 = vmatpush.bf16.msra.mxu0 %v752
  %1134 = vmatpush.bf16.msra.mxu0 %v750
  %1135 = vmatpush.bf16.msra.mxu0 %v748
  %1136 = vmatpush.bf16.msra.mxu0 %v746
  %1137 = vmatmul.bf16.gmra.mxu0 %v190
  %v1138 = vpop.f32.mrf.mxu0
  %v1139 = vadd.f32 %v1126, %v1138
  %v1140 = vpop.f32.mrf.mxu0
  %1141 = vdwg.mxu0
  %1142 = vmatpush.bf16.msra.mxu0 %v776
  %1143 = vmatpush.bf16.msra.mxu0 %v774
  %1144 = vmatpush.bf16.msra.mxu0 %v772
  %1145 = vmatpush.bf16.msra.mxu0 %v770
  %1146 = vmatpush.bf16.msra.mxu0 %v768
  %1147 = vmatpush.bf16.msra.mxu0 %v766
  %1148 = vmatpush.bf16.msra.mxu0 %v764
  %1149 = vmatpush.bf16.msra.mxu0 %v762
  %1150 = vmatmul.bf16.gmra.mxu0 %v191
  %v1151 = vpop.f32.mrf.mxu0
  %v1152 = vadd.f32 %v1139, %v1151
  %v1153 = vpop.f32.mrf.mxu0
  %1154 = vdwg.mxu0
  %v1155 = vmax.f32 %v1035, 0.0
  %v1156 = vmax.f32 %v1152, 0.0
  %v1157 = vpack.c.bf16 %v1156, %v1155
  %1158 = vst [vmem:[%s3] sm:$0xff] %v1157
  // Predicated region
  $region14: #{resnet_encoder_forward.25} parent=0 // pred_check
    _
  $region15: #{resnet_encoder_forward.25} parent=0 // pred_check_branch
    %1160 = sbr.rel (0) target = $region17
  $region16: #{resnet_encoder_forward.25} parent=0 // pred_region
    _
  $region17: #{resnet_encoder_forward.25} parent=0 // pred_fallthru
    _
  // Predicated region
  $region18: #{resnet_encoder_forward.25} parent=0 // pred_check
    _
  $region19: #{resnet_encoder_forward.25} parent=0 // pred_check_branch
    %1162 = sbr.rel (0) target = $region21
  $region20: #{resnet_encoder_forward.25} parent=0 // pred_region
    _
  $region21: #{resnet_encoder_forward.25} parent=0 // pred_fallthru
    _

// kernel: resnet_encoder_forward.27
$region0: #{resnet_encoder_forward.27}
  #allocation0 [shape = 'u32[]', space=smem, size = 0x4, offset = 0x4, fixed_abs, tag = 'smem constant byte address 0x4 - core index']
  #allocation1 [shape = 'u32[72,128]{1,0:T(1,128)}', space=vmem, size = 0x9000, scoped, tag = 'internal scratch']
  %s0 = inlined_call_operand.vmem [shape: bf16[8,2304], index: 0, kind: input, shape index: {}]
  %s1 = inlined_call_operand.vmem [shape: bf16[2304,256], index: 1, kind: input, shape index: {}]
  %s2 = inlined_call_operand.vmem [shape: f32[1,256], index: 2, kind: input, shape index: {}]
  %s3 = inlined_call_operand.vmem [shape: bf16[8,256], index: 3, kind: input, shape index: {}]
  %s4 = inlined_call_operand.vmem [shape: bf16[8,256], index: 4, kind: output, shape index: {}]
  %s5 = sld [smem:[#allocation0]]
  $region26: #{resnet_encoder_forward.27} parent=0
    _
  %s7 = ssub.s32 1, %s5
  %s8 = scalar_select 0, %s7, %s5
  // Predicated region
  $region2: #{resnet_encoder_forward.27} parent=0 // pred_check
    _
  $region3: #{resnet_encoder_forward.27} parent=0 // pred_check_branch
    %10 = sbr.rel (0) target = $region5
  $region4: #{resnet_encoder_forward.27} parent=0 // pred_region
    _
  $region5: #{resnet_encoder_forward.27} parent=0 // pred_fallthru
    _
  // Predicated region
  $region6: #{resnet_encoder_forward.27} parent=0 // pred_check
    _
  $region7: #{resnet_encoder_forward.27} parent=0 // pred_check_branch
    %12 = sbr.rel (0) target = $region9
  $region8: #{resnet_encoder_forward.27} parent=0 // pred_region
    _
  $region9: #{resnet_encoder_forward.27} parent=0 // pred_fallthru
    _
  // Predicated region
  $region10: #{resnet_encoder_forward.27} parent=0 // pred_check
    _
  $region11: #{resnet_encoder_forward.27} parent=0 // pred_check_branch
    %14 = sbr.rel (0) target = $region13
  $region12: #{resnet_encoder_forward.27} parent=0 // pred_region
    _
  $region13: #{resnet_encoder_forward.27} parent=0 // pred_fallthru
    _
  // Predicated region
  $region14: #{resnet_encoder_forward.27} parent=0 // pred_check
    _
  $region15: #{resnet_encoder_forward.27} parent=0 // pred_check_branch
    %16 = sbr.rel (0) target = $region17
  $region16: #{resnet_encoder_forward.27} parent=0 // pred_region
    _
  $region17: #{resnet_encoder_forward.27} parent=0 // pred_fallthru
    _
  %v17 = vld [vmem:[%s0] sm:$0xff]
  %v18 = vld [vmem:[%s0 + $0x8] sm:$0xff]
  %v19 = vld [vmem:[%s0 + $0x10] sm:$0xff]
  %v20 = vld [vmem:[%s0 + $0x18] sm:$0xff]
  %v21 = vld [vmem:[%s0 + $0x20] sm:$0xff]
  %v22 = vld [vmem:[%s0 + $0x28] sm:$0xff]
  %v23 = vld [vmem:[%s0 + $0x30] sm:$0xff]
  %v24 = vld [vmem:[%s0 + $0x38] sm:$0xff]
  %v25 = vld [vmem:[%s0 + $0x40] sm:$0xff]
  %v26 = vld [vmem:[%s1] sm:$0xff]
  %v27 = vld [vmem:[%s1 + $0x8] sm:$0xff]
  %v28 = vld [vmem:[%s1 + $0x10] sm:$0xff]
  %v29 = vld [vmem:[%s1 + $0x18] sm:$0xff]
  %v30 = vld [vmem:[%s1 + $0x20] sm:$0xff]
  %v31 = vld [vmem:[%s1 + $0x28] sm:$0xff]
  %v32 = vld [vmem:[%s1 + $0x30] sm:$0xff]
  %v33 = vld [vmem:[%s1 + $0x38] sm:$0xff]
  %v34 = vld [vmem:[%s1 + $0x40] sm:$0xff]
  %v35 = vld [vmem:[%s1 + $0x48] sm:$0xff]
  %v36 = vld [vmem:[%s1 + $0x50] sm:$0xff]
  %v37 = vld [vmem:[%s1 + $0x58] sm:$0xff]
  %v38 = vld [vmem:[%s1 + $0x60] sm:$0xff]
  %v39 = vld [vmem:[%s1 + $0x68] sm:$0xff]
  %v40 = vld [vmem:[%s1 + $0x70] sm:$0xff]
  %v41 = vld [vmem:[%s1 + $0x78] sm:$0xff]
  %v42 = vld [vmem:[%s1 + $0x80] sm:$0xff]
  %v43 = vld [vmem:[%s1 + $0x88] sm:$0xff]
  %v44 = vld [vmem:[%s1 + $0x90] sm:$0xff]
  %v45 = vld [vmem:[%s1 + $0x98] sm:$0xff]
  %v46 = vld [vmem:[%s1 + $0xa0] sm:$0xff]
  %v47 = vld [vmem:[%s1 + $0xa8] sm:$0xff]
  %v48 = vld [vmem:[%s1 + $0xb0] sm:$0xff]
  %v49 = vld [vmem:[%s1 + $0xb8] sm:$0xff]
  %v50 = vld [vmem:[%s1 + $0xc0] sm:$0xff]
  %v51 = vld [vmem:[%s1 + $0xc8] sm:$0xff]
  %v52 = vld [vmem:[%s1 + $0xd0] sm:$0xff]
  %v53 = vld [vmem:[%s1 + $0xd8] sm:$0xff]
  %v54 = vld [vmem:[%s1 + $0xe0] sm:$0xff]
  %v55 = vld [vmem:[%s1 + $0xe8] sm:$0xff]
  %v56 = vld [vmem:[%s1 + $0xf0] sm:$0xff]
  %v57 = vld [vmem:[%s1 + $0xf8] sm:$0xff]
  %v58 = vld [vmem:[%s1 + $0x100] sm:$0xff]
  %v59 = vld [vmem:[%s1 + $0x108] sm:$0xff]
  %v60 = vld [vmem:[%s1 + $0x110] sm:$0xff]
  %v61 = vld [vmem:[%s1 + $0x118] sm:$0xff]
  %v62 = vld [vmem:[%s1 + $0x120] sm:$0xff]
  %v63 = vld [vmem:[%s1 + $0x128] sm:$0xff]
  %v64 = vld [vmem:[%s1 + $0x130] sm:$0xff]
  %v65 = vld [vmem:[%s1 + $0x138] sm:$0xff]
  %v66 = vld [vmem:[%s1 + $0x140] sm:$0xff]
  %v67 = vld [vmem:[%s1 + $0x148] sm:$0xff]
  %v68 = vld [vmem:[%s1 + $0x150] sm:$0xff]
  %v69 = vld [vmem:[%s1 + $0x158] sm:$0xff]
  %v70 = vld [vmem:[%s1 + $0x160] sm:$0xff]
  %v71 = vld [vmem:[%s1 + $0x168] sm:$0xff]
  %v72 = vld [vmem:[%s1 + $0x170] sm:$0xff]
  %v73 = vld [vmem:[%s1 + $0x178] sm:$0xff]
  %v74 = vld [vmem:[%s1 + $0x180] sm:$0xff]
  %v75 = vld [vmem:[%s1 + $0x188] sm:$0xff]
  %v76 = vld [vmem:[%s1 + $0x190] sm:$0xff]
  %v77 = vld [vmem:[%s1 + $0x198] sm:$0xff]
  %v78 = vld [vmem:[%s1 + $0x1a0] sm:$0xff]
  %v79 = vld [vmem:[%s1 + $0x1a8] sm:$0xff]
  %v80 = vld [vmem:[%s1 + $0x1b0] sm:$0xff]
  %v81 = vld [vmem:[%s1 + $0x1b8] sm:$0xff]
  %v82 = vld [vmem:[%s1 + $0x1c0] sm:$0xff]
  %v83 = vld [vmem:[%s1 + $0x1c8] sm:$0xff]
  %v84 = vld [vmem:[%s1 + $0x1d0] sm:$0xff]
  %v85 = vld [vmem:[%s1 + $0x1d8] sm:$0xff]
  %v86 = vld [vmem:[%s1 + $0x1e0] sm:$0xff]
  %v87 = vld [vmem:[%s1 + $0x1e8] sm:$0xff]
  %v88 = vld [vmem:[%s1 + $0x1f0] sm:$0xff]
  %v89 = vld [vmem:[%s1 + $0x1f8] sm:$0xff]
  %v90 = vld [vmem:[%s1 + $0x200] sm:$0xff]
  %v91 = vld [vmem:[%s1 + $0x208] sm:$0xff]
  %v92 = vld [vmem:[%s1 + $0x210] sm:$0xff]
  %v93 = vld [vmem:[%s1 + $0x218] sm:$0xff]
  %v94 = vld [vmem:[%s1 + $0x220] sm:$0xff]
  %v95 = vld [vmem:[%s1 + $0x228] sm:$0xff]
  %v96 = vld [vmem:[%s1 + $0x230] sm:$0xff]
  %v97 = vld [vmem:[%s1 + $0x238] sm:$0xff]
  %v98 = vld [vmem:[%s1 + $0x240] sm:$0xff]
  %v99 = vld [vmem:[%s1 + $0x248] sm:$0xff]
  %v100 = vld [vmem:[%s1 + $0x250] sm:$0xff]
  %v101 = vld [vmem:[%s1 + $0x258] sm:$0xff]
  %v102 = vld [vmem:[%s1 + $0x260] sm:$0xff]
  %v103 = vld [vmem:[%s1 + $0x268] sm:$0xff]
  %v104 = vld [vmem:[%s1 + $0x270] sm:$0xff]
  %v105 = vld [vmem:[%s1 + $0x278] sm:$0xff]
  %v106 = vld [vmem:[%s1 + $0x280] sm:$0xff]
  %v107 = vld [vmem:[%s1 + $0x288] sm:$0xff]
  %v108 = vld [vmem:[%s1 + $0x290] sm:$0xff]
  %v109 = vld [vmem:[%s1 + $0x298] sm:$0xff]
  %v110 = vld [vmem:[%s1 + $0x2a0] sm:$0xff]
  %v111 = vld [vmem:[%s1 + $0x2a8] sm:$0xff]
  %v112 = vld [vmem:[%s1 + $0x2b0] sm:$0xff]
  %v113 = vld [vmem:[%s1 + $0x2b8] sm:$0xff]
  %v114 = vld [vmem:[%s1 + $0x2c0] sm:$0xff]
  %v115 = vld [vmem:[%s1 + $0x2c8] sm:$0xff]
  %v116 = vld [vmem:[%s1 + $0x2d0] sm:$0xff]
  %v117 = vld [vmem:[%s1 + $0x2d8] sm:$0xff]
  %v118 = vld [vmem:[%s1 + $0x2e0] sm:$0xff]
  %v119 = vld [vmem:[%s1 + $0x2e8] sm:$0xff]
  %v120 = vld [vmem:[%s1 + $0x2f0] sm:$0xff]
  %v121 = vld [vmem:[%s1 + $0x2f8] sm:$0xff]
  %v122 = vld [vmem:[%s1 + $0x300] sm:$0xff]
  %v123 = vld [vmem:[%s1 + $0x308] sm:$0xff]
  %v124 = vld [vmem:[%s1 + $0x310] sm:$0xff]
  %v125 = vld [vmem:[%s1 + $0x318] sm:$0xff]
  %v126 = vld [vmem:[%s1 + $0x320] sm:$0xff]
  %v127 = vld [vmem:[%s1 + $0x328] sm:$0xff]
  %v128 = vld [vmem:[%s1 + $0x330] sm:$0xff]
  %v129 = vld [vmem:[%s1 + $0x338] sm:$0xff]
  %v130 = vld [vmem:[%s1 + $0x340] sm:$0xff]
  %v131 = vld [vmem:[%s1 + $0x348] sm:$0xff]
  %v132 = vld [vmem:[%s1 + $0x350] sm:$0xff]
  %v133 = vld [vmem:[%s1 + $0x358] sm:$0xff]
  %v134 = vld [vmem:[%s1 + $0x360] sm:$0xff]
  %v135 = vld [vmem:[%s1 + $0x368] sm:$0xff]
  %v136 = vld [vmem:[%s1 + $0x370] sm:$0xff]
  %v137 = vld [vmem:[%s1 + $0x378] sm:$0xff]
  %v138 = vld [vmem:[%s1 + $0x380] sm:$0xff]
  %v139 = vld [vmem:[%s1 + $0x388] sm:$0xff]
  %v140 = vld [vmem:[%s1 + $0x390] sm:$0xff]
  %v141 = vld [vmem:[%s1 + $0x398] sm:$0xff]
  %v142 = vld [vmem:[%s1 + $0x3a0] sm:$0xff]
  %v143 = vld [vmem:[%s1 + $0x3a8] sm:$0xff]
  %v144 = vld [vmem:[%s1 + $0x3b0] sm:$0xff]
  %v145 = vld [vmem:[%s1 + $0x3b8] sm:$0xff]
  %v146 = vld [vmem:[%s1 + $0x3c0] sm:$0xff]
  %v147 = vld [vmem:[%s1 + $0x3c8] sm:$0xff]
  %v148 = vld [vmem:[%s1 + $0x3d0] sm:$0xff]
  %v149 = vld [vmem:[%s1 + $0x3d8] sm:$0xff]
  %v150 = vld [vmem:[%s1 + $0x3e0] sm:$0xff]
  %v151 = vld [vmem:[%s1 + $0x3e8] sm:$0xff]
  %v152 = vld [vmem:[%s1 + $0x3f0] sm:$0xff]
  %v153 = vld [vmem:[%s1 + $0x3f8] sm:$0xff]
  %v154 = vld [vmem:[%s1 + $0x400] sm:$0xff]
  %v155 = vld [vmem:[%s1 + $0x408] sm:$0xff]
  %v156 = vld [vmem:[%s1 + $0x410] sm:$0xff]
  %v157 = vld [vmem:[%s1 + $0x418] sm:$0xff]
  %v158 = vld [vmem:[%s1 + $0x420] sm:$0xff]
  %v159 = vld [vmem:[%s1 + $0x428] sm:$0xff]
  %v160 = vld [vmem:[%s1 + $0x430] sm:$0xff]
  %v161 = vld [vmem:[%s1 + $0x438] sm:$0xff]
  %v162 = vld [vmem:[%s1 + $0x440] sm:$0xff]
  %v163 = vld [vmem:[%s1 + $0x448] sm:$0xff]
  %v164 = vld [vmem:[%s1 + $0x450] sm:$0xff]
  %v165 = vld [vmem:[%s1 + $0x458] sm:$0xff]
  %v166 = vld [vmem:[%s1 + $0x460] sm:$0xff]
  %v167 = vld [vmem:[%s1 + $0x468] sm:$0xff]
  %v168 = vld [vmem:[%s1 + $0x470] sm:$0xff]
  %v169 = vld [vmem:[%s1 + $0x478] sm:$0xff]
  %v170 = vld [vmem:[%s1 + $0x480] sm:$0xff]
  %v171 = vld [vmem:[%s1 + $0x488] sm:$0xff]
  %v172 = vld [vmem:[%s1 + $0x490] sm:$0xff]
  %v173 = vld [vmem:[%s1 + $0x498] sm:$0xff]
  %v174 = vld [vmem:[%s1 + $0x4a0] sm:$0xff]
  %v175 = vld [vmem:[%s1 + $0x4a8] sm:$0xff]
  %v176 = vld [vmem:[%s1 + $0x4b0] sm:$0xff]
  %v177 = vld [vmem:[%s1 + $0x4b8] sm:$0xff]
  %v178 = vld [vmem:[%s1 + $0x4c0] sm:$0xff]
  %v179 = vld [vmem:[%s1 + $0x4c8] sm:$0xff]
  %v180 = vld [vmem:[%s1 + $0x4d0] sm:$0xff]
  %v181 = vld [vmem:[%s1 + $0x4d8] sm:$0xff]
  %v182 = vld [vmem:[%s1 + $0x4e0] sm:$0xff]
  %v183 = vld [vmem:[%s1 + $0x4e8] sm:$0xff]
  %v184 = vld [vmem:[%s1 + $0x4f0] sm:$0xff]
  %v185 = vld [vmem:[%s1 + $0x4f8] sm:$0xff]
  %v186 = vld [vmem:[%s1 + $0x500] sm:$0xff]
  %v187 = vld [vmem:[%s1 + $0x508] sm:$0xff]
  %v188 = vld [vmem:[%s1 + $0x510] sm:$0xff]
  %v189 = vld [vmem:[%s1 + $0x518] sm:$0xff]
  %v190 = vld [vmem:[%s1 + $0x520] sm:$0xff]
  %v191 = vld [vmem:[%s1 + $0x528] sm:$0xff]
  %v192 = vld [vmem:[%s1 + $0x530] sm:$0xff]
  %v193 = vld [vmem:[%s1 + $0x538] sm:$0xff]
  %v194 = vld [vmem:[%s1 + $0x540] sm:$0xff]
  %v195 = vld [vmem:[%s1 + $0x548] sm:$0xff]
  %v196 = vld [vmem:[%s1 + $0x550] sm:$0xff]
  %v197 = vld [vmem:[%s1 + $0x558] sm:$0xff]
  %v198 = vld [vmem:[%s1 + $0x560] sm:$0xff]
  %v199 = vld [vmem:[%s1 + $0x568] sm:$0xff]
  %v200 = vld [vmem:[%s1 + $0x570] sm:$0xff]
  %v201 = vld [vmem:[%s1 + $0x578] sm:$0xff]
  %v202 = vld [vmem:[%s1 + $0x580] sm:$0xff]
  %v203 = vld [vmem:[%s1 + $0x588] sm:$0xff]
  %v204 = vld [vmem:[%s1 + $0x590] sm:$0xff]
  %v205 = vld [vmem:[%s1 + $0x598] sm:$0xff]
  %v206 = vld [vmem:[%s1 + $0x5a0] sm:$0xff]
  %v207 = vld [vmem:[%s1 + $0x5a8] sm:$0xff]
  %v208 = vld [vmem:[%s1 + $0x5b0] sm:$0xff]
  %v209 = vld [vmem:[%s1 + $0x5b8] sm:$0xff]
  %v210 = vld [vmem:[%s1 + $0x5c0] sm:$0xff]
  %v211 = vld [vmem:[%s1 + $0x5c8] sm:$0xff]
  %v212 = vld [vmem:[%s1 + $0x5d0] sm:$0xff]
  %v213 = vld [vmem:[%s1 + $0x5d8] sm:$0xff]
  %v214 = vld [vmem:[%s1 + $0x5e0] sm:$0xff]
  %v215 = vld [vmem:[%s1 + $0x5e8] sm:$0xff]
  %v216 = vld [vmem:[%s1 + $0x5f0] sm:$0xff]
  %v217 = vld [vmem:[%s1 + $0x5f8] sm:$0xff]
  %v218 = vld [vmem:[%s1 + $0x600] sm:$0xff]
  %v219 = vld [vmem:[%s1 + $0x608] sm:$0xff]
  %v220 = vld [vmem:[%s1 + $0x610] sm:$0xff]
  %v221 = vld [vmem:[%s1 + $0x618] sm:$0xff]
  %v222 = vld [vmem:[%s1 + $0x620] sm:$0xff]
  %v223 = vld [vmem:[%s1 + $0x628] sm:$0xff]
  %v224 = vld [vmem:[%s1 + $0x630] sm:$0xff]
  %v225 = vld [vmem:[%s1 + $0x638] sm:$0xff]
  %v226 = vld [vmem:[%s1 + $0x640] sm:$0xff]
  %v227 = vld [vmem:[%s1 + $0x648] sm:$0xff]
  %v228 = vld [vmem:[%s1 + $0x650] sm:$0xff]
  %v229 = vld [vmem:[%s1 + $0x658] sm:$0xff]
  %v230 = vld [vmem:[%s1 + $0x660] sm:$0xff]
  %v231 = vld [vmem:[%s1 + $0x668] sm:$0xff]
  %v232 = vld [vmem:[%s1 + $0x670] sm:$0xff]
  %v233 = vld [vmem:[%s1 + $0x678] sm:$0xff]
  %v234 = vld [vmem:[%s1 + $0x680] sm:$0xff]
  %v235 = vld [vmem:[%s1 + $0x688] sm:$0xff]
  %v236 = vld [vmem:[%s1 + $0x690] sm:$0xff]
  %v237 = vld [vmem:[%s1 + $0x698] sm:$0xff]
  %v238 = vld [vmem:[%s1 + $0x6a0] sm:$0xff]
  %v239 = vld [vmem:[%s1 + $0x6a8] sm:$0xff]
  %v240 = vld [vmem:[%s1 + $0x6b0] sm:$0xff]
  %v241 = vld [vmem:[%s1 + $0x6b8] sm:$0xff]
  %v242 = vld [vmem:[%s1 + $0x6c0] sm:$0xff]
  %v243 = vld [vmem:[%s1 + $0x6c8] sm:$0xff]
  %v244 = vld [vmem:[%s1 + $0x6d0] sm:$0xff]
  %v245 = vld [vmem:[%s1 + $0x6d8] sm:$0xff]
  %v246 = vld [vmem:[%s1 + $0x6e0] sm:$0xff]
  %v247 = vld [vmem:[%s1 + $0x6e8] sm:$0xff]
  %v248 = vld [vmem:[%s1 + $0x6f0] sm:$0xff]
  %v249 = vld [vmem:[%s1 + $0x6f8] sm:$0xff]
  %v250 = vld [vmem:[%s1 + $0x700] sm:$0xff]
  %v251 = vld [vmem:[%s1 + $0x708] sm:$0xff]
  %v252 = vld [vmem:[%s1 + $0x710] sm:$0xff]
  %v253 = vld [vmem:[%s1 + $0x718] sm:$0xff]
  %v254 = vld [vmem:[%s1 + $0x720] sm:$0xff]
  %v255 = vld [vmem:[%s1 + $0x728] sm:$0xff]
  %v256 = vld [vmem:[%s1 + $0x730] sm:$0xff]
  %v257 = vld [vmem:[%s1 + $0x738] sm:$0xff]
  %v258 = vld [vmem:[%s1 + $0x740] sm:$0xff]
  %v259 = vld [vmem:[%s1 + $0x748] sm:$0xff]
  %v260 = vld [vmem:[%s1 + $0x750] sm:$0xff]
  %v261 = vld [vmem:[%s1 + $0x758] sm:$0xff]
  %v262 = vld [vmem:[%s1 + $0x760] sm:$0xff]
  %v263 = vld [vmem:[%s1 + $0x768] sm:$0xff]
  %v264 = vld [vmem:[%s1 + $0x770] sm:$0xff]
  %v265 = vld [vmem:[%s1 + $0x778] sm:$0xff]
  %v266 = vld [vmem:[%s1 + $0x780] sm:$0xff]
  %v267 = vld [vmem:[%s1 + $0x788] sm:$0xff]
  %v268 = vld [vmem:[%s1 + $0x790] sm:$0xff]
  %v269 = vld [vmem:[%s1 + $0x798] sm:$0xff]
  %v270 = vld [vmem:[%s1 + $0x7a0] sm:$0xff]
  %v271 = vld [vmem:[%s1 + $0x7a8] sm:$0xff]
  %v272 = vld [vmem:[%s1 + $0x7b0] sm:$0xff]
  %v273 = vld [vmem:[%s1 + $0x7b8] sm:$0xff]
  %v274 = vld [vmem:[%s1 + $0x7c0] sm:$0xff]
  %v275 = vld [vmem:[%s1 + $0x7c8] sm:$0xff]
  %v276 = vld [vmem:[%s1 + $0x7d0] sm:$0xff]
  %v277 = vld [vmem:[%s1 + $0x7d8] sm:$0xff]
  %v278 = vld [vmem:[%s1 + $0x7e0] sm:$0xff]
  %v279 = vld [vmem:[%s1 + $0x7e8] sm:$0xff]
  %v280 = vld [vmem:[%s1 + $0x7f0] sm:$0xff]
  %v281 = vld [vmem:[%s1 + $0x7f8] sm:$0xff]
  %v282 = vld [vmem:[%s1 + $0x800] sm:$0xff]
  %v283 = vld [vmem:[%s1 + $0x808] sm:$0xff]
  %v284 = vld [vmem:[%s1 + $0x810] sm:$0xff]
  %v285 = vld [vmem:[%s1 + $0x818] sm:$0xff]
  %v286 = vld [vmem:[%s1 + $0x820] sm:$0xff]
  %v287 = vld [vmem:[%s1 + $0x828] sm:$0xff]
  %v288 = vld [vmem:[%s1 + $0x830] sm:$0xff]
  %v289 = vld [vmem:[%s1 + $0x838] sm:$0xff]
  %v290 = vld [vmem:[%s1 + $0x840] sm:$0xff]
  %v291 = vld [vmem:[%s1 + $0x848] sm:$0xff]
  %v292 = vld [vmem:[%s1 + $0x850] sm:$0xff]
  %v293 = vld [vmem:[%s1 + $0x858] sm:$0xff]
  %v294 = vld [vmem:[%s1 + $0x860] sm:$0xff]
  %v295 = vld [vmem:[%s1 + $0x868] sm:$0xff]
  %v296 = vld [vmem:[%s1 + $0x870] sm:$0xff]
  %v297 = vld [vmem:[%s1 + $0x878] sm:$0xff]
  %v298 = vld [vmem:[%s1 + $0x880] sm:$0xff]
  %v299 = vld [vmem:[%s1 + $0x888] sm:$0xff]
  %v300 = vld [vmem:[%s1 + $0x890] sm:$0xff]
  %v301 = vld [vmem:[%s1 + $0x898] sm:$0xff]
  %v302 = vld [vmem:[%s1 + $0x8a0] sm:$0xff]
  %v303 = vld [vmem:[%s1 + $0x8a8] sm:$0xff]
  %v304 = vld [vmem:[%s1 + $0x8b0] sm:$0xff]
  %v305 = vld [vmem:[%s1 + $0x8b8] sm:$0xff]
  %v306 = vld [vmem:[%s1 + $0x8c0] sm:$0xff]
  %v307 = vld [vmem:[%s1 + $0x8c8] sm:$0xff]
  %v308 = vld [vmem:[%s1 + $0x8d0] sm:$0xff]
  %v309 = vld [vmem:[%s1 + $0x8d8] sm:$0xff]
  %v310 = vld [vmem:[%s1 + $0x8e0] sm:$0xff]
  %v311 = vld [vmem:[%s1 + $0x8e8] sm:$0xff]
  %v312 = vld [vmem:[%s1 + $0x8f0] sm:$0xff]
  %v313 = vld [vmem:[%s1 + $0x8f8] sm:$0xff]
  %v314 = vld [vmem:[%s2] sm:$0x3]
  %v316 = vperm.slane %v314, 0
  %v317 = vperm.slane %v314, 1
  %v329 = vunpack.c.l.b16 %v17
  %v330 = vunpack.c.h.b16 %v17
  %v331 = vunpack.c.l.b16 %v18
  %v332 = vunpack.c.h.b16 %v18
  %v333 = vunpack.c.l.b16 %v19
  %v334 = vunpack.c.h.b16 %v19
  %v335 = vunpack.c.l.b16 %v20
  %v336 = vunpack.c.h.b16 %v20
  %v337 = vunpack.c.l.b16 %v21
  %v338 = vunpack.c.h.b16 %v21
  %v339 = vunpack.c.l.b16 %v22
  %v340 = vunpack.c.h.b16 %v22
  %v341 = vunpack.c.l.b16 %v23
  %v342 = vunpack.c.h.b16 %v23
  %v343 = vunpack.c.l.b16 %v24
  %v344 = vunpack.c.h.b16 %v24
  %v345 = vunpack.c.l.b16 %v25
  %v346 = vunpack.c.h.b16 %v25
  %v347 = vpack.c.b16 %v329, %v329
  %v348 = vpack.c.b16 %v330, %v330
  %v349 = vpack.c.b16 %v331, %v331
  %v350 = vpack.c.b16 %v332, %v332
  %v351 = vpack.c.b16 %v333, %v333
  %v352 = vpack.c.b16 %v334, %v334
  %v353 = vpack.c.b16 %v335, %v335
  %v354 = vpack.c.b16 %v336, %v336
  %v355 = vpack.c.b16 %v337, %v337
  %v356 = vpack.c.b16 %v338, %v338
  %v357 = vpack.c.b16 %v339, %v339
  %v358 = vpack.c.b16 %v340, %v340
  %v359 = vpack.c.b16 %v341, %v341
  %v360 = vpack.c.b16 %v342, %v342
  %v361 = vpack.c.b16 %v343, %v343
  %v362 = vpack.c.b16 %v344, %v344
  %v363 = vpack.c.b16 %v345, %v345
  %v364 = vpack.c.b16 %v346, %v346
  %v671 = vunpack.c.l.b16 %v26
  %v672 = vunpack.c.h.b16 %v26
  %v673 = vunpack.c.l.b16 %v27
  %v674 = vunpack.c.h.b16 %v27
  %v675 = vunpack.c.l.b16 %v28
  %v676 = vunpack.c.h.b16 %v28
  %v677 = vunpack.c.l.b16 %v29
  %v678 = vunpack.c.h.b16 %v29
  %v679 = vunpack.c.l.b16 %v30
  %v680 = vunpack.c.h.b16 %v30
  %v681 = vunpack.c.l.b16 %v31
  %v682 = vunpack.c.h.b16 %v31
  %v683 = vunpack.c.l.b16 %v32
  %v684 = vunpack.c.h.b16 %v32
  %v685 = vunpack.c.l.b16 %v33
  %v686 = vunpack.c.h.b16 %v33
  %v687 = vunpack.c.l.b16 %v34
  %v688 = vunpack.c.h.b16 %v34
  %v689 = vunpack.c.l.b16 %v35
  %v690 = vunpack.c.h.b16 %v35
  %v691 = vunpack.c.l.b16 %v36
  %v692 = vunpack.c.h.b16 %v36
  %v693 = vunpack.c.l.b16 %v37
  %v694 = vunpack.c.h.b16 %v37
  %v695 = vunpack.c.l.b16 %v38
  %v696 = vunpack.c.h.b16 %v38
  %v697 = vunpack.c.l.b16 %v39
  %v698 = vunpack.c.h.b16 %v39
  %v699 = vunpack.c.l.b16 %v40
  %v700 = vunpack.c.h.b16 %v40
  %v701 = vunpack.c.l.b16 %v41
  %v702 = vunpack.c.h.b16 %v41
  %v703 = vunpack.c.l.b16 %v42
  %v704 = vunpack.c.h.b16 %v42
  %v705 = vunpack.c.l.b16 %v43
  %v706 = vunpack.c.h.b16 %v43
  %v707 = vunpack.c.l.b16 %v44
  %v708 = vunpack.c.h.b16 %v44
  %v709 = vunpack.c.l.b16 %v45
  %v710 = vunpack.c.h.b16 %v45
  %v711 = vunpack.c.l.b16 %v46
  %v712 = vunpack.c.h.b16 %v46
  %v713 = vunpack.c.l.b16 %v47
  %v714 = vunpack.c.h.b16 %v47
  %v715 = vunpack.c.l.b16 %v48
  %v716 = vunpack.c.h.b16 %v48
  %v717 = vunpack.c.l.b16 %v49
  %v718 = vunpack.c.h.b16 %v49
  %v719 = vunpack.c.l.b16 %v50
  %v720 = vunpack.c.h.b16 %v50
  %v721 = vunpack.c.l.b16 %v51
  %v722 = vunpack.c.h.b16 %v51
  %v723 = vunpack.c.l.b16 %v52
  %v724 = vunpack.c.h.b16 %v52
  %v725 = vunpack.c.l.b16 %v53
  %v726 = vunpack.c.h.b16 %v53
  %v727 = vunpack.c.l.b16 %v54
  %v728 = vunpack.c.h.b16 %v54
  %v729 = vunpack.c.l.b16 %v55
  %v730 = vunpack.c.h.b16 %v55
  %v731 = vunpack.c.l.b16 %v56
  %v732 = vunpack.c.h.b16 %v56
  %v733 = vunpack.c.l.b16 %v57
  %v734 = vunpack.c.h.b16 %v57
  %v735 = vunpack.c.l.b16 %v58
  %v736 = vunpack.c.h.b16 %v58
  %v737 = vunpack.c.l.b16 %v59
  %v738 = vunpack.c.h.b16 %v59
  %v739 = vunpack.c.l.b16 %v60
  %v740 = vunpack.c.h.b16 %v60
  %v741 = vunpack.c.l.b16 %v61
  %v742 = vunpack.c.h.b16 %v61
  %v743 = vunpack.c.l.b16 %v62
  %v744 = vunpack.c.h.b16 %v62
  %v745 = vunpack.c.l.b16 %v63
  %v746 = vunpack.c.h.b16 %v63
  %v747 = vunpack.c.l.b16 %v64
  %v748 = vunpack.c.h.b16 %v64
  %v749 = vunpack.c.l.b16 %v65
  %v750 = vunpack.c.h.b16 %v65
  %v751 = vunpack.c.l.b16 %v66
  %v752 = vunpack.c.h.b16 %v66
  %v753 = vunpack.c.l.b16 %v67
  %v754 = vunpack.c.h.b16 %v67
  %v755 = vunpack.c.l.b16 %v68
  %v756 = vunpack.c.h.b16 %v68
  %v757 = vunpack.c.l.b16 %v69
  %v758 = vunpack.c.h.b16 %v69
  %v759 = vunpack.c.l.b16 %v70
  %v760 = vunpack.c.h.b16 %v70
  %v761 = vunpack.c.l.b16 %v71
  %v762 = vunpack.c.h.b16 %v71
  %v763 = vunpack.c.l.b16 %v72
  %v764 = vunpack.c.h.b16 %v72
  %v765 = vunpack.c.l.b16 %v73
  %v766 = vunpack.c.h.b16 %v73
  %v767 = vunpack.c.l.b16 %v74
  %v768 = vunpack.c.h.b16 %v74
  %v769 = vunpack.c.l.b16 %v75
  %v770 = vunpack.c.h.b16 %v75
  %v771 = vunpack.c.l.b16 %v76
  %v772 = vunpack.c.h.b16 %v76
  %v773 = vunpack.c.l.b16 %v77
  %v774 = vunpack.c.h.b16 %v77
  %v775 = vunpack.c.l.b16 %v78
  %v776 = vunpack.c.h.b16 %v78
  %v777 = vunpack.c.l.b16 %v79
  %v778 = vunpack.c.h.b16 %v79
  %v779 = vunpack.c.l.b16 %v80
  %v780 = vunpack.c.h.b16 %v80
  %v781 = vunpack.c.l.b16 %v81
  %v782 = vunpack.c.h.b16 %v81
  %v783 = vunpack.c.l.b16 %v82
  %v784 = vunpack.c.h.b16 %v82
  %v785 = vunpack.c.l.b16 %v83
  %v786 = vunpack.c.h.b16 %v83
  %v787 = vunpack.c.l.b16 %v84
  %v788 = vunpack.c.h.b16 %v84
  %v789 = vunpack.c.l.b16 %v85
  %v790 = vunpack.c.h.b16 %v85
  %v791 = vunpack.c.l.b16 %v86
  %v792 = vunpack.c.h.b16 %v86
  %v793 = vunpack.c.l.b16 %v87
  %v794 = vunpack.c.h.b16 %v87
  %v795 = vunpack.c.l.b16 %v88
  %v796 = vunpack.c.h.b16 %v88
  %v797 = vunpack.c.l.b16 %v89
  %v798 = vunpack.c.h.b16 %v89
  %v799 = vunpack.c.l.b16 %v90
  %v800 = vunpack.c.h.b16 %v90
  %v801 = vunpack.c.l.b16 %v91
  %v802 = vunpack.c.h.b16 %v91
  %v803 = vunpack.c.l.b16 %v92
  %v804 = vunpack.c.h.b16 %v92
  %v805 = vunpack.c.l.b16 %v93
  %v806 = vunpack.c.h.b16 %v93
  %v807 = vunpack.c.l.b16 %v94
  %v808 = vunpack.c.h.b16 %v94
  %v809 = vunpack.c.l.b16 %v95
  %v810 = vunpack.c.h.b16 %v95
  %v811 = vunpack.c.l.b16 %v96
  %v812 = vunpack.c.h.b16 %v96
  %v813 = vunpack.c.l.b16 %v97
  %v814 = vunpack.c.h.b16 %v97
  %v815 = vunpack.c.l.b16 %v98
  %v816 = vunpack.c.h.b16 %v98
  %v817 = vunpack.c.l.b16 %v99
  %v818 = vunpack.c.h.b16 %v99
  %v819 = vunpack.c.l.b16 %v100
  %v820 = vunpack.c.h.b16 %v100
  %v821 = vunpack.c.l.b16 %v101
  %v822 = vunpack.c.h.b16 %v101
  %v823 = vunpack.c.l.b16 %v102
  %v824 = vunpack.c.h.b16 %v102
  %v825 = vunpack.c.l.b16 %v103
  %v826 = vunpack.c.h.b16 %v103
  %v827 = vunpack.c.l.b16 %v104
  %v828 = vunpack.c.h.b16 %v104
  %v829 = vunpack.c.l.b16 %v105
  %v830 = vunpack.c.h.b16 %v105
  %v831 = vunpack.c.l.b16 %v106
  %v832 = vunpack.c.h.b16 %v106
  %v833 = vunpack.c.l.b16 %v107
  %v834 = vunpack.c.h.b16 %v107
  %v835 = vunpack.c.l.b16 %v108
  %v836 = vunpack.c.h.b16 %v108
  %v837 = vunpack.c.l.b16 %v109
  %v838 = vunpack.c.h.b16 %v109
  %v839 = vunpack.c.l.b16 %v110
  %v840 = vunpack.c.h.b16 %v110
  %v841 = vunpack.c.l.b16 %v111
  %v842 = vunpack.c.h.b16 %v111
  %v843 = vunpack.c.l.b16 %v112
  %v844 = vunpack.c.h.b16 %v112
  %v845 = vunpack.c.l.b16 %v113
  %v846 = vunpack.c.h.b16 %v113
  %v847 = vunpack.c.l.b16 %v114
  %v848 = vunpack.c.h.b16 %v114
  %v849 = vunpack.c.l.b16 %v115
  %v850 = vunpack.c.h.b16 %v115
  %v851 = vunpack.c.l.b16 %v116
  %v852 = vunpack.c.h.b16 %v116
  %v853 = vunpack.c.l.b16 %v117
  %v854 = vunpack.c.h.b16 %v117
  %v855 = vunpack.c.l.b16 %v118
  %v856 = vunpack.c.h.b16 %v118
  %v857 = vunpack.c.l.b16 %v119
  %v858 = vunpack.c.h.b16 %v119
  %v859 = vunpack.c.l.b16 %v120
  %v860 = vunpack.c.h.b16 %v120
  %v861 = vunpack.c.l.b16 %v121
  %v862 = vunpack.c.h.b16 %v121
  %v863 = vunpack.c.l.b16 %v122
  %v864 = vunpack.c.h.b16 %v122
  %v865 = vunpack.c.l.b16 %v123
  %v866 = vunpack.c.h.b16 %v123
  %v867 = vunpack.c.l.b16 %v124
  %v868 = vunpack.c.h.b16 %v124
  %v869 = vunpack.c.l.b16 %v125
  %v870 = vunpack.c.h.b16 %v125
  %v871 = vunpack.c.l.b16 %v126
  %v872 = vunpack.c.h.b16 %v126
  %v873 = vunpack.c.l.b16 %v127
  %v874 = vunpack.c.h.b16 %v127
  %v875 = vunpack.c.l.b16 %v128
  %v876 = vunpack.c.h.b16 %v128
  %v877 = vunpack.c.l.b16 %v129
  %v878 = vunpack.c.h.b16 %v129
  %v879 = vunpack.c.l.b16 %v130
  %v880 = vunpack.c.h.b16 %v130
  %v881 = vunpack.c.l.b16 %v131
  %v882 = vunpack.c.h.b16 %v131
  %v883 = vunpack.c.l.b16 %v132
  %v884 = vunpack.c.h.b16 %v132
  %v885 = vunpack.c.l.b16 %v133
  %v886 = vunpack.c.h.b16 %v133
  %v887 = vunpack.c.l.b16 %v134
  %v888 = vunpack.c.h.b16 %v134
  %v889 = vunpack.c.l.b16 %v135
  %v890 = vunpack.c.h.b16 %v135
  %v891 = vunpack.c.l.b16 %v136
  %v892 = vunpack.c.h.b16 %v136
  %v893 = vunpack.c.l.b16 %v137
  %v894 = vunpack.c.h.b16 %v137
  %v895 = vunpack.c.l.b16 %v138
  %v896 = vunpack.c.h.b16 %v138
  %v897 = vunpack.c.l.b16 %v139
  %v898 = vunpack.c.h.b16 %v139
  %v899 = vunpack.c.l.b16 %v140
  %v900 = vunpack.c.h.b16 %v140
  %v901 = vunpack.c.l.b16 %v141
  %v902 = vunpack.c.h.b16 %v141
  %v903 = vunpack.c.l.b16 %v142
  %v904 = vunpack.c.h.b16 %v142
  %v905 = vunpack.c.l.b16 %v143
  %v906 = vunpack.c.h.b16 %v143
  %v907 = vunpack.c.l.b16 %v144
  %v908 = vunpack.c.h.b16 %v144
  %v909 = vunpack.c.l.b16 %v145
  %v910 = vunpack.c.h.b16 %v145
  %v911 = vunpack.c.l.b16 %v146
  %v912 = vunpack.c.h.b16 %v146
  %v913 = vunpack.c.l.b16 %v147
  %v914 = vunpack.c.h.b16 %v147
  %v915 = vunpack.c.l.b16 %v148
  %v916 = vunpack.c.h.b16 %v148
  %v917 = vunpack.c.l.b16 %v149
  %v918 = vunpack.c.h.b16 %v149
  %v919 = vunpack.c.l.b16 %v150
  %v920 = vunpack.c.h.b16 %v150
  %v921 = vunpack.c.l.b16 %v151
  %v922 = vunpack.c.h.b16 %v151
  %v923 = vunpack.c.l.b16 %v152
  %v924 = vunpack.c.h.b16 %v152
  %v925 = vunpack.c.l.b16 %v153
  %v926 = vunpack.c.h.b16 %v153
  %v927 = vunpack.c.l.b16 %v154
  %v928 = vunpack.c.h.b16 %v154
  %v929 = vunpack.c.l.b16 %v155
  %v930 = vunpack.c.h.b16 %v155
  %v931 = vunpack.c.l.b16 %v156
  %v932 = vunpack.c.h.b16 %v156
  %v933 = vunpack.c.l.b16 %v157
  %v934 = vunpack.c.h.b16 %v157
  %v935 = vunpack.c.l.b16 %v158
  %v936 = vunpack.c.h.b16 %v158
  %v937 = vunpack.c.l.b16 %v159
  %v938 = vunpack.c.h.b16 %v159
  %v939 = vunpack.c.l.b16 %v160
  %v940 = vunpack.c.h.b16 %v160
  %v941 = vunpack.c.l.b16 %v161
  %v942 = vunpack.c.h.b16 %v161
  %v943 = vunpack.c.l.b16 %v162
  %v944 = vunpack.c.h.b16 %v162
  %v945 = vunpack.c.l.b16 %v163
  %v946 = vunpack.c.h.b16 %v163
  %v947 = vunpack.c.l.b16 %v164
  %v948 = vunpack.c.h.b16 %v164
  %v949 = vunpack.c.l.b16 %v165
  %v950 = vunpack.c.h.b16 %v165
  %v951 = vunpack.c.l.b16 %v166
  %v952 = vunpack.c.h.b16 %v166
  %v953 = vunpack.c.l.b16 %v167
  %v954 = vunpack.c.h.b16 %v167
  %v955 = vunpack.c.l.b16 %v168
  %v956 = vunpack.c.h.b16 %v168
  %v957 = vunpack.c.l.b16 %v169
  %v958 = vunpack.c.h.b16 %v169
  %v959 = vunpack.c.l.b16 %v170
  %v960 = vunpack.c.h.b16 %v170
  %v961 = vunpack.c.l.b16 %v171
  %v962 = vunpack.c.h.b16 %v171
  %v963 = vunpack.c.l.b16 %v172
  %v964 = vunpack.c.h.b16 %v172
  %v965 = vunpack.c.l.b16 %v173
  %v966 = vunpack.c.h.b16 %v173
  %v967 = vunpack.c.l.b16 %v174
  %v968 = vunpack.c.h.b16 %v174
  %v969 = vunpack.c.l.b16 %v175
  %v970 = vunpack.c.h.b16 %v175
  %v971 = vunpack.c.l.b16 %v176
  %v972 = vunpack.c.h.b16 %v176
  %v973 = vunpack.c.l.b16 %v177
  %v974 = vunpack.c.h.b16 %v177
  %v975 = vunpack.c.l.b16 %v178
  %v976 = vunpack.c.h.b16 %v178
  %v977 = vunpack.c.l.b16 %v179
  %v978 = vunpack.c.h.b16 %v179
  %v979 = vunpack.c.l.b16 %v180
  %v980 = vunpack.c.h.b16 %v180
  %v981 = vunpack.c.l.b16 %v181
  %v982 = vunpack.c.h.b16 %v181
  %v983 = vunpack.c.l.b16 %v182
  %v984 = vunpack.c.h.b16 %v182
  %v985 = vunpack.c.l.b16 %v183
  %v986 = vunpack.c.h.b16 %v183
  %v987 = vunpack.c.l.b16 %v184
  %v988 = vunpack.c.h.b16 %v184
  %v989 = vunpack.c.l.b16 %v185
  %v990 = vunpack.c.h.b16 %v185
  %v991 = vunpack.c.l.b16 %v186
  %v992 = vunpack.c.h.b16 %v186
  %v993 = vunpack.c.l.b16 %v187
  %v994 = vunpack.c.h.b16 %v187
  %v995 = vunpack.c.l.b16 %v188
  %v996 = vunpack.c.h.b16 %v188
  %v997 = vunpack.c.l.b16 %v189
  %v998 = vunpack.c.h.b16 %v189
  %v999 = vunpack.c.l.b16 %v190
  %v1000 = vunpack.c.h.b16 %v190
  %v1001 = vunpack.c.l.b16 %v191
  %v1002 = vunpack.c.h.b16 %v191
  %v1003 = vunpack.c.l.b16 %v192
  %v1004 = vunpack.c.h.b16 %v192
  %v1005 = vunpack.c.l.b16 %v193
  %v1006 = vunpack.c.h.b16 %v193
  %v1007 = vunpack.c.l.b16 %v194
  %v1008 = vunpack.c.h.b16 %v194
  %v1009 = vunpack.c.l.b16 %v195
  %v1010 = vunpack.c.h.b16 %v195
  %v1011 = vunpack.c.l.b16 %v196
  %v1012 = vunpack.c.h.b16 %v196
  %v1013 = vunpack.c.l.b16 %v197
  %v1014 = vunpack.c.h.b16 %v197
  %v1015 = vunpack.c.l.b16 %v198
  %v1016 = vunpack.c.h.b16 %v198
  %v1017 = vunpack.c.l.b16 %v199
  %v1018 = vunpack.c.h.b16 %v199
  %v1019 = vunpack.c.l.b16 %v200
  %v1020 = vunpack.c.h.b16 %v200
  %v1021 = vunpack.c.l.b16 %v201
  %v1022 = vunpack.c.h.b16 %v201
  %v1023 = vunpack.c.l.b16 %v202
  %v1024 = vunpack.c.h.b16 %v202
  %v1025 = vunpack.c.l.b16 %v203
  %v1026 = vunpack.c.h.b16 %v203
  %v1027 = vunpack.c.l.b16 %v204
  %v1028 = vunpack.c.h.b16 %v204
  %v1029 = vunpack.c.l.b16 %v205
  %v1030 = vunpack.c.h.b16 %v205
  %v1031 = vunpack.c.l.b16 %v206
  %v1032 = vunpack.c.h.b16 %v206
  %v1033 = vunpack.c.l.b16 %v207
  %v1034 = vunpack.c.h.b16 %v207
  %v1035 = vunpack.c.l.b16 %v208
  %v1036 = vunpack.c.h.b16 %v208
  %v1037 = vunpack.c.l.b16 %v209
  %v1038 = vunpack.c.h.b16 %v209
  %v1039 = vunpack.c.l.b16 %v210
  %v1040 = vunpack.c.h.b16 %v210
  %v1041 = vunpack.c.l.b16 %v211
  %v1042 = vunpack.c.h.b16 %v211
  %v1043 = vunpack.c.l.b16 %v212
  %v1044 = vunpack.c.h.b16 %v212
  %v1045 = vunpack.c.l.b16 %v213
  %v1046 = vunpack.c.h.b16 %v213
  %v1047 = vunpack.c.l.b16 %v214
  %v1048 = vunpack.c.h.b16 %v214
  %v1049 = vunpack.c.l.b16 %v215
  %v1050 = vunpack.c.h.b16 %v215
  %v1051 = vunpack.c.l.b16 %v216
  %v1052 = vunpack.c.h.b16 %v216
  %v1053 = vunpack.c.l.b16 %v217
  %v1054 = vunpack.c.h.b16 %v217
  %v1055 = vunpack.c.l.b16 %v218
  %v1056 = vunpack.c.h.b16 %v218
  %v1057 = vunpack.c.l.b16 %v219
  %v1058 = vunpack.c.h.b16 %v219
  %v1059 = vunpack.c.l.b16 %v220
  %v1060 = vunpack.c.h.b16 %v220
  %v1061 = vunpack.c.l.b16 %v221
  %v1062 = vunpack.c.h.b16 %v221
  %v1063 = vunpack.c.l.b16 %v222
  %v1064 = vunpack.c.h.b16 %v222
  %v1065 = vunpack.c.l.b16 %v223
  %v1066 = vunpack.c.h.b16 %v223
  %v1067 = vunpack.c.l.b16 %v224
  %v1068 = vunpack.c.h.b16 %v224
  %v1069 = vunpack.c.l.b16 %v225
  %v1070 = vunpack.c.h.b16 %v225
  %v1071 = vunpack.c.l.b16 %v226
  %v1072 = vunpack.c.h.b16 %v226
  %v1073 = vunpack.c.l.b16 %v227
  %v1074 = vunpack.c.h.b16 %v227
  %v1075 = vunpack.c.l.b16 %v228
  %v1076 = vunpack.c.h.b16 %v228
  %v1077 = vunpack.c.l.b16 %v229
  %v1078 = vunpack.c.h.b16 %v229
  %v1079 = vunpack.c.l.b16 %v230
  %v1080 = vunpack.c.h.b16 %v230
  %v1081 = vunpack.c.l.b16 %v231
  %v1082 = vunpack.c.h.b16 %v231
  %v1083 = vunpack.c.l.b16 %v232
  %v1084 = vunpack.c.h.b16 %v232
  %v1085 = vunpack.c.l.b16 %v233
  %v1086 = vunpack.c.h.b16 %v233
  %v1087 = vunpack.c.l.b16 %v234
  %v1088 = vunpack.c.h.b16 %v234
  %v1089 = vunpack.c.l.b16 %v235
  %v1090 = vunpack.c.h.b16 %v235
  %v1091 = vunpack.c.l.b16 %v236
  %v1092 = vunpack.c.h.b16 %v236
  %v1093 = vunpack.c.l.b16 %v237
  %v1094 = vunpack.c.h.b16 %v237
  %v1095 = vunpack.c.l.b16 %v238
  %v1096 = vunpack.c.h.b16 %v238
  %v1097 = vunpack.c.l.b16 %v239
  %v1098 = vunpack.c.h.b16 %v239
  %v1099 = vunpack.c.l.b16 %v240
  %v1100 = vunpack.c.h.b16 %v240
  %v1101 = vunpack.c.l.b16 %v241
  %v1102 = vunpack.c.h.b16 %v241
  %v1103 = vunpack.c.l.b16 %v242
  %v1104 = vunpack.c.h.b16 %v242
  %v1105 = vunpack.c.l.b16 %v243
  %v1106 = vunpack.c.h.b16 %v243
  %v1107 = vunpack.c.l.b16 %v244
  %v1108 = vunpack.c.h.b16 %v244
  %v1109 = vunpack.c.l.b16 %v245
  %v1110 = vunpack.c.h.b16 %v245
  %v1111 = vunpack.c.l.b16 %v246
  %v1112 = vunpack.c.h.b16 %v246
  %v1113 = vunpack.c.l.b16 %v247
  %v1114 = vunpack.c.h.b16 %v247
  %v1115 = vunpack.c.l.b16 %v248
  %v1116 = vunpack.c.h.b16 %v248
  %v1117 = vunpack.c.l.b16 %v249
  %v1118 = vunpack.c.h.b16 %v249
  %v1119 = vunpack.c.l.b16 %v250
  %v1120 = vunpack.c.h.b16 %v250
  %v1121 = vunpack.c.l.b16 %v251
  %v1122 = vunpack.c.h.b16 %v251
  %v1123 = vunpack.c.l.b16 %v252
  %v1124 = vunpack.c.h.b16 %v252
  %v1125 = vunpack.c.l.b16 %v253
  %v1126 = vunpack.c.h.b16 %v253
  %v1127 = vunpack.c.l.b16 %v254
  %v1128 = vunpack.c.h.b16 %v254
  %v1129 = vunpack.c.l.b16 %v255
  %v1130 = vunpack.c.h.b16 %v255
  %v1131 = vunpack.c.l.b16 %v256
  %v1132 = vunpack.c.h.b16 %v256
  %v1133 = vunpack.c.l.b16 %v257
  %v1134 = vunpack.c.h.b16 %v257
  %v1135 = vunpack.c.l.b16 %v258
  %v1136 = vunpack.c.h.b16 %v258
  %v1137 = vunpack.c.l.b16 %v259
  %v1138 = vunpack.c.h.b16 %v259
  %v1139 = vunpack.c.l.b16 %v260
  %v1140 = vunpack.c.h.b16 %v260
  %v1141 = vunpack.c.l.b16 %v261
  %v1142 = vunpack.c.h.b16 %v261
  %v1143 = vunpack.c.l.b16 %v262
  %v1144 = vunpack.c.h.b16 %v262
  %v1145 = vunpack.c.l.b16 %v263
  %v1146 = vunpack.c.h.b16 %v263
  %v1147 = vunpack.c.l.b16 %v264
  %v1148 = vunpack.c.h.b16 %v264
  %v1149 = vunpack.c.l.b16 %v265
  %v1150 = vunpack.c.h.b16 %v265
  %v1151 = vunpack.c.l.b16 %v266
  %v1152 = vunpack.c.h.b16 %v266
  %v1153 = vunpack.c.l.b16 %v267
  %v1154 = vunpack.c.h.b16 %v267
  %v1155 = vunpack.c.l.b16 %v268
  %v1156 = vunpack.c.h.b16 %v268
  %v1157 = vunpack.c.l.b16 %v269
  %v1158 = vunpack.c.h.b16 %v269
  %v1159 = vunpack.c.l.b16 %v270
  %v1160 = vunpack.c.h.b16 %v270
  %v1161 = vunpack.c.l.b16 %v271
  %v1162 = vunpack.c.h.b16 %v271
  %v1163 = vunpack.c.l.b16 %v272
  %v1164 = vunpack.c.h.b16 %v272
  %v1165 = vunpack.c.l.b16 %v273
  %v1166 = vunpack.c.h.b16 %v273
  %v1167 = vunpack.c.l.b16 %v274
  %v1168 = vunpack.c.h.b16 %v274
  %v1169 = vunpack.c.l.b16 %v275
  %v1170 = vunpack.c.h.b16 %v275
  %v1171 = vunpack.c.l.b16 %v276
  %v1172 = vunpack.c.h.b16 %v276
  %v1173 = vunpack.c.l.b16 %v277
  %v1174 = vunpack.c.h.b16 %v277
  %v1175 = vunpack.c.l.b16 %v278
  %v1176 = vunpack.c.h.b16 %v278
  %v1177 = vunpack.c.l.b16 %v279
  %v1178 = vunpack.c.h.b16 %v279
  %v1179 = vunpack.c.l.b16 %v280
  %v1180 = vunpack.c.h.b16 %v280
  %v1181 = vunpack.c.l.b16 %v281
  %v1182 = vunpack.c.h.b16 %v281
  %v1183 = vunpack.c.l.b16 %v282
  %v1184 = vunpack.c.h.b16 %v282
  %v1185 = vunpack.c.l.b16 %v283
  %v1186 = vunpack.c.h.b16 %v283
  %v1187 = vunpack.c.l.b16 %v284
  %v1188 = vunpack.c.h.b16 %v284
  %v1189 = vunpack.c.l.b16 %v285
  %v1190 = vunpack.c.h.b16 %v285
  %v1191 = vunpack.c.l.b16 %v286
  %v1192 = vunpack.c.h.b16 %v286
  %v1193 = vunpack.c.l.b16 %v287
  %v1194 = vunpack.c.h.b16 %v287
  %v1195 = vunpack.c.l.b16 %v288
  %v1196 = vunpack.c.h.b16 %v288
  %v1197 = vunpack.c.l.b16 %v289
  %v1198 = vunpack.c.h.b16 %v289
  %v1199 = vunpack.c.l.b16 %v290
  %v1200 = vunpack.c.h.b16 %v290
  %v1201 = vunpack.c.l.b16 %v291
  %v1202 = vunpack.c.h.b16 %v291
  %v1203 = vunpack.c.l.b16 %v292
  %v1204 = vunpack.c.h.b16 %v292
  %v1205 = vunpack.c.l.b16 %v293
  %v1206 = vunpack.c.h.b16 %v293
  %v1207 = vunpack.c.l.b16 %v294
  %v1208 = vunpack.c.h.b16 %v294
  %v1209 = vunpack.c.l.b16 %v295
  %v1210 = vunpack.c.h.b16 %v295
  %v1211 = vunpack.c.l.b16 %v296
  %v1212 = vunpack.c.h.b16 %v296
  %v1213 = vunpack.c.l.b16 %v297
  %v1214 = vunpack.c.h.b16 %v297
  %v1215 = vunpack.c.l.b16 %v298
  %v1216 = vunpack.c.h.b16 %v298
  %v1217 = vunpack.c.l.b16 %v299
  %v1218 = vunpack.c.h.b16 %v299
  %v1219 = vunpack.c.l.b16 %v300
  %v1220 = vunpack.c.h.b16 %v300
  %v1221 = vunpack.c.l.b16 %v301
  %v1222 = vunpack.c.h.b16 %v301
  %v1223 = vunpack.c.l.b16 %v302
  %v1224 = vunpack.c.h.b16 %v302
  %v1225 = vunpack.c.l.b16 %v303
  %v1226 = vunpack.c.h.b16 %v303
  %v1227 = vunpack.c.l.b16 %v304
  %v1228 = vunpack.c.h.b16 %v304
  %v1229 = vunpack.c.l.b16 %v305
  %v1230 = vunpack.c.h.b16 %v305
  %v1231 = vunpack.c.l.b16 %v306
  %v1232 = vunpack.c.h.b16 %v306
  %v1233 = vunpack.c.l.b16 %v307
  %v1234 = vunpack.c.h.b16 %v307
  %v1235 = vunpack.c.l.b16 %v308
  %v1236 = vunpack.c.h.b16 %v308
  %v1237 = vunpack.c.l.b16 %v309
  %v1238 = vunpack.c.h.b16 %v309
  %v1239 = vunpack.c.l.b16 %v310
  %v1240 = vunpack.c.h.b16 %v310
  %v1241 = vunpack.c.l.b16 %v311
  %v1242 = vunpack.c.h.b16 %v311
  %v1243 = vunpack.c.l.b16 %v312
  %v1244 = vunpack.c.h.b16 %v312
  %v1245 = vunpack.c.l.b16 %v313
  %v1246 = vunpack.c.h.b16 %v313
  %v1247 = vpack.c.b16 %v673, %v671
  %v1248 = vpack.c.b16 %v674, %v672
  %v1249 = vpack.c.b16 %v677, %v675
  %v1250 = vpack.c.b16 %v678, %v676
  %v1251 = vpack.c.b16 %v681, %v679
  %v1252 = vpack.c.b16 %v682, %v680
  %v1253 = vpack.c.b16 %v685, %v683
  %v1254 = vpack.c.b16 %v686, %v684
  %v1255 = vpack.c.b16 %v689, %v687
  %v1256 = vpack.c.b16 %v690, %v688
  %v1257 = vpack.c.b16 %v693, %v691
  %v1258 = vpack.c.b16 %v694, %v692
  %v1259 = vpack.c.b16 %v697, %v695
  %v1260 = vpack.c.b16 %v698, %v696
  %v1261 = vpack.c.b16 %v701, %v699
  %v1262 = vpack.c.b16 %v702, %v700
  %v1263 = vpack.c.b16 %v705, %v703
  %v1264 = vpack.c.b16 %v706, %v704
  %v1265 = vpack.c.b16 %v709, %v707
  %v1266 = vpack.c.b16 %v710, %v708
  %v1267 = vpack.c.b16 %v713, %v711
  %v1268 = vpack.c.b16 %v714, %v712
  %v1269 = vpack.c.b16 %v717, %v715
  %v1270 = vpack.c.b16 %v718, %v716
  %v1271 = vpack.c.b16 %v721, %v719
  %v1272 = vpack.c.b16 %v722, %v720
  %v1273 = vpack.c.b16 %v725, %v723
  %v1274 = vpack.c.b16 %v726, %v724
  %v1275 = vpack.c.b16 %v729, %v727
  %v1276 = vpack.c.b16 %v730, %v728
  %v1277 = vpack.c.b16 %v733, %v731
  %v1278 = vpack.c.b16 %v734, %v732
  %v1279 = vpack.c.b16 %v737, %v735
  %v1280 = vpack.c.b16 %v738, %v736
  %v1281 = vpack.c.b16 %v741, %v739
  %v1282 = vpack.c.b16 %v742, %v740
  %v1283 = vpack.c.b16 %v745, %v743
  %v1284 = vpack.c.b16 %v746, %v744
  %v1285 = vpack.c.b16 %v749, %v747
  %v1286 = vpack.c.b16 %v750, %v748
  %v1287 = vpack.c.b16 %v753, %v751
  %v1288 = vpack.c.b16 %v754, %v752
  %v1289 = vpack.c.b16 %v757, %v755
  %v1290 = vpack.c.b16 %v758, %v756
  %v1291 = vpack.c.b16 %v761, %v759
  %v1292 = vpack.c.b16 %v762, %v760
  %v1293 = vpack.c.b16 %v765, %v763
  %v1294 = vpack.c.b16 %v766, %v764
  %v1295 = vpack.c.b16 %v769, %v767
  %v1296 = vpack.c.b16 %v770, %v768
  %v1297 = vpack.c.b16 %v773, %v771
  %v1298 = vpack.c.b16 %v774, %v772
  %v1299 = vpack.c.b16 %v777, %v775
  %v1300 = vpack.c.b16 %v778, %v776
  %v1301 = vpack.c.b16 %v781, %v779
  %v1302 = vpack.c.b16 %v782, %v780
  %v1303 = vpack.c.b16 %v785, %v783
  %v1304 = vpack.c.b16 %v786, %v784
  %v1305 = vpack.c.b16 %v789, %v787
  %v1306 = vpack.c.b16 %v790, %v788
  %v1307 = vpack.c.b16 %v793, %v791
  %v1308 = vpack.c.b16 %v794, %v792
  %v1309 = vpack.c.b16 %v797, %v795
  %v1310 = vpack.c.b16 %v798, %v796
  %v1311 = vpack.c.b16 %v801, %v799
  %v1312 = vpack.c.b16 %v802, %v800
  %v1313 = vpack.c.b16 %v805, %v803
  %v1314 = vpack.c.b16 %v806, %v804
  %v1315 = vpack.c.b16 %v809, %v807
  %v1316 = vpack.c.b16 %v810, %v808
  %v1317 = vpack.c.b16 %v813, %v811
  %v1318 = vpack.c.b16 %v814, %v812
  %v1319 = vpack.c.b16 %v817, %v815
  %v1320 = vpack.c.b16 %v818, %v816
  %v1321 = vpack.c.b16 %v821, %v819
  %v1322 = vpack.c.b16 %v822, %v820
  %v1323 = vpack.c.b16 %v825, %v823
  %v1324 = vpack.c.b16 %v826, %v824
  %v1325 = vpack.c.b16 %v829, %v827
  %v1326 = vpack.c.b16 %v830, %v828
  %v1327 = vpack.c.b16 %v833, %v831
  %v1328 = vpack.c.b16 %v834, %v832
  %v1329 = vpack.c.b16 %v837, %v835
  %v1330 = vpack.c.b16 %v838, %v836
  %v1331 = vpack.c.b16 %v841, %v839
  %v1332 = vpack.c.b16 %v842, %v840
  %v1333 = vpack.c.b16 %v845, %v843
  %v1334 = vpack.c.b16 %v846, %v844
  %v1335 = vpack.c.b16 %v849, %v847
  %v1336 = vpack.c.b16 %v850, %v848
  %v1337 = vpack.c.b16 %v853, %v851
  %v1338 = vpack.c.b16 %v854, %v852
  %v1339 = vpack.c.b16 %v857, %v855
  %v1340 = vpack.c.b16 %v858, %v856
  %v1341 = vpack.c.b16 %v861, %v859
  %v1342 = vpack.c.b16 %v862, %v860
  %v1343 = vpack.c.b16 %v865, %v863
  %v1344 = vpack.c.b16 %v866, %v864
  %v1345 = vpack.c.b16 %v869, %v867
  %v1346 = vpack.c.b16 %v870, %v868
  %v1347 = vpack.c.b16 %v873, %v871
  %v1348 = vpack.c.b16 %v874, %v872
  %v1349 = vpack.c.b16 %v877, %v875
  %v1350 = vpack.c.b16 %v878, %v876
  %v1351 = vpack.c.b16 %v881, %v879
  %v1352 = vpack.c.b16 %v882, %v880
  %v1353 = vpack.c.b16 %v885, %v883
  %v1354 = vpack.c.b16 %v886, %v884
  %v1355 = vpack.c.b16 %v889, %v887
  %v1356 = vpack.c.b16 %v890, %v888
  %v1357 = vpack.c.b16 %v893, %v891
  %v1358 = vpack.c.b16 %v894, %v892
  %v1359 = vpack.c.b16 %v897, %v895
  %v1360 = vpack.c.b16 %v898, %v896
  %v1361 = vpack.c.b16 %v901, %v899
  %v1362 = vpack.c.b16 %v902, %v900
  %v1363 = vpack.c.b16 %v905, %v903
  %v1364 = vpack.c.b16 %v906, %v904
  %v1365 = vpack.c.b16 %v909, %v907
  %v1366 = vpack.c.b16 %v910, %v908
  %v1367 = vpack.c.b16 %v913, %v911
  %v1368 = vpack.c.b16 %v914, %v912
  %v1369 = vpack.c.b16 %v917, %v915
  %v1370 = vpack.c.b16 %v918, %v916
  %v1371 = vpack.c.b16 %v921, %v919
  %v1372 = vpack.c.b16 %v922, %v920
  %v1373 = vpack.c.b16 %v925, %v923
  %v1374 = vpack.c.b16 %v926, %v924
  %v1375 = vpack.c.b16 %v929, %v927
  %v1376 = vpack.c.b16 %v930, %v928
  %v1377 = vpack.c.b16 %v933, %v931
  %v1378 = vpack.c.b16 %v934, %v932
  %v1379 = vpack.c.b16 %v937, %v935
  %v1380 = vpack.c.b16 %v938, %v936
  %v1381 = vpack.c.b16 %v941, %v939
  %v1382 = vpack.c.b16 %v942, %v940
  %v1383 = vpack.c.b16 %v945, %v943
  %v1384 = vpack.c.b16 %v946, %v944
  %v1385 = vpack.c.b16 %v949, %v947
  %v1386 = vpack.c.b16 %v950, %v948
  %v1387 = vpack.c.b16 %v953, %v951
  %v1388 = vpack.c.b16 %v954, %v952
  %v1389 = vpack.c.b16 %v957, %v955
  %v1390 = vpack.c.b16 %v958, %v956
  %v1391 = vpack.c.b16 %v961, %v959
  %v1392 = vpack.c.b16 %v962, %v960
  %v1393 = vpack.c.b16 %v965, %v963
  %v1394 = vpack.c.b16 %v966, %v964
  %v1395 = vpack.c.b16 %v969, %v967
  %v1396 = vpack.c.b16 %v970, %v968
  %v1397 = vpack.c.b16 %v973, %v971
  %v1398 = vpack.c.b16 %v974, %v972
  %v1399 = vpack.c.b16 %v977, %v975
  %v1400 = vpack.c.b16 %v978, %v976
  %v1401 = vpack.c.b16 %v981, %v979
  %v1402 = vpack.c.b16 %v982, %v980
  %v1403 = vpack.c.b16 %v985, %v983
  %v1404 = vpack.c.b16 %v986, %v984
  %v1405 = vpack.c.b16 %v989, %v987
  %v1406 = vpack.c.b16 %v990, %v988
  %v1407 = vpack.c.b16 %v993, %v991
  %v1408 = vpack.c.b16 %v994, %v992
  %v1409 = vpack.c.b16 %v997, %v995
  %v1410 = vpack.c.b16 %v998, %v996
  %v1411 = vpack.c.b16 %v1001, %v999
  %v1412 = vpack.c.b16 %v1002, %v1000
  %v1413 = vpack.c.b16 %v1005, %v1003
  %v1414 = vpack.c.b16 %v1006, %v1004
  %v1415 = vpack.c.b16 %v1009, %v1007
  %v1416 = vpack.c.b16 %v1010, %v1008
  %v1417 = vpack.c.b16 %v1013, %v1011
  %v1418 = vpack.c.b16 %v1014, %v1012
  %v1419 = vpack.c.b16 %v1017, %v1015
  %v1420 = vpack.c.b16 %v1018, %v1016
  %v1421 = vpack.c.b16 %v1021, %v1019
  %v1422 = vpack.c.b16 %v1022, %v1020
  %v1423 = vpack.c.b16 %v1025, %v1023
  %v1424 = vpack.c.b16 %v1026, %v1024
  %v1425 = vpack.c.b16 %v1029, %v1027
  %v1426 = vpack.c.b16 %v1030, %v1028
  %v1427 = vpack.c.b16 %v1033, %v1031
  %v1428 = vpack.c.b16 %v1034, %v1032
  %v1429 = vpack.c.b16 %v1037, %v1035
  %v1430 = vpack.c.b16 %v1038, %v1036
  %v1431 = vpack.c.b16 %v1041, %v1039
  %v1432 = vpack.c.b16 %v1042, %v1040
  %v1433 = vpack.c.b16 %v1045, %v1043
  %v1434 = vpack.c.b16 %v1046, %v1044
  %v1435 = vpack.c.b16 %v1049, %v1047
  %v1436 = vpack.c.b16 %v1050, %v1048
  %v1437 = vpack.c.b16 %v1053, %v1051
  %v1438 = vpack.c.b16 %v1054, %v1052
  %v1439 = vpack.c.b16 %v1057, %v1055
  %v1440 = vpack.c.b16 %v1058, %v1056
  %v1441 = vpack.c.b16 %v1061, %v1059
  %v1442 = vpack.c.b16 %v1062, %v1060
  %v1443 = vpack.c.b16 %v1065, %v1063
  %v1444 = vpack.c.b16 %v1066, %v1064
  %v1445 = vpack.c.b16 %v1069, %v1067
  %v1446 = vpack.c.b16 %v1070, %v1068
  %v1447 = vpack.c.b16 %v1073, %v1071
  %v1448 = vpack.c.b16 %v1074, %v1072
  %v1449 = vpack.c.b16 %v1077, %v1075
  %v1450 = vpack.c.b16 %v1078, %v1076
  %v1451 = vpack.c.b16 %v1081, %v1079
  %v1452 = vpack.c.b16 %v1082, %v1080
  %v1453 = vpack.c.b16 %v1085, %v1083
  %v1454 = vpack.c.b16 %v1086, %v1084
  %v1455 = vpack.c.b16 %v1089, %v1087
  %v1456 = vpack.c.b16 %v1090, %v1088
  %v1457 = vpack.c.b16 %v1093, %v1091
  %v1458 = vpack.c.b16 %v1094, %v1092
  %v1459 = vpack.c.b16 %v1097, %v1095
  %v1460 = vpack.c.b16 %v1098, %v1096
  %v1461 = vpack.c.b16 %v1101, %v1099
  %v1462 = vpack.c.b16 %v1102, %v1100
  %v1463 = vpack.c.b16 %v1105, %v1103
  %v1464 = vpack.c.b16 %v1106, %v1104
  %v1465 = vpack.c.b16 %v1109, %v1107
  %v1466 = vpack.c.b16 %v1110, %v1108
  %v1467 = vpack.c.b16 %v1113, %v1111
  %v1468 = vpack.c.b16 %v1114, %v1112
  %v1469 = vpack.c.b16 %v1117, %v1115
  %v1470 = vpack.c.b16 %v1118, %v1116
  %v1471 = vpack.c.b16 %v1121, %v1119
  %v1472 = vpack.c.b16 %v1122, %v1120
  %v1473 = vpack.c.b16 %v1125, %v1123
  %v1474 = vpack.c.b16 %v1126, %v1124
  %v1475 = vpack.c.b16 %v1129, %v1127
  %v1476 = vpack.c.b16 %v1130, %v1128
  %v1477 = vpack.c.b16 %v1133, %v1131
  %v1478 = vpack.c.b16 %v1134, %v1132
  %v1479 = vpack.c.b16 %v1137, %v1135
  %v1480 = vpack.c.b16 %v1138, %v1136
  %v1481 = vpack.c.b16 %v1141, %v1139
  %v1482 = vpack.c.b16 %v1142, %v1140
  %v1483 = vpack.c.b16 %v1145, %v1143
  %v1484 = vpack.c.b16 %v1146, %v1144
  %v1485 = vpack.c.b16 %v1149, %v1147
  %v1486 = vpack.c.b16 %v1150, %v1148
  %v1487 = vpack.c.b16 %v1153, %v1151
  %v1488 = vpack.c.b16 %v1154, %v1152
  %v1489 = vpack.c.b16 %v1157, %v1155
  %v1490 = vpack.c.b16 %v1158, %v1156
  %v1491 = vpack.c.b16 %v1161, %v1159
  %v1492 = vpack.c.b16 %v1162, %v1160
  %v1493 = vpack.c.b16 %v1165, %v1163
  %v1494 = vpack.c.b16 %v1166, %v1164
  %v1495 = vpack.c.b16 %v1169, %v1167
  %v1496 = vpack.c.b16 %v1170, %v1168
  %v1497 = vpack.c.b16 %v1173, %v1171
  %v1498 = vpack.c.b16 %v1174, %v1172
  %v1499 = vpack.c.b16 %v1177, %v1175
  %v1500 = vpack.c.b16 %v1178, %v1176
  %v1501 = vpack.c.b16 %v1181, %v1179
  %v1502 = vpack.c.b16 %v1182, %v1180
  %v1503 = vpack.c.b16 %v1185, %v1183
  %v1504 = vpack.c.b16 %v1186, %v1184
  %v1505 = vpack.c.b16 %v1189, %v1187
  %v1506 = vpack.c.b16 %v1190, %v1188
  %v1507 = vpack.c.b16 %v1193, %v1191
  %v1508 = vpack.c.b16 %v1194, %v1192
  %v1509 = vpack.c.b16 %v1197, %v1195
  %v1510 = vpack.c.b16 %v1198, %v1196
  %v1511 = vpack.c.b16 %v1201, %v1199
  %v1512 = vpack.c.b16 %v1202, %v1200
  %v1513 = vpack.c.b16 %v1205, %v1203
  %v1514 = vpack.c.b16 %v1206, %v1204
  %v1515 = vpack.c.b16 %v1209, %v1207
  %v1516 = vpack.c.b16 %v1210, %v1208
  %v1517 = vpack.c.b16 %v1213, %v1211
  %v1518 = vpack.c.b16 %v1214, %v1212
  %v1519 = vpack.c.b16 %v1217, %v1215
  %v1520 = vpack.c.b16 %v1218, %v1216
  %v1521 = vpack.c.b16 %v1221, %v1219
  %v1522 = vpack.c.b16 %v1222, %v1220
  %v1523 = vpack.c.b16 %v1225, %v1223
  %v1524 = vpack.c.b16 %v1226, %v1224
  %v1525 = vpack.c.b16 %v1229, %v1227
  %v1526 = vpack.c.b16 %v1230, %v1228
  %v1527 = vpack.c.b16 %v1233, %v1231
  %v1528 = vpack.c.b16 %v1234, %v1232
  %v1529 = vpack.c.b16 %v1237, %v1235
  %v1530 = vpack.c.b16 %v1238, %v1236
  %v1531 = vpack.c.b16 %v1241, %v1239
  %v1532 = vpack.c.b16 %v1242, %v1240
  %v1533 = vpack.c.b16 %v1245, %v1243
  %v1534 = vpack.c.b16 %v1246, %v1244
  %1823 = vmatpush.bf16.msra.mxu0 %v1261
  %1824 = vmatpush.bf16.msra.mxu0 %v1259
  %1825 = vmatpush.bf16.msra.mxu0 %v1257
  %1826 = vmatpush.bf16.msra.mxu0 %v1255
  %1827 = vmatpush.bf16.msra.mxu0 %v1253
  %1828 = vmatpush.bf16.msra.mxu0 %v1251
  %1829 = vmatpush.bf16.msra.mxu0 %v1249
  %1830 = vmatpush.bf16.msra.mxu0 %v1247
  %1831 = vmatmul.bf16.gmra.mxu0 %v347
  %v1832 = vpop.f32.mrf.mxu0
  %v1833 = vadd.f32 %v316, %v1832
  %v1834 = vpop.f32.mrf.mxu0
  %1835 = vdwg.mxu0
  %1836 = vmatpush.bf16.msra.mxu0 %v1277
  %1837 = vmatpush.bf16.msra.mxu0 %v1275
  %1838 = vmatpush.bf16.msra.mxu0 %v1273
  %1839 = vmatpush.bf16.msra.mxu0 %v1271
  %1840 = vmatpush.bf16.msra.mxu0 %v1269
  %1841 = vmatpush.bf16.msra.mxu0 %v1267
  %1842 = vmatpush.bf16.msra.mxu0 %v1265
  %1843 = vmatpush.bf16.msra.mxu0 %v1263
  %1844 = vmatmul.bf16.gmra.mxu0 %v348
  %v1845 = vpop.f32.mrf.mxu0
  %v1846 = vadd.f32 %v1833, %v1845
  %v1847 = vpop.f32.mrf.mxu0
  %1848 = vdwg.mxu0
  %1849 = vmatpush.bf16.msra.mxu0 %v1293
  %1850 = vmatpush.bf16.msra.mxu0 %v1291
  %1851 = vmatpush.bf16.msra.mxu0 %v1289
  %1852 = vmatpush.bf16.msra.mxu0 %v1287
  %1853 = vmatpush.bf16.msra.mxu0 %v1285
  %1854 = vmatpush.bf16.msra.mxu0 %v1283
  %1855 = vmatpush.bf16.msra.mxu0 %v1281
  %1856 = vmatpush.bf16.msra.mxu0 %v1279
  %1857 = vmatmul.bf16.gmra.mxu0 %v349
  %v1858 = vpop.f32.mrf.mxu0
  %v1859 = vadd.f32 %v1846, %v1858
  %v1860 = vpop.f32.mrf.mxu0
  %1861 = vdwg.mxu0
  %1862 = vmatpush.bf16.msra.mxu0 %v1309
  %1863 = vmatpush.bf16.msra.mxu0 %v1307
  %1864 = vmatpush.bf16.msra.mxu0 %v1305
  %1865 = vmatpush.bf16.msra.mxu0 %v1303
  %1866 = vmatpush.bf16.msra.mxu0 %v1301
  %1867 = vmatpush.bf16.msra.mxu0 %v1299
  %1868 = vmatpush.bf16.msra.mxu0 %v1297
  %1869 = vmatpush.bf16.msra.mxu0 %v1295
  %1870 = vmatmul.bf16.gmra.mxu0 %v350
  %v1871 = vpop.f32.mrf.mxu0
  %v1872 = vadd.f32 %v1859, %v1871
  %v1873 = vpop.f32.mrf.mxu0
  %1874 = vdwg.mxu0
  %1875 = vmatpush.bf16.msra.mxu0 %v1325
  %1876 = vmatpush.bf16.msra.mxu0 %v1323
  %1877 = vmatpush.bf16.msra.mxu0 %v1321
  %1878 = vmatpush.bf16.msra.mxu0 %v1319
  %1879 = vmatpush.bf16.msra.mxu0 %v1317
  %1880 = vmatpush.bf16.msra.mxu0 %v1315
  %1881 = vmatpush.bf16.msra.mxu0 %v1313
  %1882 = vmatpush.bf16.msra.mxu0 %v1311
  %1883 = vmatmul.bf16.gmra.mxu0 %v351
  %v1884 = vpop.f32.mrf.mxu0
  %v1885 = vadd.f32 %v1872, %v1884
  %v1886 = vpop.f32.mrf.mxu0
  %1887 = vdwg.mxu0
  %1888 = vmatpush.bf16.msra.mxu0 %v1341
  %1889 = vmatpush.bf16.msra.mxu0 %v1339
  %1890 = vmatpush.bf16.msra.mxu0 %v1337
  %1891 = vmatpush.bf16.msra.mxu0 %v1335
  %1892 = vmatpush.bf16.msra.mxu0 %v1333
  %1893 = vmatpush.bf16.msra.mxu0 %v1331
  %1894 = vmatpush.bf16.msra.mxu0 %v1329
  %1895 = vmatpush.bf16.msra.mxu0 %v1327
  %1896 = vmatmul.bf16.gmra.mxu0 %v352
  %v1897 = vpop.f32.mrf.mxu0
  %v1898 = vadd.f32 %v1885, %v1897
  %v1899 = vpop.f32.mrf.mxu0
  %1900 = vdwg.mxu0
  %1901 = vmatpush.bf16.msra.mxu0 %v1357
  %1902 = vmatpush.bf16.msra.mxu0 %v1355
  %1903 = vmatpush.bf16.msra.mxu0 %v1353
  %1904 = vmatpush.bf16.msra.mxu0 %v1351
  %1905 = vmatpush.bf16.msra.mxu0 %v1349
  %1906 = vmatpush.bf16.msra.mxu0 %v1347
  %1907 = vmatpush.bf16.msra.mxu0 %v1345
  %1908 = vmatpush.bf16.msra.mxu0 %v1343
  %1909 = vmatmul.bf16.gmra.mxu0 %v353
  %v1910 = vpop.f32.mrf.mxu0
  %v1911 = vadd.f32 %v1898, %v1910
  %v1912 = vpop.f32.mrf.mxu0
  %1913 = vdwg.mxu0
  %1914 = vmatpush.bf16.msra.mxu0 %v1373
  %1915 = vmatpush.bf16.msra.mxu0 %v1371
  %1916 = vmatpush.bf16.msra.mxu0 %v1369
  %1917 = vmatpush.bf16.msra.mxu0 %v1367
  %1918 = vmatpush.bf16.msra.mxu0 %v1365
  %1919 = vmatpush.bf16.msra.mxu0 %v1363
  %1920 = vmatpush.bf16.msra.mxu0 %v1361
  %1921 = vmatpush.bf16.msra.mxu0 %v1359
  %1922 = vmatmul.bf16.gmra.mxu0 %v354
  %v1923 = vpop.f32.mrf.mxu0
  %v1924 = vadd.f32 %v1911, %v1923
  %v1925 = vpop.f32.mrf.mxu0
  %1926 = vdwg.mxu0
  %1927 = vmatpush.bf16.msra.mxu0 %v1389
  %1928 = vmatpush.bf16.msra.mxu0 %v1387
  %1929 = vmatpush.bf16.msra.mxu0 %v1385
  %1930 = vmatpush.bf16.msra.mxu0 %v1383
  %1931 = vmatpush.bf16.msra.mxu0 %v1381
  %1932 = vmatpush.bf16.msra.mxu0 %v1379
  %1933 = vmatpush.bf16.msra.mxu0 %v1377
  %1934 = vmatpush.bf16.msra.mxu0 %v1375
  %1935 = vmatmul.bf16.gmra.mxu0 %v355
  %v1936 = vpop.f32.mrf.mxu0
  %v1937 = vadd.f32 %v1924, %v1936
  %v1938 = vpop.f32.mrf.mxu0
  %1939 = vdwg.mxu0
  %1940 = vmatpush.bf16.msra.mxu0 %v1405
  %1941 = vmatpush.bf16.msra.mxu0 %v1403
  %1942 = vmatpush.bf16.msra.mxu0 %v1401
  %1943 = vmatpush.bf16.msra.mxu0 %v1399
  %1944 = vmatpush.bf16.msra.mxu0 %v1397
  %1945 = vmatpush.bf16.msra.mxu0 %v1395
  %1946 = vmatpush.bf16.msra.mxu0 %v1393
  %1947 = vmatpush.bf16.msra.mxu0 %v1391
  %1948 = vmatmul.bf16.gmra.mxu0 %v356
  %v1949 = vpop.f32.mrf.mxu0
  %v1950 = vadd.f32 %v1937, %v1949
  %v1951 = vpop.f32.mrf.mxu0
  %1952 = vdwg.mxu0
  %1953 = vmatpush.bf16.msra.mxu0 %v1421
  %1954 = vmatpush.bf16.msra.mxu0 %v1419
  %1955 = vmatpush.bf16.msra.mxu0 %v1417
  %1956 = vmatpush.bf16.msra.mxu0 %v1415
  %1957 = vmatpush.bf16.msra.mxu0 %v1413
  %1958 = vmatpush.bf16.msra.mxu0 %v1411
  %1959 = vmatpush.bf16.msra.mxu0 %v1409
  %1960 = vmatpush.bf16.msra.mxu0 %v1407
  %1961 = vmatmul.bf16.gmra.mxu0 %v357
  %v1962 = vpop.f32.mrf.mxu0
  %v1963 = vadd.f32 %v1950, %v1962
  %v1964 = vpop.f32.mrf.mxu0
  %1965 = vdwg.mxu0
  %1966 = vmatpush.bf16.msra.mxu0 %v1437
  %1967 = vmatpush.bf16.msra.mxu0 %v1435
  %1968 = vmatpush.bf16.msra.mxu0 %v1433
  %1969 = vmatpush.bf16.msra.mxu0 %v1431
  %1970 = vmatpush.bf16.msra.mxu0 %v1429
  %1971 = vmatpush.bf16.msra.mxu0 %v1427
  %1972 = vmatpush.bf16.msra.mxu0 %v1425
  %1973 = vmatpush.bf16.msra.mxu0 %v1423
  %1974 = vmatmul.bf16.gmra.mxu0 %v358
  %v1975 = vpop.f32.mrf.mxu0
  %v1976 = vadd.f32 %v1963, %v1975
  %v1977 = vpop.f32.mrf.mxu0
  %1978 = vdwg.mxu0
  %1979 = vmatpush.bf16.msra.mxu0 %v1453
  %1980 = vmatpush.bf16.msra.mxu0 %v1451
  %1981 = vmatpush.bf16.msra.mxu0 %v1449
  %1982 = vmatpush.bf16.msra.mxu0 %v1447
  %1983 = vmatpush.bf16.msra.mxu0 %v1445
  %1984 = vmatpush.bf16.msra.mxu0 %v1443
  %1985 = vmatpush.bf16.msra.mxu0 %v1441
  %1986 = vmatpush.bf16.msra.mxu0 %v1439
  %1987 = vmatmul.bf16.gmra.mxu0 %v359
  %v1988 = vpop.f32.mrf.mxu0
  %v1989 = vadd.f32 %v1976, %v1988
  %v1990 = vpop.f32.mrf.mxu0
  %1991 = vdwg.mxu0
  %1992 = vmatpush.bf16.msra.mxu0 %v1469
  %1993 = vmatpush.bf16.msra.mxu0 %v1467
  %1994 = vmatpush.bf16.msra.mxu0 %v1465
  %1995 = vmatpush.bf16.msra.mxu0 %v1463
  %1996 = vmatpush.bf16.msra.mxu0 %v1461
  %1997 = vmatpush.bf16.msra.mxu0 %v1459
  %1998 = vmatpush.bf16.msra.mxu0 %v1457
  %1999 = vmatpush.bf16.msra.mxu0 %v1455
  %2000 = vmatmul.bf16.gmra.mxu0 %v360
  %v2001 = vpop.f32.mrf.mxu0
  %v2002 = vadd.f32 %v1989, %v2001
  %v2003 = vpop.f32.mrf.mxu0
  %2004 = vdwg.mxu0
  %2005 = vmatpush.bf16.msra.mxu0 %v1485
  %2006 = vmatpush.bf16.msra.mxu0 %v1483
  %2007 = vmatpush.bf16.msra.mxu0 %v1481
  %2008 = vmatpush.bf16.msra.mxu0 %v1479
  %2009 = vmatpush.bf16.msra.mxu0 %v1477
  %2010 = vmatpush.bf16.msra.mxu0 %v1475
  %2011 = vmatpush.bf16.msra.mxu0 %v1473
  %2012 = vmatpush.bf16.msra.mxu0 %v1471
  %2013 = vmatmul.bf16.gmra.mxu0 %v361
  %v2014 = vpop.f32.mrf.mxu0
  %v2015 = vadd.f32 %v2002, %v2014
  %v2016 = vpop.f32.mrf.mxu0
  %2017 = vdwg.mxu0
  %2018 = vmatpush.bf16.msra.mxu0 %v1501
  %2019 = vmatpush.bf16.msra.mxu0 %v1499
  %2020 = vmatpush.bf16.msra.mxu0 %v1497
  %2021 = vmatpush.bf16.msra.mxu0 %v1495
  %2022 = vmatpush.bf16.msra.mxu0 %v1493
  %2023 = vmatpush.bf16.msra.mxu0 %v1491
  %2024 = vmatpush.bf16.msra.mxu0 %v1489
  %2025 = vmatpush.bf16.msra.mxu0 %v1487
  %2026 = vmatmul.bf16.gmra.mxu0 %v362
  %v2027 = vpop.f32.mrf.mxu0
  %v2028 = vadd.f32 %v2015, %v2027
  %v2029 = vpop.f32.mrf.mxu0
  %2030 = vdwg.mxu0
  %2031 = vmatpush.bf16.msra.mxu0 %v1517
  %2032 = vmatpush.bf16.msra.mxu0 %v1515
  %2033 = vmatpush.bf16.msra.mxu0 %v1513
  %2034 = vmatpush.bf16.msra.mxu0 %v1511
  %2035 = vmatpush.bf16.msra.mxu0 %v1509
  %2036 = vmatpush.bf16.msra.mxu0 %v1507
  %2037 = vmatpush.bf16.msra.mxu0 %v1505
  %2038 = vmatpush.bf16.msra.mxu0 %v1503
  %2039 = vmatmul.bf16.gmra.mxu0 %v363
  %v2040 = vpop.f32.mrf.mxu0
  %v2041 = vadd.f32 %v2028, %v2040
  %v2042 = vpop.f32.mrf.mxu0
  %2043 = vdwg.mxu0
  %2044 = vmatpush.bf16.msra.mxu0 %v1533
  %2045 = vmatpush.bf16.msra.mxu0 %v1531
  %2046 = vmatpush.bf16.msra.mxu0 %v1529
  %2047 = vmatpush.bf16.msra.mxu0 %v1527
  %2048 = vmatpush.bf16.msra.mxu0 %v1525
  %2049 = vmatpush.bf16.msra.mxu0 %v1523
  %2050 = vmatpush.bf16.msra.mxu0 %v1521
  %2051 = vmatpush.bf16.msra.mxu0 %v1519
  %2052 = vmatmul.bf16.gmra.mxu0 %v364
  %v2053 = vpop.f32.mrf.mxu0
  %v2054 = vadd.f32 %v2041, %v2053
  %v2055 = vpop.f32.mrf.mxu0
  %2056 = vdwg.mxu0
  %2057 = vmatpush.bf16.msra.mxu0 %v1262
  %2058 = vmatpush.bf16.msra.mxu0 %v1260
  %2059 = vmatpush.bf16.msra.mxu0 %v1258
  %2060 = vmatpush.bf16.msra.mxu0 %v1256
  %2061 = vmatpush.bf16.msra.mxu0 %v1254
  %2062 = vmatpush.bf16.msra.mxu0 %v1252
  %2063 = vmatpush.bf16.msra.mxu0 %v1250
  %2064 = vmatpush.bf16.msra.mxu0 %v1248
  %2065 = vmatmul.bf16.gmra.mxu0 %v347
  %v2066 = vpop.f32.mrf.mxu0
  %v2067 = vadd.f32 %v317, %v2066
  %v2068 = vpop.f32.mrf.mxu0
  %2069 = vdwg.mxu0
  %2070 = vmatpush.bf16.msra.mxu0 %v1278
  %2071 = vmatpush.bf16.msra.mxu0 %v1276
  %2072 = vmatpush.bf16.msra.mxu0 %v1274
  %2073 = vmatpush.bf16.msra.mxu0 %v1272
  %2074 = vmatpush.bf16.msra.mxu0 %v1270
  %2075 = vmatpush.bf16.msra.mxu0 %v1268
  %2076 = vmatpush.bf16.msra.mxu0 %v1266
  %2077 = vmatpush.bf16.msra.mxu0 %v1264
  %2078 = vmatmul.bf16.gmra.mxu0 %v348
  %v2079 = vpop.f32.mrf.mxu0
  %v2080 = vadd.f32 %v2067, %v2079
  %v2081 = vpop.f32.mrf.mxu0
  %2082 = vdwg.mxu0
  %2083 = vmatpush.bf16.msra.mxu0 %v1294
  %2084 = vmatpush.bf16.msra.mxu0 %v1292
  %2085 = vmatpush.bf16.msra.mxu0 %v1290
  %2086 = vmatpush.bf16.msra.mxu0 %v1288
  %2087 = vmatpush.bf16.msra.mxu0 %v1286
  %2088 = vmatpush.bf16.msra.mxu0 %v1284
  %2089 = vmatpush.bf16.msra.mxu0 %v1282
  %2090 = vmatpush.bf16.msra.mxu0 %v1280
  %2091 = vmatmul.bf16.gmra.mxu0 %v349
  %v2092 = vpop.f32.mrf.mxu0
  %v2093 = vadd.f32 %v2080, %v2092
  %v2094 = vpop.f32.mrf.mxu0
  %2095 = vdwg.mxu0
  %2096 = vmatpush.bf16.msra.mxu0 %v1310
  %2097 = vmatpush.bf16.msra.mxu0 %v1308
  %2098 = vmatpush.bf16.msra.mxu0 %v1306
  %2099 = vmatpush.bf16.msra.mxu0 %v1304
  %2100 = vmatpush.bf16.msra.mxu0 %v1302
  %2101 = vmatpush.bf16.msra.mxu0 %v1300
  %2102 = vmatpush.bf16.msra.mxu0 %v1298
  %2103 = vmatpush.bf16.msra.mxu0 %v1296
  %2104 = vmatmul.bf16.gmra.mxu0 %v350
  %v2105 = vpop.f32.mrf.mxu0
  %v2106 = vadd.f32 %v2093, %v2105
  %v2107 = vpop.f32.mrf.mxu0
  %2108 = vdwg.mxu0
  %2109 = vmatpush.bf16.msra.mxu0 %v1326
  %2110 = vmatpush.bf16.msra.mxu0 %v1324
  %2111 = vmatpush.bf16.msra.mxu0 %v1322
  %2112 = vmatpush.bf16.msra.mxu0 %v1320
  %2113 = vmatpush.bf16.msra.mxu0 %v1318
  %2114 = vmatpush.bf16.msra.mxu0 %v1316
  %2115 = vmatpush.bf16.msra.mxu0 %v1314
  %2116 = vmatpush.bf16.msra.mxu0 %v1312
  %2117 = vmatmul.bf16.gmra.mxu0 %v351
  %v2118 = vpop.f32.mrf.mxu0
  %v2119 = vadd.f32 %v2106, %v2118
  %v2120 = vpop.f32.mrf.mxu0
  %2121 = vdwg.mxu0
  %2122 = vmatpush.bf16.msra.mxu0 %v1342
  %2123 = vmatpush.bf16.msra.mxu0 %v1340
  %2124 = vmatpush.bf16.msra.mxu0 %v1338
  %2125 = vmatpush.bf16.msra.mxu0 %v1336
  %2126 = vmatpush.bf16.msra.mxu0 %v1334
  %2127 = vmatpush.bf16.msra.mxu0 %v1332
  %2128 = vmatpush.bf16.msra.mxu0 %v1330
  %2129 = vmatpush.bf16.msra.mxu0 %v1328
  %2130 = vmatmul.bf16.gmra.mxu0 %v352
  %v2131 = vpop.f32.mrf.mxu0
  %v2132 = vadd.f32 %v2119, %v2131
  %v2133 = vpop.f32.mrf.mxu0
  %2134 = vdwg.mxu0
  %2135 = vmatpush.bf16.msra.mxu0 %v1358
  %2136 = vmatpush.bf16.msra.mxu0 %v1356
  %2137 = vmatpush.bf16.msra.mxu0 %v1354
  %2138 = vmatpush.bf16.msra.mxu0 %v1352
  %2139 = vmatpush.bf16.msra.mxu0 %v1350
  %2140 = vmatpush.bf16.msra.mxu0 %v1348
  %2141 = vmatpush.bf16.msra.mxu0 %v1346
  %2142 = vmatpush.bf16.msra.mxu0 %v1344
  %2143 = vmatmul.bf16.gmra.mxu0 %v353
  %v2144 = vpop.f32.mrf.mxu0
  %v2145 = vadd.f32 %v2132, %v2144
  %v2146 = vpop.f32.mrf.mxu0
  %2147 = vdwg.mxu0
  %2148 = vmatpush.bf16.msra.mxu0 %v1374
  %2149 = vmatpush.bf16.msra.mxu0 %v1372
  %2150 = vmatpush.bf16.msra.mxu0 %v1370
  %2151 = vmatpush.bf16.msra.mxu0 %v1368
  %2152 = vmatpush.bf16.msra.mxu0 %v1366
  %2153 = vmatpush.bf16.msra.mxu0 %v1364
  %2154 = vmatpush.bf16.msra.mxu0 %v1362
  %2155 = vmatpush.bf16.msra.mxu0 %v1360
  %2156 = vmatmul.bf16.gmra.mxu0 %v354
  %v2157 = vpop.f32.mrf.mxu0
  %v2158 = vadd.f32 %v2145, %v2157
  %v2159 = vpop.f32.mrf.mxu0
  %2160 = vdwg.mxu0
  %2161 = vmatpush.bf16.msra.mxu0 %v1390
  %2162 = vmatpush.bf16.msra.mxu0 %v1388
  %2163 = vmatpush.bf16.msra.mxu0 %v1386
  %2164 = vmatpush.bf16.msra.mxu0 %v1384
  %2165 = vmatpush.bf16.msra.mxu0 %v1382
  %2166 = vmatpush.bf16.msra.mxu0 %v1380
  %2167 = vmatpush.bf16.msra.mxu0 %v1378
  %2168 = vmatpush.bf16.msra.mxu0 %v1376
  %2169 = vmatmul.bf16.gmra.mxu0 %v355
  %v2170 = vpop.f32.mrf.mxu0
  %v2171 = vadd.f32 %v2158, %v2170
  %v2172 = vpop.f32.mrf.mxu0
  %2173 = vdwg.mxu0
  %2174 = vmatpush.bf16.msra.mxu0 %v1406
  %2175 = vmatpush.bf16.msra.mxu0 %v1404
  %2176 = vmatpush.bf16.msra.mxu0 %v1402
  %2177 = vmatpush.bf16.msra.mxu0 %v1400
  %2178 = vmatpush.bf16.msra.mxu0 %v1398
  %2179 = vmatpush.bf16.msra.mxu0 %v1396
  %2180 = vmatpush.bf16.msra.mxu0 %v1394
  %2181 = vmatpush.bf16.msra.mxu0 %v1392
  %2182 = vmatmul.bf16.gmra.mxu0 %v356
  %v2183 = vpop.f32.mrf.mxu0
  %v2184 = vadd.f32 %v2171, %v2183
  %v2185 = vpop.f32.mrf.mxu0
  %2186 = vdwg.mxu0
  %2187 = vmatpush.bf16.msra.mxu0 %v1422
  %2188 = vmatpush.bf16.msra.mxu0 %v1420
  %2189 = vmatpush.bf16.msra.mxu0 %v1418
  %2190 = vmatpush.bf16.msra.mxu0 %v1416
  %2191 = vmatpush.bf16.msra.mxu0 %v1414
  %2192 = vmatpush.bf16.msra.mxu0 %v1412
  %2193 = vmatpush.bf16.msra.mxu0 %v1410
  %2194 = vmatpush.bf16.msra.mxu0 %v1408
  %2195 = vmatmul.bf16.gmra.mxu0 %v357
  %v2196 = vpop.f32.mrf.mxu0
  %v2197 = vadd.f32 %v2184, %v2196
  %v2198 = vpop.f32.mrf.mxu0
  %2199 = vdwg.mxu0
  %2200 = vmatpush.bf16.msra.mxu0 %v1438
  %2201 = vmatpush.bf16.msra.mxu0 %v1436
  %2202 = vmatpush.bf16.msra.mxu0 %v1434
  %2203 = vmatpush.bf16.msra.mxu0 %v1432
  %2204 = vmatpush.bf16.msra.mxu0 %v1430
  %2205 = vmatpush.bf16.msra.mxu0 %v1428
  %2206 = vmatpush.bf16.msra.mxu0 %v1426
  %2207 = vmatpush.bf16.msra.mxu0 %v1424
  %2208 = vmatmul.bf16.gmra.mxu0 %v358
  %v2209 = vpop.f32.mrf.mxu0
  %v2210 = vadd.f32 %v2197, %v2209
  %v2211 = vpop.f32.mrf.mxu0
  %2212 = vdwg.mxu0
  %2213 = vmatpush.bf16.msra.mxu0 %v1454
  %2214 = vmatpush.bf16.msra.mxu0 %v1452
  %2215 = vmatpush.bf16.msra.mxu0 %v1450
  %2216 = vmatpush.bf16.msra.mxu0 %v1448
  %2217 = vmatpush.bf16.msra.mxu0 %v1446
  %2218 = vmatpush.bf16.msra.mxu0 %v1444
  %2219 = vmatpush.bf16.msra.mxu0 %v1442
  %2220 = vmatpush.bf16.msra.mxu0 %v1440
  %2221 = vmatmul.bf16.gmra.mxu0 %v359
  %v2222 = vpop.f32.mrf.mxu0
  %v2223 = vadd.f32 %v2210, %v2222
  %v2224 = vpop.f32.mrf.mxu0
  %2225 = vdwg.mxu0
  %2226 = vmatpush.bf16.msra.mxu0 %v1470
  %2227 = vmatpush.bf16.msra.mxu0 %v1468
  %2228 = vmatpush.bf16.msra.mxu0 %v1466
  %2229 = vmatpush.bf16.msra.mxu0 %v1464
  %2230 = vmatpush.bf16.msra.mxu0 %v1462
  %2231 = vmatpush.bf16.msra.mxu0 %v1460
  %2232 = vmatpush.bf16.msra.mxu0 %v1458
  %2233 = vmatpush.bf16.msra.mxu0 %v1456
  %2234 = vmatmul.bf16.gmra.mxu0 %v360
  %v2235 = vpop.f32.mrf.mxu0
  %v2236 = vadd.f32 %v2223, %v2235
  %v2237 = vpop.f32.mrf.mxu0
  %2238 = vdwg.mxu0
  %2239 = vmatpush.bf16.msra.mxu0 %v1486
  %2240 = vmatpush.bf16.msra.mxu0 %v1484
  %2241 = vmatpush.bf16.msra.mxu0 %v1482
  %2242 = vmatpush.bf16.msra.mxu0 %v1480
  %2243 = vmatpush.bf16.msra.mxu0 %v1478
  %2244 = vmatpush.bf16.msra.mxu0 %v1476
  %2245 = vmatpush.bf16.msra.mxu0 %v1474
  %2246 = vmatpush.bf16.msra.mxu0 %v1472
  %2247 = vmatmul.bf16.gmra.mxu0 %v361
  %v2248 = vpop.f32.mrf.mxu0
  %v2249 = vadd.f32 %v2236, %v2248
  %v2250 = vpop.f32.mrf.mxu0
  %2251 = vdwg.mxu0
  %2252 = vmatpush.bf16.msra.mxu0 %v1502
  %2253 = vmatpush.bf16.msra.mxu0 %v1500
  %2254 = vmatpush.bf16.msra.mxu0 %v1498
  %2255 = vmatpush.bf16.msra.mxu0 %v1496
  %2256 = vmatpush.bf16.msra.mxu0 %v1494
  %2257 = vmatpush.bf16.msra.mxu0 %v1492
  %2258 = vmatpush.bf16.msra.mxu0 %v1490
  %2259 = vmatpush.bf16.msra.mxu0 %v1488
  %2260 = vmatmul.bf16.gmra.mxu0 %v362
  %v2261 = vpop.f32.mrf.mxu0
  %v2262 = vadd.f32 %v2249, %v2261
  %v2263 = vpop.f32.mrf.mxu0
  %2264 = vdwg.mxu0
  %2265 = vmatpush.bf16.msra.mxu0 %v1518
  %2266 = vmatpush.bf16.msra.mxu0 %v1516
  %2267 = vmatpush.bf16.msra.mxu0 %v1514
  %2268 = vmatpush.bf16.msra.mxu0 %v1512
  %2269 = vmatpush.bf16.msra.mxu0 %v1510
  %2270 = vmatpush.bf16.msra.mxu0 %v1508
  %2271 = vmatpush.bf16.msra.mxu0 %v1506
  %2272 = vmatpush.bf16.msra.mxu0 %v1504
  %2273 = vmatmul.bf16.gmra.mxu0 %v363
  %v2274 = vpop.f32.mrf.mxu0
  %v2275 = vadd.f32 %v2262, %v2274
  %v2276 = vpop.f32.mrf.mxu0
  %2277 = vdwg.mxu0
  %2278 = vmatpush.bf16.msra.mxu0 %v1534
  %2279 = vmatpush.bf16.msra.mxu0 %v1532
  %2280 = vmatpush.bf16.msra.mxu0 %v1530
  %2281 = vmatpush.bf16.msra.mxu0 %v1528
  %2282 = vmatpush.bf16.msra.mxu0 %v1526
  %2283 = vmatpush.bf16.msra.mxu0 %v1524
  %2284 = vmatpush.bf16.msra.mxu0 %v1522
  %2285 = vmatpush.bf16.msra.mxu0 %v1520
  %2286 = vmatmul.bf16.gmra.mxu0 %v364
  %v2287 = vpop.f32.mrf.mxu0
  %v2288 = vadd.f32 %v2275, %v2287
  %v2289 = vpop.f32.mrf.mxu0
  %2290 = vdwg.mxu0
  %v2291 = vld [vmem:[%s3] sm:$0xff]
  %v2292 = vunpack.c.l.bf16 %v2291
  %v2293 = vunpack.c.h.bf16 %v2291
  %v2294 = vadd.f32 %v2054, %v2292
  %v2295 = vadd.f32 %v2288, %v2293
  %v2296 = vmax.f32 %v2294, 0.0
  %v2297 = vmax.f32 %v2295, 0.0
  %v2298 = vpack.c.bf16 %v2297, %v2296
  %2299 = vst [vmem:[%s4] sm:$0xff] %v2298
  // Predicated region
  $region18: #{resnet_encoder_forward.27} parent=0 // pred_check
    _
  $region19: #{resnet_encoder_forward.27} parent=0 // pred_check_branch
    %2301 = sbr.rel (0) target = $region21
  $region20: #{resnet_encoder_forward.27} parent=0 // pred_region
    _
  $region21: #{resnet_encoder_forward.27} parent=0 // pred_fallthru
    _
  // Predicated region
  $region22: #{resnet_encoder_forward.27} parent=0 // pred_check
    _
  $region23: #{resnet_encoder_forward.27} parent=0 // pred_check_branch
    %2303 = sbr.rel (0) target = $region25
  $region24: #{resnet_encoder_forward.27} parent=0 // pred_region
    _
  $region25: #{resnet_encoder_forward.27} parent=0 // pred_fallthru
    _

// kernel: resnet_encoder_forward.28
$region0: #{resnet_encoder_forward.28}
  #allocation0 [shape = 'u32[]', space=smem, size = 0x4, offset = 0x4, fixed_abs, tag = 'smem constant byte address 0x4 - core index']
  #allocation1 [shape = 'u32[72,128]{1,0:T(1,128)}', space=vmem, size = 0x9000, scoped, tag = 'internal scratch']
  %s0 = inlined_call_operand.vmem [shape: bf16[8,2304], index: 0, kind: input, shape index: {}]
  %s1 = inlined_call_operand.vmem [shape: bf16[2304,256], index: 1, kind: input, shape index: {}]
  %s2 = inlined_call_operand.vmem [shape: f32[1,256], index: 2, kind: input, shape index: {}]
  %s3 = inlined_call_operand.vmem [shape: bf16[8,256], index: 3, kind: output, shape index: {}]
  %s4 = sld [smem:[#allocation0]]
  $region22: #{resnet_encoder_forward.28} parent=0
    _
  %s6 = ssub.s32 1, %s4
  %s7 = scalar_select 0, %s6, %s4
  // Predicated region
  $region2: #{resnet_encoder_forward.28} parent=0 // pred_check
    _
  $region3: #{resnet_encoder_forward.28} parent=0 // pred_check_branch
    %9 = sbr.rel (0) target = $region5
  $region4: #{resnet_encoder_forward.28} parent=0 // pred_region
    _
  $region5: #{resnet_encoder_forward.28} parent=0 // pred_fallthru
    _
  // Predicated region
  $region6: #{resnet_encoder_forward.28} parent=0 // pred_check
    _
  $region7: #{resnet_encoder_forward.28} parent=0 // pred_check_branch
    %11 = sbr.rel (0) target = $region9
  $region8: #{resnet_encoder_forward.28} parent=0 // pred_region
    _
  $region9: #{resnet_encoder_forward.28} parent=0 // pred_fallthru
    _
  // Predicated region
  $region10: #{resnet_encoder_forward.28} parent=0 // pred_check
    _
  $region11: #{resnet_encoder_forward.28} parent=0 // pred_check_branch
    %13 = sbr.rel (0) target = $region13
  $region12: #{resnet_encoder_forward.28} parent=0 // pred_region
    _
  $region13: #{resnet_encoder_forward.28} parent=0 // pred_fallthru
    _
  %v14 = vld [vmem:[%s0] sm:$0xff]
  %v15 = vld [vmem:[%s0 + $0x8] sm:$0xff]
  %v16 = vld [vmem:[%s0 + $0x10] sm:$0xff]
  %v17 = vld [vmem:[%s0 + $0x18] sm:$0xff]
  %v18 = vld [vmem:[%s0 + $0x20] sm:$0xff]
  %v19 = vld [vmem:[%s0 + $0x28] sm:$0xff]
  %v20 = vld [vmem:[%s0 + $0x30] sm:$0xff]
  %v21 = vld [vmem:[%s0 + $0x38] sm:$0xff]
  %v22 = vld [vmem:[%s0 + $0x40] sm:$0xff]
  %v23 = vld [vmem:[%s1] sm:$0xff]
  %v24 = vld [vmem:[%s1 + $0x8] sm:$0xff]
  %v25 = vld [vmem:[%s1 + $0x10] sm:$0xff]
  %v26 = vld [vmem:[%s1 + $0x18] sm:$0xff]
  %v27 = vld [vmem:[%s1 + $0x20] sm:$0xff]
  %v28 = vld [vmem:[%s1 + $0x28] sm:$0xff]
  %v29 = vld [vmem:[%s1 + $0x30] sm:$0xff]
  %v30 = vld [vmem:[%s1 + $0x38] sm:$0xff]
  %v31 = vld [vmem:[%s1 + $0x40] sm:$0xff]
  %v32 = vld [vmem:[%s1 + $0x48] sm:$0xff]
  %v33 = vld [vmem:[%s1 + $0x50] sm:$0xff]
  %v34 = vld [vmem:[%s1 + $0x58] sm:$0xff]
  %v35 = vld [vmem:[%s1 + $0x60] sm:$0xff]
  %v36 = vld [vmem:[%s1 + $0x68] sm:$0xff]
  %v37 = vld [vmem:[%s1 + $0x70] sm:$0xff]
  %v38 = vld [vmem:[%s1 + $0x78] sm:$0xff]
  %v39 = vld [vmem:[%s1 + $0x80] sm:$0xff]
  %v40 = vld [vmem:[%s1 + $0x88] sm:$0xff]
  %v41 = vld [vmem:[%s1 + $0x90] sm:$0xff]
  %v42 = vld [vmem:[%s1 + $0x98] sm:$0xff]
  %v43 = vld [vmem:[%s1 + $0xa0] sm:$0xff]
  %v44 = vld [vmem:[%s1 + $0xa8] sm:$0xff]
  %v45 = vld [vmem:[%s1 + $0xb0] sm:$0xff]
  %v46 = vld [vmem:[%s1 + $0xb8] sm:$0xff]
  %v47 = vld [vmem:[%s1 + $0xc0] sm:$0xff]
  %v48 = vld [vmem:[%s1 + $0xc8] sm:$0xff]
  %v49 = vld [vmem:[%s1 + $0xd0] sm:$0xff]
  %v50 = vld [vmem:[%s1 + $0xd8] sm:$0xff]
  %v51 = vld [vmem:[%s1 + $0xe0] sm:$0xff]
  %v52 = vld [vmem:[%s1 + $0xe8] sm:$0xff]
  %v53 = vld [vmem:[%s1 + $0xf0] sm:$0xff]
  %v54 = vld [vmem:[%s1 + $0xf8] sm:$0xff]
  %v55 = vld [vmem:[%s1 + $0x100] sm:$0xff]
  %v56 = vld [vmem:[%s1 + $0x108] sm:$0xff]
  %v57 = vld [vmem:[%s1 + $0x110] sm:$0xff]
  %v58 = vld [vmem:[%s1 + $0x118] sm:$0xff]
  %v59 = vld [vmem:[%s1 + $0x120] sm:$0xff]
  %v60 = vld [vmem:[%s1 + $0x128] sm:$0xff]
  %v61 = vld [vmem:[%s1 + $0x130] sm:$0xff]
  %v62 = vld [vmem:[%s1 + $0x138] sm:$0xff]
  %v63 = vld [vmem:[%s1 + $0x140] sm:$0xff]
  %v64 = vld [vmem:[%s1 + $0x148] sm:$0xff]
  %v65 = vld [vmem:[%s1 + $0x150] sm:$0xff]
  %v66 = vld [vmem:[%s1 + $0x158] sm:$0xff]
  %v67 = vld [vmem:[%s1 + $0x160] sm:$0xff]
  %v68 = vld [vmem:[%s1 + $0x168] sm:$0xff]
  %v69 = vld [vmem:[%s1 + $0x170] sm:$0xff]
  %v70 = vld [vmem:[%s1 + $0x178] sm:$0xff]
  %v71 = vld [vmem:[%s1 + $0x180] sm:$0xff]
  %v72 = vld [vmem:[%s1 + $0x188] sm:$0xff]
  %v73 = vld [vmem:[%s1 + $0x190] sm:$0xff]
  %v74 = vld [vmem:[%s1 + $0x198] sm:$0xff]
  %v75 = vld [vmem:[%s1 + $0x1a0] sm:$0xff]
  %v76 = vld [vmem:[%s1 + $0x1a8] sm:$0xff]
  %v77 = vld [vmem:[%s1 + $0x1b0] sm:$0xff]
  %v78 = vld [vmem:[%s1 + $0x1b8] sm:$0xff]
  %v79 = vld [vmem:[%s1 + $0x1c0] sm:$0xff]
  %v80 = vld [vmem:[%s1 + $0x1c8] sm:$0xff]
  %v81 = vld [vmem:[%s1 + $0x1d0] sm:$0xff]
  %v82 = vld [vmem:[%s1 + $0x1d8] sm:$0xff]
  %v83 = vld [vmem:[%s1 + $0x1e0] sm:$0xff]
  %v84 = vld [vmem:[%s1 + $0x1e8] sm:$0xff]
  %v85 = vld [vmem:[%s1 + $0x1f0] sm:$0xff]
  %v86 = vld [vmem:[%s1 + $0x1f8] sm:$0xff]
  %v87 = vld [vmem:[%s1 + $0x200] sm:$0xff]
  %v88 = vld [vmem:[%s1 + $0x208] sm:$0xff]
  %v89 = vld [vmem:[%s1 + $0x210] sm:$0xff]
  %v90 = vld [vmem:[%s1 + $0x218] sm:$0xff]
  %v91 = vld [vmem:[%s1 + $0x220] sm:$0xff]
  %v92 = vld [vmem:[%s1 + $0x228] sm:$0xff]
  %v93 = vld [vmem:[%s1 + $0x230] sm:$0xff]
  %v94 = vld [vmem:[%s1 + $0x238] sm:$0xff]
  %v95 = vld [vmem:[%s1 + $0x240] sm:$0xff]
  %v96 = vld [vmem:[%s1 + $0x248] sm:$0xff]
  %v97 = vld [vmem:[%s1 + $0x250] sm:$0xff]
  %v98 = vld [vmem:[%s1 + $0x258] sm:$0xff]
  %v99 = vld [vmem:[%s1 + $0x260] sm:$0xff]
  %v100 = vld [vmem:[%s1 + $0x268] sm:$0xff]
  %v101 = vld [vmem:[%s1 + $0x270] sm:$0xff]
  %v102 = vld [vmem:[%s1 + $0x278] sm:$0xff]
  %v103 = vld [vmem:[%s1 + $0x280] sm:$0xff]
  %v104 = vld [vmem:[%s1 + $0x288] sm:$0xff]
  %v105 = vld [vmem:[%s1 + $0x290] sm:$0xff]
  %v106 = vld [vmem:[%s1 + $0x298] sm:$0xff]
  %v107 = vld [vmem:[%s1 + $0x2a0] sm:$0xff]
  %v108 = vld [vmem:[%s1 + $0x2a8] sm:$0xff]
  %v109 = vld [vmem:[%s1 + $0x2b0] sm:$0xff]
  %v110 = vld [vmem:[%s1 + $0x2b8] sm:$0xff]
  %v111 = vld [vmem:[%s1 + $0x2c0] sm:$0xff]
  %v112 = vld [vmem:[%s1 + $0x2c8] sm:$0xff]
  %v113 = vld [vmem:[%s1 + $0x2d0] sm:$0xff]
  %v114 = vld [vmem:[%s1 + $0x2d8] sm:$0xff]
  %v115 = vld [vmem:[%s1 + $0x2e0] sm:$0xff]
  %v116 = vld [vmem:[%s1 + $0x2e8] sm:$0xff]
  %v117 = vld [vmem:[%s1 + $0x2f0] sm:$0xff]
  %v118 = vld [vmem:[%s1 + $0x2f8] sm:$0xff]
  %v119 = vld [vmem:[%s1 + $0x300] sm:$0xff]
  %v120 = vld [vmem:[%s1 + $0x308] sm:$0xff]
  %v121 = vld [vmem:[%s1 + $0x310] sm:$0xff]
  %v122 = vld [vmem:[%s1 + $0x318] sm:$0xff]
  %v123 = vld [vmem:[%s1 + $0x320] sm:$0xff]
  %v124 = vld [vmem:[%s1 + $0x328] sm:$0xff]
  %v125 = vld [vmem:[%s1 + $0x330] sm:$0xff]
  %v126 = vld [vmem:[%s1 + $0x338] sm:$0xff]
  %v127 = vld [vmem:[%s1 + $0x340] sm:$0xff]
  %v128 = vld [vmem:[%s1 + $0x348] sm:$0xff]
  %v129 = vld [vmem:[%s1 + $0x350] sm:$0xff]
  %v130 = vld [vmem:[%s1 + $0x358] sm:$0xff]
  %v131 = vld [vmem:[%s1 + $0x360] sm:$0xff]
  %v132 = vld [vmem:[%s1 + $0x368] sm:$0xff]
  %v133 = vld [vmem:[%s1 + $0x370] sm:$0xff]
  %v134 = vld [vmem:[%s1 + $0x378] sm:$0xff]
  %v135 = vld [vmem:[%s1 + $0x380] sm:$0xff]
  %v136 = vld [vmem:[%s1 + $0x388] sm:$0xff]
  %v137 = vld [vmem:[%s1 + $0x390] sm:$0xff]
  %v138 = vld [vmem:[%s1 + $0x398] sm:$0xff]
  %v139 = vld [vmem:[%s1 + $0x3a0] sm:$0xff]
  %v140 = vld [vmem:[%s1 + $0x3a8] sm:$0xff]
  %v141 = vld [vmem:[%s1 + $0x3b0] sm:$0xff]
  %v142 = vld [vmem:[%s1 + $0x3b8] sm:$0xff]
  %v143 = vld [vmem:[%s1 + $0x3c0] sm:$0xff]
  %v144 = vld [vmem:[%s1 + $0x3c8] sm:$0xff]
  %v145 = vld [vmem:[%s1 + $0x3d0] sm:$0xff]
  %v146 = vld [vmem:[%s1 + $0x3d8] sm:$0xff]
  %v147 = vld [vmem:[%s1 + $0x3e0] sm:$0xff]
  %v148 = vld [vmem:[%s1 + $0x3e8] sm:$0xff]
  %v149 = vld [vmem:[%s1 + $0x3f0] sm:$0xff]
  %v150 = vld [vmem:[%s1 + $0x3f8] sm:$0xff]
  %v151 = vld [vmem:[%s1 + $0x400] sm:$0xff]
  %v152 = vld [vmem:[%s1 + $0x408] sm:$0xff]
  %v153 = vld [vmem:[%s1 + $0x410] sm:$0xff]
  %v154 = vld [vmem:[%s1 + $0x418] sm:$0xff]
  %v155 = vld [vmem:[%s1 + $0x420] sm:$0xff]
  %v156 = vld [vmem:[%s1 + $0x428] sm:$0xff]
  %v157 = vld [vmem:[%s1 + $0x430] sm:$0xff]
  %v158 = vld [vmem:[%s1 + $0x438] sm:$0xff]
  %v159 = vld [vmem:[%s1 + $0x440] sm:$0xff]
  %v160 = vld [vmem:[%s1 + $0x448] sm:$0xff]
  %v161 = vld [vmem:[%s1 + $0x450] sm:$0xff]
  %v162 = vld [vmem:[%s1 + $0x458] sm:$0xff]
  %v163 = vld [vmem:[%s1 + $0x460] sm:$0xff]
  %v164 = vld [vmem:[%s1 + $0x468] sm:$0xff]
  %v165 = vld [vmem:[%s1 + $0x470] sm:$0xff]
  %v166 = vld [vmem:[%s1 + $0x478] sm:$0xff]
  %v167 = vld [vmem:[%s1 + $0x480] sm:$0xff]
  %v168 = vld [vmem:[%s1 + $0x488] sm:$0xff]
  %v169 = vld [vmem:[%s1 + $0x490] sm:$0xff]
  %v170 = vld [vmem:[%s1 + $0x498] sm:$0xff]
  %v171 = vld [vmem:[%s1 + $0x4a0] sm:$0xff]
  %v172 = vld [vmem:[%s1 + $0x4a8] sm:$0xff]
  %v173 = vld [vmem:[%s1 + $0x4b0] sm:$0xff]
  %v174 = vld [vmem:[%s1 + $0x4b8] sm:$0xff]
  %v175 = vld [vmem:[%s1 + $0x4c0] sm:$0xff]
  %v176 = vld [vmem:[%s1 + $0x4c8] sm:$0xff]
  %v177 = vld [vmem:[%s1 + $0x4d0] sm:$0xff]
  %v178 = vld [vmem:[%s1 + $0x4d8] sm:$0xff]
  %v179 = vld [vmem:[%s1 + $0x4e0] sm:$0xff]
  %v180 = vld [vmem:[%s1 + $0x4e8] sm:$0xff]
  %v181 = vld [vmem:[%s1 + $0x4f0] sm:$0xff]
  %v182 = vld [vmem:[%s1 + $0x4f8] sm:$0xff]
  %v183 = vld [vmem:[%s1 + $0x500] sm:$0xff]
  %v184 = vld [vmem:[%s1 + $0x508] sm:$0xff]
  %v185 = vld [vmem:[%s1 + $0x510] sm:$0xff]
  %v186 = vld [vmem:[%s1 + $0x518] sm:$0xff]
  %v187 = vld [vmem:[%s1 + $0x520] sm:$0xff]
  %v188 = vld [vmem:[%s1 + $0x528] sm:$0xff]
  %v189 = vld [vmem:[%s1 + $0x530] sm:$0xff]
  %v190 = vld [vmem:[%s1 + $0x538] sm:$0xff]
  %v191 = vld [vmem:[%s1 + $0x540] sm:$0xff]
  %v192 = vld [vmem:[%s1 + $0x548] sm:$0xff]
  %v193 = vld [vmem:[%s1 + $0x550] sm:$0xff]
  %v194 = vld [vmem:[%s1 + $0x558] sm:$0xff]
  %v195 = vld [vmem:[%s1 + $0x560] sm:$0xff]
  %v196 = vld [vmem:[%s1 + $0x568] sm:$0xff]
  %v197 = vld [vmem:[%s1 + $0x570] sm:$0xff]
  %v198 = vld [vmem:[%s1 + $0x578] sm:$0xff]
  %v199 = vld [vmem:[%s1 + $0x580] sm:$0xff]
  %v200 = vld [vmem:[%s1 + $0x588] sm:$0xff]
  %v201 = vld [vmem:[%s1 + $0x590] sm:$0xff]
  %v202 = vld [vmem:[%s1 + $0x598] sm:$0xff]
  %v203 = vld [vmem:[%s1 + $0x5a0] sm:$0xff]
  %v204 = vld [vmem:[%s1 + $0x5a8] sm:$0xff]
  %v205 = vld [vmem:[%s1 + $0x5b0] sm:$0xff]
  %v206 = vld [vmem:[%s1 + $0x5b8] sm:$0xff]
  %v207 = vld [vmem:[%s1 + $0x5c0] sm:$0xff]
  %v208 = vld [vmem:[%s1 + $0x5c8] sm:$0xff]
  %v209 = vld [vmem:[%s1 + $0x5d0] sm:$0xff]
  %v210 = vld [vmem:[%s1 + $0x5d8] sm:$0xff]
  %v211 = vld [vmem:[%s1 + $0x5e0] sm:$0xff]
  %v212 = vld [vmem:[%s1 + $0x5e8] sm:$0xff]
  %v213 = vld [vmem:[%s1 + $0x5f0] sm:$0xff]
  %v214 = vld [vmem:[%s1 + $0x5f8] sm:$0xff]
  %v215 = vld [vmem:[%s1 + $0x600] sm:$0xff]
  %v216 = vld [vmem:[%s1 + $0x608] sm:$0xff]
  %v217 = vld [vmem:[%s1 + $0x610] sm:$0xff]
  %v218 = vld [vmem:[%s1 + $0x618] sm:$0xff]
  %v219 = vld [vmem:[%s1 + $0x620] sm:$0xff]
  %v220 = vld [vmem:[%s1 + $0x628] sm:$0xff]
  %v221 = vld [vmem:[%s1 + $0x630] sm:$0xff]
  %v222 = vld [vmem:[%s1 + $0x638] sm:$0xff]
  %v223 = vld [vmem:[%s1 + $0x640] sm:$0xff]
  %v224 = vld [vmem:[%s1 + $0x648] sm:$0xff]
  %v225 = vld [vmem:[%s1 + $0x650] sm:$0xff]
  %v226 = vld [vmem:[%s1 + $0x658] sm:$0xff]
  %v227 = vld [vmem:[%s1 + $0x660] sm:$0xff]
  %v228 = vld [vmem:[%s1 + $0x668] sm:$0xff]
  %v229 = vld [vmem:[%s1 + $0x670] sm:$0xff]
  %v230 = vld [vmem:[%s1 + $0x678] sm:$0xff]
  %v231 = vld [vmem:[%s1 + $0x680] sm:$0xff]
  %v232 = vld [vmem:[%s1 + $0x688] sm:$0xff]
  %v233 = vld [vmem:[%s1 + $0x690] sm:$0xff]
  %v234 = vld [vmem:[%s1 + $0x698] sm:$0xff]
  %v235 = vld [vmem:[%s1 + $0x6a0] sm:$0xff]
  %v236 = vld [vmem:[%s1 + $0x6a8] sm:$0xff]
  %v237 = vld [vmem:[%s1 + $0x6b0] sm:$0xff]
  %v238 = vld [vmem:[%s1 + $0x6b8] sm:$0xff]
  %v239 = vld [vmem:[%s1 + $0x6c0] sm:$0xff]
  %v240 = vld [vmem:[%s1 + $0x6c8] sm:$0xff]
  %v241 = vld [vmem:[%s1 + $0x6d0] sm:$0xff]
  %v242 = vld [vmem:[%s1 + $0x6d8] sm:$0xff]
  %v243 = vld [vmem:[%s1 + $0x6e0] sm:$0xff]
  %v244 = vld [vmem:[%s1 + $0x6e8] sm:$0xff]
  %v245 = vld [vmem:[%s1 + $0x6f0] sm:$0xff]
  %v246 = vld [vmem:[%s1 + $0x6f8] sm:$0xff]
  %v247 = vld [vmem:[%s1 + $0x700] sm:$0xff]
  %v248 = vld [vmem:[%s1 + $0x708] sm:$0xff]
  %v249 = vld [vmem:[%s1 + $0x710] sm:$0xff]
  %v250 = vld [vmem:[%s1 + $0x718] sm:$0xff]
  %v251 = vld [vmem:[%s1 + $0x720] sm:$0xff]
  %v252 = vld [vmem:[%s1 + $0x728] sm:$0xff]
  %v253 = vld [vmem:[%s1 + $0x730] sm:$0xff]
  %v254 = vld [vmem:[%s1 + $0x738] sm:$0xff]
  %v255 = vld [vmem:[%s1 + $0x740] sm:$0xff]
  %v256 = vld [vmem:[%s1 + $0x748] sm:$0xff]
  %v257 = vld [vmem:[%s1 + $0x750] sm:$0xff]
  %v258 = vld [vmem:[%s1 + $0x758] sm:$0xff]
  %v259 = vld [vmem:[%s1 + $0x760] sm:$0xff]
  %v260 = vld [vmem:[%s1 + $0x768] sm:$0xff]
  %v261 = vld [vmem:[%s1 + $0x770] sm:$0xff]
  %v262 = vld [vmem:[%s1 + $0x778] sm:$0xff]
  %v263 = vld [vmem:[%s1 + $0x780] sm:$0xff]
  %v264 = vld [vmem:[%s1 + $0x788] sm:$0xff]
  %v265 = vld [vmem:[%s1 + $0x790] sm:$0xff]
  %v266 = vld [vmem:[%s1 + $0x798] sm:$0xff]
  %v267 = vld [vmem:[%s1 + $0x7a0] sm:$0xff]
  %v268 = vld [vmem:[%s1 + $0x7a8] sm:$0xff]
  %v269 = vld [vmem:[%s1 + $0x7b0] sm:$0xff]
  %v270 = vld [vmem:[%s1 + $0x7b8] sm:$0xff]
  %v271 = vld [vmem:[%s1 + $0x7c0] sm:$0xff]
  %v272 = vld [vmem:[%s1 + $0x7c8] sm:$0xff]
  %v273 = vld [vmem:[%s1 + $0x7d0] sm:$0xff]
  %v274 = vld [vmem:[%s1 + $0x7d8] sm:$0xff]
  %v275 = vld [vmem:[%s1 + $0x7e0] sm:$0xff]
  %v276 = vld [vmem:[%s1 + $0x7e8] sm:$0xff]
  %v277 = vld [vmem:[%s1 + $0x7f0] sm:$0xff]
  %v278 = vld [vmem:[%s1 + $0x7f8] sm:$0xff]
  %v279 = vld [vmem:[%s1 + $0x800] sm:$0xff]
  %v280 = vld [vmem:[%s1 + $0x808] sm:$0xff]
  %v281 = vld [vmem:[%s1 + $0x810] sm:$0xff]
  %v282 = vld [vmem:[%s1 + $0x818] sm:$0xff]
  %v283 = vld [vmem:[%s1 + $0x820] sm:$0xff]
  %v284 = vld [vmem:[%s1 + $0x828] sm:$0xff]
  %v285 = vld [vmem:[%s1 + $0x830] sm:$0xff]
  %v286 = vld [vmem:[%s1 + $0x838] sm:$0xff]
  %v287 = vld [vmem:[%s1 + $0x840] sm:$0xff]
  %v288 = vld [vmem:[%s1 + $0x848] sm:$0xff]
  %v289 = vld [vmem:[%s1 + $0x850] sm:$0xff]
  %v290 = vld [vmem:[%s1 + $0x858] sm:$0xff]
  %v291 = vld [vmem:[%s1 + $0x860] sm:$0xff]
  %v292 = vld [vmem:[%s1 + $0x868] sm:$0xff]
  %v293 = vld [vmem:[%s1 + $0x870] sm:$0xff]
  %v294 = vld [vmem:[%s1 + $0x878] sm:$0xff]
  %v295 = vld [vmem:[%s1 + $0x880] sm:$0xff]
  %v296 = vld [vmem:[%s1 + $0x888] sm:$0xff]
  %v297 = vld [vmem:[%s1 + $0x890] sm:$0xff]
  %v298 = vld [vmem:[%s1 + $0x898] sm:$0xff]
  %v299 = vld [vmem:[%s1 + $0x8a0] sm:$0xff]
  %v300 = vld [vmem:[%s1 + $0x8a8] sm:$0xff]
  %v301 = vld [vmem:[%s1 + $0x8b0] sm:$0xff]
  %v302 = vld [vmem:[%s1 + $0x8b8] sm:$0xff]
  %v303 = vld [vmem:[%s1 + $0x8c0] sm:$0xff]
  %v304 = vld [vmem:[%s1 + $0x8c8] sm:$0xff]
  %v305 = vld [vmem:[%s1 + $0x8d0] sm:$0xff]
  %v306 = vld [vmem:[%s1 + $0x8d8] sm:$0xff]
  %v307 = vld [vmem:[%s1 + $0x8e0] sm:$0xff]
  %v308 = vld [vmem:[%s1 + $0x8e8] sm:$0xff]
  %v309 = vld [vmem:[%s1 + $0x8f0] sm:$0xff]
  %v310 = vld [vmem:[%s1 + $0x8f8] sm:$0xff]
  %v311 = vld [vmem:[%s2] sm:$0x3]
  %v313 = vperm.slane %v311, 0
  %v314 = vperm.slane %v311, 1
  %v326 = vunpack.c.l.b16 %v14
  %v327 = vunpack.c.h.b16 %v14
  %v328 = vunpack.c.l.b16 %v15
  %v329 = vunpack.c.h.b16 %v15
  %v330 = vunpack.c.l.b16 %v16
  %v331 = vunpack.c.h.b16 %v16
  %v332 = vunpack.c.l.b16 %v17
  %v333 = vunpack.c.h.b16 %v17
  %v334 = vunpack.c.l.b16 %v18
  %v335 = vunpack.c.h.b16 %v18
  %v336 = vunpack.c.l.b16 %v19
  %v337 = vunpack.c.h.b16 %v19
  %v338 = vunpack.c.l.b16 %v20
  %v339 = vunpack.c.h.b16 %v20
  %v340 = vunpack.c.l.b16 %v21
  %v341 = vunpack.c.h.b16 %v21
  %v342 = vunpack.c.l.b16 %v22
  %v343 = vunpack.c.h.b16 %v22
  %v344 = vpack.c.b16 %v326, %v326
  %v345 = vpack.c.b16 %v327, %v327
  %v346 = vpack.c.b16 %v328, %v328
  %v347 = vpack.c.b16 %v329, %v329
  %v348 = vpack.c.b16 %v330, %v330
  %v349 = vpack.c.b16 %v331, %v331
  %v350 = vpack.c.b16 %v332, %v332
  %v351 = vpack.c.b16 %v333, %v333
  %v352 = vpack.c.b16 %v334, %v334
  %v353 = vpack.c.b16 %v335, %v335
  %v354 = vpack.c.b16 %v336, %v336
  %v355 = vpack.c.b16 %v337, %v337
  %v356 = vpack.c.b16 %v338, %v338
  %v357 = vpack.c.b16 %v339, %v339
  %v358 = vpack.c.b16 %v340, %v340
  %v359 = vpack.c.b16 %v341, %v341
  %v360 = vpack.c.b16 %v342, %v342
  %v361 = vpack.c.b16 %v343, %v343
  %v668 = vunpack.c.l.b16 %v23
  %v669 = vunpack.c.h.b16 %v23
  %v670 = vunpack.c.l.b16 %v24
  %v671 = vunpack.c.h.b16 %v24
  %v672 = vunpack.c.l.b16 %v25
  %v673 = vunpack.c.h.b16 %v25
  %v674 = vunpack.c.l.b16 %v26
  %v675 = vunpack.c.h.b16 %v26
  %v676 = vunpack.c.l.b16 %v27
  %v677 = vunpack.c.h.b16 %v27
  %v678 = vunpack.c.l.b16 %v28
  %v679 = vunpack.c.h.b16 %v28
  %v680 = vunpack.c.l.b16 %v29
  %v681 = vunpack.c.h.b16 %v29
  %v682 = vunpack.c.l.b16 %v30
  %v683 = vunpack.c.h.b16 %v30
  %v684 = vunpack.c.l.b16 %v31
  %v685 = vunpack.c.h.b16 %v31
  %v686 = vunpack.c.l.b16 %v32
  %v687 = vunpack.c.h.b16 %v32
  %v688 = vunpack.c.l.b16 %v33
  %v689 = vunpack.c.h.b16 %v33
  %v690 = vunpack.c.l.b16 %v34
  %v691 = vunpack.c.h.b16 %v34
  %v692 = vunpack.c.l.b16 %v35
  %v693 = vunpack.c.h.b16 %v35
  %v694 = vunpack.c.l.b16 %v36
  %v695 = vunpack.c.h.b16 %v36
  %v696 = vunpack.c.l.b16 %v37
  %v697 = vunpack.c.h.b16 %v37
  %v698 = vunpack.c.l.b16 %v38
  %v699 = vunpack.c.h.b16 %v38
  %v700 = vunpack.c.l.b16 %v39
  %v701 = vunpack.c.h.b16 %v39
  %v702 = vunpack.c.l.b16 %v40
  %v703 = vunpack.c.h.b16 %v40
  %v704 = vunpack.c.l.b16 %v41
  %v705 = vunpack.c.h.b16 %v41
  %v706 = vunpack.c.l.b16 %v42
  %v707 = vunpack.c.h.b16 %v42
  %v708 = vunpack.c.l.b16 %v43
  %v709 = vunpack.c.h.b16 %v43
  %v710 = vunpack.c.l.b16 %v44
  %v711 = vunpack.c.h.b16 %v44
  %v712 = vunpack.c.l.b16 %v45
  %v713 = vunpack.c.h.b16 %v45
  %v714 = vunpack.c.l.b16 %v46
  %v715 = vunpack.c.h.b16 %v46
  %v716 = vunpack.c.l.b16 %v47
  %v717 = vunpack.c.h.b16 %v47
  %v718 = vunpack.c.l.b16 %v48
  %v719 = vunpack.c.h.b16 %v48
  %v720 = vunpack.c.l.b16 %v49
  %v721 = vunpack.c.h.b16 %v49
  %v722 = vunpack.c.l.b16 %v50
  %v723 = vunpack.c.h.b16 %v50
  %v724 = vunpack.c.l.b16 %v51
  %v725 = vunpack.c.h.b16 %v51
  %v726 = vunpack.c.l.b16 %v52
  %v727 = vunpack.c.h.b16 %v52
  %v728 = vunpack.c.l.b16 %v53
  %v729 = vunpack.c.h.b16 %v53
  %v730 = vunpack.c.l.b16 %v54
  %v731 = vunpack.c.h.b16 %v54
  %v732 = vunpack.c.l.b16 %v55
  %v733 = vunpack.c.h.b16 %v55
  %v734 = vunpack.c.l.b16 %v56
  %v735 = vunpack.c.h.b16 %v56
  %v736 = vunpack.c.l.b16 %v57
  %v737 = vunpack.c.h.b16 %v57
  %v738 = vunpack.c.l.b16 %v58
  %v739 = vunpack.c.h.b16 %v58
  %v740 = vunpack.c.l.b16 %v59
  %v741 = vunpack.c.h.b16 %v59
  %v742 = vunpack.c.l.b16 %v60
  %v743 = vunpack.c.h.b16 %v60
  %v744 = vunpack.c.l.b16 %v61
  %v745 = vunpack.c.h.b16 %v61
  %v746 = vunpack.c.l.b16 %v62
  %v747 = vunpack.c.h.b16 %v62
  %v748 = vunpack.c.l.b16 %v63
  %v749 = vunpack.c.h.b16 %v63
  %v750 = vunpack.c.l.b16 %v64
  %v751 = vunpack.c.h.b16 %v64
  %v752 = vunpack.c.l.b16 %v65
  %v753 = vunpack.c.h.b16 %v65
  %v754 = vunpack.c.l.b16 %v66
  %v755 = vunpack.c.h.b16 %v66
  %v756 = vunpack.c.l.b16 %v67
  %v757 = vunpack.c.h.b16 %v67
  %v758 = vunpack.c.l.b16 %v68
  %v759 = vunpack.c.h.b16 %v68
  %v760 = vunpack.c.l.b16 %v69
  %v761 = vunpack.c.h.b16 %v69
  %v762 = vunpack.c.l.b16 %v70
  %v763 = vunpack.c.h.b16 %v70
  %v764 = vunpack.c.l.b16 %v71
  %v765 = vunpack.c.h.b16 %v71
  %v766 = vunpack.c.l.b16 %v72
  %v767 = vunpack.c.h.b16 %v72
  %v768 = vunpack.c.l.b16 %v73
  %v769 = vunpack.c.h.b16 %v73
  %v770 = vunpack.c.l.b16 %v74
  %v771 = vunpack.c.h.b16 %v74
  %v772 = vunpack.c.l.b16 %v75
  %v773 = vunpack.c.h.b16 %v75
  %v774 = vunpack.c.l.b16 %v76
  %v775 = vunpack.c.h.b16 %v76
  %v776 = vunpack.c.l.b16 %v77
  %v777 = vunpack.c.h.b16 %v77
  %v778 = vunpack.c.l.b16 %v78
  %v779 = vunpack.c.h.b16 %v78
  %v780 = vunpack.c.l.b16 %v79
  %v781 = vunpack.c.h.b16 %v79
  %v782 = vunpack.c.l.b16 %v80
  %v783 = vunpack.c.h.b16 %v80
  %v784 = vunpack.c.l.b16 %v81
  %v785 = vunpack.c.h.b16 %v81
  %v786 = vunpack.c.l.b16 %v82
  %v787 = vunpack.c.h.b16 %v82
  %v788 = vunpack.c.l.b16 %v83
  %v789 = vunpack.c.h.b16 %v83
  %v790 = vunpack.c.l.b16 %v84
  %v791 = vunpack.c.h.b16 %v84
  %v792 = vunpack.c.l.b16 %v85
  %v793 = vunpack.c.h.b16 %v85
  %v794 = vunpack.c.l.b16 %v86
  %v795 = vunpack.c.h.b16 %v86
  %v796 = vunpack.c.l.b16 %v87
  %v797 = vunpack.c.h.b16 %v87
  %v798 = vunpack.c.l.b16 %v88
  %v799 = vunpack.c.h.b16 %v88
  %v800 = vunpack.c.l.b16 %v89
  %v801 = vunpack.c.h.b16 %v89
  %v802 = vunpack.c.l.b16 %v90
  %v803 = vunpack.c.h.b16 %v90
  %v804 = vunpack.c.l.b16 %v91
  %v805 = vunpack.c.h.b16 %v91
  %v806 = vunpack.c.l.b16 %v92
  %v807 = vunpack.c.h.b16 %v92
  %v808 = vunpack.c.l.b16 %v93
  %v809 = vunpack.c.h.b16 %v93
  %v810 = vunpack.c.l.b16 %v94
  %v811 = vunpack.c.h.b16 %v94
  %v812 = vunpack.c.l.b16 %v95
  %v813 = vunpack.c.h.b16 %v95
  %v814 = vunpack.c.l.b16 %v96
  %v815 = vunpack.c.h.b16 %v96
  %v816 = vunpack.c.l.b16 %v97
  %v817 = vunpack.c.h.b16 %v97
  %v818 = vunpack.c.l.b16 %v98
  %v819 = vunpack.c.h.b16 %v98
  %v820 = vunpack.c.l.b16 %v99
  %v821 = vunpack.c.h.b16 %v99
  %v822 = vunpack.c.l.b16 %v100
  %v823 = vunpack.c.h.b16 %v100
  %v824 = vunpack.c.l.b16 %v101
  %v825 = vunpack.c.h.b16 %v101
  %v826 = vunpack.c.l.b16 %v102
  %v827 = vunpack.c.h.b16 %v102
  %v828 = vunpack.c.l.b16 %v103
  %v829 = vunpack.c.h.b16 %v103
  %v830 = vunpack.c.l.b16 %v104
  %v831 = vunpack.c.h.b16 %v104
  %v832 = vunpack.c.l.b16 %v105
  %v833 = vunpack.c.h.b16 %v105
  %v834 = vunpack.c.l.b16 %v106
  %v835 = vunpack.c.h.b16 %v106
  %v836 = vunpack.c.l.b16 %v107
  %v837 = vunpack.c.h.b16 %v107
  %v838 = vunpack.c.l.b16 %v108
  %v839 = vunpack.c.h.b16 %v108
  %v840 = vunpack.c.l.b16 %v109
  %v841 = vunpack.c.h.b16 %v109
  %v842 = vunpack.c.l.b16 %v110
  %v843 = vunpack.c.h.b16 %v110
  %v844 = vunpack.c.l.b16 %v111
  %v845 = vunpack.c.h.b16 %v111
  %v846 = vunpack.c.l.b16 %v112
  %v847 = vunpack.c.h.b16 %v112
  %v848 = vunpack.c.l.b16 %v113
  %v849 = vunpack.c.h.b16 %v113
  %v850 = vunpack.c.l.b16 %v114
  %v851 = vunpack.c.h.b16 %v114
  %v852 = vunpack.c.l.b16 %v115
  %v853 = vunpack.c.h.b16 %v115
  %v854 = vunpack.c.l.b16 %v116
  %v855 = vunpack.c.h.b16 %v116
  %v856 = vunpack.c.l.b16 %v117
  %v857 = vunpack.c.h.b16 %v117
  %v858 = vunpack.c.l.b16 %v118
  %v859 = vunpack.c.h.b16 %v118
  %v860 = vunpack.c.l.b16 %v119
  %v861 = vunpack.c.h.b16 %v119
  %v862 = vunpack.c.l.b16 %v120
  %v863 = vunpack.c.h.b16 %v120
  %v864 = vunpack.c.l.b16 %v121
  %v865 = vunpack.c.h.b16 %v121
  %v866 = vunpack.c.l.b16 %v122
  %v867 = vunpack.c.h.b16 %v122
  %v868 = vunpack.c.l.b16 %v123
  %v869 = vunpack.c.h.b16 %v123
  %v870 = vunpack.c.l.b16 %v124
  %v871 = vunpack.c.h.b16 %v124
  %v872 = vunpack.c.l.b16 %v125
  %v873 = vunpack.c.h.b16 %v125
  %v874 = vunpack.c.l.b16 %v126
  %v875 = vunpack.c.h.b16 %v126
  %v876 = vunpack.c.l.b16 %v127
  %v877 = vunpack.c.h.b16 %v127
  %v878 = vunpack.c.l.b16 %v128
  %v879 = vunpack.c.h.b16 %v128
  %v880 = vunpack.c.l.b16 %v129
  %v881 = vunpack.c.h.b16 %v129
  %v882 = vunpack.c.l.b16 %v130
  %v883 = vunpack.c.h.b16 %v130
  %v884 = vunpack.c.l.b16 %v131
  %v885 = vunpack.c.h.b16 %v131
  %v886 = vunpack.c.l.b16 %v132
  %v887 = vunpack.c.h.b16 %v132
  %v888 = vunpack.c.l.b16 %v133
  %v889 = vunpack.c.h.b16 %v133
  %v890 = vunpack.c.l.b16 %v134
  %v891 = vunpack.c.h.b16 %v134
  %v892 = vunpack.c.l.b16 %v135
  %v893 = vunpack.c.h.b16 %v135
  %v894 = vunpack.c.l.b16 %v136
  %v895 = vunpack.c.h.b16 %v136
  %v896 = vunpack.c.l.b16 %v137
  %v897 = vunpack.c.h.b16 %v137
  %v898 = vunpack.c.l.b16 %v138
  %v899 = vunpack.c.h.b16 %v138
  %v900 = vunpack.c.l.b16 %v139
  %v901 = vunpack.c.h.b16 %v139
  %v902 = vunpack.c.l.b16 %v140
  %v903 = vunpack.c.h.b16 %v140
  %v904 = vunpack.c.l.b16 %v141
  %v905 = vunpack.c.h.b16 %v141
  %v906 = vunpack.c.l.b16 %v142
  %v907 = vunpack.c.h.b16 %v142
  %v908 = vunpack.c.l.b16 %v143
  %v909 = vunpack.c.h.b16 %v143
  %v910 = vunpack.c.l.b16 %v144
  %v911 = vunpack.c.h.b16 %v144
  %v912 = vunpack.c.l.b16 %v145
  %v913 = vunpack.c.h.b16 %v145
  %v914 = vunpack.c.l.b16 %v146
  %v915 = vunpack.c.h.b16 %v146
  %v916 = vunpack.c.l.b16 %v147
  %v917 = vunpack.c.h.b16 %v147
  %v918 = vunpack.c.l.b16 %v148
  %v919 = vunpack.c.h.b16 %v148
  %v920 = vunpack.c.l.b16 %v149
  %v921 = vunpack.c.h.b16 %v149
  %v922 = vunpack.c.l.b16 %v150
  %v923 = vunpack.c.h.b16 %v150
  %v924 = vunpack.c.l.b16 %v151
  %v925 = vunpack.c.h.b16 %v151
  %v926 = vunpack.c.l.b16 %v152
  %v927 = vunpack.c.h.b16 %v152
  %v928 = vunpack.c.l.b16 %v153
  %v929 = vunpack.c.h.b16 %v153
  %v930 = vunpack.c.l.b16 %v154
  %v931 = vunpack.c.h.b16 %v154
  %v932 = vunpack.c.l.b16 %v155
  %v933 = vunpack.c.h.b16 %v155
  %v934 = vunpack.c.l.b16 %v156
  %v935 = vunpack.c.h.b16 %v156
  %v936 = vunpack.c.l.b16 %v157
  %v937 = vunpack.c.h.b16 %v157
  %v938 = vunpack.c.l.b16 %v158
  %v939 = vunpack.c.h.b16 %v158
  %v940 = vunpack.c.l.b16 %v159
  %v941 = vunpack.c.h.b16 %v159
  %v942 = vunpack.c.l.b16 %v160
  %v943 = vunpack.c.h.b16 %v160
  %v944 = vunpack.c.l.b16 %v161
  %v945 = vunpack.c.h.b16 %v161
  %v946 = vunpack.c.l.b16 %v162
  %v947 = vunpack.c.h.b16 %v162
  %v948 = vunpack.c.l.b16 %v163
  %v949 = vunpack.c.h.b16 %v163
  %v950 = vunpack.c.l.b16 %v164
  %v951 = vunpack.c.h.b16 %v164
  %v952 = vunpack.c.l.b16 %v165
  %v953 = vunpack.c.h.b16 %v165
  %v954 = vunpack.c.l.b16 %v166
  %v955 = vunpack.c.h.b16 %v166
  %v956 = vunpack.c.l.b16 %v167
  %v957 = vunpack.c.h.b16 %v167
  %v958 = vunpack.c.l.b16 %v168
  %v959 = vunpack.c.h.b16 %v168
  %v960 = vunpack.c.l.b16 %v169
  %v961 = vunpack.c.h.b16 %v169
  %v962 = vunpack.c.l.b16 %v170
  %v963 = vunpack.c.h.b16 %v170
  %v964 = vunpack.c.l.b16 %v171
  %v965 = vunpack.c.h.b16 %v171
  %v966 = vunpack.c.l.b16 %v172
  %v967 = vunpack.c.h.b16 %v172
  %v968 = vunpack.c.l.b16 %v173
  %v969 = vunpack.c.h.b16 %v173
  %v970 = vunpack.c.l.b16 %v174
  %v971 = vunpack.c.h.b16 %v174
  %v972 = vunpack.c.l.b16 %v175
  %v973 = vunpack.c.h.b16 %v175
  %v974 = vunpack.c.l.b16 %v176
  %v975 = vunpack.c.h.b16 %v176
  %v976 = vunpack.c.l.b16 %v177
  %v977 = vunpack.c.h.b16 %v177
  %v978 = vunpack.c.l.b16 %v178
  %v979 = vunpack.c.h.b16 %v178
  %v980 = vunpack.c.l.b16 %v179
  %v981 = vunpack.c.h.b16 %v179
  %v982 = vunpack.c.l.b16 %v180
  %v983 = vunpack.c.h.b16 %v180
  %v984 = vunpack.c.l.b16 %v181
  %v985 = vunpack.c.h.b16 %v181
  %v986 = vunpack.c.l.b16 %v182
  %v987 = vunpack.c.h.b16 %v182
  %v988 = vunpack.c.l.b16 %v183
  %v989 = vunpack.c.h.b16 %v183
  %v990 = vunpack.c.l.b16 %v184
  %v991 = vunpack.c.h.b16 %v184
  %v992 = vunpack.c.l.b16 %v185
  %v993 = vunpack.c.h.b16 %v185
  %v994 = vunpack.c.l.b16 %v186
  %v995 = vunpack.c.h.b16 %v186
  %v996 = vunpack.c.l.b16 %v187
  %v997 = vunpack.c.h.b16 %v187
  %v998 = vunpack.c.l.b16 %v188
  %v999 = vunpack.c.h.b16 %v188
  %v1000 = vunpack.c.l.b16 %v189
  %v1001 = vunpack.c.h.b16 %v189
  %v1002 = vunpack.c.l.b16 %v190
  %v1003 = vunpack.c.h.b16 %v190
  %v1004 = vunpack.c.l.b16 %v191
  %v1005 = vunpack.c.h.b16 %v191
  %v1006 = vunpack.c.l.b16 %v192
  %v1007 = vunpack.c.h.b16 %v192
  %v1008 = vunpack.c.l.b16 %v193
  %v1009 = vunpack.c.h.b16 %v193
  %v1010 = vunpack.c.l.b16 %v194
  %v1011 = vunpack.c.h.b16 %v194
  %v1012 = vunpack.c.l.b16 %v195
  %v1013 = vunpack.c.h.b16 %v195
  %v1014 = vunpack.c.l.b16 %v196
  %v1015 = vunpack.c.h.b16 %v196
  %v1016 = vunpack.c.l.b16 %v197
  %v1017 = vunpack.c.h.b16 %v197
  %v1018 = vunpack.c.l.b16 %v198
  %v1019 = vunpack.c.h.b16 %v198
  %v1020 = vunpack.c.l.b16 %v199
  %v1021 = vunpack.c.h.b16 %v199
  %v1022 = vunpack.c.l.b16 %v200
  %v1023 = vunpack.c.h.b16 %v200
  %v1024 = vunpack.c.l.b16 %v201
  %v1025 = vunpack.c.h.b16 %v201
  %v1026 = vunpack.c.l.b16 %v202
  %v1027 = vunpack.c.h.b16 %v202
  %v1028 = vunpack.c.l.b16 %v203
  %v1029 = vunpack.c.h.b16 %v203
  %v1030 = vunpack.c.l.b16 %v204
  %v1031 = vunpack.c.h.b16 %v204
  %v1032 = vunpack.c.l.b16 %v205
  %v1033 = vunpack.c.h.b16 %v205
  %v1034 = vunpack.c.l.b16 %v206
  %v1035 = vunpack.c.h.b16 %v206
  %v1036 = vunpack.c.l.b16 %v207
  %v1037 = vunpack.c.h.b16 %v207
  %v1038 = vunpack.c.l.b16 %v208
  %v1039 = vunpack.c.h.b16 %v208
  %v1040 = vunpack.c.l.b16 %v209
  %v1041 = vunpack.c.h.b16 %v209
  %v1042 = vunpack.c.l.b16 %v210
  %v1043 = vunpack.c.h.b16 %v210
  %v1044 = vunpack.c.l.b16 %v211
  %v1045 = vunpack.c.h.b16 %v211
  %v1046 = vunpack.c.l.b16 %v212
  %v1047 = vunpack.c.h.b16 %v212
  %v1048 = vunpack.c.l.b16 %v213
  %v1049 = vunpack.c.h.b16 %v213
  %v1050 = vunpack.c.l.b16 %v214
  %v1051 = vunpack.c.h.b16 %v214
  %v1052 = vunpack.c.l.b16 %v215
  %v1053 = vunpack.c.h.b16 %v215
  %v1054 = vunpack.c.l.b16 %v216
  %v1055 = vunpack.c.h.b16 %v216
  %v1056 = vunpack.c.l.b16 %v217
  %v1057 = vunpack.c.h.b16 %v217
  %v1058 = vunpack.c.l.b16 %v218
  %v1059 = vunpack.c.h.b16 %v218
  %v1060 = vunpack.c.l.b16 %v219
  %v1061 = vunpack.c.h.b16 %v219
  %v1062 = vunpack.c.l.b16 %v220
  %v1063 = vunpack.c.h.b16 %v220
  %v1064 = vunpack.c.l.b16 %v221
  %v1065 = vunpack.c.h.b16 %v221
  %v1066 = vunpack.c.l.b16 %v222
  %v1067 = vunpack.c.h.b16 %v222
  %v1068 = vunpack.c.l.b16 %v223
  %v1069 = vunpack.c.h.b16 %v223
  %v1070 = vunpack.c.l.b16 %v224
  %v1071 = vunpack.c.h.b16 %v224
  %v1072 = vunpack.c.l.b16 %v225
  %v1073 = vunpack.c.h.b16 %v225
  %v1074 = vunpack.c.l.b16 %v226
  %v1075 = vunpack.c.h.b16 %v226
  %v1076 = vunpack.c.l.b16 %v227
  %v1077 = vunpack.c.h.b16 %v227
  %v1078 = vunpack.c.l.b16 %v228
  %v1079 = vunpack.c.h.b16 %v228
  %v1080 = vunpack.c.l.b16 %v229
  %v1081 = vunpack.c.h.b16 %v229
  %v1082 = vunpack.c.l.b16 %v230
  %v1083 = vunpack.c.h.b16 %v230
  %v1084 = vunpack.c.l.b16 %v231
  %v1085 = vunpack.c.h.b16 %v231
  %v1086 = vunpack.c.l.b16 %v232
  %v1087 = vunpack.c.h.b16 %v232
  %v1088 = vunpack.c.l.b16 %v233
  %v1089 = vunpack.c.h.b16 %v233
  %v1090 = vunpack.c.l.b16 %v234
  %v1091 = vunpack.c.h.b16 %v234
  %v1092 = vunpack.c.l.b16 %v235
  %v1093 = vunpack.c.h.b16 %v235
  %v1094 = vunpack.c.l.b16 %v236
  %v1095 = vunpack.c.h.b16 %v236
  %v1096 = vunpack.c.l.b16 %v237
  %v1097 = vunpack.c.h.b16 %v237
  %v1098 = vunpack.c.l.b16 %v238
  %v1099 = vunpack.c.h.b16 %v238
  %v1100 = vunpack.c.l.b16 %v239
  %v1101 = vunpack.c.h.b16 %v239
  %v1102 = vunpack.c.l.b16 %v240
  %v1103 = vunpack.c.h.b16 %v240
  %v1104 = vunpack.c.l.b16 %v241
  %v1105 = vunpack.c.h.b16 %v241
  %v1106 = vunpack.c.l.b16 %v242
  %v1107 = vunpack.c.h.b16 %v242
  %v1108 = vunpack.c.l.b16 %v243
  %v1109 = vunpack.c.h.b16 %v243
  %v1110 = vunpack.c.l.b16 %v244
  %v1111 = vunpack.c.h.b16 %v244
  %v1112 = vunpack.c.l.b16 %v245
  %v1113 = vunpack.c.h.b16 %v245
  %v1114 = vunpack.c.l.b16 %v246
  %v1115 = vunpack.c.h.b16 %v246
  %v1116 = vunpack.c.l.b16 %v247
  %v1117 = vunpack.c.h.b16 %v247
  %v1118 = vunpack.c.l.b16 %v248
  %v1119 = vunpack.c.h.b16 %v248
  %v1120 = vunpack.c.l.b16 %v249
  %v1121 = vunpack.c.h.b16 %v249
  %v1122 = vunpack.c.l.b16 %v250
  %v1123 = vunpack.c.h.b16 %v250
  %v1124 = vunpack.c.l.b16 %v251
  %v1125 = vunpack.c.h.b16 %v251
  %v1126 = vunpack.c.l.b16 %v252
  %v1127 = vunpack.c.h.b16 %v252
  %v1128 = vunpack.c.l.b16 %v253
  %v1129 = vunpack.c.h.b16 %v253
  %v1130 = vunpack.c.l.b16 %v254
  %v1131 = vunpack.c.h.b16 %v254
  %v1132 = vunpack.c.l.b16 %v255
  %v1133 = vunpack.c.h.b16 %v255
  %v1134 = vunpack.c.l.b16 %v256
  %v1135 = vunpack.c.h.b16 %v256
  %v1136 = vunpack.c.l.b16 %v257
  %v1137 = vunpack.c.h.b16 %v257
  %v1138 = vunpack.c.l.b16 %v258
  %v1139 = vunpack.c.h.b16 %v258
  %v1140 = vunpack.c.l.b16 %v259
  %v1141 = vunpack.c.h.b16 %v259
  %v1142 = vunpack.c.l.b16 %v260
  %v1143 = vunpack.c.h.b16 %v260
  %v1144 = vunpack.c.l.b16 %v261
  %v1145 = vunpack.c.h.b16 %v261
  %v1146 = vunpack.c.l.b16 %v262
  %v1147 = vunpack.c.h.b16 %v262
  %v1148 = vunpack.c.l.b16 %v263
  %v1149 = vunpack.c.h.b16 %v263
  %v1150 = vunpack.c.l.b16 %v264
  %v1151 = vunpack.c.h.b16 %v264
  %v1152 = vunpack.c.l.b16 %v265
  %v1153 = vunpack.c.h.b16 %v265
  %v1154 = vunpack.c.l.b16 %v266
  %v1155 = vunpack.c.h.b16 %v266
  %v1156 = vunpack.c.l.b16 %v267
  %v1157 = vunpack.c.h.b16 %v267
  %v1158 = vunpack.c.l.b16 %v268
  %v1159 = vunpack.c.h.b16 %v268
  %v1160 = vunpack.c.l.b16 %v269
  %v1161 = vunpack.c.h.b16 %v269
  %v1162 = vunpack.c.l.b16 %v270
  %v1163 = vunpack.c.h.b16 %v270
  %v1164 = vunpack.c.l.b16 %v271
  %v1165 = vunpack.c.h.b16 %v271
  %v1166 = vunpack.c.l.b16 %v272
  %v1167 = vunpack.c.h.b16 %v272
  %v1168 = vunpack.c.l.b16 %v273
  %v1169 = vunpack.c.h.b16 %v273
  %v1170 = vunpack.c.l.b16 %v274
  %v1171 = vunpack.c.h.b16 %v274
  %v1172 = vunpack.c.l.b16 %v275
  %v1173 = vunpack.c.h.b16 %v275
  %v1174 = vunpack.c.l.b16 %v276
  %v1175 = vunpack.c.h.b16 %v276
  %v1176 = vunpack.c.l.b16 %v277
  %v1177 = vunpack.c.h.b16 %v277
  %v1178 = vunpack.c.l.b16 %v278
  %v1179 = vunpack.c.h.b16 %v278
  %v1180 = vunpack.c.l.b16 %v279
  %v1181 = vunpack.c.h.b16 %v279
  %v1182 = vunpack.c.l.b16 %v280
  %v1183 = vunpack.c.h.b16 %v280
  %v1184 = vunpack.c.l.b16 %v281
  %v1185 = vunpack.c.h.b16 %v281
  %v1186 = vunpack.c.l.b16 %v282
  %v1187 = vunpack.c.h.b16 %v282
  %v1188 = vunpack.c.l.b16 %v283
  %v1189 = vunpack.c.h.b16 %v283
  %v1190 = vunpack.c.l.b16 %v284
  %v1191 = vunpack.c.h.b16 %v284
  %v1192 = vunpack.c.l.b16 %v285
  %v1193 = vunpack.c.h.b16 %v285
  %v1194 = vunpack.c.l.b16 %v286
  %v1195 = vunpack.c.h.b16 %v286
  %v1196 = vunpack.c.l.b16 %v287
  %v1197 = vunpack.c.h.b16 %v287
  %v1198 = vunpack.c.l.b16 %v288
  %v1199 = vunpack.c.h.b16 %v288
  %v1200 = vunpack.c.l.b16 %v289
  %v1201 = vunpack.c.h.b16 %v289
  %v1202 = vunpack.c.l.b16 %v290
  %v1203 = vunpack.c.h.b16 %v290
  %v1204 = vunpack.c.l.b16 %v291
  %v1205 = vunpack.c.h.b16 %v291
  %v1206 = vunpack.c.l.b16 %v292
  %v1207 = vunpack.c.h.b16 %v292
  %v1208 = vunpack.c.l.b16 %v293
  %v1209 = vunpack.c.h.b16 %v293
  %v1210 = vunpack.c.l.b16 %v294
  %v1211 = vunpack.c.h.b16 %v294
  %v1212 = vunpack.c.l.b16 %v295
  %v1213 = vunpack.c.h.b16 %v295
  %v1214 = vunpack.c.l.b16 %v296
  %v1215 = vunpack.c.h.b16 %v296
  %v1216 = vunpack.c.l.b16 %v297
  %v1217 = vunpack.c.h.b16 %v297
  %v1218 = vunpack.c.l.b16 %v298
  %v1219 = vunpack.c.h.b16 %v298
  %v1220 = vunpack.c.l.b16 %v299
  %v1221 = vunpack.c.h.b16 %v299
  %v1222 = vunpack.c.l.b16 %v300
  %v1223 = vunpack.c.h.b16 %v300
  %v1224 = vunpack.c.l.b16 %v301
  %v1225 = vunpack.c.h.b16 %v301
  %v1226 = vunpack.c.l.b16 %v302
  %v1227 = vunpack.c.h.b16 %v302
  %v1228 = vunpack.c.l.b16 %v303
  %v1229 = vunpack.c.h.b16 %v303
  %v1230 = vunpack.c.l.b16 %v304
  %v1231 = vunpack.c.h.b16 %v304
  %v1232 = vunpack.c.l.b16 %v305
  %v1233 = vunpack.c.h.b16 %v305
  %v1234 = vunpack.c.l.b16 %v306
  %v1235 = vunpack.c.h.b16 %v306
  %v1236 = vunpack.c.l.b16 %v307
  %v1237 = vunpack.c.h.b16 %v307
  %v1238 = vunpack.c.l.b16 %v308
  %v1239 = vunpack.c.h.b16 %v308
  %v1240 = vunpack.c.l.b16 %v309
  %v1241 = vunpack.c.h.b16 %v309
  %v1242 = vunpack.c.l.b16 %v310
  %v1243 = vunpack.c.h.b16 %v310
  %v1244 = vpack.c.b16 %v670, %v668
  %v1245 = vpack.c.b16 %v671, %v669
  %v1246 = vpack.c.b16 %v674, %v672
  %v1247 = vpack.c.b16 %v675, %v673
  %v1248 = vpack.c.b16 %v678, %v676
  %v1249 = vpack.c.b16 %v679, %v677
  %v1250 = vpack.c.b16 %v682, %v680
  %v1251 = vpack.c.b16 %v683, %v681
  %v1252 = vpack.c.b16 %v686, %v684
  %v1253 = vpack.c.b16 %v687, %v685
  %v1254 = vpack.c.b16 %v690, %v688
  %v1255 = vpack.c.b16 %v691, %v689
  %v1256 = vpack.c.b16 %v694, %v692
  %v1257 = vpack.c.b16 %v695, %v693
  %v1258 = vpack.c.b16 %v698, %v696
  %v1259 = vpack.c.b16 %v699, %v697
  %v1260 = vpack.c.b16 %v702, %v700
  %v1261 = vpack.c.b16 %v703, %v701
  %v1262 = vpack.c.b16 %v706, %v704
  %v1263 = vpack.c.b16 %v707, %v705
  %v1264 = vpack.c.b16 %v710, %v708
  %v1265 = vpack.c.b16 %v711, %v709
  %v1266 = vpack.c.b16 %v714, %v712
  %v1267 = vpack.c.b16 %v715, %v713
  %v1268 = vpack.c.b16 %v718, %v716
  %v1269 = vpack.c.b16 %v719, %v717
  %v1270 = vpack.c.b16 %v722, %v720
  %v1271 = vpack.c.b16 %v723, %v721
  %v1272 = vpack.c.b16 %v726, %v724
  %v1273 = vpack.c.b16 %v727, %v725
  %v1274 = vpack.c.b16 %v730, %v728
  %v1275 = vpack.c.b16 %v731, %v729
  %v1276 = vpack.c.b16 %v734, %v732
  %v1277 = vpack.c.b16 %v735, %v733
  %v1278 = vpack.c.b16 %v738, %v736
  %v1279 = vpack.c.b16 %v739, %v737
  %v1280 = vpack.c.b16 %v742, %v740
  %v1281 = vpack.c.b16 %v743, %v741
  %v1282 = vpack.c.b16 %v746, %v744
  %v1283 = vpack.c.b16 %v747, %v745
  %v1284 = vpack.c.b16 %v750, %v748
  %v1285 = vpack.c.b16 %v751, %v749
  %v1286 = vpack.c.b16 %v754, %v752
  %v1287 = vpack.c.b16 %v755, %v753
  %v1288 = vpack.c.b16 %v758, %v756
  %v1289 = vpack.c.b16 %v759, %v757
  %v1290 = vpack.c.b16 %v762, %v760
  %v1291 = vpack.c.b16 %v763, %v761
  %v1292 = vpack.c.b16 %v766, %v764
  %v1293 = vpack.c.b16 %v767, %v765
  %v1294 = vpack.c.b16 %v770, %v768
  %v1295 = vpack.c.b16 %v771, %v769
  %v1296 = vpack.c.b16 %v774, %v772
  %v1297 = vpack.c.b16 %v775, %v773
  %v1298 = vpack.c.b16 %v778, %v776
  %v1299 = vpack.c.b16 %v779, %v777
  %v1300 = vpack.c.b16 %v782, %v780
  %v1301 = vpack.c.b16 %v783, %v781
  %v1302 = vpack.c.b16 %v786, %v784
  %v1303 = vpack.c.b16 %v787, %v785
  %v1304 = vpack.c.b16 %v790, %v788
  %v1305 = vpack.c.b16 %v791, %v789
  %v1306 = vpack.c.b16 %v794, %v792
  %v1307 = vpack.c.b16 %v795, %v793
  %v1308 = vpack.c.b16 %v798, %v796
  %v1309 = vpack.c.b16 %v799, %v797
  %v1310 = vpack.c.b16 %v802, %v800
  %v1311 = vpack.c.b16 %v803, %v801
  %v1312 = vpack.c.b16 %v806, %v804
  %v1313 = vpack.c.b16 %v807, %v805
  %v1314 = vpack.c.b16 %v810, %v808
  %v1315 = vpack.c.b16 %v811, %v809
  %v1316 = vpack.c.b16 %v814, %v812
  %v1317 = vpack.c.b16 %v815, %v813
  %v1318 = vpack.c.b16 %v818, %v816
  %v1319 = vpack.c.b16 %v819, %v817
  %v1320 = vpack.c.b16 %v822, %v820
  %v1321 = vpack.c.b16 %v823, %v821
  %v1322 = vpack.c.b16 %v826, %v824
  %v1323 = vpack.c.b16 %v827, %v825
  %v1324 = vpack.c.b16 %v830, %v828
  %v1325 = vpack.c.b16 %v831, %v829
  %v1326 = vpack.c.b16 %v834, %v832
  %v1327 = vpack.c.b16 %v835, %v833
  %v1328 = vpack.c.b16 %v838, %v836
  %v1329 = vpack.c.b16 %v839, %v837
  %v1330 = vpack.c.b16 %v842, %v840
  %v1331 = vpack.c.b16 %v843, %v841
  %v1332 = vpack.c.b16 %v846, %v844
  %v1333 = vpack.c.b16 %v847, %v845
  %v1334 = vpack.c.b16 %v850, %v848
  %v1335 = vpack.c.b16 %v851, %v849
  %v1336 = vpack.c.b16 %v854, %v852
  %v1337 = vpack.c.b16 %v855, %v853
  %v1338 = vpack.c.b16 %v858, %v856
  %v1339 = vpack.c.b16 %v859, %v857
  %v1340 = vpack.c.b16 %v862, %v860
  %v1341 = vpack.c.b16 %v863, %v861
  %v1342 = vpack.c.b16 %v866, %v864
  %v1343 = vpack.c.b16 %v867, %v865
  %v1344 = vpack.c.b16 %v870, %v868
  %v1345 = vpack.c.b16 %v871, %v869
  %v1346 = vpack.c.b16 %v874, %v872
  %v1347 = vpack.c.b16 %v875, %v873
  %v1348 = vpack.c.b16 %v878, %v876
  %v1349 = vpack.c.b16 %v879, %v877
  %v1350 = vpack.c.b16 %v882, %v880
  %v1351 = vpack.c.b16 %v883, %v881
  %v1352 = vpack.c.b16 %v886, %v884
  %v1353 = vpack.c.b16 %v887, %v885
  %v1354 = vpack.c.b16 %v890, %v888
  %v1355 = vpack.c.b16 %v891, %v889
  %v1356 = vpack.c.b16 %v894, %v892
  %v1357 = vpack.c.b16 %v895, %v893
  %v1358 = vpack.c.b16 %v898, %v896
  %v1359 = vpack.c.b16 %v899, %v897
  %v1360 = vpack.c.b16 %v902, %v900
  %v1361 = vpack.c.b16 %v903, %v901
  %v1362 = vpack.c.b16 %v906, %v904
  %v1363 = vpack.c.b16 %v907, %v905
  %v1364 = vpack.c.b16 %v910, %v908
  %v1365 = vpack.c.b16 %v911, %v909
  %v1366 = vpack.c.b16 %v914, %v912
  %v1367 = vpack.c.b16 %v915, %v913
  %v1368 = vpack.c.b16 %v918, %v916
  %v1369 = vpack.c.b16 %v919, %v917
  %v1370 = vpack.c.b16 %v922, %v920
  %v1371 = vpack.c.b16 %v923, %v921
  %v1372 = vpack.c.b16 %v926, %v924
  %v1373 = vpack.c.b16 %v927, %v925
  %v1374 = vpack.c.b16 %v930, %v928
  %v1375 = vpack.c.b16 %v931, %v929
  %v1376 = vpack.c.b16 %v934, %v932
  %v1377 = vpack.c.b16 %v935, %v933
  %v1378 = vpack.c.b16 %v938, %v936
  %v1379 = vpack.c.b16 %v939, %v937
  %v1380 = vpack.c.b16 %v942, %v940
  %v1381 = vpack.c.b16 %v943, %v941
  %v1382 = vpack.c.b16 %v946, %v944
  %v1383 = vpack.c.b16 %v947, %v945
  %v1384 = vpack.c.b16 %v950, %v948
  %v1385 = vpack.c.b16 %v951, %v949
  %v1386 = vpack.c.b16 %v954, %v952
  %v1387 = vpack.c.b16 %v955, %v953
  %v1388 = vpack.c.b16 %v958, %v956
  %v1389 = vpack.c.b16 %v959, %v957
  %v1390 = vpack.c.b16 %v962, %v960
  %v1391 = vpack.c.b16 %v963, %v961
  %v1392 = vpack.c.b16 %v966, %v964
  %v1393 = vpack.c.b16 %v967, %v965
  %v1394 = vpack.c.b16 %v970, %v968
  %v1395 = vpack.c.b16 %v971, %v969
  %v1396 = vpack.c.b16 %v974, %v972
  %v1397 = vpack.c.b16 %v975, %v973
  %v1398 = vpack.c.b16 %v978, %v976
  %v1399 = vpack.c.b16 %v979, %v977
  %v1400 = vpack.c.b16 %v982, %v980
  %v1401 = vpack.c.b16 %v983, %v981
  %v1402 = vpack.c.b16 %v986, %v984
  %v1403 = vpack.c.b16 %v987, %v985
  %v1404 = vpack.c.b16 %v990, %v988
  %v1405 = vpack.c.b16 %v991, %v989
  %v1406 = vpack.c.b16 %v994, %v992
  %v1407 = vpack.c.b16 %v995, %v993
  %v1408 = vpack.c.b16 %v998, %v996
  %v1409 = vpack.c.b16 %v999, %v997
  %v1410 = vpack.c.b16 %v1002, %v1000
  %v1411 = vpack.c.b16 %v1003, %v1001
  %v1412 = vpack.c.b16 %v1006, %v1004
  %v1413 = vpack.c.b16 %v1007, %v1005
  %v1414 = vpack.c.b16 %v1010, %v1008
  %v1415 = vpack.c.b16 %v1011, %v1009
  %v1416 = vpack.c.b16 %v1014, %v1012
  %v1417 = vpack.c.b16 %v1015, %v1013
  %v1418 = vpack.c.b16 %v1018, %v1016
  %v1419 = vpack.c.b16 %v1019, %v1017
  %v1420 = vpack.c.b16 %v1022, %v1020
  %v1421 = vpack.c.b16 %v1023, %v1021
  %v1422 = vpack.c.b16 %v1026, %v1024
  %v1423 = vpack.c.b16 %v1027, %v1025
  %v1424 = vpack.c.b16 %v1030, %v1028
  %v1425 = vpack.c.b16 %v1031, %v1029
  %v1426 = vpack.c.b16 %v1034, %v1032
  %v1427 = vpack.c.b16 %v1035, %v1033
  %v1428 = vpack.c.b16 %v1038, %v1036
  %v1429 = vpack.c.b16 %v1039, %v1037
  %v1430 = vpack.c.b16 %v1042, %v1040
  %v1431 = vpack.c.b16 %v1043, %v1041
  %v1432 = vpack.c.b16 %v1046, %v1044
  %v1433 = vpack.c.b16 %v1047, %v1045
  %v1434 = vpack.c.b16 %v1050, %v1048
  %v1435 = vpack.c.b16 %v1051, %v1049
  %v1436 = vpack.c.b16 %v1054, %v1052
  %v1437 = vpack.c.b16 %v1055, %v1053
  %v1438 = vpack.c.b16 %v1058, %v1056
  %v1439 = vpack.c.b16 %v1059, %v1057
  %v1440 = vpack.c.b16 %v1062, %v1060
  %v1441 = vpack.c.b16 %v1063, %v1061
  %v1442 = vpack.c.b16 %v1066, %v1064
  %v1443 = vpack.c.b16 %v1067, %v1065
  %v1444 = vpack.c.b16 %v1070, %v1068
  %v1445 = vpack.c.b16 %v1071, %v1069
  %v1446 = vpack.c.b16 %v1074, %v1072
  %v1447 = vpack.c.b16 %v1075, %v1073
  %v1448 = vpack.c.b16 %v1078, %v1076
  %v1449 = vpack.c.b16 %v1079, %v1077
  %v1450 = vpack.c.b16 %v1082, %v1080
  %v1451 = vpack.c.b16 %v1083, %v1081
  %v1452 = vpack.c.b16 %v1086, %v1084
  %v1453 = vpack.c.b16 %v1087, %v1085
  %v1454 = vpack.c.b16 %v1090, %v1088
  %v1455 = vpack.c.b16 %v1091, %v1089
  %v1456 = vpack.c.b16 %v1094, %v1092
  %v1457 = vpack.c.b16 %v1095, %v1093
  %v1458 = vpack.c.b16 %v1098, %v1096
  %v1459 = vpack.c.b16 %v1099, %v1097
  %v1460 = vpack.c.b16 %v1102, %v1100
  %v1461 = vpack.c.b16 %v1103, %v1101
  %v1462 = vpack.c.b16 %v1106, %v1104
  %v1463 = vpack.c.b16 %v1107, %v1105
  %v1464 = vpack.c.b16 %v1110, %v1108
  %v1465 = vpack.c.b16 %v1111, %v1109
  %v1466 = vpack.c.b16 %v1114, %v1112
  %v1467 = vpack.c.b16 %v1115, %v1113
  %v1468 = vpack.c.b16 %v1118, %v1116
  %v1469 = vpack.c.b16 %v1119, %v1117
  %v1470 = vpack.c.b16 %v1122, %v1120
  %v1471 = vpack.c.b16 %v1123, %v1121
  %v1472 = vpack.c.b16 %v1126, %v1124
  %v1473 = vpack.c.b16 %v1127, %v1125
  %v1474 = vpack.c.b16 %v1130, %v1128
  %v1475 = vpack.c.b16 %v1131, %v1129
  %v1476 = vpack.c.b16 %v1134, %v1132
  %v1477 = vpack.c.b16 %v1135, %v1133
  %v1478 = vpack.c.b16 %v1138, %v1136
  %v1479 = vpack.c.b16 %v1139, %v1137
  %v1480 = vpack.c.b16 %v1142, %v1140
  %v1481 = vpack.c.b16 %v1143, %v1141
  %v1482 = vpack.c.b16 %v1146, %v1144
  %v1483 = vpack.c.b16 %v1147, %v1145
  %v1484 = vpack.c.b16 %v1150, %v1148
  %v1485 = vpack.c.b16 %v1151, %v1149
  %v1486 = vpack.c.b16 %v1154, %v1152
  %v1487 = vpack.c.b16 %v1155, %v1153
  %v1488 = vpack.c.b16 %v1158, %v1156
  %v1489 = vpack.c.b16 %v1159, %v1157
  %v1490 = vpack.c.b16 %v1162, %v1160
  %v1491 = vpack.c.b16 %v1163, %v1161
  %v1492 = vpack.c.b16 %v1166, %v1164
  %v1493 = vpack.c.b16 %v1167, %v1165
  %v1494 = vpack.c.b16 %v1170, %v1168
  %v1495 = vpack.c.b16 %v1171, %v1169
  %v1496 = vpack.c.b16 %v1174, %v1172
  %v1497 = vpack.c.b16 %v1175, %v1173
  %v1498 = vpack.c.b16 %v1178, %v1176
  %v1499 = vpack.c.b16 %v1179, %v1177
  %v1500 = vpack.c.b16 %v1182, %v1180
  %v1501 = vpack.c.b16 %v1183, %v1181
  %v1502 = vpack.c.b16 %v1186, %v1184
  %v1503 = vpack.c.b16 %v1187, %v1185
  %v1504 = vpack.c.b16 %v1190, %v1188
  %v1505 = vpack.c.b16 %v1191, %v1189
  %v1506 = vpack.c.b16 %v1194, %v1192
  %v1507 = vpack.c.b16 %v1195, %v1193
  %v1508 = vpack.c.b16 %v1198, %v1196
  %v1509 = vpack.c.b16 %v1199, %v1197
  %v1510 = vpack.c.b16 %v1202, %v1200
  %v1511 = vpack.c.b16 %v1203, %v1201
  %v1512 = vpack.c.b16 %v1206, %v1204
  %v1513 = vpack.c.b16 %v1207, %v1205
  %v1514 = vpack.c.b16 %v1210, %v1208
  %v1515 = vpack.c.b16 %v1211, %v1209
  %v1516 = vpack.c.b16 %v1214, %v1212
  %v1517 = vpack.c.b16 %v1215, %v1213
  %v1518 = vpack.c.b16 %v1218, %v1216
  %v1519 = vpack.c.b16 %v1219, %v1217
  %v1520 = vpack.c.b16 %v1222, %v1220
  %v1521 = vpack.c.b16 %v1223, %v1221
  %v1522 = vpack.c.b16 %v1226, %v1224
  %v1523 = vpack.c.b16 %v1227, %v1225
  %v1524 = vpack.c.b16 %v1230, %v1228
  %v1525 = vpack.c.b16 %v1231, %v1229
  %v1526 = vpack.c.b16 %v1234, %v1232
  %v1527 = vpack.c.b16 %v1235, %v1233
  %v1528 = vpack.c.b16 %v1238, %v1236
  %v1529 = vpack.c.b16 %v1239, %v1237
  %v1530 = vpack.c.b16 %v1242, %v1240
  %v1531 = vpack.c.b16 %v1243, %v1241
  %1820 = vmatpush.bf16.msra.mxu0 %v1258
  %1821 = vmatpush.bf16.msra.mxu0 %v1256
  %1822 = vmatpush.bf16.msra.mxu0 %v1254
  %1823 = vmatpush.bf16.msra.mxu0 %v1252
  %1824 = vmatpush.bf16.msra.mxu0 %v1250
  %1825 = vmatpush.bf16.msra.mxu0 %v1248
  %1826 = vmatpush.bf16.msra.mxu0 %v1246
  %1827 = vmatpush.bf16.msra.mxu0 %v1244
  %1828 = vmatmul.bf16.gmra.mxu0 %v344
  %v1829 = vpop.f32.mrf.mxu0
  %v1830 = vadd.f32 %v313, %v1829
  %v1831 = vpop.f32.mrf.mxu0
  %1832 = vdwg.mxu0
  %1833 = vmatpush.bf16.msra.mxu0 %v1274
  %1834 = vmatpush.bf16.msra.mxu0 %v1272
  %1835 = vmatpush.bf16.msra.mxu0 %v1270
  %1836 = vmatpush.bf16.msra.mxu0 %v1268
  %1837 = vmatpush.bf16.msra.mxu0 %v1266
  %1838 = vmatpush.bf16.msra.mxu0 %v1264
  %1839 = vmatpush.bf16.msra.mxu0 %v1262
  %1840 = vmatpush.bf16.msra.mxu0 %v1260
  %1841 = vmatmul.bf16.gmra.mxu0 %v345
  %v1842 = vpop.f32.mrf.mxu0
  %v1843 = vadd.f32 %v1830, %v1842
  %v1844 = vpop.f32.mrf.mxu0
  %1845 = vdwg.mxu0
  %1846 = vmatpush.bf16.msra.mxu0 %v1290
  %1847 = vmatpush.bf16.msra.mxu0 %v1288
  %1848 = vmatpush.bf16.msra.mxu0 %v1286
  %1849 = vmatpush.bf16.msra.mxu0 %v1284
  %1850 = vmatpush.bf16.msra.mxu0 %v1282
  %1851 = vmatpush.bf16.msra.mxu0 %v1280
  %1852 = vmatpush.bf16.msra.mxu0 %v1278
  %1853 = vmatpush.bf16.msra.mxu0 %v1276
  %1854 = vmatmul.bf16.gmra.mxu0 %v346
  %v1855 = vpop.f32.mrf.mxu0
  %v1856 = vadd.f32 %v1843, %v1855
  %v1857 = vpop.f32.mrf.mxu0
  %1858 = vdwg.mxu0
  %1859 = vmatpush.bf16.msra.mxu0 %v1306
  %1860 = vmatpush.bf16.msra.mxu0 %v1304
  %1861 = vmatpush.bf16.msra.mxu0 %v1302
  %1862 = vmatpush.bf16.msra.mxu0 %v1300
  %1863 = vmatpush.bf16.msra.mxu0 %v1298
  %1864 = vmatpush.bf16.msra.mxu0 %v1296
  %1865 = vmatpush.bf16.msra.mxu0 %v1294
  %1866 = vmatpush.bf16.msra.mxu0 %v1292
  %1867 = vmatmul.bf16.gmra.mxu0 %v347
  %v1868 = vpop.f32.mrf.mxu0
  %v1869 = vadd.f32 %v1856, %v1868
  %v1870 = vpop.f32.mrf.mxu0
  %1871 = vdwg.mxu0
  %1872 = vmatpush.bf16.msra.mxu0 %v1322
  %1873 = vmatpush.bf16.msra.mxu0 %v1320
  %1874 = vmatpush.bf16.msra.mxu0 %v1318
  %1875 = vmatpush.bf16.msra.mxu0 %v1316
  %1876 = vmatpush.bf16.msra.mxu0 %v1314
  %1877 = vmatpush.bf16.msra.mxu0 %v1312
  %1878 = vmatpush.bf16.msra.mxu0 %v1310
  %1879 = vmatpush.bf16.msra.mxu0 %v1308
  %1880 = vmatmul.bf16.gmra.mxu0 %v348
  %v1881 = vpop.f32.mrf.mxu0
  %v1882 = vadd.f32 %v1869, %v1881
  %v1883 = vpop.f32.mrf.mxu0
  %1884 = vdwg.mxu0
  %1885 = vmatpush.bf16.msra.mxu0 %v1338
  %1886 = vmatpush.bf16.msra.mxu0 %v1336
  %1887 = vmatpush.bf16.msra.mxu0 %v1334
  %1888 = vmatpush.bf16.msra.mxu0 %v1332
  %1889 = vmatpush.bf16.msra.mxu0 %v1330
  %1890 = vmatpush.bf16.msra.mxu0 %v1328
  %1891 = vmatpush.bf16.msra.mxu0 %v1326
  %1892 = vmatpush.bf16.msra.mxu0 %v1324
  %1893 = vmatmul.bf16.gmra.mxu0 %v349
  %v1894 = vpop.f32.mrf.mxu0
  %v1895 = vadd.f32 %v1882, %v1894
  %v1896 = vpop.f32.mrf.mxu0
  %1897 = vdwg.mxu0
  %1898 = vmatpush.bf16.msra.mxu0 %v1354
  %1899 = vmatpush.bf16.msra.mxu0 %v1352
  %1900 = vmatpush.bf16.msra.mxu0 %v1350
  %1901 = vmatpush.bf16.msra.mxu0 %v1348
  %1902 = vmatpush.bf16.msra.mxu0 %v1346
  %1903 = vmatpush.bf16.msra.mxu0 %v1344
  %1904 = vmatpush.bf16.msra.mxu0 %v1342
  %1905 = vmatpush.bf16.msra.mxu0 %v1340
  %1906 = vmatmul.bf16.gmra.mxu0 %v350
  %v1907 = vpop.f32.mrf.mxu0
  %v1908 = vadd.f32 %v1895, %v1907
  %v1909 = vpop.f32.mrf.mxu0
  %1910 = vdwg.mxu0
  %1911 = vmatpush.bf16.msra.mxu0 %v1370
  %1912 = vmatpush.bf16.msra.mxu0 %v1368
  %1913 = vmatpush.bf16.msra.mxu0 %v1366
  %1914 = vmatpush.bf16.msra.mxu0 %v1364
  %1915 = vmatpush.bf16.msra.mxu0 %v1362
  %1916 = vmatpush.bf16.msra.mxu0 %v1360
  %1917 = vmatpush.bf16.msra.mxu0 %v1358
  %1918 = vmatpush.bf16.msra.mxu0 %v1356
  %1919 = vmatmul.bf16.gmra.mxu0 %v351
  %v1920 = vpop.f32.mrf.mxu0
  %v1921 = vadd.f32 %v1908, %v1920
  %v1922 = vpop.f32.mrf.mxu0
  %1923 = vdwg.mxu0
  %1924 = vmatpush.bf16.msra.mxu0 %v1386
  %1925 = vmatpush.bf16.msra.mxu0 %v1384
  %1926 = vmatpush.bf16.msra.mxu0 %v1382
  %1927 = vmatpush.bf16.msra.mxu0 %v1380
  %1928 = vmatpush.bf16.msra.mxu0 %v1378
  %1929 = vmatpush.bf16.msra.mxu0 %v1376
  %1930 = vmatpush.bf16.msra.mxu0 %v1374
  %1931 = vmatpush.bf16.msra.mxu0 %v1372
  %1932 = vmatmul.bf16.gmra.mxu0 %v352
  %v1933 = vpop.f32.mrf.mxu0
  %v1934 = vadd.f32 %v1921, %v1933
  %v1935 = vpop.f32.mrf.mxu0
  %1936 = vdwg.mxu0
  %1937 = vmatpush.bf16.msra.mxu0 %v1402
  %1938 = vmatpush.bf16.msra.mxu0 %v1400
  %1939 = vmatpush.bf16.msra.mxu0 %v1398
  %1940 = vmatpush.bf16.msra.mxu0 %v1396
  %1941 = vmatpush.bf16.msra.mxu0 %v1394
  %1942 = vmatpush.bf16.msra.mxu0 %v1392
  %1943 = vmatpush.bf16.msra.mxu0 %v1390
  %1944 = vmatpush.bf16.msra.mxu0 %v1388
  %1945 = vmatmul.bf16.gmra.mxu0 %v353
  %v1946 = vpop.f32.mrf.mxu0
  %v1947 = vadd.f32 %v1934, %v1946
  %v1948 = vpop.f32.mrf.mxu0
  %1949 = vdwg.mxu0
  %1950 = vmatpush.bf16.msra.mxu0 %v1418
  %1951 = vmatpush.bf16.msra.mxu0 %v1416
  %1952 = vmatpush.bf16.msra.mxu0 %v1414
  %1953 = vmatpush.bf16.msra.mxu0 %v1412
  %1954 = vmatpush.bf16.msra.mxu0 %v1410
  %1955 = vmatpush.bf16.msra.mxu0 %v1408
  %1956 = vmatpush.bf16.msra.mxu0 %v1406
  %1957 = vmatpush.bf16.msra.mxu0 %v1404
  %1958 = vmatmul.bf16.gmra.mxu0 %v354
  %v1959 = vpop.f32.mrf.mxu0
  %v1960 = vadd.f32 %v1947, %v1959
  %v1961 = vpop.f32.mrf.mxu0
  %1962 = vdwg.mxu0
  %1963 = vmatpush.bf16.msra.mxu0 %v1434
  %1964 = vmatpush.bf16.msra.mxu0 %v1432
  %1965 = vmatpush.bf16.msra.mxu0 %v1430
  %1966 = vmatpush.bf16.msra.mxu0 %v1428
  %1967 = vmatpush.bf16.msra.mxu0 %v1426
  %1968 = vmatpush.bf16.msra.mxu0 %v1424
  %1969 = vmatpush.bf16.msra.mxu0 %v1422
  %1970 = vmatpush.bf16.msra.mxu0 %v1420
  %1971 = vmatmul.bf16.gmra.mxu0 %v355
  %v1972 = vpop.f32.mrf.mxu0
  %v1973 = vadd.f32 %v1960, %v1972
  %v1974 = vpop.f32.mrf.mxu0
  %1975 = vdwg.mxu0
  %1976 = vmatpush.bf16.msra.mxu0 %v1450
  %1977 = vmatpush.bf16.msra.mxu0 %v1448
  %1978 = vmatpush.bf16.msra.mxu0 %v1446
  %1979 = vmatpush.bf16.msra.mxu0 %v1444
  %1980 = vmatpush.bf16.msra.mxu0 %v1442
  %1981 = vmatpush.bf16.msra.mxu0 %v1440
  %1982 = vmatpush.bf16.msra.mxu0 %v1438
  %1983 = vmatpush.bf16.msra.mxu0 %v1436
  %1984 = vmatmul.bf16.gmra.mxu0 %v356
  %v1985 = vpop.f32.mrf.mxu0
  %v1986 = vadd.f32 %v1973, %v1985
  %v1987 = vpop.f32.mrf.mxu0
  %1988 = vdwg.mxu0
  %1989 = vmatpush.bf16.msra.mxu0 %v1466
  %1990 = vmatpush.bf16.msra.mxu0 %v1464
  %1991 = vmatpush.bf16.msra.mxu0 %v1462
  %1992 = vmatpush.bf16.msra.mxu0 %v1460
  %1993 = vmatpush.bf16.msra.mxu0 %v1458
  %1994 = vmatpush.bf16.msra.mxu0 %v1456
  %1995 = vmatpush.bf16.msra.mxu0 %v1454
  %1996 = vmatpush.bf16.msra.mxu0 %v1452
  %1997 = vmatmul.bf16.gmra.mxu0 %v357
  %v1998 = vpop.f32.mrf.mxu0
  %v1999 = vadd.f32 %v1986, %v1998
  %v2000 = vpop.f32.mrf.mxu0
  %2001 = vdwg.mxu0
  %2002 = vmatpush.bf16.msra.mxu0 %v1482
  %2003 = vmatpush.bf16.msra.mxu0 %v1480
  %2004 = vmatpush.bf16.msra.mxu0 %v1478
  %2005 = vmatpush.bf16.msra.mxu0 %v1476
  %2006 = vmatpush.bf16.msra.mxu0 %v1474
  %2007 = vmatpush.bf16.msra.mxu0 %v1472
  %2008 = vmatpush.bf16.msra.mxu0 %v1470
  %2009 = vmatpush.bf16.msra.mxu0 %v1468
  %2010 = vmatmul.bf16.gmra.mxu0 %v358
  %v2011 = vpop.f32.mrf.mxu0
  %v2012 = vadd.f32 %v1999, %v2011
  %v2013 = vpop.f32.mrf.mxu0
  %2014 = vdwg.mxu0
  %2015 = vmatpush.bf16.msra.mxu0 %v1498
  %2016 = vmatpush.bf16.msra.mxu0 %v1496
  %2017 = vmatpush.bf16.msra.mxu0 %v1494
  %2018 = vmatpush.bf16.msra.mxu0 %v1492
  %2019 = vmatpush.bf16.msra.mxu0 %v1490
  %2020 = vmatpush.bf16.msra.mxu0 %v1488
  %2021 = vmatpush.bf16.msra.mxu0 %v1486
  %2022 = vmatpush.bf16.msra.mxu0 %v1484
  %2023 = vmatmul.bf16.gmra.mxu0 %v359
  %v2024 = vpop.f32.mrf.mxu0
  %v2025 = vadd.f32 %v2012, %v2024
  %v2026 = vpop.f32.mrf.mxu0
  %2027 = vdwg.mxu0
  %2028 = vmatpush.bf16.msra.mxu0 %v1514
  %2029 = vmatpush.bf16.msra.mxu0 %v1512
  %2030 = vmatpush.bf16.msra.mxu0 %v1510
  %2031 = vmatpush.bf16.msra.mxu0 %v1508
  %2032 = vmatpush.bf16.msra.mxu0 %v1506
  %2033 = vmatpush.bf16.msra.mxu0 %v1504
  %2034 = vmatpush.bf16.msra.mxu0 %v1502
  %2035 = vmatpush.bf16.msra.mxu0 %v1500
  %2036 = vmatmul.bf16.gmra.mxu0 %v360
  %v2037 = vpop.f32.mrf.mxu0
  %v2038 = vadd.f32 %v2025, %v2037
  %v2039 = vpop.f32.mrf.mxu0
  %2040 = vdwg.mxu0
  %2041 = vmatpush.bf16.msra.mxu0 %v1530
  %2042 = vmatpush.bf16.msra.mxu0 %v1528
  %2043 = vmatpush.bf16.msra.mxu0 %v1526
  %2044 = vmatpush.bf16.msra.mxu0 %v1524
  %2045 = vmatpush.bf16.msra.mxu0 %v1522
  %2046 = vmatpush.bf16.msra.mxu0 %v1520
  %2047 = vmatpush.bf16.msra.mxu0 %v1518
  %2048 = vmatpush.bf16.msra.mxu0 %v1516
  %2049 = vmatmul.bf16.gmra.mxu0 %v361
  %v2050 = vpop.f32.mrf.mxu0
  %v2051 = vadd.f32 %v2038, %v2050
  %v2052 = vpop.f32.mrf.mxu0
  %2053 = vdwg.mxu0
  %2054 = vmatpush.bf16.msra.mxu0 %v1259
  %2055 = vmatpush.bf16.msra.mxu0 %v1257
  %2056 = vmatpush.bf16.msra.mxu0 %v1255
  %2057 = vmatpush.bf16.msra.mxu0 %v1253
  %2058 = vmatpush.bf16.msra.mxu0 %v1251
  %2059 = vmatpush.bf16.msra.mxu0 %v1249
  %2060 = vmatpush.bf16.msra.mxu0 %v1247
  %2061 = vmatpush.bf16.msra.mxu0 %v1245
  %2062 = vmatmul.bf16.gmra.mxu0 %v344
  %v2063 = vpop.f32.mrf.mxu0
  %v2064 = vadd.f32 %v314, %v2063
  %v2065 = vpop.f32.mrf.mxu0
  %2066 = vdwg.mxu0
  %2067 = vmatpush.bf16.msra.mxu0 %v1275
  %2068 = vmatpush.bf16.msra.mxu0 %v1273
  %2069 = vmatpush.bf16.msra.mxu0 %v1271
  %2070 = vmatpush.bf16.msra.mxu0 %v1269
  %2071 = vmatpush.bf16.msra.mxu0 %v1267
  %2072 = vmatpush.bf16.msra.mxu0 %v1265
  %2073 = vmatpush.bf16.msra.mxu0 %v1263
  %2074 = vmatpush.bf16.msra.mxu0 %v1261
  %2075 = vmatmul.bf16.gmra.mxu0 %v345
  %v2076 = vpop.f32.mrf.mxu0
  %v2077 = vadd.f32 %v2064, %v2076
  %v2078 = vpop.f32.mrf.mxu0
  %2079 = vdwg.mxu0
  %2080 = vmatpush.bf16.msra.mxu0 %v1291
  %2081 = vmatpush.bf16.msra.mxu0 %v1289
  %2082 = vmatpush.bf16.msra.mxu0 %v1287
  %2083 = vmatpush.bf16.msra.mxu0 %v1285
  %2084 = vmatpush.bf16.msra.mxu0 %v1283
  %2085 = vmatpush.bf16.msra.mxu0 %v1281
  %2086 = vmatpush.bf16.msra.mxu0 %v1279
  %2087 = vmatpush.bf16.msra.mxu0 %v1277
  %2088 = vmatmul.bf16.gmra.mxu0 %v346
  %v2089 = vpop.f32.mrf.mxu0
  %v2090 = vadd.f32 %v2077, %v2089
  %v2091 = vpop.f32.mrf.mxu0
  %2092 = vdwg.mxu0
  %2093 = vmatpush.bf16.msra.mxu0 %v1307
  %2094 = vmatpush.bf16.msra.mxu0 %v1305
  %2095 = vmatpush.bf16.msra.mxu0 %v1303
  %2096 = vmatpush.bf16.msra.mxu0 %v1301
  %2097 = vmatpush.bf16.msra.mxu0 %v1299
  %2098 = vmatpush.bf16.msra.mxu0 %v1297
  %2099 = vmatpush.bf16.msra.mxu0 %v1295
  %2100 = vmatpush.bf16.msra.mxu0 %v1293
  %2101 = vmatmul.bf16.gmra.mxu0 %v347
  %v2102 = vpop.f32.mrf.mxu0
  %v2103 = vadd.f32 %v2090, %v2102
  %v2104 = vpop.f32.mrf.mxu0
  %2105 = vdwg.mxu0
  %2106 = vmatpush.bf16.msra.mxu0 %v1323
  %2107 = vmatpush.bf16.msra.mxu0 %v1321
  %2108 = vmatpush.bf16.msra.mxu0 %v1319
  %2109 = vmatpush.bf16.msra.mxu0 %v1317
  %2110 = vmatpush.bf16.msra.mxu0 %v1315
  %2111 = vmatpush.bf16.msra.mxu0 %v1313
  %2112 = vmatpush.bf16.msra.mxu0 %v1311
  %2113 = vmatpush.bf16.msra.mxu0 %v1309
  %2114 = vmatmul.bf16.gmra.mxu0 %v348
  %v2115 = vpop.f32.mrf.mxu0
  %v2116 = vadd.f32 %v2103, %v2115
  %v2117 = vpop.f32.mrf.mxu0
  %2118 = vdwg.mxu0
  %2119 = vmatpush.bf16.msra.mxu0 %v1339
  %2120 = vmatpush.bf16.msra.mxu0 %v1337
  %2121 = vmatpush.bf16.msra.mxu0 %v1335
  %2122 = vmatpush.bf16.msra.mxu0 %v1333
  %2123 = vmatpush.bf16.msra.mxu0 %v1331
  %2124 = vmatpush.bf16.msra.mxu0 %v1329
  %2125 = vmatpush.bf16.msra.mxu0 %v1327
  %2126 = vmatpush.bf16.msra.mxu0 %v1325
  %2127 = vmatmul.bf16.gmra.mxu0 %v349
  %v2128 = vpop.f32.mrf.mxu0
  %v2129 = vadd.f32 %v2116, %v2128
  %v2130 = vpop.f32.mrf.mxu0
  %2131 = vdwg.mxu0
  %2132 = vmatpush.bf16.msra.mxu0 %v1355
  %2133 = vmatpush.bf16.msra.mxu0 %v1353
  %2134 = vmatpush.bf16.msra.mxu0 %v1351
  %2135 = vmatpush.bf16.msra.mxu0 %v1349
  %2136 = vmatpush.bf16.msra.mxu0 %v1347
  %2137 = vmatpush.bf16.msra.mxu0 %v1345
  %2138 = vmatpush.bf16.msra.mxu0 %v1343
  %2139 = vmatpush.bf16.msra.mxu0 %v1341
  %2140 = vmatmul.bf16.gmra.mxu0 %v350
  %v2141 = vpop.f32.mrf.mxu0
  %v2142 = vadd.f32 %v2129, %v2141
  %v2143 = vpop.f32.mrf.mxu0
  %2144 = vdwg.mxu0
  %2145 = vmatpush.bf16.msra.mxu0 %v1371
  %2146 = vmatpush.bf16.msra.mxu0 %v1369
  %2147 = vmatpush.bf16.msra.mxu0 %v1367
  %2148 = vmatpush.bf16.msra.mxu0 %v1365
  %2149 = vmatpush.bf16.msra.mxu0 %v1363
  %2150 = vmatpush.bf16.msra.mxu0 %v1361
  %2151 = vmatpush.bf16.msra.mxu0 %v1359
  %2152 = vmatpush.bf16.msra.mxu0 %v1357
  %2153 = vmatmul.bf16.gmra.mxu0 %v351
  %v2154 = vpop.f32.mrf.mxu0
  %v2155 = vadd.f32 %v2142, %v2154
  %v2156 = vpop.f32.mrf.mxu0
  %2157 = vdwg.mxu0
  %2158 = vmatpush.bf16.msra.mxu0 %v1387
  %2159 = vmatpush.bf16.msra.mxu0 %v1385
  %2160 = vmatpush.bf16.msra.mxu0 %v1383
  %2161 = vmatpush.bf16.msra.mxu0 %v1381
  %2162 = vmatpush.bf16.msra.mxu0 %v1379
  %2163 = vmatpush.bf16.msra.mxu0 %v1377
  %2164 = vmatpush.bf16.msra.mxu0 %v1375
  %2165 = vmatpush.bf16.msra.mxu0 %v1373
  %2166 = vmatmul.bf16.gmra.mxu0 %v352
  %v2167 = vpop.f32.mrf.mxu0
  %v2168 = vadd.f32 %v2155, %v2167
  %v2169 = vpop.f32.mrf.mxu0
  %2170 = vdwg.mxu0
  %2171 = vmatpush.bf16.msra.mxu0 %v1403
  %2172 = vmatpush.bf16.msra.mxu0 %v1401
  %2173 = vmatpush.bf16.msra.mxu0 %v1399
  %2174 = vmatpush.bf16.msra.mxu0 %v1397
  %2175 = vmatpush.bf16.msra.mxu0 %v1395
  %2176 = vmatpush.bf16.msra.mxu0 %v1393
  %2177 = vmatpush.bf16.msra.mxu0 %v1391
  %2178 = vmatpush.bf16.msra.mxu0 %v1389
  %2179 = vmatmul.bf16.gmra.mxu0 %v353
  %v2180 = vpop.f32.mrf.mxu0
  %v2181 = vadd.f32 %v2168, %v2180
  %v2182 = vpop.f32.mrf.mxu0
  %2183 = vdwg.mxu0
  %2184 = vmatpush.bf16.msra.mxu0 %v1419
  %2185 = vmatpush.bf16.msra.mxu0 %v1417
  %2186 = vmatpush.bf16.msra.mxu0 %v1415
  %2187 = vmatpush.bf16.msra.mxu0 %v1413
  %2188 = vmatpush.bf16.msra.mxu0 %v1411
  %2189 = vmatpush.bf16.msra.mxu0 %v1409
  %2190 = vmatpush.bf16.msra.mxu0 %v1407
  %2191 = vmatpush.bf16.msra.mxu0 %v1405
  %2192 = vmatmul.bf16.gmra.mxu0 %v354
  %v2193 = vpop.f32.mrf.mxu0
  %v2194 = vadd.f32 %v2181, %v2193
  %v2195 = vpop.f32.mrf.mxu0
  %2196 = vdwg.mxu0
  %2197 = vmatpush.bf16.msra.mxu0 %v1435
  %2198 = vmatpush.bf16.msra.mxu0 %v1433
  %2199 = vmatpush.bf16.msra.mxu0 %v1431
  %2200 = vmatpush.bf16.msra.mxu0 %v1429
  %2201 = vmatpush.bf16.msra.mxu0 %v1427
  %2202 = vmatpush.bf16.msra.mxu0 %v1425
  %2203 = vmatpush.bf16.msra.mxu0 %v1423
  %2204 = vmatpush.bf16.msra.mxu0 %v1421
  %2205 = vmatmul.bf16.gmra.mxu0 %v355
  %v2206 = vpop.f32.mrf.mxu0
  %v2207 = vadd.f32 %v2194, %v2206
  %v2208 = vpop.f32.mrf.mxu0
  %2209 = vdwg.mxu0
  %2210 = vmatpush.bf16.msra.mxu0 %v1451
  %2211 = vmatpush.bf16.msra.mxu0 %v1449
  %2212 = vmatpush.bf16.msra.mxu0 %v1447
  %2213 = vmatpush.bf16.msra.mxu0 %v1445
  %2214 = vmatpush.bf16.msra.mxu0 %v1443
  %2215 = vmatpush.bf16.msra.mxu0 %v1441
  %2216 = vmatpush.bf16.msra.mxu0 %v1439
  %2217 = vmatpush.bf16.msra.mxu0 %v1437
  %2218 = vmatmul.bf16.gmra.mxu0 %v356
  %v2219 = vpop.f32.mrf.mxu0
  %v2220 = vadd.f32 %v2207, %v2219
  %v2221 = vpop.f32.mrf.mxu0
  %2222 = vdwg.mxu0
  %2223 = vmatpush.bf16.msra.mxu0 %v1467
  %2224 = vmatpush.bf16.msra.mxu0 %v1465
  %2225 = vmatpush.bf16.msra.mxu0 %v1463
  %2226 = vmatpush.bf16.msra.mxu0 %v1461
  %2227 = vmatpush.bf16.msra.mxu0 %v1459
  %2228 = vmatpush.bf16.msra.mxu0 %v1457
  %2229 = vmatpush.bf16.msra.mxu0 %v1455
  %2230 = vmatpush.bf16.msra.mxu0 %v1453
  %2231 = vmatmul.bf16.gmra.mxu0 %v357
  %v2232 = vpop.f32.mrf.mxu0
  %v2233 = vadd.f32 %v2220, %v2232
  %v2234 = vpop.f32.mrf.mxu0
  %2235 = vdwg.mxu0
  %2236 = vmatpush.bf16.msra.mxu0 %v1483
  %2237 = vmatpush.bf16.msra.mxu0 %v1481
  %2238 = vmatpush.bf16.msra.mxu0 %v1479
  %2239 = vmatpush.bf16.msra.mxu0 %v1477
  %2240 = vmatpush.bf16.msra.mxu0 %v1475
  %2241 = vmatpush.bf16.msra.mxu0 %v1473
  %2242 = vmatpush.bf16.msra.mxu0 %v1471
  %2243 = vmatpush.bf16.msra.mxu0 %v1469
  %2244 = vmatmul.bf16.gmra.mxu0 %v358
  %v2245 = vpop.f32.mrf.mxu0
  %v2246 = vadd.f32 %v2233, %v2245
  %v2247 = vpop.f32.mrf.mxu0
  %2248 = vdwg.mxu0
  %2249 = vmatpush.bf16.msra.mxu0 %v1499
  %2250 = vmatpush.bf16.msra.mxu0 %v1497
  %2251 = vmatpush.bf16.msra.mxu0 %v1495
  %2252 = vmatpush.bf16.msra.mxu0 %v1493
  %2253 = vmatpush.bf16.msra.mxu0 %v1491
  %2254 = vmatpush.bf16.msra.mxu0 %v1489
  %2255 = vmatpush.bf16.msra.mxu0 %v1487
  %2256 = vmatpush.bf16.msra.mxu0 %v1485
  %2257 = vmatmul.bf16.gmra.mxu0 %v359
  %v2258 = vpop.f32.mrf.mxu0
  %v2259 = vadd.f32 %v2246, %v2258
  %v2260 = vpop.f32.mrf.mxu0
  %2261 = vdwg.mxu0
  %2262 = vmatpush.bf16.msra.mxu0 %v1515
  %2263 = vmatpush.bf16.msra.mxu0 %v1513
  %2264 = vmatpush.bf16.msra.mxu0 %v1511
  %2265 = vmatpush.bf16.msra.mxu0 %v1509
  %2266 = vmatpush.bf16.msra.mxu0 %v1507
  %2267 = vmatpush.bf16.msra.mxu0 %v1505
  %2268 = vmatpush.bf16.msra.mxu0 %v1503
  %2269 = vmatpush.bf16.msra.mxu0 %v1501
  %2270 = vmatmul.bf16.gmra.mxu0 %v360
  %v2271 = vpop.f32.mrf.mxu0
  %v2272 = vadd.f32 %v2259, %v2271
  %v2273 = vpop.f32.mrf.mxu0
  %2274 = vdwg.mxu0
  %2275 = vmatpush.bf16.msra.mxu0 %v1531
  %2276 = vmatpush.bf16.msra.mxu0 %v1529
  %2277 = vmatpush.bf16.msra.mxu0 %v1527
  %2278 = vmatpush.bf16.msra.mxu0 %v1525
  %2279 = vmatpush.bf16.msra.mxu0 %v1523
  %2280 = vmatpush.bf16.msra.mxu0 %v1521
  %2281 = vmatpush.bf16.msra.mxu0 %v1519
  %2282 = vmatpush.bf16.msra.mxu0 %v1517
  %2283 = vmatmul.bf16.gmra.mxu0 %v361
  %v2284 = vpop.f32.mrf.mxu0
  %v2285 = vadd.f32 %v2272, %v2284
  %v2286 = vpop.f32.mrf.mxu0
  %2287 = vdwg.mxu0
  %v2288 = vmax.f32 %v2051, 0.0
  %v2289 = vmax.f32 %v2285, 0.0
  %v2290 = vpack.c.bf16 %v2289, %v2288
  %2291 = vst [vmem:[%s3] sm:$0xff] %v2290
  // Predicated region
  $region14: #{resnet_encoder_forward.28} parent=0 // pred_check
    _
  $region15: #{resnet_encoder_forward.28} parent=0 // pred_check_branch
    %2293 = sbr.rel (0) target = $region17
  $region16: #{resnet_encoder_forward.28} parent=0 // pred_region
    _
  $region17: #{resnet_encoder_forward.28} parent=0 // pred_fallthru
    _
  // Predicated region
  $region18: #{resnet_encoder_forward.28} parent=0 // pred_check
    _
  $region19: #{resnet_encoder_forward.28} parent=0 // pred_check_branch
    %2295 = sbr.rel (0) target = $region21
  $region20: #{resnet_encoder_forward.28} parent=0 // pred_region
    _
  $region21: #{resnet_encoder_forward.28} parent=0 // pred_fallthru
    _

</llo_original>
